<compile_context>
chip_gen: v6e
topology: v6e:2x2x1
jax: 0.10.0
libtpu: 0.0.40
codegen_flags: <defaults>
</compile_context>

<pallas_src>
import math

import jax
import jax.numpy as jnp
from jax.experimental import pallas as pl
from jax.experimental.pallas import tpu as pltpu

CLIP_SIZE = 512      # ViT-B/32 output_dim
HIDDEN = 512
EXPAND = HIDDEN * 4  # 2048
BN_EPS = 1e-5


def _gelu_exact(x):
    # PyTorch nn.GELU() default: exact erf-based GELU (kept in f32).
    return 0.5 * x * (1.0 + jax.lax.erf(x * (1.0 / math.sqrt(2.0))))


def _round_up(n, m):
    return ((n + m - 1) // m) * m


# ----------------------------------------------------------------------------
# Pallas kernel: fused regression head (BN already folded into first Linear).
# ----------------------------------------------------------------------------
def _mlp_head_kernel(
    f_ref,     # [TB, CLIP_SIZE]  features (f32)
    w1_ref,    # [CLIP_SIZE, HIDDEN]  bf16 (BN-folded)
    b1_ref,    # [1, HIDDEN]          f32  (BN-folded)
    wr1_ref,   # [HIDDEN, EXPAND]     bf16
    br1_ref,   # [1, EXPAND]          f32
    wr2_ref,   # [EXPAND, HIDDEN]     bf16
    br2_ref,   # [1, HIDDEN]          f32
    wo_ref,    # [1, HIDDEN]          f32  (final Linear weight as a row)
    bo_ref,    # [1, 1]               f32
    out_ref,   # [TB, 1]              f32
):
    x = f_ref[...].astype(jnp.bfloat16)

    # Linear(clip_size, 512) + folded BatchNorm1d (eval mode)
    h = jnp.dot(x, w1_ref[...], preferred_element_type=jnp.float32) + b1_ref[...]
    h = _gelu_exact(h)  # f32

    # ResidualBlock(512): h + Linear(512,2048) -> GELU -> Linear(2048,512) -> Dropout(id)
    r = jnp.dot(h.astype(jnp.bfloat16), wr1_ref[...],
                preferred_element_type=jnp.float32) + br1_ref[...]
    r = _gelu_exact(r)
    r = jnp.dot(r.astype(jnp.bfloat16), wr2_ref[...],
                preferred_element_type=jnp.float32) + br2_ref[...]
    h = h + r

    # Dropout(0.3) -> identity in eval mode; Linear(512, 1) as a lane reduction
    # (avoids an N=1 MXU matmul that would waste the MXU output width).
    out = jnp.sum(h * wo_ref[...], axis=-1, keepdims=True) + bo_ref[...]
    out_ref[...] = out


def _resident_spec(shape):
    # Weight / bias spec: full array, constant block index -> stays VMEM-resident
    # across all batch-grid steps.  Fresh closure per call (no late-binding bug).
    n = len(shape)
    return pl.BlockSpec(shape, lambda i: (0,) * n)


def prepare_head_params(params):
    """Fold eval-mode BatchNorm into the first Linear and cast big weights to bf16."""
    inv_std = jax.lax.rsqrt(params["bn_var"] + BN_EPS)        # [1, HIDDEN]
    scale = params["bn_gamma"] * inv_std                      # [1, HIDDEN]
    w1f = (params["w1"] * scale).astype(jnp.bfloat16)         # [CLIP_SIZE, HIDDEN]
    b1f = (params["b1"] - params["bn_mean"]) * scale + params["bn_beta"]
    return {
        "w1f": w1f,
        "b1f": b1f.astype(jnp.float32),
        "wr1": params["wr1"].astype(jnp.bfloat16),
        "br1": params["br1"].astype(jnp.float32),
        "wr2": params["wr2"].astype(jnp.bfloat16),
        "br2": params["br2"].astype(jnp.float32),
        # Final Linear(512,1) weight as a [1, HIDDEN] row for the lane reduction.
        "wo_row": params["wo"].reshape(1, HIDDEN).astype(jnp.float32),
        "bo": params["bo"].astype(jnp.float32),
    }


def aesclip_reg_head(features, head_params, *, tile_b=256):
    """Run the regression head Pallas kernel. features: [B, CLIP_SIZE] f32 -> [B]."""
    B = features.shape[0]
    hp = head_params

    # Batch tiling: tile must be a multiple of 8 (sublane); pad B if needed.
    tb = min(tile_b, _round_up(B, 8))
    Bp = _round_up(B, tb)
    if Bp != B:
        features = jnp.pad(features, ((0, Bp - B), (0, 0)))
    grid = (Bp // tb,)

    weight_args = (hp["w1f"], hp["b1f"], hp["wr1"], hp["br1"],
                   hp["wr2"], hp["br2"], hp["wo_row"], hp["bo"])

    in_specs = [pl.BlockSpec((tb, CLIP_SIZE), lambda i: (i, 0))]
    in_specs += [_resident_spec(w.shape) for w in weight_args]
    out_specs = pl.BlockSpec((tb, 1), lambda i: (i, 0))

    # Advisory cost hint for the XLA scheduler.
    flops = 2 * Bp * (CLIP_SIZE * HIDDEN + HIDDEN * EXPAND + EXPAND * HIDDEN + HIDDEN)
    transcendentals = Bp * (HIDDEN + EXPAND)
    bytes_accessed = (
        sum(int(w.size) * w.dtype.itemsize for w in weight_args)
        + Bp * CLIP_SIZE * features.dtype.itemsize
        + Bp * 4
    )
    cost = pl.CostEstimate(flops=flops, transcendentals=transcendentals,
                           bytes_accessed=bytes_accessed)

    out = pl.pallas_call(
        _mlp_head_kernel,
        out_shape=jax.ShapeDtypeStruct((Bp, 1), jnp.float32),
        grid=grid,
        in_specs=in_specs,
        out_specs=out_specs,
        compiler_params=pltpu.CompilerParams(
            dimension_semantics=("parallel",),        # v7x: shard batch tiles over 2 TCs
            vmem_limit_bytes=32 * 1024 * 1024,        # < v7x 64 MiB physical VMEM
        ),
        cost_estimate=cost,
    )(features, *weight_args)

    return out[:B, 0]  # .squeeze(dim=-1)


# ----------------------------------------------------------------------------
# Parameter init (mirrors the PyTorch module's shapes / init_weights) and the
# CLIP-encoder stand-in.
# ----------------------------------------------------------------------------
def init_params(key):
    """PyTorch nn.Linear stores weight as [out,in]; here we keep the transposed
    [in,out] layout so the kernel computes x @ W directly.  Kaiming-normal
    (fan_in, relu gain) with bias=6.0 for the two top-level Linears (init_weights);
    default-style init for the ResidualBlock linears."""
    ks = jax.random.split(key, 6)

    def kaiming(k, fan_in, shape):
        std = math.sqrt(2.0 / fan_in)
        return std * jax.random.normal(k, shape, jnp.float32)

    params = {
        "w1": kaiming(ks[0], CLIP_SIZE, (CLIP_SIZE, HIDDEN)),
        "b1": jnp.full((1, HIDDEN), 6.0, jnp.float32),
        # BatchNorm1d(512) defaults: gamma=1, beta=0, running_mean=0, running_var=1
        "bn_gamma": jnp.ones((1, HIDDEN), jnp.float32),
        "bn_beta": jnp.zeros((1, HIDDEN), jnp.float32),
        "bn_mean": jnp.zeros((1, HIDDEN), jnp.float32),
        "bn_var": jnp.ones((1, HIDDEN), jnp.float32),
        "wr1": (1.0 / math.sqrt(HIDDEN)) * jax.random.normal(ks[1], (HIDDEN, EXPAND), jnp.float32),
        "br1": jnp.zeros((1, EXPAND), jnp.float32),
        "wr2": (1.0 / math.sqrt(EXPAND)) * jax.random.normal(ks[2], (EXPAND, HIDDEN), jnp.float32),
        "br2": jnp.zeros((1, HIDDEN), jnp.float32),
        "wo": kaiming(ks[3], HIDDEN, (HIDDEN, 1)),
        "bo": jnp.full((1, 1), 6.0, jnp.float32),
    }
    # Stand-in "CLIP encoder" projection (deterministic) — plain-JAX glue.
    params["enc_w"] = 0.02 * jax.random.normal(ks[4], (3 * 16 * 16, CLIP_SIZE), jnp.float32)
    return params


def encode_image_standin(x_nchw, enc_w):
    # Plain-JAX glue standing in for aesclip.encode_image(x).float()
    B = x_nchw.shape[0]
    flat = x_nchw.reshape(B, -1).astype(jnp.float32)
    return flat @ enc_w  # [B, CLIP_SIZE]


def aesclip_reg_forward(x_nchw, params, head_params):
    features = encode_image_standin(x_nchw, params["enc_w"])
    return aesclip_reg_head(features, head_params)


# Plain-JAX reference of the head using the SAME prepared (bf16-folded) params,
# so the kernel can be checked tightly against identical math.
def head_reference(features, hp):
    h = jnp.dot(features.astype(jnp.bfloat16), hp["w1f"],
                preferred_element_type=jnp.float32) + hp["b1f"]
    h = _gelu_exact(h)
    r = jnp.dot(h.astype(jnp.bfloat16), hp["wr1"],
                preferred_element_type=jnp.float32) + hp["br1"]
    r = _gelu_exact(r)
    r = jnp.dot(r.astype(jnp.bfloat16), hp["wr2"],
                preferred_element_type=jnp.float32) + hp["br2"]
    h = h + r
    return jnp.sum(h * hp["wo_row"], axis=-1) + hp["bo"][0, 0]


if __name__ == "__main__":
    key = jax.random.PRNGKey(0)
    k_img, k_par = jax.random.split(key)

    B, C, H, W = 8, 3, 16, 16
    x = jax.random.normal(k_img, (B, C, H, W), jnp.float32)  # NCHW like PyTorch
    params = init_params(k_par)
    head_params = prepare_head_params(params)

    scores = aesclip_reg_forward(x, params, head_params)
    scores = jax.block_until_ready(scores)
    assert scores.shape == (B,), scores.shape

    # Correctness check against a plain-JAX reference using identical bf16 weights.
    feats = encode_image_standin(x, params["enc_w"])
    ref = head_reference(feats, head_params)
    assert jnp.allclose(scores, ref, rtol=1e-3, atol=1e-2), (scores, ref)

    print("KERNEL_OK")
</pallas_src>

<mosaic_0001>
module attributes {stable_mosaic.version = 11 : i64} {
  func.func @_mlp_head_kernel(%arg0: i32, %arg1: memref<8x512xf32, #tpu.memory_space<vmem>>, %arg2: memref<512x512xbf16, #tpu.memory_space<vmem>>, %arg3: memref<1x512xf32, #tpu.memory_space<vmem>>, %arg4: memref<512x2048xbf16, #tpu.memory_space<vmem>>, %arg5: memref<1x2048xf32, #tpu.memory_space<vmem>>, %arg6: memref<2048x512xbf16, #tpu.memory_space<vmem>>, %arg7: memref<1x512xf32, #tpu.memory_space<vmem>>, %arg8: memref<1x512xf32, #tpu.memory_space<vmem>>, %arg9: memref<1x1xf32, #tpu.memory_space<vmem>>, %arg10: memref<8x1xf32, #tpu.memory_space<vmem>>) attributes {dimension_semantics = [#tpu.dimension_semantics<parallel>], iteration_bounds = array<i64: 1>, scalar_prefetch = 0 : i64, scratch_operands = 0 : i64, tpu.core_type = #tpu.core_type<tc>, window_params = [{transform_indices = @transform_0, window_bounds = array<i64: 8, 512>}, {pipeline_mode = #tpu.pipeline_mode<synchronous>, transform_indices = @transform_1, window_bounds = array<i64: 512, 512>}, {pipeline_mode = #tpu.pipeline_mode<synchronous>, transform_indices = @transform_2, window_bounds = array<i64: 1, 512>}, {pipeline_mode = #tpu.pipeline_mode<synchronous>, transform_indices = @transform_3, window_bounds = array<i64: 512, 2048>}, {pipeline_mode = #tpu.pipeline_mode<synchronous>, transform_indices = @transform_4, window_bounds = array<i64: 1, 2048>}, {pipeline_mode = #tpu.pipeline_mode<synchronous>, transform_indices = @transform_5, window_bounds = array<i64: 2048, 512>}, {pipeline_mode = #tpu.pipeline_mode<synchronous>, transform_indices = @transform_6, window_bounds = array<i64: 1, 512>}, {pipeline_mode = #tpu.pipeline_mode<synchronous>, transform_indices = @transform_7, window_bounds = array<i64: 1, 512>}, {pipeline_mode = #tpu.pipeline_mode<synchronous>, transform_indices = @transform_8, window_bounds = array<i64: 1, 1>}, {transform_indices = @transform_9, window_bounds = array<i64: 8, 1>}]} {
    %c0 = arith.constant 0 : index
    %c0_0 = arith.constant 0 : index
    %0 = vector.load %arg1[%c0, %c0_0] : memref<8x512xf32, #tpu.memory_space<vmem>>, vector<8x512xf32>
    %1 = arith.truncf %0 : vector<8x512xf32> to vector<8x512xbf16>
    %c0_1 = arith.constant 0 : index
    %c0_2 = arith.constant 0 : index
    %2 = vector.load %arg2[%c0_1, %c0_2] : memref<512x512xbf16, #tpu.memory_space<vmem>>, vector<512x512xbf16>
    %cst = arith.constant dense<0.000000e+00> : vector<8x512xf32>
    %3 = tpu.matmul %1, %2, %cst {dimension_numbers = #tpu.dot_dimension_numbers<[1], [0], [0], [1], [0, 0, 1, 1], [], []>} : vector<8x512xbf16>, vector<512x512xbf16>, vector<8x512xf32> -> vector<8x512xf32>
    %c0_3 = arith.constant 0 : index
    %c0_4 = arith.constant 0 : index
    %4 = vector.load %arg3[%c0_3, %c0_4] : memref<1x512xf32, #tpu.memory_space<vmem>>, vector<1x512xf32>
    %5 = vector.broadcast %4 : vector<1x512xf32> to vector<8x512xf32>
    %6 = arith.addf %3, %5 : vector<8x512xf32>
    %cst_5 = arith.constant 5.000000e-01 : f32
    %7 = vector.broadcast %cst_5 : f32 to vector<8x512xf32>
    %8 = arith.mulf %7, %6 : vector<8x512xf32>
    %cst_6 = arith.constant 0.707106769 : f32
    %9 = vector.broadcast %cst_6 : f32 to vector<8x512xf32>
    %10 = arith.mulf %6, %9 : vector<8x512xf32>
    %11 = math.erf %10 : vector<8x512xf32>
    %cst_7 = arith.constant 1.000000e+00 : f32
    %12 = vector.broadcast %cst_7 : f32 to vector<8x512xf32>
    %13 = arith.addf %12, %11 : vector<8x512xf32>
    %14 = arith.mulf %8, %13 : vector<8x512xf32>
    %15 = arith.truncf %14 : vector<8x512xf32> to vector<8x512xbf16>
    %c0_8 = arith.constant 0 : index
    %c0_9 = arith.constant 0 : index
    %16 = vector.load %arg4[%c0_8, %c0_9] : memref<512x2048xbf16, #tpu.memory_space<vmem>>, vector<512x2048xbf16>
    %cst_10 = arith.constant dense<0.000000e+00> : vector<8x2048xf32>
    %17 = tpu.matmul %15, %16, %cst_10 {dimension_numbers = #tpu.dot_dimension_numbers<[1], [0], [0], [1], [0, 0, 1, 1], [], []>} : vector<8x512xbf16>, vector<512x2048xbf16>, vector<8x2048xf32> -> vector<8x2048xf32>
    %c0_11 = arith.constant 0 : index
    %c0_12 = arith.constant 0 : index
    %18 = vector.load %arg5[%c0_11, %c0_12] : memref<1x2048xf32, #tpu.memory_space<vmem>>, vector<1x2048xf32>
    %19 = vector.broadcast %18 : vector<1x2048xf32> to vector<8x2048xf32>
    %20 = arith.addf %17, %19 : vector<8x2048xf32>
    %cst_13 = arith.constant 5.000000e-01 : f32
    %21 = vector.broadcast %cst_13 : f32 to vector<8x2048xf32>
    %22 = arith.mulf %21, %20 : vector<8x2048xf32>
    %cst_14 = arith.constant 0.707106769 : f32
    %23 = vector.broadcast %cst_14 : f32 to vector<8x2048xf32>
    %24 = arith.mulf %20, %23 : vector<8x2048xf32>
    %25 = math.erf %24 : vector<8x2048xf32>
    %cst_15 = arith.constant 1.000000e+00 : f32
    %26 = vector.broadcast %cst_15 : f32 to vector<8x2048xf32>
    %27 = arith.addf %26, %25 : vector<8x2048xf32>
    %28 = arith.mulf %22, %27 : vector<8x2048xf32>
    %29 = arith.truncf %28 : vector<8x2048xf32> to vector<8x2048xbf16>
    %c0_16 = arith.constant 0 : index
    %c0_17 = arith.constant 0 : index
    %30 = vector.load %arg6[%c0_16, %c0_17] : memref<2048x512xbf16, #tpu.memory_space<vmem>>, vector<2048x512xbf16>
    %cst_18 = arith.constant dense<0.000000e+00> : vector<8x512xf32>
    %31 = tpu.matmul %29, %30, %cst_18 {dimension_numbers = #tpu.dot_dimension_numbers<[1], [0], [0], [1], [0, 0, 1, 1], [], []>} : vector<8x2048xbf16>, vector<2048x512xbf16>, vector<8x512xf32> -> vector<8x512xf32>
    %c0_19 = arith.constant 0 : index
    %c0_20 = arith.constant 0 : index
    %32 = vector.load %arg7[%c0_19, %c0_20] : memref<1x512xf32, #tpu.memory_space<vmem>>, vector<1x512xf32>
    %33 = vector.broadcast %32 : vector<1x512xf32> to vector<8x512xf32>
    %34 = arith.addf %31, %33 : vector<8x512xf32>
    %35 = arith.addf %14, %34 : vector<8x512xf32>
    %c0_21 = arith.constant 0 : index
    %c0_22 = arith.constant 0 : index
    %36 = vector.load %arg8[%c0_21, %c0_22] : memref<1x512xf32, #tpu.memory_space<vmem>>, vector<1x512xf32>
    %37 = vector.broadcast %36 : vector<1x512xf32> to vector<8x512xf32>
    %38 = arith.mulf %35, %37 : vector<8x512xf32>
    %cst_23 = arith.constant dense<0.000000e+00> : vector<8xf32>
    %39 = vector.multi_reduction <add>, %38, %cst_23 [1] : vector<8x512xf32> to vector<8xf32>
    %40 = vector.shape_cast %39 : vector<8xf32> to vector<8x1xf32>
    %c0_24 = arith.constant 0 : index
    %c0_25 = arith.constant 0 : index
    %41 = vector.load %arg9[%c0_24, %c0_25] : memref<1x1xf32, #tpu.memory_space<vmem>>, vector<1x1xf32>
    %42 = vector.broadcast %41 : vector<1x1xf32> to vector<8x1xf32>
    %43 = arith.addf %40, %42 : vector<8x1xf32>
    %c0_26 = arith.constant 0 : index
    %c0_27 = arith.constant 0 : index
    %44 = vector.load %arg10[%c0_26, %c0_27] : memref<8x1xf32, #tpu.memory_space<vmem>>, vector<8x1xf32>
    tpu.vector_store %arg10[%c0_26, %c0_27], %43 {strides = array<i32>} : memref<8x1xf32, #tpu.memory_space<vmem>>, vector<8x1xf32>,
    return
  }
  func.func @transform_0(%arg0: i32) -> (i32, i32) {
    %c0_i32 = arith.constant 0 : i32
    %c0_i32_0 = arith.constant 0 : i32
    return %arg0, %c0_i32 : i32, i32
  }
  func.func @transform_1(%arg0: i32) -> (i32, i32) {
    %c0_i32 = arith.constant 0 : i32
    %c0_i32_0 = arith.constant 0 : i32
    %c0_i32_1 = arith.constant 0 : i32
    return %c0_i32, %c0_i32_0 : i32, i32
  }
  func.func @transform_2(%arg0: i32) -> (i32, i32) {
    %c0_i32 = arith.constant 0 : i32
    %c0_i32_0 = arith.constant 0 : i32
    %c0_i32_1 = arith.constant 0 : i32
    return %c0_i32, %c0_i32_0 : i32, i32
  }
  func.func @transform_3(%arg0: i32) -> (i32, i32) {
    %c0_i32 = arith.constant 0 : i32
    %c0_i32_0 = arith.constant 0 : i32
    %c0_i32_1 = arith.constant 0 : i32
    return %c0_i32, %c0_i32_0 : i32, i32
  }
  func.func @transform_4(%arg0: i32) -> (i32, i32) {
    %c0_i32 = arith.constant 0 : i32
    %c0_i32_0 = arith.constant 0 : i32
    %c0_i32_1 = arith.constant 0 : i32
    return %c0_i32, %c0_i32_0 : i32, i32
  }
  func.func @transform_5(%arg0: i32) -> (i32, i32) {
    %c0_i32 = arith.constant 0 : i32
    %c0_i32_0 = arith.constant 0 : i32
    %c0_i32_1 = arith.constant 0 : i32
    return %c0_i32, %c0_i32_0 : i32, i32
  }
  func.func @transform_6(%arg0: i32) -> (i32, i32) {
    %c0_i32 = arith.constant 0 : i32
    %c0_i32_0 = arith.constant 0 : i32
    %c0_i32_1 = arith.constant 0 : i32
    return %c0_i32, %c0_i32_0 : i32, i32
  }
  func.func @transform_7(%arg0: i32) -> (i32, i32) {
    %c0_i32 = arith.constant 0 : i32
    %c0_i32_0 = arith.constant 0 : i32
    %c0_i32_1 = arith.constant 0 : i32
    return %c0_i32, %c0_i32_0 : i32, i32
  }
  func.func @transform_8(%arg0: i32) -> (i32, i32) {
    %c0_i32 = arith.constant 0 : i32
    %c0_i32_0 = arith.constant 0 : i32
    %c0_i32_1 = arith.constant 0 : i32
    return %c0_i32, %c0_i32_0 : i32, i32
  }
  func.func @transform_9(%arg0: i32) -> (i32, i32) {
    %c0_i32 = arith.constant 0 : i32
    %c0_i32_0 = arith.constant 0 : i32
    return %arg0, %c0_i32 : i32, i32
  }
}

</mosaic_0001>

<llo_original>
// kernel: tpu_custom_call.1
$region0: #{tpu_custom_call.1}
  #allocation0 [shape = 'u32[]', space=smem, size = 0x4, offset = 0x4, fixed_abs, tag = 'smem constant byte address 0x4 - core index']
  #allocation1 [shape = 'u32[144,128]{1,0:T(1,128)}', space=vmem, size = 0x12000, scoped, tag = 'internal scratch']
  #allocation2 [shape = 'f32[1,1]{1,0:T(1,128)S(1)}', space=vmem, size = 0x200, scoped, tag = 'scoped memory for tpu_custom_call.1']
  %s0 = inlined_call_operand.hbm [shape: f32[8,512], index: 0, kind: input, shape index: {}]
  %s1 = inlined_call_operand.hbm [shape: bf16[512,512], index: 1, kind: input, shape index: {}]
  %s2 = inlined_call_operand.hbm [shape: f32[1,512], index: 2, kind: input, shape index: {}]
  %s3 = inlined_call_operand.hbm [shape: bf16[512,2048], index: 3, kind: input, shape index: {}]
  %s4 = inlined_call_operand.hbm [shape: f32[1,2048], index: 4, kind: input, shape index: {}]
  %s5 = inlined_call_operand.hbm [shape: bf16[2048,512], index: 5, kind: input, shape index: {}]
  %s6 = inlined_call_operand.hbm [shape: f32[1,512], index: 6, kind: input, shape index: {}]
  %s7 = inlined_call_operand.hbm [shape: f32[1,512], index: 7, kind: input, shape index: {}]
  %s8 = inlined_call_operand.<no memory space> [shape: f32[1,1], index: 8, kind: input, shape index: {}]
  %s9 = inlined_call_operand.vmem [shape: f32[8,1], index: 9, kind: output, shape index: {}]
  %s10 = sld [smem:[#allocation0]]
  $region78: #{tpu_custom_call.1} parent=0
    _
  %s12 = ssub.s32 1, %s10
  %s13 = scalar_select 0, %s12, %s10
  %v14 = vstv %s8
  %15 = vst [vmem:[#allocation2] sm:$0x1] %v14
  $region1: #{tpu_custom_call.1} parent=0
    #allocation3 [shape = 'u8[16384]{0}', space=vmem, size = 0x4000, scoped, tag = 'input window, operand 0, single buffered']
    #allocation4 [shape = 's32[1]{0}', space=sflag, size = 0x4, scoped, tag = 'scoped memory for tpu_custom_call.1']
    #allocation5 [shape = 'u8[524288]{0}', space=vmem, size = 0x80000, scoped, tag = 'input window, operand 1, single buffered']
    #allocation6 [shape = 's32[1]{0}', space=sflag, size = 0x4, scoped, tag = 'scoped memory for tpu_custom_call.1']
    #allocation7 [shape = 'u8[2048]{0}', space=vmem, size = 0x800, scoped, tag = 'input window, operand 2, single buffered']
    #allocation8 [shape = 'u8[2097152]{0}', space=vmem, size = 0x200000, scoped, tag = 'input window, operand 3, single buffered']
    #allocation9 [shape = 's32[1]{0}', space=sflag, size = 0x4, scoped, tag = 'scoped memory for tpu_custom_call.1']
    #allocation10 [shape = 'u8[8192]{0}', space=vmem, size = 0x2000, scoped, tag = 'input window, operand 4, single buffered']
    #allocation11 [shape = 'u8[2097152]{0}', space=vmem, size = 0x200000, scoped, tag = 'input window, operand 5, single buffered']
    #allocation12 [shape = 's32[1]{0}', space=sflag, size = 0x4, scoped, tag = 'scoped memory for tpu_custom_call.1']
    #allocation13 [shape = 'u8[2048]{0}', space=vmem, size = 0x800, scoped, tag = 'input window, operand 6, single buffered']
    #allocation14 [shape = 'u8[2048]{0}', space=vmem, size = 0x800, scoped, tag = 'input window, operand 7, single buffered']
    #allocation15 [shape = 's32[1]{0}', space=sflag, size = 0x4, scoped, tag = 'scoped memory for tpu_custom_call.1']
    %16 = vsyncpa [#allocation4], 0
    %17 = vsyncpa [#allocation6], 0
    %18 = vsyncpa [#allocation9], 0
    %19 = vsyncpa [#allocation12], 0
    %20 = vsyncpa [#allocation15], 0
    // Predicated region
    $region2: #{tpu_custom_call.1} parent=1 // pred_check
      _
    $region3: #{tpu_custom_call.1} parent=1 // pred_check_branch
      %22 = sbr.rel (0) target = $region5
    $region4: #{tpu_custom_call.1} parent=1 // pred_region
      %s24 = ssub.s32 512, 512
      %25 = vsyncadd [#allocation4], %s24
      %s27 = sshll.u32 [#allocation3], 4
      %s28 = int_to_ptr.vmem [resolvable:$true] %s27
      %30 = dma.hbm_to_vmem [thread:$0]  %s0, 512, %s28, [#allocation4]
    $region5: #{tpu_custom_call.1} parent=1 // pred_fallthru
      _
    // Predicated region
    $region6: #{tpu_custom_call.1} parent=1 // pred_check
      _
    $region7: #{tpu_custom_call.1} parent=1 // pred_check_branch
      %32 = sbr.rel (0) target = $region9
    $region8: #{tpu_custom_call.1} parent=1 // pred_region
      %s34 = ssub.s32 16384, 16384
      %35 = vsyncadd [#allocation6], %s34
      %s36 = sshll.u32 [#allocation5], 4
      %s37 = int_to_ptr.vmem [resolvable:$true] %s36
      %42 = dma.hbm_to_vmem [thread:$0]  %s1, 16384, %s37, [#allocation6], 256, 256, 16
    $region9: #{tpu_custom_call.1} parent=1 // pred_fallthru
      _
    // Predicated region
    $region10: #{tpu_custom_call.1} parent=1 // pred_check
      _
    $region11: #{tpu_custom_call.1} parent=1 // pred_check_branch
      %44 = sbr.rel (0) target = $region13
    $region12: #{tpu_custom_call.1} parent=1 // pred_region
      %s46 = ssub.s32 64, 64
      %47 = vsyncadd [#allocation6], %s46
      %s49 = sshll.u32 [#allocation7], 4
      %s50 = int_to_ptr.vmem [resolvable:$true] %s49
      %52 = dma.hbm_to_vmem [thread:$0]  %s2, 64, %s50, [#allocation6]
    $region13: #{tpu_custom_call.1} parent=1 // pred_fallthru
      _
    // Predicated region
    $region14: #{tpu_custom_call.1} parent=1 // pred_check
      _
    $region15: #{tpu_custom_call.1} parent=1 // pred_check_branch
      %54 = sbr.rel (0) target = $region17
    $region16: #{tpu_custom_call.1} parent=1 // pred_region
      %s56 = ssub.s32 65536, 65536
      %57 = vsyncadd [#allocation9], %s56
      %s58 = sshll.u32 [#allocation8], 4
      %s59 = int_to_ptr.vmem [resolvable:$true] %s58
      %64 = dma.hbm_to_vmem [thread:$0]  %s3, 65536, %s59, [#allocation9], 1024, 1024, 64
    $region17: #{tpu_custom_call.1} parent=1 // pred_fallthru
      _
    // Predicated region
    $region18: #{tpu_custom_call.1} parent=1 // pred_check
      _
    $region19: #{tpu_custom_call.1} parent=1 // pred_check_branch
      %66 = sbr.rel (0) target = $region21
    $region20: #{tpu_custom_call.1} parent=1 // pred_region
      %s68 = ssub.s32 256, 256
      %69 = vsyncadd [#allocation9], %s68
      %s71 = sshll.u32 [#allocation10], 4
      %s72 = int_to_ptr.vmem [resolvable:$true] %s71
      %74 = dma.hbm_to_vmem [thread:$0]  %s4, 256, %s72, [#allocation9]
    $region21: #{tpu_custom_call.1} parent=1 // pred_fallthru
      _
    // Predicated region
    $region22: #{tpu_custom_call.1} parent=1 // pred_check
      _
    $region23: #{tpu_custom_call.1} parent=1 // pred_check_branch
      %76 = sbr.rel (0) target = $region25
    $region24: #{tpu_custom_call.1} parent=1 // pred_region
      %s78 = ssub.s32 65536, 65536
      %79 = vsyncadd [#allocation12], %s78
      %s80 = sshll.u32 [#allocation11], 4
      %s81 = int_to_ptr.vmem [resolvable:$true] %s80
      %86 = dma.hbm_to_vmem [thread:$0]  %s5, 65536, %s81, [#allocation12], 256, 256, 16
    $region25: #{tpu_custom_call.1} parent=1 // pred_fallthru
      _
    // Predicated region
    $region26: #{tpu_custom_call.1} parent=1 // pred_check
      _
    $region27: #{tpu_custom_call.1} parent=1 // pred_check_branch
      %88 = sbr.rel (0) target = $region29
    $region28: #{tpu_custom_call.1} parent=1 // pred_region
      %s90 = ssub.s32 64, 64
      %91 = vsyncadd [#allocation12], %s90
      %s93 = sshll.u32 [#allocation13], 4
      %s94 = int_to_ptr.vmem [resolvable:$true] %s93
      %96 = dma.hbm_to_vmem [thread:$0]  %s6, 64, %s94, [#allocation12]
    $region29: #{tpu_custom_call.1} parent=1 // pred_fallthru
      _
    // Predicated region
    $region30: #{tpu_custom_call.1} parent=1 // pred_check
      _
    $region31: #{tpu_custom_call.1} parent=1 // pred_check_branch
      %98 = sbr.rel (0) target = $region33
    $region32: #{tpu_custom_call.1} parent=1 // pred_region
      %s100 = ssub.s32 64, 64
      %101 = vsyncadd [#allocation15], %s100
      %s103 = sshll.u32 [#allocation14], 4
      %s104 = int_to_ptr.vmem [resolvable:$true] %s103
      %106 = dma.hbm_to_vmem [thread:$0]  %s7, 64, %s104, [#allocation15]
    $region33: #{tpu_custom_call.1} parent=1 // pred_fallthru
      _
    // Predicated region
    $region34: #{tpu_custom_call.1} parent=1 // pred_check
      _
    $region35: #{tpu_custom_call.1} parent=1 // pred_check_branch
      %108 = sbr.rel (0) target = $region37
    $region36: #{tpu_custom_call.1} parent=1 // pred_region
      _
    $region37: #{tpu_custom_call.1} parent=1 // pred_fallthru
      _
    // Predicated region
    $region38: #{tpu_custom_call.1} parent=1 // pred_check
      _
    $region39: #{tpu_custom_call.1} parent=1 // pred_check_branch
      %110 = sbr.rel (0) target = $region41
    $region40: #{tpu_custom_call.1} parent=1 // pred_region
      %111 = dma.done [#allocation4], 512
    $region41: #{tpu_custom_call.1} parent=1 // pred_fallthru
      _
    // Predicated region
    $region42: #{tpu_custom_call.1} parent=1 // pred_check
      _
    $region43: #{tpu_custom_call.1} parent=1 // pred_check_branch
      %113 = sbr.rel (0) target = $region45
    $region44: #{tpu_custom_call.1} parent=1 // pred_region
      %114 = dma.done [#allocation6], 16384
    $region45: #{tpu_custom_call.1} parent=1 // pred_fallthru
      _
    // Predicated region
    $region46: #{tpu_custom_call.1} parent=1 // pred_check
      _
    $region47: #{tpu_custom_call.1} parent=1 // pred_check_branch
      %116 = sbr.rel (0) target = $region49
    $region48: #{tpu_custom_call.1} parent=1 // pred_region
      %117 = dma.done [#allocation6], 64
    $region49: #{tpu_custom_call.1} parent=1 // pred_fallthru
      _
    // Predicated region
    $region50: #{tpu_custom_call.1} parent=1 // pred_check
      _
    $region51: #{tpu_custom_call.1} parent=1 // pred_check_branch
      %119 = sbr.rel (0) target = $region53
    $region52: #{tpu_custom_call.1} parent=1 // pred_region
      %120 = dma.done [#allocation9], 65536
    $region53: #{tpu_custom_call.1} parent=1 // pred_fallthru
      _
    // Predicated region
    $region54: #{tpu_custom_call.1} parent=1 // pred_check
      _
    $region55: #{tpu_custom_call.1} parent=1 // pred_check_branch
      %122 = sbr.rel (0) target = $region57
    $region56: #{tpu_custom_call.1} parent=1 // pred_region
      %123 = dma.done [#allocation9], 256
    $region57: #{tpu_custom_call.1} parent=1 // pred_fallthru
      _
    // Predicated region
    $region58: #{tpu_custom_call.1} parent=1 // pred_check
      _
    $region59: #{tpu_custom_call.1} parent=1 // pred_check_branch
      %125 = sbr.rel (0) target = $region61
    $region60: #{tpu_custom_call.1} parent=1 // pred_region
      %126 = dma.done [#allocation12], 65536
    $region61: #{tpu_custom_call.1} parent=1 // pred_fallthru
      _
    // Predicated region
    $region62: #{tpu_custom_call.1} parent=1 // pred_check
      _
    $region63: #{tpu_custom_call.1} parent=1 // pred_check_branch
      %128 = sbr.rel (0) target = $region65
    $region64: #{tpu_custom_call.1} parent=1 // pred_region
      %129 = dma.done [#allocation12], 64
    $region65: #{tpu_custom_call.1} parent=1 // pred_fallthru
      _
    // Predicated region
    $region66: #{tpu_custom_call.1} parent=1 // pred_check
      _
    $region67: #{tpu_custom_call.1} parent=1 // pred_check_branch
      %131 = sbr.rel (0) target = $region69
    $region68: #{tpu_custom_call.1} parent=1 // pred_region
      %132 = dma.done [#allocation15], 64
    $region69: #{tpu_custom_call.1} parent=1 // pred_fallthru
      _
    %v133 = vld [vmem:[#allocation3] sm:$0xff]
    %v134 = vld [vmem:[#allocation3 + $0x8] sm:$0xff]
    %v135 = vld [vmem:[#allocation3 + $0x10] sm:$0xff]
    %v136 = vld [vmem:[#allocation3 + $0x18] sm:$0xff]
    %v137 = vpack.c.bf16 %v133, %v133
    %v138 = vpack.c.bf16 %v134, %v134
    %v139 = vpack.c.bf16 %v135, %v135
    %v140 = vpack.c.bf16 %v136, %v136
    %v141 = vld [vmem:[#allocation5] sm:$0xff]
    %v142 = vld [vmem:[#allocation5 + $0x8] sm:$0xff]
    %v143 = vld [vmem:[#allocation5 + $0x10] sm:$0xff]
    %v144 = vld [vmem:[#allocation5 + $0x18] sm:$0xff]
    %v145 = vld [vmem:[#allocation5 + $0x20] sm:$0xff]
    %v146 = vld [vmem:[#allocation5 + $0x28] sm:$0xff]
    %v147 = vld [vmem:[#allocation5 + $0x30] sm:$0xff]
    %v148 = vld [vmem:[#allocation5 + $0x38] sm:$0xff]
    %v149 = vld [vmem:[#allocation5 + $0x40] sm:$0xff]
    %v150 = vld [vmem:[#allocation5 + $0x48] sm:$0xff]
    %v151 = vld [vmem:[#allocation5 + $0x50] sm:$0xff]
    %v152 = vld [vmem:[#allocation5 + $0x58] sm:$0xff]
    %v153 = vld [vmem:[#allocation5 + $0x60] sm:$0xff]
    %v154 = vld [vmem:[#allocation5 + $0x68] sm:$0xff]
    %v155 = vld [vmem:[#allocation5 + $0x70] sm:$0xff]
    %v156 = vld [vmem:[#allocation5 + $0x78] sm:$0xff]
    %v157 = vld [vmem:[#allocation5 + $0x80] sm:$0xff]
    %v158 = vld [vmem:[#allocation5 + $0x88] sm:$0xff]
    %v159 = vld [vmem:[#allocation5 + $0x90] sm:$0xff]
    %v160 = vld [vmem:[#allocation5 + $0x98] sm:$0xff]
    %v161 = vld [vmem:[#allocation5 + $0xa0] sm:$0xff]
    %v162 = vld [vmem:[#allocation5 + $0xa8] sm:$0xff]
    %v163 = vld [vmem:[#allocation5 + $0xb0] sm:$0xff]
    %v164 = vld [vmem:[#allocation5 + $0xb8] sm:$0xff]
    %v165 = vld [vmem:[#allocation5 + $0xc0] sm:$0xff]
    %v166 = vld [vmem:[#allocation5 + $0xc8] sm:$0xff]
    %v167 = vld [vmem:[#allocation5 + $0xd0] sm:$0xff]
    %v168 = vld [vmem:[#allocation5 + $0xd8] sm:$0xff]
    %v169 = vld [vmem:[#allocation5 + $0xe0] sm:$0xff]
    %v170 = vld [vmem:[#allocation5 + $0xe8] sm:$0xff]
    %v171 = vld [vmem:[#allocation5 + $0xf0] sm:$0xff]
    %v172 = vld [vmem:[#allocation5 + $0xf8] sm:$0xff]
    %v173 = vld [vmem:[#allocation5 + $0x100] sm:$0xff]
    %v174 = vld [vmem:[#allocation5 + $0x108] sm:$0xff]
    %v175 = vld [vmem:[#allocation5 + $0x110] sm:$0xff]
    %v176 = vld [vmem:[#allocation5 + $0x118] sm:$0xff]
    %v177 = vld [vmem:[#allocation5 + $0x120] sm:$0xff]
    %v178 = vld [vmem:[#allocation5 + $0x128] sm:$0xff]
    %v179 = vld [vmem:[#allocation5 + $0x130] sm:$0xff]
    %v180 = vld [vmem:[#allocation5 + $0x138] sm:$0xff]
    %v181 = vld [vmem:[#allocation5 + $0x140] sm:$0xff]
    %v182 = vld [vmem:[#allocation5 + $0x148] sm:$0xff]
    %v183 = vld [vmem:[#allocation5 + $0x150] sm:$0xff]
    %v184 = vld [vmem:[#allocation5 + $0x158] sm:$0xff]
    %v185 = vld [vmem:[#allocation5 + $0x160] sm:$0xff]
    %v186 = vld [vmem:[#allocation5 + $0x168] sm:$0xff]
    %v187 = vld [vmem:[#allocation5 + $0x170] sm:$0xff]
    %v188 = vld [vmem:[#allocation5 + $0x178] sm:$0xff]
    %v189 = vld [vmem:[#allocation5 + $0x180] sm:$0xff]
    %v190 = vld [vmem:[#allocation5 + $0x188] sm:$0xff]
    %v191 = vld [vmem:[#allocation5 + $0x190] sm:$0xff]
    %v192 = vld [vmem:[#allocation5 + $0x198] sm:$0xff]
    %v193 = vld [vmem:[#allocation5 + $0x1a0] sm:$0xff]
    %v194 = vld [vmem:[#allocation5 + $0x1a8] sm:$0xff]
    %v195 = vld [vmem:[#allocation5 + $0x1b0] sm:$0xff]
    %v196 = vld [vmem:[#allocation5 + $0x1b8] sm:$0xff]
    %v197 = vld [vmem:[#allocation5 + $0x1c0] sm:$0xff]
    %v198 = vld [vmem:[#allocation5 + $0x1c8] sm:$0xff]
    %v199 = vld [vmem:[#allocation5 + $0x1d0] sm:$0xff]
    %v200 = vld [vmem:[#allocation5 + $0x1d8] sm:$0xff]
    %v201 = vld [vmem:[#allocation5 + $0x1e0] sm:$0xff]
    %v202 = vld [vmem:[#allocation5 + $0x1e8] sm:$0xff]
    %v203 = vld [vmem:[#allocation5 + $0x1f0] sm:$0xff]
    %v204 = vld [vmem:[#allocation5 + $0x1f8] sm:$0xff]
    %v205 = vld [vmem:[#allocation5 + $0x200] sm:$0xff]
    %v206 = vld [vmem:[#allocation5 + $0x208] sm:$0xff]
    %v207 = vld [vmem:[#allocation5 + $0x210] sm:$0xff]
    %v208 = vld [vmem:[#allocation5 + $0x218] sm:$0xff]
    %v209 = vld [vmem:[#allocation5 + $0x220] sm:$0xff]
    %v210 = vld [vmem:[#allocation5 + $0x228] sm:$0xff]
    %v211 = vld [vmem:[#allocation5 + $0x230] sm:$0xff]
    %v212 = vld [vmem:[#allocation5 + $0x238] sm:$0xff]
    %v213 = vld [vmem:[#allocation5 + $0x240] sm:$0xff]
    %v214 = vld [vmem:[#allocation5 + $0x248] sm:$0xff]
    %v215 = vld [vmem:[#allocation5 + $0x250] sm:$0xff]
    %v216 = vld [vmem:[#allocation5 + $0x258] sm:$0xff]
    %v217 = vld [vmem:[#allocation5 + $0x260] sm:$0xff]
    %v218 = vld [vmem:[#allocation5 + $0x268] sm:$0xff]
    %v219 = vld [vmem:[#allocation5 + $0x270] sm:$0xff]
    %v220 = vld [vmem:[#allocation5 + $0x278] sm:$0xff]
    %v221 = vld [vmem:[#allocation5 + $0x280] sm:$0xff]
    %v222 = vld [vmem:[#allocation5 + $0x288] sm:$0xff]
    %v223 = vld [vmem:[#allocation5 + $0x290] sm:$0xff]
    %v224 = vld [vmem:[#allocation5 + $0x298] sm:$0xff]
    %v225 = vld [vmem:[#allocation5 + $0x2a0] sm:$0xff]
    %v226 = vld [vmem:[#allocation5 + $0x2a8] sm:$0xff]
    %v227 = vld [vmem:[#allocation5 + $0x2b0] sm:$0xff]
    %v228 = vld [vmem:[#allocation5 + $0x2b8] sm:$0xff]
    %v229 = vld [vmem:[#allocation5 + $0x2c0] sm:$0xff]
    %v230 = vld [vmem:[#allocation5 + $0x2c8] sm:$0xff]
    %v231 = vld [vmem:[#allocation5 + $0x2d0] sm:$0xff]
    %v232 = vld [vmem:[#allocation5 + $0x2d8] sm:$0xff]
    %v233 = vld [vmem:[#allocation5 + $0x2e0] sm:$0xff]
    %v234 = vld [vmem:[#allocation5 + $0x2e8] sm:$0xff]
    %v235 = vld [vmem:[#allocation5 + $0x2f0] sm:$0xff]
    %v236 = vld [vmem:[#allocation5 + $0x2f8] sm:$0xff]
    %v237 = vld [vmem:[#allocation5 + $0x300] sm:$0xff]
    %v238 = vld [vmem:[#allocation5 + $0x308] sm:$0xff]
    %v239 = vld [vmem:[#allocation5 + $0x310] sm:$0xff]
    %v240 = vld [vmem:[#allocation5 + $0x318] sm:$0xff]
    %v241 = vld [vmem:[#allocation5 + $0x320] sm:$0xff]
    %v242 = vld [vmem:[#allocation5 + $0x328] sm:$0xff]
    %v243 = vld [vmem:[#allocation5 + $0x330] sm:$0xff]
    %v244 = vld [vmem:[#allocation5 + $0x338] sm:$0xff]
    %v245 = vld [vmem:[#allocation5 + $0x340] sm:$0xff]
    %v246 = vld [vmem:[#allocation5 + $0x348] sm:$0xff]
    %v247 = vld [vmem:[#allocation5 + $0x350] sm:$0xff]
    %v248 = vld [vmem:[#allocation5 + $0x358] sm:$0xff]
    %v249 = vld [vmem:[#allocation5 + $0x360] sm:$0xff]
    %v250 = vld [vmem:[#allocation5 + $0x368] sm:$0xff]
    %v251 = vld [vmem:[#allocation5 + $0x370] sm:$0xff]
    %v252 = vld [vmem:[#allocation5 + $0x378] sm:$0xff]
    %v253 = vld [vmem:[#allocation5 + $0x380] sm:$0xff]
    %v254 = vld [vmem:[#allocation5 + $0x388] sm:$0xff]
    %v255 = vld [vmem:[#allocation5 + $0x390] sm:$0xff]
    %v256 = vld [vmem:[#allocation5 + $0x398] sm:$0xff]
    %v257 = vld [vmem:[#allocation5 + $0x3a0] sm:$0xff]
    %v258 = vld [vmem:[#allocation5 + $0x3a8] sm:$0xff]
    %v259 = vld [vmem:[#allocation5 + $0x3b0] sm:$0xff]
    %v260 = vld [vmem:[#allocation5 + $0x3b8] sm:$0xff]
    %v261 = vld [vmem:[#allocation5 + $0x3c0] sm:$0xff]
    %v262 = vld [vmem:[#allocation5 + $0x3c8] sm:$0xff]
    %v263 = vld [vmem:[#allocation5 + $0x3d0] sm:$0xff]
    %v264 = vld [vmem:[#allocation5 + $0x3d8] sm:$0xff]
    %v265 = vld [vmem:[#allocation5 + $0x3e0] sm:$0xff]
    %v266 = vld [vmem:[#allocation5 + $0x3e8] sm:$0xff]
    %v267 = vld [vmem:[#allocation5 + $0x3f0] sm:$0xff]
    %v268 = vld [vmem:[#allocation5 + $0x3f8] sm:$0xff]
    %v269 = vld [vmem:[#allocation7] sm:$0xf]
    %v271 = vlaneseq
    %v272 = vshrl.u32 %v271, 7
    %v273 = vsub.s32 0, %v272
    %v274 = vrot.slane %v269, %v273
    %v275 = vlaneseq
    %v276 = vshrl.u32 %v275, 7
    %v277 = vsub.s32 1, %v276
    %v278 = vrot.slane %v269, %v277
    %v279 = vlaneseq
    %v280 = vshrl.u32 %v279, 7
    %v281 = vsub.s32 2, %v280
    %v282 = vrot.slane %v269, %v281
    %v283 = vlaneseq
    %v284 = vshrl.u32 %v283, 7
    %v285 = vsub.s32 3, %v284
    %v286 = vrot.slane %v269, %v285
    %v419 = vunpack.c.l.b16 %v141
    %v420 = vunpack.c.h.b16 %v141
    %v421 = vunpack.c.l.b16 %v142
    %v422 = vunpack.c.h.b16 %v142
    %v423 = vunpack.c.l.b16 %v143
    %v424 = vunpack.c.h.b16 %v143
    %v425 = vunpack.c.l.b16 %v144
    %v426 = vunpack.c.h.b16 %v144
    %v427 = vunpack.c.l.b16 %v145
    %v428 = vunpack.c.h.b16 %v145
    %v429 = vunpack.c.l.b16 %v146
    %v430 = vunpack.c.h.b16 %v146
    %v431 = vunpack.c.l.b16 %v147
    %v432 = vunpack.c.h.b16 %v147
    %v433 = vunpack.c.l.b16 %v148
    %v434 = vunpack.c.h.b16 %v148
    %v435 = vunpack.c.l.b16 %v149
    %v436 = vunpack.c.h.b16 %v149
    %v437 = vunpack.c.l.b16 %v150
    %v438 = vunpack.c.h.b16 %v150
    %v439 = vunpack.c.l.b16 %v151
    %v440 = vunpack.c.h.b16 %v151
    %v441 = vunpack.c.l.b16 %v152
    %v442 = vunpack.c.h.b16 %v152
    %v443 = vunpack.c.l.b16 %v153
    %v444 = vunpack.c.h.b16 %v153
    %v445 = vunpack.c.l.b16 %v154
    %v446 = vunpack.c.h.b16 %v154
    %v447 = vunpack.c.l.b16 %v155
    %v448 = vunpack.c.h.b16 %v155
    %v449 = vunpack.c.l.b16 %v156
    %v450 = vunpack.c.h.b16 %v156
    %v451 = vunpack.c.l.b16 %v157
    %v452 = vunpack.c.h.b16 %v157
    %v453 = vunpack.c.l.b16 %v158
    %v454 = vunpack.c.h.b16 %v158
    %v455 = vunpack.c.l.b16 %v159
    %v456 = vunpack.c.h.b16 %v159
    %v457 = vunpack.c.l.b16 %v160
    %v458 = vunpack.c.h.b16 %v160
    %v459 = vunpack.c.l.b16 %v161
    %v460 = vunpack.c.h.b16 %v161
    %v461 = vunpack.c.l.b16 %v162
    %v462 = vunpack.c.h.b16 %v162
    %v463 = vunpack.c.l.b16 %v163
    %v464 = vunpack.c.h.b16 %v163
    %v465 = vunpack.c.l.b16 %v164
    %v466 = vunpack.c.h.b16 %v164
    %v467 = vunpack.c.l.b16 %v165
    %v468 = vunpack.c.h.b16 %v165
    %v469 = vunpack.c.l.b16 %v166
    %v470 = vunpack.c.h.b16 %v166
    %v471 = vunpack.c.l.b16 %v167
    %v472 = vunpack.c.h.b16 %v167
    %v473 = vunpack.c.l.b16 %v168
    %v474 = vunpack.c.h.b16 %v168
    %v475 = vunpack.c.l.b16 %v169
    %v476 = vunpack.c.h.b16 %v169
    %v477 = vunpack.c.l.b16 %v170
    %v478 = vunpack.c.h.b16 %v170
    %v479 = vunpack.c.l.b16 %v171
    %v480 = vunpack.c.h.b16 %v171
    %v481 = vunpack.c.l.b16 %v172
    %v482 = vunpack.c.h.b16 %v172
    %v483 = vunpack.c.l.b16 %v173
    %v484 = vunpack.c.h.b16 %v173
    %v485 = vunpack.c.l.b16 %v174
    %v486 = vunpack.c.h.b16 %v174
    %v487 = vunpack.c.l.b16 %v175
    %v488 = vunpack.c.h.b16 %v175
    %v489 = vunpack.c.l.b16 %v176
    %v490 = vunpack.c.h.b16 %v176
    %v491 = vunpack.c.l.b16 %v177
    %v492 = vunpack.c.h.b16 %v177
    %v493 = vunpack.c.l.b16 %v178
    %v494 = vunpack.c.h.b16 %v178
    %v495 = vunpack.c.l.b16 %v179
    %v496 = vunpack.c.h.b16 %v179
    %v497 = vunpack.c.l.b16 %v180
    %v498 = vunpack.c.h.b16 %v180
    %v499 = vunpack.c.l.b16 %v181
    %v500 = vunpack.c.h.b16 %v181
    %v501 = vunpack.c.l.b16 %v182
    %v502 = vunpack.c.h.b16 %v182
    %v503 = vunpack.c.l.b16 %v183
    %v504 = vunpack.c.h.b16 %v183
    %v505 = vunpack.c.l.b16 %v184
    %v506 = vunpack.c.h.b16 %v184
    %v507 = vunpack.c.l.b16 %v185
    %v508 = vunpack.c.h.b16 %v185
    %v509 = vunpack.c.l.b16 %v186
    %v510 = vunpack.c.h.b16 %v186
    %v511 = vunpack.c.l.b16 %v187
    %v512 = vunpack.c.h.b16 %v187
    %v513 = vunpack.c.l.b16 %v188
    %v514 = vunpack.c.h.b16 %v188
    %v515 = vunpack.c.l.b16 %v189
    %v516 = vunpack.c.h.b16 %v189
    %v517 = vunpack.c.l.b16 %v190
    %v518 = vunpack.c.h.b16 %v190
    %v519 = vunpack.c.l.b16 %v191
    %v520 = vunpack.c.h.b16 %v191
    %v521 = vunpack.c.l.b16 %v192
    %v522 = vunpack.c.h.b16 %v192
    %v523 = vunpack.c.l.b16 %v193
    %v524 = vunpack.c.h.b16 %v193
    %v525 = vunpack.c.l.b16 %v194
    %v526 = vunpack.c.h.b16 %v194
    %v527 = vunpack.c.l.b16 %v195
    %v528 = vunpack.c.h.b16 %v195
    %v529 = vunpack.c.l.b16 %v196
    %v530 = vunpack.c.h.b16 %v196
    %v531 = vunpack.c.l.b16 %v197
    %v532 = vunpack.c.h.b16 %v197
    %v533 = vunpack.c.l.b16 %v198
    %v534 = vunpack.c.h.b16 %v198
    %v535 = vunpack.c.l.b16 %v199
    %v536 = vunpack.c.h.b16 %v199
    %v537 = vunpack.c.l.b16 %v200
    %v538 = vunpack.c.h.b16 %v200
    %v539 = vunpack.c.l.b16 %v201
    %v540 = vunpack.c.h.b16 %v201
    %v541 = vunpack.c.l.b16 %v202
    %v542 = vunpack.c.h.b16 %v202
    %v543 = vunpack.c.l.b16 %v203
    %v544 = vunpack.c.h.b16 %v203
    %v545 = vunpack.c.l.b16 %v204
    %v546 = vunpack.c.h.b16 %v204
    %v547 = vunpack.c.l.b16 %v205
    %v548 = vunpack.c.h.b16 %v205
    %v549 = vunpack.c.l.b16 %v206
    %v550 = vunpack.c.h.b16 %v206
    %v551 = vunpack.c.l.b16 %v207
    %v552 = vunpack.c.h.b16 %v207
    %v553 = vunpack.c.l.b16 %v208
    %v554 = vunpack.c.h.b16 %v208
    %v555 = vunpack.c.l.b16 %v209
    %v556 = vunpack.c.h.b16 %v209
    %v557 = vunpack.c.l.b16 %v210
    %v558 = vunpack.c.h.b16 %v210
    %v559 = vunpack.c.l.b16 %v211
    %v560 = vunpack.c.h.b16 %v211
    %v561 = vunpack.c.l.b16 %v212
    %v562 = vunpack.c.h.b16 %v212
    %v563 = vunpack.c.l.b16 %v213
    %v564 = vunpack.c.h.b16 %v213
    %v565 = vunpack.c.l.b16 %v214
    %v566 = vunpack.c.h.b16 %v214
    %v567 = vunpack.c.l.b16 %v215
    %v568 = vunpack.c.h.b16 %v215
    %v569 = vunpack.c.l.b16 %v216
    %v570 = vunpack.c.h.b16 %v216
    %v571 = vunpack.c.l.b16 %v217
    %v572 = vunpack.c.h.b16 %v217
    %v573 = vunpack.c.l.b16 %v218
    %v574 = vunpack.c.h.b16 %v218
    %v575 = vunpack.c.l.b16 %v219
    %v576 = vunpack.c.h.b16 %v219
    %v577 = vunpack.c.l.b16 %v220
    %v578 = vunpack.c.h.b16 %v220
    %v579 = vunpack.c.l.b16 %v221
    %v580 = vunpack.c.h.b16 %v221
    %v581 = vunpack.c.l.b16 %v222
    %v582 = vunpack.c.h.b16 %v222
    %v583 = vunpack.c.l.b16 %v223
    %v584 = vunpack.c.h.b16 %v223
    %v585 = vunpack.c.l.b16 %v224
    %v586 = vunpack.c.h.b16 %v224
    %v587 = vunpack.c.l.b16 %v225
    %v588 = vunpack.c.h.b16 %v225
    %v589 = vunpack.c.l.b16 %v226
    %v590 = vunpack.c.h.b16 %v226
    %v591 = vunpack.c.l.b16 %v227
    %v592 = vunpack.c.h.b16 %v227
    %v593 = vunpack.c.l.b16 %v228
    %v594 = vunpack.c.h.b16 %v228
    %v595 = vunpack.c.l.b16 %v229
    %v596 = vunpack.c.h.b16 %v229
    %v597 = vunpack.c.l.b16 %v230
    %v598 = vunpack.c.h.b16 %v230
    %v599 = vunpack.c.l.b16 %v231
    %v600 = vunpack.c.h.b16 %v231
    %v601 = vunpack.c.l.b16 %v232
    %v602 = vunpack.c.h.b16 %v232
    %v603 = vunpack.c.l.b16 %v233
    %v604 = vunpack.c.h.b16 %v233
    %v605 = vunpack.c.l.b16 %v234
    %v606 = vunpack.c.h.b16 %v234
    %v607 = vunpack.c.l.b16 %v235
    %v608 = vunpack.c.h.b16 %v235
    %v609 = vunpack.c.l.b16 %v236
    %v610 = vunpack.c.h.b16 %v236
    %v611 = vunpack.c.l.b16 %v237
    %v612 = vunpack.c.h.b16 %v237
    %v613 = vunpack.c.l.b16 %v238
    %v614 = vunpack.c.h.b16 %v238
    %v615 = vunpack.c.l.b16 %v239
    %v616 = vunpack.c.h.b16 %v239
    %v617 = vunpack.c.l.b16 %v240
    %v618 = vunpack.c.h.b16 %v240
    %v619 = vunpack.c.l.b16 %v241
    %v620 = vunpack.c.h.b16 %v241
    %v621 = vunpack.c.l.b16 %v242
    %v622 = vunpack.c.h.b16 %v242
    %v623 = vunpack.c.l.b16 %v243
    %v624 = vunpack.c.h.b16 %v243
    %v625 = vunpack.c.l.b16 %v244
    %v626 = vunpack.c.h.b16 %v244
    %v627 = vunpack.c.l.b16 %v245
    %v628 = vunpack.c.h.b16 %v245
    %v629 = vunpack.c.l.b16 %v246
    %v630 = vunpack.c.h.b16 %v246
    %v631 = vunpack.c.l.b16 %v247
    %v632 = vunpack.c.h.b16 %v247
    %v633 = vunpack.c.l.b16 %v248
    %v634 = vunpack.c.h.b16 %v248
    %v635 = vunpack.c.l.b16 %v249
    %v636 = vunpack.c.h.b16 %v249
    %v637 = vunpack.c.l.b16 %v250
    %v638 = vunpack.c.h.b16 %v250
    %v639 = vunpack.c.l.b16 %v251
    %v640 = vunpack.c.h.b16 %v251
    %v641 = vunpack.c.l.b16 %v252
    %v642 = vunpack.c.h.b16 %v252
    %v643 = vunpack.c.l.b16 %v253
    %v644 = vunpack.c.h.b16 %v253
    %v645 = vunpack.c.l.b16 %v254
    %v646 = vunpack.c.h.b16 %v254
    %v647 = vunpack.c.l.b16 %v255
    %v648 = vunpack.c.h.b16 %v255
    %v649 = vunpack.c.l.b16 %v256
    %v650 = vunpack.c.h.b16 %v256
    %v651 = vunpack.c.l.b16 %v257
    %v652 = vunpack.c.h.b16 %v257
    %v653 = vunpack.c.l.b16 %v258
    %v654 = vunpack.c.h.b16 %v258
    %v655 = vunpack.c.l.b16 %v259
    %v656 = vunpack.c.h.b16 %v259
    %v657 = vunpack.c.l.b16 %v260
    %v658 = vunpack.c.h.b16 %v260
    %v659 = vunpack.c.l.b16 %v261
    %v660 = vunpack.c.h.b16 %v261
    %v661 = vunpack.c.l.b16 %v262
    %v662 = vunpack.c.h.b16 %v262
    %v663 = vunpack.c.l.b16 %v263
    %v664 = vunpack.c.h.b16 %v263
    %v665 = vunpack.c.l.b16 %v264
    %v666 = vunpack.c.h.b16 %v264
    %v667 = vunpack.c.l.b16 %v265
    %v668 = vunpack.c.h.b16 %v265
    %v669 = vunpack.c.l.b16 %v266
    %v670 = vunpack.c.h.b16 %v266
    %v671 = vunpack.c.l.b16 %v267
    %v672 = vunpack.c.h.b16 %v267
    %v673 = vunpack.c.l.b16 %v268
    %v674 = vunpack.c.h.b16 %v268
    %v675 = vpack.c.b16 %v423, %v419
    %v676 = vpack.c.b16 %v424, %v420
    %v677 = vpack.c.b16 %v425, %v421
    %v678 = vpack.c.b16 %v426, %v422
    %v679 = vpack.c.b16 %v431, %v427
    %v680 = vpack.c.b16 %v432, %v428
    %v681 = vpack.c.b16 %v433, %v429
    %v682 = vpack.c.b16 %v434, %v430
    %v683 = vpack.c.b16 %v439, %v435
    %v684 = vpack.c.b16 %v440, %v436
    %v685 = vpack.c.b16 %v441, %v437
    %v686 = vpack.c.b16 %v442, %v438
    %v687 = vpack.c.b16 %v447, %v443
    %v688 = vpack.c.b16 %v448, %v444
    %v689 = vpack.c.b16 %v449, %v445
    %v690 = vpack.c.b16 %v450, %v446
    %v691 = vpack.c.b16 %v455, %v451
    %v692 = vpack.c.b16 %v456, %v452
    %v693 = vpack.c.b16 %v457, %v453
    %v694 = vpack.c.b16 %v458, %v454
    %v695 = vpack.c.b16 %v463, %v459
    %v696 = vpack.c.b16 %v464, %v460
    %v697 = vpack.c.b16 %v465, %v461
    %v698 = vpack.c.b16 %v466, %v462
    %v699 = vpack.c.b16 %v471, %v467
    %v700 = vpack.c.b16 %v472, %v468
    %v701 = vpack.c.b16 %v473, %v469
    %v702 = vpack.c.b16 %v474, %v470
    %v703 = vpack.c.b16 %v479, %v475
    %v704 = vpack.c.b16 %v480, %v476
    %v705 = vpack.c.b16 %v481, %v477
    %v706 = vpack.c.b16 %v482, %v478
    %v707 = vpack.c.b16 %v487, %v483
    %v708 = vpack.c.b16 %v488, %v484
    %v709 = vpack.c.b16 %v489, %v485
    %v710 = vpack.c.b16 %v490, %v486
    %v711 = vpack.c.b16 %v495, %v491
    %v712 = vpack.c.b16 %v496, %v492
    %v713 = vpack.c.b16 %v497, %v493
    %v714 = vpack.c.b16 %v498, %v494
    %v715 = vpack.c.b16 %v503, %v499
    %v716 = vpack.c.b16 %v504, %v500
    %v717 = vpack.c.b16 %v505, %v501
    %v718 = vpack.c.b16 %v506, %v502
    %v719 = vpack.c.b16 %v511, %v507
    %v720 = vpack.c.b16 %v512, %v508
    %v721 = vpack.c.b16 %v513, %v509
    %v722 = vpack.c.b16 %v514, %v510
    %v723 = vpack.c.b16 %v519, %v515
    %v724 = vpack.c.b16 %v520, %v516
    %v725 = vpack.c.b16 %v521, %v517
    %v726 = vpack.c.b16 %v522, %v518
    %v727 = vpack.c.b16 %v527, %v523
    %v728 = vpack.c.b16 %v528, %v524
    %v729 = vpack.c.b16 %v529, %v525
    %v730 = vpack.c.b16 %v530, %v526
    %v731 = vpack.c.b16 %v535, %v531
    %v732 = vpack.c.b16 %v536, %v532
    %v733 = vpack.c.b16 %v537, %v533
    %v734 = vpack.c.b16 %v538, %v534
    %v735 = vpack.c.b16 %v543, %v539
    %v736 = vpack.c.b16 %v544, %v540
    %v737 = vpack.c.b16 %v545, %v541
    %v738 = vpack.c.b16 %v546, %v542
    %v739 = vpack.c.b16 %v551, %v547
    %v740 = vpack.c.b16 %v552, %v548
    %v741 = vpack.c.b16 %v553, %v549
    %v742 = vpack.c.b16 %v554, %v550
    %v743 = vpack.c.b16 %v559, %v555
    %v744 = vpack.c.b16 %v560, %v556
    %v745 = vpack.c.b16 %v561, %v557
    %v746 = vpack.c.b16 %v562, %v558
    %v747 = vpack.c.b16 %v567, %v563
    %v748 = vpack.c.b16 %v568, %v564
    %v749 = vpack.c.b16 %v569, %v565
    %v750 = vpack.c.b16 %v570, %v566
    %v751 = vpack.c.b16 %v575, %v571
    %v752 = vpack.c.b16 %v576, %v572
    %v753 = vpack.c.b16 %v577, %v573
    %v754 = vpack.c.b16 %v578, %v574
    %v755 = vpack.c.b16 %v583, %v579
    %v756 = vpack.c.b16 %v584, %v580
    %v757 = vpack.c.b16 %v585, %v581
    %v758 = vpack.c.b16 %v586, %v582
    %v759 = vpack.c.b16 %v591, %v587
    %v760 = vpack.c.b16 %v592, %v588
    %v761 = vpack.c.b16 %v593, %v589
    %v762 = vpack.c.b16 %v594, %v590
    %v763 = vpack.c.b16 %v599, %v595
    %v764 = vpack.c.b16 %v600, %v596
    %v765 = vpack.c.b16 %v601, %v597
    %v766 = vpack.c.b16 %v602, %v598
    %v767 = vpack.c.b16 %v607, %v603
    %v768 = vpack.c.b16 %v608, %v604
    %v769 = vpack.c.b16 %v609, %v605
    %v770 = vpack.c.b16 %v610, %v606
    %v771 = vpack.c.b16 %v615, %v611
    %v772 = vpack.c.b16 %v616, %v612
    %v773 = vpack.c.b16 %v617, %v613
    %v774 = vpack.c.b16 %v618, %v614
    %v775 = vpack.c.b16 %v623, %v619
    %v776 = vpack.c.b16 %v624, %v620
    %v777 = vpack.c.b16 %v625, %v621
    %v778 = vpack.c.b16 %v626, %v622
    %v779 = vpack.c.b16 %v631, %v627
    %v780 = vpack.c.b16 %v632, %v628
    %v781 = vpack.c.b16 %v633, %v629
    %v782 = vpack.c.b16 %v634, %v630
    %v783 = vpack.c.b16 %v639, %v635
    %v784 = vpack.c.b16 %v640, %v636
    %v785 = vpack.c.b16 %v641, %v637
    %v786 = vpack.c.b16 %v642, %v638
    %v787 = vpack.c.b16 %v647, %v643
    %v788 = vpack.c.b16 %v648, %v644
    %v789 = vpack.c.b16 %v649, %v645
    %v790 = vpack.c.b16 %v650, %v646
    %v791 = vpack.c.b16 %v655, %v651
    %v792 = vpack.c.b16 %v656, %v652
    %v793 = vpack.c.b16 %v657, %v653
    %v794 = vpack.c.b16 %v658, %v654
    %v795 = vpack.c.b16 %v663, %v659
    %v796 = vpack.c.b16 %v664, %v660
    %v797 = vpack.c.b16 %v665, %v661
    %v798 = vpack.c.b16 %v666, %v662
    %v799 = vpack.c.b16 %v671, %v667
    %v800 = vpack.c.b16 %v672, %v668
    %v801 = vpack.c.b16 %v673, %v669
    %v802 = vpack.c.b16 %v674, %v670
    %931 = vmatprep.subr.bf16.mxu0 %v704
    %932 = vmatpush1.bf16.msra.mxu0 %v703
    %933 = vmatprep.subr.bf16.mxu0 %v700
    %934 = vmatpush1.bf16.msra.mxu0 %v699
    %935 = vmatprep.subr.bf16.mxu0 %v696
    %936 = vmatpush1.bf16.msra.mxu0 %v695
    %937 = vmatprep.subr.bf16.mxu0 %v692
    %938 = vmatpush1.bf16.msra.mxu0 %v691
    %939 = vmatprep.subr.bf16.mxu0 %v688
    %940 = vmatpush1.bf16.msra.mxu0 %v687
    %941 = vmatprep.subr.bf16.mxu0 %v684
    %942 = vmatpush1.bf16.msra.mxu0 %v683
    %943 = vmatprep.subr.bf16.mxu0 %v680
    %944 = vmatpush1.bf16.msra.mxu0 %v679
    %945 = vmatprep.subr.bf16.mxu0 %v676
    %946 = vmatpush1.bf16.msra.mxu0 %v675
    %947 = vmatprep.subr.bf16.mxu0 %v736
    %948 = vmatpush2.bf16.msra.mxu0 %v735
    %949 = vmatprep.subr.bf16.mxu0 %v732
    %950 = vmatpush2.bf16.msra.mxu0 %v731
    %951 = vmatprep.subr.bf16.mxu0 %v728
    %952 = vmatpush2.bf16.msra.mxu0 %v727
    %953 = vmatprep.subr.bf16.mxu0 %v724
    %954 = vmatpush2.bf16.msra.mxu0 %v723
    %955 = vmatprep.subr.bf16.mxu0 %v720
    %956 = vmatpush2.bf16.msra.mxu0 %v719
    %957 = vmatprep.subr.bf16.mxu0 %v716
    %958 = vmatpush2.bf16.msra.mxu0 %v715
    %959 = vmatprep.subr.bf16.mxu0 %v712
    %960 = vmatpush2.bf16.msra.mxu0 %v711
    %961 = vmatprep.subr.bf16.mxu0 %v708
    %962 = vmatpush2.bf16.msra.mxu0 %v707
    %963 = vmatprep.mubr.bf16.mxu0 %v138
    %964 = vmatmul.mubr.bf16.gmra.mxu0 %v137
    %v965 = vpop.f32.mrf.mxu0
    %v966 = vadd.f32 %v274, %v965
    %v967 = vpop.f32.mrf.mxu0
    %v968 = vadd.f32 %v278, %v967
    %v969 = vpop.f32.mrf.mxu0
    %v970 = vpop.f32.mrf.mxu0
    %971 = vdwg.mxu0
    %972 = vmatprep.subr.bf16.mxu0 %v768
    %973 = vmatpush1.bf16.msra.mxu0 %v767
    %974 = vmatprep.subr.bf16.mxu0 %v764
    %975 = vmatpush1.bf16.msra.mxu0 %v763
    %976 = vmatprep.subr.bf16.mxu0 %v760
    %977 = vmatpush1.bf16.msra.mxu0 %v759
    %978 = vmatprep.subr.bf16.mxu0 %v756
    %979 = vmatpush1.bf16.msra.mxu0 %v755
    %980 = vmatprep.subr.bf16.mxu0 %v752
    %981 = vmatpush1.bf16.msra.mxu0 %v751
    %982 = vmatprep.subr.bf16.mxu0 %v748
    %983 = vmatpush1.bf16.msra.mxu0 %v747
    %984 = vmatprep.subr.bf16.mxu0 %v744
    %985 = vmatpush1.bf16.msra.mxu0 %v743
    %986 = vmatprep.subr.bf16.mxu0 %v740
    %987 = vmatpush1.bf16.msra.mxu0 %v739
    %988 = vmatprep.subr.bf16.mxu0 %v800
    %989 = vmatpush2.bf16.msra.mxu0 %v799
    %990 = vmatprep.subr.bf16.mxu0 %v796
    %991 = vmatpush2.bf16.msra.mxu0 %v795
    %992 = vmatprep.subr.bf16.mxu0 %v792
    %993 = vmatpush2.bf16.msra.mxu0 %v791
    %994 = vmatprep.subr.bf16.mxu0 %v788
    %995 = vmatpush2.bf16.msra.mxu0 %v787
    %996 = vmatprep.subr.bf16.mxu0 %v784
    %997 = vmatpush2.bf16.msra.mxu0 %v783
    %998 = vmatprep.subr.bf16.mxu0 %v780
    %999 = vmatpush2.bf16.msra.mxu0 %v779
    %1000 = vmatprep.subr.bf16.mxu0 %v776
    %1001 = vmatpush2.bf16.msra.mxu0 %v775
    %1002 = vmatprep.subr.bf16.mxu0 %v772
    %1003 = vmatpush2.bf16.msra.mxu0 %v771
    %1004 = vmatprep.mubr.bf16.mxu0 %v140
    %1005 = vmatmul.mubr.bf16.gmra.mxu0 %v139
    %v1006 = vpop.f32.mrf.mxu0
    %v1007 = vadd.f32 %v966, %v1006
    %v1008 = vpop.f32.mrf.mxu0
    %v1009 = vadd.f32 %v968, %v1008
    %v1010 = vpop.f32.mrf.mxu0
    %v1011 = vpop.f32.mrf.mxu0
    %1012 = vdwg.mxu0
    %1013 = vmatprep.subr.bf16.mxu0 %v706
    %1014 = vmatpush1.bf16.msra.mxu0 %v705
    %1015 = vmatprep.subr.bf16.mxu0 %v702
    %1016 = vmatpush1.bf16.msra.mxu0 %v701
    %1017 = vmatprep.subr.bf16.mxu0 %v698
    %1018 = vmatpush1.bf16.msra.mxu0 %v697
    %1019 = vmatprep.subr.bf16.mxu0 %v694
    %1020 = vmatpush1.bf16.msra.mxu0 %v693
    %1021 = vmatprep.subr.bf16.mxu0 %v690
    %1022 = vmatpush1.bf16.msra.mxu0 %v689
    %1023 = vmatprep.subr.bf16.mxu0 %v686
    %1024 = vmatpush1.bf16.msra.mxu0 %v685
    %1025 = vmatprep.subr.bf16.mxu0 %v682
    %1026 = vmatpush1.bf16.msra.mxu0 %v681
    %1027 = vmatprep.subr.bf16.mxu0 %v678
    %1028 = vmatpush1.bf16.msra.mxu0 %v677
    %1029 = vmatprep.subr.bf16.mxu0 %v738
    %1030 = vmatpush2.bf16.msra.mxu0 %v737
    %1031 = vmatprep.subr.bf16.mxu0 %v734
    %1032 = vmatpush2.bf16.msra.mxu0 %v733
    %1033 = vmatprep.subr.bf16.mxu0 %v730
    %1034 = vmatpush2.bf16.msra.mxu0 %v729
    %1035 = vmatprep.subr.bf16.mxu0 %v726
    %1036 = vmatpush2.bf16.msra.mxu0 %v725
    %1037 = vmatprep.subr.bf16.mxu0 %v722
    %1038 = vmatpush2.bf16.msra.mxu0 %v721
    %1039 = vmatprep.subr.bf16.mxu0 %v718
    %1040 = vmatpush2.bf16.msra.mxu0 %v717
    %1041 = vmatprep.subr.bf16.mxu0 %v714
    %1042 = vmatpush2.bf16.msra.mxu0 %v713
    %1043 = vmatprep.subr.bf16.mxu0 %v710
    %1044 = vmatpush2.bf16.msra.mxu0 %v709
    %1045 = vmatprep.mubr.bf16.mxu0 %v138
    %1046 = vmatmul.mubr.bf16.gmra.mxu0 %v137
    %v1047 = vpop.f32.mrf.mxu0
    %v1048 = vadd.f32 %v282, %v1047
    %v1049 = vpop.f32.mrf.mxu0
    %v1050 = vadd.f32 %v286, %v1049
    %v1051 = vpop.f32.mrf.mxu0
    %v1052 = vpop.f32.mrf.mxu0
    %1053 = vdwg.mxu0
    %1054 = vmatprep.subr.bf16.mxu0 %v770
    %1055 = vmatpush1.bf16.msra.mxu0 %v769
    %1056 = vmatprep.subr.bf16.mxu0 %v766
    %1057 = vmatpush1.bf16.msra.mxu0 %v765
    %1058 = vmatprep.subr.bf16.mxu0 %v762
    %1059 = vmatpush1.bf16.msra.mxu0 %v761
    %1060 = vmatprep.subr.bf16.mxu0 %v758
    %1061 = vmatpush1.bf16.msra.mxu0 %v757
    %1062 = vmatprep.subr.bf16.mxu0 %v754
    %1063 = vmatpush1.bf16.msra.mxu0 %v753
    %1064 = vmatprep.subr.bf16.mxu0 %v750
    %1065 = vmatpush1.bf16.msra.mxu0 %v749
    %1066 = vmatprep.subr.bf16.mxu0 %v746
    %1067 = vmatpush1.bf16.msra.mxu0 %v745
    %1068 = vmatprep.subr.bf16.mxu0 %v742
    %1069 = vmatpush1.bf16.msra.mxu0 %v741
    %1070 = vmatprep.subr.bf16.mxu0 %v802
    %1071 = vmatpush2.bf16.msra.mxu0 %v801
    %1072 = vmatprep.subr.bf16.mxu0 %v798
    %1073 = vmatpush2.bf16.msra.mxu0 %v797
    %1074 = vmatprep.subr.bf16.mxu0 %v794
    %1075 = vmatpush2.bf16.msra.mxu0 %v793
    %1076 = vmatprep.subr.bf16.mxu0 %v790
    %1077 = vmatpush2.bf16.msra.mxu0 %v789
    %1078 = vmatprep.subr.bf16.mxu0 %v786
    %1079 = vmatpush2.bf16.msra.mxu0 %v785
    %1080 = vmatprep.subr.bf16.mxu0 %v782
    %1081 = vmatpush2.bf16.msra.mxu0 %v781
    %1082 = vmatprep.subr.bf16.mxu0 %v778
    %1083 = vmatpush2.bf16.msra.mxu0 %v777
    %1084 = vmatprep.subr.bf16.mxu0 %v774
    %1085 = vmatpush2.bf16.msra.mxu0 %v773
    %1086 = vmatprep.mubr.bf16.mxu0 %v140
    %1087 = vmatmul.mubr.bf16.gmra.mxu0 %v139
    %v1088 = vpop.f32.mrf.mxu0
    %v1089 = vadd.f32 %v1048, %v1088
    %v1090 = vpop.f32.mrf.mxu0
    %v1091 = vadd.f32 %v1050, %v1090
    %v1092 = vpop.f32.mrf.mxu0
    %v1093 = vpop.f32.mrf.mxu0
    %1094 = vdwg.mxu0
    %v1095 = vmul.f32 %v1007, 0.5
    %v1096 = vmul.f32 %v1009, 0.5
    %v1097 = vmul.f32 %v1089, 0.5
    %v1098 = vmul.f32 %v1091, 0.5
    %v1099 = vmul.f32 %v1007, 0.70710677
    %v1100 = vmul.f32 %v1009, 0.70710677
    %v1101 = vmul.f32 %v1089, 0.70710677
    %v1102 = vmul.f32 %v1091, 0.70710677
    %v1103 = verf.f32.pop %v1099
    %v1104 = verf.f32.pop %v1100
    %v1105 = verf.f32.pop %v1101
    %v1106 = verf.f32.pop %v1102
    %v1107 = vadd.f32 %v1103, 1.0
    %v1108 = vadd.f32 %v1104, 1.0
    %v1109 = vadd.f32 %v1105, 1.0
    %v1110 = vadd.f32 %v1106, 1.0
    %v1111 = vmul.f32 %v1095, %v1107
    %v1112 = vmul.f32 %v1096, %v1108
    %v1113 = vmul.f32 %v1097, %v1109
    %v1114 = vmul.f32 %v1098, %v1110
    %v1115 = vpack.c.bf16 %v1111, %v1111
    %v1116 = vpack.c.bf16 %v1112, %v1112
    %v1117 = vpack.c.bf16 %v1113, %v1113
    %v1118 = vpack.c.bf16 %v1114, %v1114
    %v1119 = vld [vmem:[#allocation8] sm:$0xff]
    %v1120 = vld [vmem:[#allocation8 + $0x8] sm:$0xff]
    %v1121 = vld [vmem:[#allocation8 + $0x10] sm:$0xff]
    %v1122 = vld [vmem:[#allocation8 + $0x18] sm:$0xff]
    %v1123 = vld [vmem:[#allocation8 + $0x20] sm:$0xff]
    %v1124 = vld [vmem:[#allocation8 + $0x28] sm:$0xff]
    %v1125 = vld [vmem:[#allocation8 + $0x30] sm:$0xff]
    %v1126 = vld [vmem:[#allocation8 + $0x38] sm:$0xff]
    %v1127 = vld [vmem:[#allocation8 + $0x40] sm:$0xff]
    %v1128 = vld [vmem:[#allocation8 + $0x48] sm:$0xff]
    %v1129 = vld [vmem:[#allocation8 + $0x50] sm:$0xff]
    %v1130 = vld [vmem:[#allocation8 + $0x58] sm:$0xff]
    %v1131 = vld [vmem:[#allocation8 + $0x60] sm:$0xff]
    %v1132 = vld [vmem:[#allocation8 + $0x68] sm:$0xff]
    %v1133 = vld [vmem:[#allocation8 + $0x70] sm:$0xff]
    %v1134 = vld [vmem:[#allocation8 + $0x78] sm:$0xff]
    %v1135 = vld [vmem:[#allocation8 + $0x80] sm:$0xff]
    %v1136 = vld [vmem:[#allocation8 + $0x88] sm:$0xff]
    %v1137 = vld [vmem:[#allocation8 + $0x90] sm:$0xff]
    %v1138 = vld [vmem:[#allocation8 + $0x98] sm:$0xff]
    %v1139 = vld [vmem:[#allocation8 + $0xa0] sm:$0xff]
    %v1140 = vld [vmem:[#allocation8 + $0xa8] sm:$0xff]
    %v1141 = vld [vmem:[#allocation8 + $0xb0] sm:$0xff]
    %v1142 = vld [vmem:[#allocation8 + $0xb8] sm:$0xff]
    %v1143 = vld [vmem:[#allocation8 + $0xc0] sm:$0xff]
    %v1144 = vld [vmem:[#allocation8 + $0xc8] sm:$0xff]
    %v1145 = vld [vmem:[#allocation8 + $0xd0] sm:$0xff]
    %v1146 = vld [vmem:[#allocation8 + $0xd8] sm:$0xff]
    %v1147 = vld [vmem:[#allocation8 + $0xe0] sm:$0xff]
    %v1148 = vld [vmem:[#allocation8 + $0xe8] sm:$0xff]
    %v1149 = vld [vmem:[#allocation8 + $0xf0] sm:$0xff]
    %v1150 = vld [vmem:[#allocation8 + $0xf8] sm:$0xff]
    %v1151 = vld [vmem:[#allocation8 + $0x100] sm:$0xff]
    %v1152 = vld [vmem:[#allocation8 + $0x108] sm:$0xff]
    %v1153 = vld [vmem:[#allocation8 + $0x110] sm:$0xff]
    %v1154 = vld [vmem:[#allocation8 + $0x118] sm:$0xff]
    %v1155 = vld [vmem:[#allocation8 + $0x120] sm:$0xff]
    %v1156 = vld [vmem:[#allocation8 + $0x128] sm:$0xff]
    %v1157 = vld [vmem:[#allocation8 + $0x130] sm:$0xff]
    %v1158 = vld [vmem:[#allocation8 + $0x138] sm:$0xff]
    %v1159 = vld [vmem:[#allocation8 + $0x140] sm:$0xff]
    %v1160 = vld [vmem:[#allocation8 + $0x148] sm:$0xff]
    %v1161 = vld [vmem:[#allocation8 + $0x150] sm:$0xff]
    %v1162 = vld [vmem:[#allocation8 + $0x158] sm:$0xff]
    %v1163 = vld [vmem:[#allocation8 + $0x160] sm:$0xff]
    %v1164 = vld [vmem:[#allocation8 + $0x168] sm:$0xff]
    %v1165 = vld [vmem:[#allocation8 + $0x170] sm:$0xff]
    %v1166 = vld [vmem:[#allocation8 + $0x178] sm:$0xff]
    %v1167 = vld [vmem:[#allocation8 + $0x180] sm:$0xff]
    %v1168 = vld [vmem:[#allocation8 + $0x188] sm:$0xff]
    %v1169 = vld [vmem:[#allocation8 + $0x190] sm:$0xff]
    %v1170 = vld [vmem:[#allocation8 + $0x198] sm:$0xff]
    %v1171 = vld [vmem:[#allocation8 + $0x1a0] sm:$0xff]
    %v1172 = vld [vmem:[#allocation8 + $0x1a8] sm:$0xff]
    %v1173 = vld [vmem:[#allocation8 + $0x1b0] sm:$0xff]
    %v1174 = vld [vmem:[#allocation8 + $0x1b8] sm:$0xff]
    %v1175 = vld [vmem:[#allocation8 + $0x1c0] sm:$0xff]
    %v1176 = vld [vmem:[#allocation8 + $0x1c8] sm:$0xff]
    %v1177 = vld [vmem:[#allocation8 + $0x1d0] sm:$0xff]
    %v1178 = vld [vmem:[#allocation8 + $0x1d8] sm:$0xff]
    %v1179 = vld [vmem:[#allocation8 + $0x1e0] sm:$0xff]
    %v1180 = vld [vmem:[#allocation8 + $0x1e8] sm:$0xff]
    %v1181 = vld [vmem:[#allocation8 + $0x1f0] sm:$0xff]
    %v1182 = vld [vmem:[#allocation8 + $0x1f8] sm:$0xff]
    %v1183 = vld [vmem:[#allocation8 + $0x200] sm:$0xff]
    %v1184 = vld [vmem:[#allocation8 + $0x208] sm:$0xff]
    %v1185 = vld [vmem:[#allocation8 + $0x210] sm:$0xff]
    %v1186 = vld [vmem:[#allocation8 + $0x218] sm:$0xff]
    %v1187 = vld [vmem:[#allocation8 + $0x220] sm:$0xff]
    %v1188 = vld [vmem:[#allocation8 + $0x228] sm:$0xff]
    %v1189 = vld [vmem:[#allocation8 + $0x230] sm:$0xff]
    %v1190 = vld [vmem:[#allocation8 + $0x238] sm:$0xff]
    %v1191 = vld [vmem:[#allocation8 + $0x240] sm:$0xff]
    %v1192 = vld [vmem:[#allocation8 + $0x248] sm:$0xff]
    %v1193 = vld [vmem:[#allocation8 + $0x250] sm:$0xff]
    %v1194 = vld [vmem:[#allocation8 + $0x258] sm:$0xff]
    %v1195 = vld [vmem:[#allocation8 + $0x260] sm:$0xff]
    %v1196 = vld [vmem:[#allocation8 + $0x268] sm:$0xff]
    %v1197 = vld [vmem:[#allocation8 + $0x270] sm:$0xff]
    %v1198 = vld [vmem:[#allocation8 + $0x278] sm:$0xff]
    %v1199 = vld [vmem:[#allocation8 + $0x280] sm:$0xff]
    %v1200 = vld [vmem:[#allocation8 + $0x288] sm:$0xff]
    %v1201 = vld [vmem:[#allocation8 + $0x290] sm:$0xff]
    %v1202 = vld [vmem:[#allocation8 + $0x298] sm:$0xff]
    %v1203 = vld [vmem:[#allocation8 + $0x2a0] sm:$0xff]
    %v1204 = vld [vmem:[#allocation8 + $0x2a8] sm:$0xff]
    %v1205 = vld [vmem:[#allocation8 + $0x2b0] sm:$0xff]
    %v1206 = vld [vmem:[#allocation8 + $0x2b8] sm:$0xff]
    %v1207 = vld [vmem:[#allocation8 + $0x2c0] sm:$0xff]
    %v1208 = vld [vmem:[#allocation8 + $0x2c8] sm:$0xff]
    %v1209 = vld [vmem:[#allocation8 + $0x2d0] sm:$0xff]
    %v1210 = vld [vmem:[#allocation8 + $0x2d8] sm:$0xff]
    %v1211 = vld [vmem:[#allocation8 + $0x2e0] sm:$0xff]
    %v1212 = vld [vmem:[#allocation8 + $0x2e8] sm:$0xff]
    %v1213 = vld [vmem:[#allocation8 + $0x2f0] sm:$0xff]
    %v1214 = vld [vmem:[#allocation8 + $0x2f8] sm:$0xff]
    %v1215 = vld [vmem:[#allocation8 + $0x300] sm:$0xff]
    %v1216 = vld [vmem:[#allocation8 + $0x308] sm:$0xff]
    %v1217 = vld [vmem:[#allocation8 + $0x310] sm:$0xff]
    %v1218 = vld [vmem:[#allocation8 + $0x318] sm:$0xff]
    %v1219 = vld [vmem:[#allocation8 + $0x320] sm:$0xff]
    %v1220 = vld [vmem:[#allocation8 + $0x328] sm:$0xff]
    %v1221 = vld [vmem:[#allocation8 + $0x330] sm:$0xff]
    %v1222 = vld [vmem:[#allocation8 + $0x338] sm:$0xff]
    %v1223 = vld [vmem:[#allocation8 + $0x340] sm:$0xff]
    %v1224 = vld [vmem:[#allocation8 + $0x348] sm:$0xff]
    %v1225 = vld [vmem:[#allocation8 + $0x350] sm:$0xff]
    %v1226 = vld [vmem:[#allocation8 + $0x358] sm:$0xff]
    %v1227 = vld [vmem:[#allocation8 + $0x360] sm:$0xff]
    %v1228 = vld [vmem:[#allocation8 + $0x368] sm:$0xff]
    %v1229 = vld [vmem:[#allocation8 + $0x370] sm:$0xff]
    %v1230 = vld [vmem:[#allocation8 + $0x378] sm:$0xff]
    %v1231 = vld [vmem:[#allocation8 + $0x380] sm:$0xff]
    %v1232 = vld [vmem:[#allocation8 + $0x388] sm:$0xff]
    %v1233 = vld [vmem:[#allocation8 + $0x390] sm:$0xff]
    %v1234 = vld [vmem:[#allocation8 + $0x398] sm:$0xff]
    %v1235 = vld [vmem:[#allocation8 + $0x3a0] sm:$0xff]
    %v1236 = vld [vmem:[#allocation8 + $0x3a8] sm:$0xff]
    %v1237 = vld [vmem:[#allocation8 + $0x3b0] sm:$0xff]
    %v1238 = vld [vmem:[#allocation8 + $0x3b8] sm:$0xff]
    %v1239 = vld [vmem:[#allocation8 + $0x3c0] sm:$0xff]
    %v1240 = vld [vmem:[#allocation8 + $0x3c8] sm:$0xff]
    %v1241 = vld [vmem:[#allocation8 + $0x3d0] sm:$0xff]
    %v1242 = vld [vmem:[#allocation8 + $0x3d8] sm:$0xff]
    %v1243 = vld [vmem:[#allocation8 + $0x3e0] sm:$0xff]
    %v1244 = vld [vmem:[#allocation8 + $0x3e8] sm:$0xff]
    %v1245 = vld [vmem:[#allocation8 + $0x3f0] sm:$0xff]
    %v1246 = vld [vmem:[#allocation8 + $0x3f8] sm:$0xff]
    %v1247 = vld [vmem:[#allocation8 + $0x400] sm:$0xff]
    %v1248 = vld [vmem:[#allocation8 + $0x408] sm:$0xff]
    %v1249 = vld [vmem:[#allocation8 + $0x410] sm:$0xff]
    %v1250 = vld [vmem:[#allocation8 + $0x418] sm:$0xff]
    %v1251 = vld [vmem:[#allocation8 + $0x420] sm:$0xff]
    %v1252 = vld [vmem:[#allocation8 + $0x428] sm:$0xff]
    %v1253 = vld [vmem:[#allocation8 + $0x430] sm:$0xff]
    %v1254 = vld [vmem:[#allocation8 + $0x438] sm:$0xff]
    %v1255 = vld [vmem:[#allocation8 + $0x440] sm:$0xff]
    %v1256 = vld [vmem:[#allocation8 + $0x448] sm:$0xff]
    %v1257 = vld [vmem:[#allocation8 + $0x450] sm:$0xff]
    %v1258 = vld [vmem:[#allocation8 + $0x458] sm:$0xff]
    %v1259 = vld [vmem:[#allocation8 + $0x460] sm:$0xff]
    %v1260 = vld [vmem:[#allocation8 + $0x468] sm:$0xff]
    %v1261 = vld [vmem:[#allocation8 + $0x470] sm:$0xff]
    %v1262 = vld [vmem:[#allocation8 + $0x478] sm:$0xff]
    %v1263 = vld [vmem:[#allocation8 + $0x480] sm:$0xff]
    %v1264 = vld [vmem:[#allocation8 + $0x488] sm:$0xff]
    %v1265 = vld [vmem:[#allocation8 + $0x490] sm:$0xff]
    %v1266 = vld [vmem:[#allocation8 + $0x498] sm:$0xff]
    %v1267 = vld [vmem:[#allocation8 + $0x4a0] sm:$0xff]
    %v1268 = vld [vmem:[#allocation8 + $0x4a8] sm:$0xff]
    %v1269 = vld [vmem:[#allocation8 + $0x4b0] sm:$0xff]
    %v1270 = vld [vmem:[#allocation8 + $0x4b8] sm:$0xff]
    %v1271 = vld [vmem:[#allocation8 + $0x4c0] sm:$0xff]
    %v1272 = vld [vmem:[#allocation8 + $0x4c8] sm:$0xff]
    %v1273 = vld [vmem:[#allocation8 + $0x4d0] sm:$0xff]
    %v1274 = vld [vmem:[#allocation8 + $0x4d8] sm:$0xff]
    %v1275 = vld [vmem:[#allocation8 + $0x4e0] sm:$0xff]
    %v1276 = vld [vmem:[#allocation8 + $0x4e8] sm:$0xff]
    %v1277 = vld [vmem:[#allocation8 + $0x4f0] sm:$0xff]
    %v1278 = vld [vmem:[#allocation8 + $0x4f8] sm:$0xff]
    %v1279 = vld [vmem:[#allocation8 + $0x500] sm:$0xff]
    %v1280 = vld [vmem:[#allocation8 + $0x508] sm:$0xff]
    %v1281 = vld [vmem:[#allocation8 + $0x510] sm:$0xff]
    %v1282 = vld [vmem:[#allocation8 + $0x518] sm:$0xff]
    %v1283 = vld [vmem:[#allocation8 + $0x520] sm:$0xff]
    %v1284 = vld [vmem:[#allocation8 + $0x528] sm:$0xff]
    %v1285 = vld [vmem:[#allocation8 + $0x530] sm:$0xff]
    %v1286 = vld [vmem:[#allocation8 + $0x538] sm:$0xff]
    %v1287 = vld [vmem:[#allocation8 + $0x540] sm:$0xff]
    %v1288 = vld [vmem:[#allocation8 + $0x548] sm:$0xff]
    %v1289 = vld [vmem:[#allocation8 + $0x550] sm:$0xff]
    %v1290 = vld [vmem:[#allocation8 + $0x558] sm:$0xff]
    %v1291 = vld [vmem:[#allocation8 + $0x560] sm:$0xff]
    %v1292 = vld [vmem:[#allocation8 + $0x568] sm:$0xff]
    %v1293 = vld [vmem:[#allocation8 + $0x570] sm:$0xff]
    %v1294 = vld [vmem:[#allocation8 + $0x578] sm:$0xff]
    %v1295 = vld [vmem:[#allocation8 + $0x580] sm:$0xff]
    %v1296 = vld [vmem:[#allocation8 + $0x588] sm:$0xff]
    %v1297 = vld [vmem:[#allocation8 + $0x590] sm:$0xff]
    %v1298 = vld [vmem:[#allocation8 + $0x598] sm:$0xff]
    %v1299 = vld [vmem:[#allocation8 + $0x5a0] sm:$0xff]
    %v1300 = vld [vmem:[#allocation8 + $0x5a8] sm:$0xff]
    %v1301 = vld [vmem:[#allocation8 + $0x5b0] sm:$0xff]
    %v1302 = vld [vmem:[#allocation8 + $0x5b8] sm:$0xff]
    %v1303 = vld [vmem:[#allocation8 + $0x5c0] sm:$0xff]
    %v1304 = vld [vmem:[#allocation8 + $0x5c8] sm:$0xff]
    %v1305 = vld [vmem:[#allocation8 + $0x5d0] sm:$0xff]
    %v1306 = vld [vmem:[#allocation8 + $0x5d8] sm:$0xff]
    %v1307 = vld [vmem:[#allocation8 + $0x5e0] sm:$0xff]
    %v1308 = vld [vmem:[#allocation8 + $0x5e8] sm:$0xff]
    %v1309 = vld [vmem:[#allocation8 + $0x5f0] sm:$0xff]
    %v1310 = vld [vmem:[#allocation8 + $0x5f8] sm:$0xff]
    %v1311 = vld [vmem:[#allocation8 + $0x600] sm:$0xff]
    %v1312 = vld [vmem:[#allocation8 + $0x608] sm:$0xff]
    %v1313 = vld [vmem:[#allocation8 + $0x610] sm:$0xff]
    %v1314 = vld [vmem:[#allocation8 + $0x618] sm:$0xff]
    %v1315 = vld [vmem:[#allocation8 + $0x620] sm:$0xff]
    %v1316 = vld [vmem:[#allocation8 + $0x628] sm:$0xff]
    %v1317 = vld [vmem:[#allocation8 + $0x630] sm:$0xff]
    %v1318 = vld [vmem:[#allocation8 + $0x638] sm:$0xff]
    %v1319 = vld [vmem:[#allocation8 + $0x640] sm:$0xff]
    %v1320 = vld [vmem:[#allocation8 + $0x648] sm:$0xff]
    %v1321 = vld [vmem:[#allocation8 + $0x650] sm:$0xff]
    %v1322 = vld [vmem:[#allocation8 + $0x658] sm:$0xff]
    %v1323 = vld [vmem:[#allocation8 + $0x660] sm:$0xff]
    %v1324 = vld [vmem:[#allocation8 + $0x668] sm:$0xff]
    %v1325 = vld [vmem:[#allocation8 + $0x670] sm:$0xff]
    %v1326 = vld [vmem:[#allocation8 + $0x678] sm:$0xff]
    %v1327 = vld [vmem:[#allocation8 + $0x680] sm:$0xff]
    %v1328 = vld [vmem:[#allocation8 + $0x688] sm:$0xff]
    %v1329 = vld [vmem:[#allocation8 + $0x690] sm:$0xff]
    %v1330 = vld [vmem:[#allocation8 + $0x698] sm:$0xff]
    %v1331 = vld [vmem:[#allocation8 + $0x6a0] sm:$0xff]
    %v1332 = vld [vmem:[#allocation8 + $0x6a8] sm:$0xff]
    %v1333 = vld [vmem:[#allocation8 + $0x6b0] sm:$0xff]
    %v1334 = vld [vmem:[#allocation8 + $0x6b8] sm:$0xff]
    %v1335 = vld [vmem:[#allocation8 + $0x6c0] sm:$0xff]
    %v1336 = vld [vmem:[#allocation8 + $0x6c8] sm:$0xff]
    %v1337 = vld [vmem:[#allocation8 + $0x6d0] sm:$0xff]
    %v1338 = vld [vmem:[#allocation8 + $0x6d8] sm:$0xff]
    %v1339 = vld [vmem:[#allocation8 + $0x6e0] sm:$0xff]
    %v1340 = vld [vmem:[#allocation8 + $0x6e8] sm:$0xff]
    %v1341 = vld [vmem:[#allocation8 + $0x6f0] sm:$0xff]
    %v1342 = vld [vmem:[#allocation8 + $0x6f8] sm:$0xff]
    %v1343 = vld [vmem:[#allocation8 + $0x700] sm:$0xff]
    %v1344 = vld [vmem:[#allocation8 + $0x708] sm:$0xff]
    %v1345 = vld [vmem:[#allocation8 + $0x710] sm:$0xff]
    %v1346 = vld [vmem:[#allocation8 + $0x718] sm:$0xff]
    %v1347 = vld [vmem:[#allocation8 + $0x720] sm:$0xff]
    %v1348 = vld [vmem:[#allocation8 + $0x728] sm:$0xff]
    %v1349 = vld [vmem:[#allocation8 + $0x730] sm:$0xff]
    %v1350 = vld [vmem:[#allocation8 + $0x738] sm:$0xff]
    %v1351 = vld [vmem:[#allocation8 + $0x740] sm:$0xff]
    %v1352 = vld [vmem:[#allocation8 + $0x748] sm:$0xff]
    %v1353 = vld [vmem:[#allocation8 + $0x750] sm:$0xff]
    %v1354 = vld [vmem:[#allocation8 + $0x758] sm:$0xff]
    %v1355 = vld [vmem:[#allocation8 + $0x760] sm:$0xff]
    %v1356 = vld [vmem:[#allocation8 + $0x768] sm:$0xff]
    %v1357 = vld [vmem:[#allocation8 + $0x770] sm:$0xff]
    %v1358 = vld [vmem:[#allocation8 + $0x778] sm:$0xff]
    %v1359 = vld [vmem:[#allocation8 + $0x780] sm:$0xff]
    %v1360 = vld [vmem:[#allocation8 + $0x788] sm:$0xff]
    %v1361 = vld [vmem:[#allocation8 + $0x790] sm:$0xff]
    %v1362 = vld [vmem:[#allocation8 + $0x798] sm:$0xff]
    %v1363 = vld [vmem:[#allocation8 + $0x7a0] sm:$0xff]
    %v1364 = vld [vmem:[#allocation8 + $0x7a8] sm:$0xff]
    %v1365 = vld [vmem:[#allocation8 + $0x7b0] sm:$0xff]
    %v1366 = vld [vmem:[#allocation8 + $0x7b8] sm:$0xff]
    %v1367 = vld [vmem:[#allocation8 + $0x7c0] sm:$0xff]
    %v1368 = vld [vmem:[#allocation8 + $0x7c8] sm:$0xff]
    %v1369 = vld [vmem:[#allocation8 + $0x7d0] sm:$0xff]
    %v1370 = vld [vmem:[#allocation8 + $0x7d8] sm:$0xff]
    %v1371 = vld [vmem:[#allocation8 + $0x7e0] sm:$0xff]
    %v1372 = vld [vmem:[#allocation8 + $0x7e8] sm:$0xff]
    %v1373 = vld [vmem:[#allocation8 + $0x7f0] sm:$0xff]
    %v1374 = vld [vmem:[#allocation8 + $0x7f8] sm:$0xff]
    %v1375 = vld [vmem:[#allocation8 + $0x800] sm:$0xff]
    %v1376 = vld [vmem:[#allocation8 + $0x808] sm:$0xff]
    %v1377 = vld [vmem:[#allocation8 + $0x810] sm:$0xff]
    %v1378 = vld [vmem:[#allocation8 + $0x818] sm:$0xff]
    %v1379 = vld [vmem:[#allocation8 + $0x820] sm:$0xff]
    %v1380 = vld [vmem:[#allocation8 + $0x828] sm:$0xff]
    %v1381 = vld [vmem:[#allocation8 + $0x830] sm:$0xff]
    %v1382 = vld [vmem:[#allocation8 + $0x838] sm:$0xff]
    %v1383 = vld [vmem:[#allocation8 + $0x840] sm:$0xff]
    %v1384 = vld [vmem:[#allocation8 + $0x848] sm:$0xff]
    %v1385 = vld [vmem:[#allocation8 + $0x850] sm:$0xff]
    %v1386 = vld [vmem:[#allocation8 + $0x858] sm:$0xff]
    %v1387 = vld [vmem:[#allocation8 + $0x860] sm:$0xff]
    %v1388 = vld [vmem:[#allocation8 + $0x868] sm:$0xff]
    %v1389 = vld [vmem:[#allocation8 + $0x870] sm:$0xff]
    %v1390 = vld [vmem:[#allocation8 + $0x878] sm:$0xff]
    %v1391 = vld [vmem:[#allocation8 + $0x880] sm:$0xff]
    %v1392 = vld [vmem:[#allocation8 + $0x888] sm:$0xff]
    %v1393 = vld [vmem:[#allocation8 + $0x890] sm:$0xff]
    %v1394 = vld [vmem:[#allocation8 + $0x898] sm:$0xff]
    %v1395 = vld [vmem:[#allocation8 + $0x8a0] sm:$0xff]
    %v1396 = vld [vmem:[#allocation8 + $0x8a8] sm:$0xff]
    %v1397 = vld [vmem:[#allocation8 + $0x8b0] sm:$0xff]
    %v1398 = vld [vmem:[#allocation8 + $0x8b8] sm:$0xff]
    %v1399 = vld [vmem:[#allocation8 + $0x8c0] sm:$0xff]
    %v1400 = vld [vmem:[#allocation8 + $0x8c8] sm:$0xff]
    %v1401 = vld [vmem:[#allocation8 + $0x8d0] sm:$0xff]
    %v1402 = vld [vmem:[#allocation8 + $0x8d8] sm:$0xff]
    %v1403 = vld [vmem:[#allocation8 + $0x8e0] sm:$0xff]
    %v1404 = vld [vmem:[#allocation8 + $0x8e8] sm:$0xff]
    %v1405 = vld [vmem:[#allocation8 + $0x8f0] sm:$0xff]
    %v1406 = vld [vmem:[#allocation8 + $0x8f8] sm:$0xff]
    %v1407 = vld [vmem:[#allocation8 + $0x900] sm:$0xff]
    %v1408 = vld [vmem:[#allocation8 + $0x908] sm:$0xff]
    %v1409 = vld [vmem:[#allocation8 + $0x910] sm:$0xff]
    %v1410 = vld [vmem:[#allocation8 + $0x918] sm:$0xff]
    %v1411 = vld [vmem:[#allocation8 + $0x920] sm:$0xff]
    %v1412 = vld [vmem:[#allocation8 + $0x928] sm:$0xff]
    %v1413 = vld [vmem:[#allocation8 + $0x930] sm:$0xff]
    %v1414 = vld [vmem:[#allocation8 + $0x938] sm:$0xff]
    %v1415 = vld [vmem:[#allocation8 + $0x940] sm:$0xff]
    %v1416 = vld [vmem:[#allocation8 + $0x948] sm:$0xff]
    %v1417 = vld [vmem:[#allocation8 + $0x950] sm:$0xff]
    %v1418 = vld [vmem:[#allocation8 + $0x958] sm:$0xff]
    %v1419 = vld [vmem:[#allocation8 + $0x960] sm:$0xff]
    %v1420 = vld [vmem:[#allocation8 + $0x968] sm:$0xff]
    %v1421 = vld [vmem:[#allocation8 + $0x970] sm:$0xff]
    %v1422 = vld [vmem:[#allocation8 + $0x978] sm:$0xff]
    %v1423 = vld [vmem:[#allocation8 + $0x980] sm:$0xff]
    %v1424 = vld [vmem:[#allocation8 + $0x988] sm:$0xff]
    %v1425 = vld [vmem:[#allocation8 + $0x990] sm:$0xff]
    %v1426 = vld [vmem:[#allocation8 + $0x998] sm:$0xff]
    %v1427 = vld [vmem:[#allocation8 + $0x9a0] sm:$0xff]
    %v1428 = vld [vmem:[#allocation8 + $0x9a8] sm:$0xff]
    %v1429 = vld [vmem:[#allocation8 + $0x9b0] sm:$0xff]
    %v1430 = vld [vmem:[#allocation8 + $0x9b8] sm:$0xff]
    %v1431 = vld [vmem:[#allocation8 + $0x9c0] sm:$0xff]
    %v1432 = vld [vmem:[#allocation8 + $0x9c8] sm:$0xff]
    %v1433 = vld [vmem:[#allocation8 + $0x9d0] sm:$0xff]
    %v1434 = vld [vmem:[#allocation8 + $0x9d8] sm:$0xff]
    %v1435 = vld [vmem:[#allocation8 + $0x9e0] sm:$0xff]
    %v1436 = vld [vmem:[#allocation8 + $0x9e8] sm:$0xff]
    %v1437 = vld [vmem:[#allocation8 + $0x9f0] sm:$0xff]
    %v1438 = vld [vmem:[#allocation8 + $0x9f8] sm:$0xff]
    %v1439 = vld [vmem:[#allocation8 + $0xa00] sm:$0xff]
    %v1440 = vld [vmem:[#allocation8 + $0xa08] sm:$0xff]
    %v1441 = vld [vmem:[#allocation8 + $0xa10] sm:$0xff]
    %v1442 = vld [vmem:[#allocation8 + $0xa18] sm:$0xff]
    %v1443 = vld [vmem:[#allocation8 + $0xa20] sm:$0xff]
    %v1444 = vld [vmem:[#allocation8 + $0xa28] sm:$0xff]
    %v1445 = vld [vmem:[#allocation8 + $0xa30] sm:$0xff]
    %v1446 = vld [vmem:[#allocation8 + $0xa38] sm:$0xff]
    %v1447 = vld [vmem:[#allocation8 + $0xa40] sm:$0xff]
    %v1448 = vld [vmem:[#allocation8 + $0xa48] sm:$0xff]
    %v1449 = vld [vmem:[#allocation8 + $0xa50] sm:$0xff]
    %v1450 = vld [vmem:[#allocation8 + $0xa58] sm:$0xff]
    %v1451 = vld [vmem:[#allocation8 + $0xa60] sm:$0xff]
    %v1452 = vld [vmem:[#allocation8 + $0xa68] sm:$0xff]
    %v1453 = vld [vmem:[#allocation8 + $0xa70] sm:$0xff]
    %v1454 = vld [vmem:[#allocation8 + $0xa78] sm:$0xff]
    %v1455 = vld [vmem:[#allocation8 + $0xa80] sm:$0xff]
    %v1456 = vld [vmem:[#allocation8 + $0xa88] sm:$0xff]
    %v1457 = vld [vmem:[#allocation8 + $0xa90] sm:$0xff]
    %v1458 = vld [vmem:[#allocation8 + $0xa98] sm:$0xff]
    %v1459 = vld [vmem:[#allocation8 + $0xaa0] sm:$0xff]
    %v1460 = vld [vmem:[#allocation8 + $0xaa8] sm:$0xff]
    %v1461 = vld [vmem:[#allocation8 + $0xab0] sm:$0xff]
    %v1462 = vld [vmem:[#allocation8 + $0xab8] sm:$0xff]
    %v1463 = vld [vmem:[#allocation8 + $0xac0] sm:$0xff]
    %v1464 = vld [vmem:[#allocation8 + $0xac8] sm:$0xff]
    %v1465 = vld [vmem:[#allocation8 + $0xad0] sm:$0xff]
    %v1466 = vld [vmem:[#allocation8 + $0xad8] sm:$0xff]
    %v1467 = vld [vmem:[#allocation8 + $0xae0] sm:$0xff]
    %v1468 = vld [vmem:[#allocation8 + $0xae8] sm:$0xff]
    %v1469 = vld [vmem:[#allocation8 + $0xaf0] sm:$0xff]
    %v1470 = vld [vmem:[#allocation8 + $0xaf8] sm:$0xff]
    %v1471 = vld [vmem:[#allocation8 + $0xb00] sm:$0xff]
    %v1472 = vld [vmem:[#allocation8 + $0xb08] sm:$0xff]
    %v1473 = vld [vmem:[#allocation8 + $0xb10] sm:$0xff]
    %v1474 = vld [vmem:[#allocation8 + $0xb18] sm:$0xff]
    %v1475 = vld [vmem:[#allocation8 + $0xb20] sm:$0xff]
    %v1476 = vld [vmem:[#allocation8 + $0xb28] sm:$0xff]
    %v1477 = vld [vmem:[#allocation8 + $0xb30] sm:$0xff]
    %v1478 = vld [vmem:[#allocation8 + $0xb38] sm:$0xff]
    %v1479 = vld [vmem:[#allocation8 + $0xb40] sm:$0xff]
    %v1480 = vld [vmem:[#allocation8 + $0xb48] sm:$0xff]
    %v1481 = vld [vmem:[#allocation8 + $0xb50] sm:$0xff]
    %v1482 = vld [vmem:[#allocation8 + $0xb58] sm:$0xff]
    %v1483 = vld [vmem:[#allocation8 + $0xb60] sm:$0xff]
    %v1484 = vld [vmem:[#allocation8 + $0xb68] sm:$0xff]
    %v1485 = vld [vmem:[#allocation8 + $0xb70] sm:$0xff]
    %v1486 = vld [vmem:[#allocation8 + $0xb78] sm:$0xff]
    %v1487 = vld [vmem:[#allocation8 + $0xb80] sm:$0xff]
    %v1488 = vld [vmem:[#allocation8 + $0xb88] sm:$0xff]
    %v1489 = vld [vmem:[#allocation8 + $0xb90] sm:$0xff]
    %v1490 = vld [vmem:[#allocation8 + $0xb98] sm:$0xff]
    %v1491 = vld [vmem:[#allocation8 + $0xba0] sm:$0xff]
    %v1492 = vld [vmem:[#allocation8 + $0xba8] sm:$0xff]
    %v1493 = vld [vmem:[#allocation8 + $0xbb0] sm:$0xff]
    %v1494 = vld [vmem:[#allocation8 + $0xbb8] sm:$0xff]
    %v1495 = vld [vmem:[#allocation8 + $0xbc0] sm:$0xff]
    %v1496 = vld [vmem:[#allocation8 + $0xbc8] sm:$0xff]
    %v1497 = vld [vmem:[#allocation8 + $0xbd0] sm:$0xff]
    %v1498 = vld [vmem:[#allocation8 + $0xbd8] sm:$0xff]
    %v1499 = vld [vmem:[#allocation8 + $0xbe0] sm:$0xff]
    %v1500 = vld [vmem:[#allocation8 + $0xbe8] sm:$0xff]
    %v1501 = vld [vmem:[#allocation8 + $0xbf0] sm:$0xff]
    %v1502 = vld [vmem:[#allocation8 + $0xbf8] sm:$0xff]
    %v1503 = vld [vmem:[#allocation8 + $0xc00] sm:$0xff]
    %v1504 = vld [vmem:[#allocation8 + $0xc08] sm:$0xff]
    %v1505 = vld [vmem:[#allocation8 + $0xc10] sm:$0xff]
    %v1506 = vld [vmem:[#allocation8 + $0xc18] sm:$0xff]
    %v1507 = vld [vmem:[#allocation8 + $0xc20] sm:$0xff]
    %v1508 = vld [vmem:[#allocation8 + $0xc28] sm:$0xff]
    %v1509 = vld [vmem:[#allocation8 + $0xc30] sm:$0xff]
    %v1510 = vld [vmem:[#allocation8 + $0xc38] sm:$0xff]
    %v1511 = vld [vmem:[#allocation8 + $0xc40] sm:$0xff]
    %v1512 = vld [vmem:[#allocation8 + $0xc48] sm:$0xff]
    %v1513 = vld [vmem:[#allocation8 + $0xc50] sm:$0xff]
    %v1514 = vld [vmem:[#allocation8 + $0xc58] sm:$0xff]
    %v1515 = vld [vmem:[#allocation8 + $0xc60] sm:$0xff]
    %v1516 = vld [vmem:[#allocation8 + $0xc68] sm:$0xff]
    %v1517 = vld [vmem:[#allocation8 + $0xc70] sm:$0xff]
    %v1518 = vld [vmem:[#allocation8 + $0xc78] sm:$0xff]
    %v1519 = vld [vmem:[#allocation8 + $0xc80] sm:$0xff]
    %v1520 = vld [vmem:[#allocation8 + $0xc88] sm:$0xff]
    %v1521 = vld [vmem:[#allocation8 + $0xc90] sm:$0xff]
    %v1522 = vld [vmem:[#allocation8 + $0xc98] sm:$0xff]
    %v1523 = vld [vmem:[#allocation8 + $0xca0] sm:$0xff]
    %v1524 = vld [vmem:[#allocation8 + $0xca8] sm:$0xff]
    %v1525 = vld [vmem:[#allocation8 + $0xcb0] sm:$0xff]
    %v1526 = vld [vmem:[#allocation8 + $0xcb8] sm:$0xff]
    %v1527 = vld [vmem:[#allocation8 + $0xcc0] sm:$0xff]
    %v1528 = vld [vmem:[#allocation8 + $0xcc8] sm:$0xff]
    %v1529 = vld [vmem:[#allocation8 + $0xcd0] sm:$0xff]
    %v1530 = vld [vmem:[#allocation8 + $0xcd8] sm:$0xff]
    %v1531 = vld [vmem:[#allocation8 + $0xce0] sm:$0xff]
    %v1532 = vld [vmem:[#allocation8 + $0xce8] sm:$0xff]
    %v1533 = vld [vmem:[#allocation8 + $0xcf0] sm:$0xff]
    %v1534 = vld [vmem:[#allocation8 + $0xcf8] sm:$0xff]
    %v1535 = vld [vmem:[#allocation8 + $0xd00] sm:$0xff]
    %v1536 = vld [vmem:[#allocation8 + $0xd08] sm:$0xff]
    %v1537 = vld [vmem:[#allocation8 + $0xd10] sm:$0xff]
    %v1538 = vld [vmem:[#allocation8 + $0xd18] sm:$0xff]
    %v1539 = vld [vmem:[#allocation8 + $0xd20] sm:$0xff]
    %v1540 = vld [vmem:[#allocation8 + $0xd28] sm:$0xff]
    %v1541 = vld [vmem:[#allocation8 + $0xd30] sm:$0xff]
    %v1542 = vld [vmem:[#allocation8 + $0xd38] sm:$0xff]
    %v1543 = vld [vmem:[#allocation8 + $0xd40] sm:$0xff]
    %v1544 = vld [vmem:[#allocation8 + $0xd48] sm:$0xff]
    %v1545 = vld [vmem:[#allocation8 + $0xd50] sm:$0xff]
    %v1546 = vld [vmem:[#allocation8 + $0xd58] sm:$0xff]
    %v1547 = vld [vmem:[#allocation8 + $0xd60] sm:$0xff]
    %v1548 = vld [vmem:[#allocation8 + $0xd68] sm:$0xff]
    %v1549 = vld [vmem:[#allocation8 + $0xd70] sm:$0xff]
    %v1550 = vld [vmem:[#allocation8 + $0xd78] sm:$0xff]
    %v1551 = vld [vmem:[#allocation8 + $0xd80] sm:$0xff]
    %v1552 = vld [vmem:[#allocation8 + $0xd88] sm:$0xff]
    %v1553 = vld [vmem:[#allocation8 + $0xd90] sm:$0xff]
    %v1554 = vld [vmem:[#allocation8 + $0xd98] sm:$0xff]
    %v1555 = vld [vmem:[#allocation8 + $0xda0] sm:$0xff]
    %v1556 = vld [vmem:[#allocation8 + $0xda8] sm:$0xff]
    %v1557 = vld [vmem:[#allocation8 + $0xdb0] sm:$0xff]
    %v1558 = vld [vmem:[#allocation8 + $0xdb8] sm:$0xff]
    %v1559 = vld [vmem:[#allocation8 + $0xdc0] sm:$0xff]
    %v1560 = vld [vmem:[#allocation8 + $0xdc8] sm:$0xff]
    %v1561 = vld [vmem:[#allocation8 + $0xdd0] sm:$0xff]
    %v1562 = vld [vmem:[#allocation8 + $0xdd8] sm:$0xff]
    %v1563 = vld [vmem:[#allocation8 + $0xde0] sm:$0xff]
    %v1564 = vld [vmem:[#allocation8 + $0xde8] sm:$0xff]
    %v1565 = vld [vmem:[#allocation8 + $0xdf0] sm:$0xff]
    %v1566 = vld [vmem:[#allocation8 + $0xdf8] sm:$0xff]
    %v1567 = vld [vmem:[#allocation8 + $0xe00] sm:$0xff]
    %v1568 = vld [vmem:[#allocation8 + $0xe08] sm:$0xff]
    %v1569 = vld [vmem:[#allocation8 + $0xe10] sm:$0xff]
    %v1570 = vld [vmem:[#allocation8 + $0xe18] sm:$0xff]
    %v1571 = vld [vmem:[#allocation8 + $0xe20] sm:$0xff]
    %v1572 = vld [vmem:[#allocation8 + $0xe28] sm:$0xff]
    %v1573 = vld [vmem:[#allocation8 + $0xe30] sm:$0xff]
    %v1574 = vld [vmem:[#allocation8 + $0xe38] sm:$0xff]
    %v1575 = vld [vmem:[#allocation8 + $0xe40] sm:$0xff]
    %v1576 = vld [vmem:[#allocation8 + $0xe48] sm:$0xff]
    %v1577 = vld [vmem:[#allocation8 + $0xe50] sm:$0xff]
    %v1578 = vld [vmem:[#allocation8 + $0xe58] sm:$0xff]
    %v1579 = vld [vmem:[#allocation8 + $0xe60] sm:$0xff]
    %v1580 = vld [vmem:[#allocation8 + $0xe68] sm:$0xff]
    %v1581 = vld [vmem:[#allocation8 + $0xe70] sm:$0xff]
    %v1582 = vld [vmem:[#allocation8 + $0xe78] sm:$0xff]
    %v1583 = vld [vmem:[#allocation8 + $0xe80] sm:$0xff]
    %v1584 = vld [vmem:[#allocation8 + $0xe88] sm:$0xff]
    %v1585 = vld [vmem:[#allocation8 + $0xe90] sm:$0xff]
    %v1586 = vld [vmem:[#allocation8 + $0xe98] sm:$0xff]
    %v1587 = vld [vmem:[#allocation8 + $0xea0] sm:$0xff]
    %v1588 = vld [vmem:[#allocation8 + $0xea8] sm:$0xff]
    %v1589 = vld [vmem:[#allocation8 + $0xeb0] sm:$0xff]
    %v1590 = vld [vmem:[#allocation8 + $0xeb8] sm:$0xff]
    %v1591 = vld [vmem:[#allocation8 + $0xec0] sm:$0xff]
    %v1592 = vld [vmem:[#allocation8 + $0xec8] sm:$0xff]
    %v1593 = vld [vmem:[#allocation8 + $0xed0] sm:$0xff]
    %v1594 = vld [vmem:[#allocation8 + $0xed8] sm:$0xff]
    %v1595 = vld [vmem:[#allocation8 + $0xee0] sm:$0xff]
    %v1596 = vld [vmem:[#allocation8 + $0xee8] sm:$0xff]
    %v1597 = vld [vmem:[#allocation8 + $0xef0] sm:$0xff]
    %v1598 = vld [vmem:[#allocation8 + $0xef8] sm:$0xff]
    %v1599 = vld [vmem:[#allocation8 + $0xf00] sm:$0xff]
    %v1600 = vld [vmem:[#allocation8 + $0xf08] sm:$0xff]
    %v1601 = vld [vmem:[#allocation8 + $0xf10] sm:$0xff]
    %v1602 = vld [vmem:[#allocation8 + $0xf18] sm:$0xff]
    %v1603 = vld [vmem:[#allocation8 + $0xf20] sm:$0xff]
    %v1604 = vld [vmem:[#allocation8 + $0xf28] sm:$0xff]
    %v1605 = vld [vmem:[#allocation8 + $0xf30] sm:$0xff]
    %v1606 = vld [vmem:[#allocation8 + $0xf38] sm:$0xff]
    %v1607 = vld [vmem:[#allocation8 + $0xf40] sm:$0xff]
    %v1608 = vld [vmem:[#allocation8 + $0xf48] sm:$0xff]
    %v1609 = vld [vmem:[#allocation8 + $0xf50] sm:$0xff]
    %v1610 = vld [vmem:[#allocation8 + $0xf58] sm:$0xff]
    %v1611 = vld [vmem:[#allocation8 + $0xf60] sm:$0xff]
    %v1612 = vld [vmem:[#allocation8 + $0xf68] sm:$0xff]
    %v1613 = vld [vmem:[#allocation8 + $0xf70] sm:$0xff]
    %v1614 = vld [vmem:[#allocation8 + $0xf78] sm:$0xff]
    %v1615 = vld [vmem:[#allocation8 + $0xf80] sm:$0xff]
    %v1616 = vld [vmem:[#allocation8 + $0xf88] sm:$0xff]
    %v1617 = vld [vmem:[#allocation8 + $0xf90] sm:$0xff]
    %v1618 = vld [vmem:[#allocation8 + $0xf98] sm:$0xff]
    %v1619 = vld [vmem:[#allocation8 + $0xfa0] sm:$0xff]
    %v1620 = vld [vmem:[#allocation8 + $0xfa8] sm:$0xff]
    %v1621 = vld [vmem:[#allocation8 + $0xfb0] sm:$0xff]
    %v1622 = vld [vmem:[#allocation8 + $0xfb8] sm:$0xff]
    %v1623 = vld [vmem:[#allocation8 + $0xfc0] sm:$0xff]
    %v1624 = vld [vmem:[#allocation8 + $0xfc8] sm:$0xff]
    %v1625 = vld [vmem:[#allocation8 + $0xfd0] sm:$0xff]
    %v1626 = vld [vmem:[#allocation8 + $0xfd8] sm:$0xff]
    %v1627 = vld [vmem:[#allocation8 + $0xfe0] sm:$0xff]
    %v1628 = vld [vmem:[#allocation8 + $0xfe8] sm:$0xff]
    %v1629 = vld [vmem:[#allocation8 + $0xff0] sm:$0xff]
    %v1630 = vld [vmem:[#allocation8 + $0xff8] sm:$0xff]
    %v1631 = vld [vmem:[#allocation10] sm:$0xff]
    %v1632 = vld [vmem:[#allocation10 + $0x8] sm:$0xff]
    %v1635 = vlaneseq
    %v1636 = vshrl.u32 %v1635, 7
    %v1637 = vsub.s32 0, %v1636
    %v1638 = vrot.slane %v1631, %v1637
    %v1639 = vlaneseq
    %v1640 = vshrl.u32 %v1639, 7
    %v1641 = vsub.s32 1, %v1640
    %v1642 = vrot.slane %v1631, %v1641
    %v1643 = vlaneseq
    %v1644 = vshrl.u32 %v1643, 7
    %v1645 = vsub.s32 2, %v1644
    %v1646 = vrot.slane %v1631, %v1645
    %v1647 = vlaneseq
    %v1648 = vshrl.u32 %v1647, 7
    %v1649 = vsub.s32 3, %v1648
    %v1650 = vrot.slane %v1631, %v1649
    %v1651 = vlaneseq
    %v1652 = vshrl.u32 %v1651, 7
    %v1653 = vsub.s32 4, %v1652
    %v1654 = vrot.slane %v1631, %v1653
    %v1655 = vlaneseq
    %v1656 = vshrl.u32 %v1655, 7
    %v1657 = vsub.s32 5, %v1656
    %v1658 = vrot.slane %v1631, %v1657
    %v1659 = vlaneseq
    %v1660 = vshrl.u32 %v1659, 7
    %v1661 = vsub.s32 6, %v1660
    %v1662 = vrot.slane %v1631, %v1661
    %v1663 = vlaneseq
    %v1664 = vshrl.u32 %v1663, 7
    %v1665 = vsub.s32 7, %v1664
    %v1666 = vrot.slane %v1631, %v1665
    %v1667 = vlaneseq
    %v1668 = vshrl.u32 %v1667, 7
    %v1669 = vsub.s32 0, %v1668
    %v1670 = vrot.slane %v1632, %v1669
    %v1671 = vlaneseq
    %v1672 = vshrl.u32 %v1671, 7
    %v1673 = vsub.s32 1, %v1672
    %v1674 = vrot.slane %v1632, %v1673
    %v1675 = vlaneseq
    %v1676 = vshrl.u32 %v1675, 7
    %v1677 = vsub.s32 2, %v1676
    %v1678 = vrot.slane %v1632, %v1677
    %v1679 = vlaneseq
    %v1680 = vshrl.u32 %v1679, 7
    %v1681 = vsub.s32 3, %v1680
    %v1682 = vrot.slane %v1632, %v1681
    %v1683 = vlaneseq
    %v1684 = vshrl.u32 %v1683, 7
    %v1685 = vsub.s32 4, %v1684
    %v1686 = vrot.slane %v1632, %v1685
    %v1687 = vlaneseq
    %v1688 = vshrl.u32 %v1687, 7
    %v1689 = vsub.s32 5, %v1688
    %v1690 = vrot.slane %v1632, %v1689
    %v1691 = vlaneseq
    %v1692 = vshrl.u32 %v1691, 7
    %v1693 = vsub.s32 6, %v1692
    %v1694 = vrot.slane %v1632, %v1693
    %v1695 = vlaneseq
    %v1696 = vshrl.u32 %v1695, 7
    %v1697 = vsub.s32 7, %v1696
    %v1698 = vrot.slane %v1632, %v1697
    %v2227 = vunpack.c.l.b16 %v1119
    %v2228 = vunpack.c.h.b16 %v1119
    %v2229 = vunpack.c.l.b16 %v1120
    %v2230 = vunpack.c.h.b16 %v1120
    %v2231 = vunpack.c.l.b16 %v1121
    %v2232 = vunpack.c.h.b16 %v1121
    %v2233 = vunpack.c.l.b16 %v1122
    %v2234 = vunpack.c.h.b16 %v1122
    %v2235 = vunpack.c.l.b16 %v1123
    %v2236 = vunpack.c.h.b16 %v1123
    %v2237 = vunpack.c.l.b16 %v1124
    %v2238 = vunpack.c.h.b16 %v1124
    %v2239 = vunpack.c.l.b16 %v1125
    %v2240 = vunpack.c.h.b16 %v1125
    %v2241 = vunpack.c.l.b16 %v1126
    %v2242 = vunpack.c.h.b16 %v1126
    %v2243 = vunpack.c.l.b16 %v1127
    %v2244 = vunpack.c.h.b16 %v1127
    %v2245 = vunpack.c.l.b16 %v1128
    %v2246 = vunpack.c.h.b16 %v1128
    %v2247 = vunpack.c.l.b16 %v1129
    %v2248 = vunpack.c.h.b16 %v1129
    %v2249 = vunpack.c.l.b16 %v1130
    %v2250 = vunpack.c.h.b16 %v1130
    %v2251 = vunpack.c.l.b16 %v1131
    %v2252 = vunpack.c.h.b16 %v1131
    %v2253 = vunpack.c.l.b16 %v1132
    %v2254 = vunpack.c.h.b16 %v1132
    %v2255 = vunpack.c.l.b16 %v1133
    %v2256 = vunpack.c.h.b16 %v1133
    %v2257 = vunpack.c.l.b16 %v1134
    %v2258 = vunpack.c.h.b16 %v1134
    %v2259 = vunpack.c.l.b16 %v1135
    %v2260 = vunpack.c.h.b16 %v1135
    %v2261 = vunpack.c.l.b16 %v1136
    %v2262 = vunpack.c.h.b16 %v1136
    %v2263 = vunpack.c.l.b16 %v1137
    %v2264 = vunpack.c.h.b16 %v1137
    %v2265 = vunpack.c.l.b16 %v1138
    %v2266 = vunpack.c.h.b16 %v1138
    %v2267 = vunpack.c.l.b16 %v1139
    %v2268 = vunpack.c.h.b16 %v1139
    %v2269 = vunpack.c.l.b16 %v1140
    %v2270 = vunpack.c.h.b16 %v1140
    %v2271 = vunpack.c.l.b16 %v1141
    %v2272 = vunpack.c.h.b16 %v1141
    %v2273 = vunpack.c.l.b16 %v1142
    %v2274 = vunpack.c.h.b16 %v1142
    %v2275 = vunpack.c.l.b16 %v1143
    %v2276 = vunpack.c.h.b16 %v1143
    %v2277 = vunpack.c.l.b16 %v1144
    %v2278 = vunpack.c.h.b16 %v1144
    %v2279 = vunpack.c.l.b16 %v1145
    %v2280 = vunpack.c.h.b16 %v1145
    %v2281 = vunpack.c.l.b16 %v1146
    %v2282 = vunpack.c.h.b16 %v1146
    %v2283 = vunpack.c.l.b16 %v1147
    %v2284 = vunpack.c.h.b16 %v1147
    %v2285 = vunpack.c.l.b16 %v1148
    %v2286 = vunpack.c.h.b16 %v1148
    %v2287 = vunpack.c.l.b16 %v1149
    %v2288 = vunpack.c.h.b16 %v1149
    %v2289 = vunpack.c.l.b16 %v1150
    %v2290 = vunpack.c.h.b16 %v1150
    %v2291 = vunpack.c.l.b16 %v1151
    %v2292 = vunpack.c.h.b16 %v1151
    %v2293 = vunpack.c.l.b16 %v1152
    %v2294 = vunpack.c.h.b16 %v1152
    %v2295 = vunpack.c.l.b16 %v1153
    %v2296 = vunpack.c.h.b16 %v1153
    %v2297 = vunpack.c.l.b16 %v1154
    %v2298 = vunpack.c.h.b16 %v1154
    %v2299 = vunpack.c.l.b16 %v1155
    %v2300 = vunpack.c.h.b16 %v1155
    %v2301 = vunpack.c.l.b16 %v1156
    %v2302 = vunpack.c.h.b16 %v1156
    %v2303 = vunpack.c.l.b16 %v1157
    %v2304 = vunpack.c.h.b16 %v1157
    %v2305 = vunpack.c.l.b16 %v1158
    %v2306 = vunpack.c.h.b16 %v1158
    %v2307 = vunpack.c.l.b16 %v1159
    %v2308 = vunpack.c.h.b16 %v1159
    %v2309 = vunpack.c.l.b16 %v1160
    %v2310 = vunpack.c.h.b16 %v1160
    %v2311 = vunpack.c.l.b16 %v1161
    %v2312 = vunpack.c.h.b16 %v1161
    %v2313 = vunpack.c.l.b16 %v1162
    %v2314 = vunpack.c.h.b16 %v1162
    %v2315 = vunpack.c.l.b16 %v1163
    %v2316 = vunpack.c.h.b16 %v1163
    %v2317 = vunpack.c.l.b16 %v1164
    %v2318 = vunpack.c.h.b16 %v1164
    %v2319 = vunpack.c.l.b16 %v1165
    %v2320 = vunpack.c.h.b16 %v1165
    %v2321 = vunpack.c.l.b16 %v1166
    %v2322 = vunpack.c.h.b16 %v1166
    %v2323 = vunpack.c.l.b16 %v1167
    %v2324 = vunpack.c.h.b16 %v1167
    %v2325 = vunpack.c.l.b16 %v1168
    %v2326 = vunpack.c.h.b16 %v1168
    %v2327 = vunpack.c.l.b16 %v1169
    %v2328 = vunpack.c.h.b16 %v1169
    %v2329 = vunpack.c.l.b16 %v1170
    %v2330 = vunpack.c.h.b16 %v1170
    %v2331 = vunpack.c.l.b16 %v1171
    %v2332 = vunpack.c.h.b16 %v1171
    %v2333 = vunpack.c.l.b16 %v1172
    %v2334 = vunpack.c.h.b16 %v1172
    %v2335 = vunpack.c.l.b16 %v1173
    %v2336 = vunpack.c.h.b16 %v1173
    %v2337 = vunpack.c.l.b16 %v1174
    %v2338 = vunpack.c.h.b16 %v1174
    %v2339 = vunpack.c.l.b16 %v1175
    %v2340 = vunpack.c.h.b16 %v1175
    %v2341 = vunpack.c.l.b16 %v1176
    %v2342 = vunpack.c.h.b16 %v1176
    %v2343 = vunpack.c.l.b16 %v1177
    %v2344 = vunpack.c.h.b16 %v1177
    %v2345 = vunpack.c.l.b16 %v1178
    %v2346 = vunpack.c.h.b16 %v1178
    %v2347 = vunpack.c.l.b16 %v1179
    %v2348 = vunpack.c.h.b16 %v1179
    %v2349 = vunpack.c.l.b16 %v1180
    %v2350 = vunpack.c.h.b16 %v1180
    %v2351 = vunpack.c.l.b16 %v1181
    %v2352 = vunpack.c.h.b16 %v1181
    %v2353 = vunpack.c.l.b16 %v1182
    %v2354 = vunpack.c.h.b16 %v1182
    %v2355 = vunpack.c.l.b16 %v1183
    %v2356 = vunpack.c.h.b16 %v1183
    %v2357 = vunpack.c.l.b16 %v1184
    %v2358 = vunpack.c.h.b16 %v1184
    %v2359 = vunpack.c.l.b16 %v1185
    %v2360 = vunpack.c.h.b16 %v1185
    %v2361 = vunpack.c.l.b16 %v1186
    %v2362 = vunpack.c.h.b16 %v1186
    %v2363 = vunpack.c.l.b16 %v1187
    %v2364 = vunpack.c.h.b16 %v1187
    %v2365 = vunpack.c.l.b16 %v1188
    %v2366 = vunpack.c.h.b16 %v1188
    %v2367 = vunpack.c.l.b16 %v1189
    %v2368 = vunpack.c.h.b16 %v1189
    %v2369 = vunpack.c.l.b16 %v1190
    %v2370 = vunpack.c.h.b16 %v1190
    %v2371 = vunpack.c.l.b16 %v1191
    %v2372 = vunpack.c.h.b16 %v1191
    %v2373 = vunpack.c.l.b16 %v1192
    %v2374 = vunpack.c.h.b16 %v1192
    %v2375 = vunpack.c.l.b16 %v1193
    %v2376 = vunpack.c.h.b16 %v1193
    %v2377 = vunpack.c.l.b16 %v1194
    %v2378 = vunpack.c.h.b16 %v1194
    %v2379 = vunpack.c.l.b16 %v1195
    %v2380 = vunpack.c.h.b16 %v1195
    %v2381 = vunpack.c.l.b16 %v1196
    %v2382 = vunpack.c.h.b16 %v1196
    %v2383 = vunpack.c.l.b16 %v1197
    %v2384 = vunpack.c.h.b16 %v1197
    %v2385 = vunpack.c.l.b16 %v1198
    %v2386 = vunpack.c.h.b16 %v1198
    %v2387 = vunpack.c.l.b16 %v1199
    %v2388 = vunpack.c.h.b16 %v1199
    %v2389 = vunpack.c.l.b16 %v1200
    %v2390 = vunpack.c.h.b16 %v1200
    %v2391 = vunpack.c.l.b16 %v1201
    %v2392 = vunpack.c.h.b16 %v1201
    %v2393 = vunpack.c.l.b16 %v1202
    %v2394 = vunpack.c.h.b16 %v1202
    %v2395 = vunpack.c.l.b16 %v1203
    %v2396 = vunpack.c.h.b16 %v1203
    %v2397 = vunpack.c.l.b16 %v1204
    %v2398 = vunpack.c.h.b16 %v1204
    %v2399 = vunpack.c.l.b16 %v1205
    %v2400 = vunpack.c.h.b16 %v1205
    %v2401 = vunpack.c.l.b16 %v1206
    %v2402 = vunpack.c.h.b16 %v1206
    %v2403 = vunpack.c.l.b16 %v1207
    %v2404 = vunpack.c.h.b16 %v1207
    %v2405 = vunpack.c.l.b16 %v1208
    %v2406 = vunpack.c.h.b16 %v1208
    %v2407 = vunpack.c.l.b16 %v1209
    %v2408 = vunpack.c.h.b16 %v1209
    %v2409 = vunpack.c.l.b16 %v1210
    %v2410 = vunpack.c.h.b16 %v1210
    %v2411 = vunpack.c.l.b16 %v1211
    %v2412 = vunpack.c.h.b16 %v1211
    %v2413 = vunpack.c.l.b16 %v1212
    %v2414 = vunpack.c.h.b16 %v1212
    %v2415 = vunpack.c.l.b16 %v1213
    %v2416 = vunpack.c.h.b16 %v1213
    %v2417 = vunpack.c.l.b16 %v1214
    %v2418 = vunpack.c.h.b16 %v1214
    %v2419 = vunpack.c.l.b16 %v1215
    %v2420 = vunpack.c.h.b16 %v1215
    %v2421 = vunpack.c.l.b16 %v1216
    %v2422 = vunpack.c.h.b16 %v1216
    %v2423 = vunpack.c.l.b16 %v1217
    %v2424 = vunpack.c.h.b16 %v1217
    %v2425 = vunpack.c.l.b16 %v1218
    %v2426 = vunpack.c.h.b16 %v1218
    %v2427 = vunpack.c.l.b16 %v1219
    %v2428 = vunpack.c.h.b16 %v1219
    %v2429 = vunpack.c.l.b16 %v1220
    %v2430 = vunpack.c.h.b16 %v1220
    %v2431 = vunpack.c.l.b16 %v1221
    %v2432 = vunpack.c.h.b16 %v1221
    %v2433 = vunpack.c.l.b16 %v1222
    %v2434 = vunpack.c.h.b16 %v1222
    %v2435 = vunpack.c.l.b16 %v1223
    %v2436 = vunpack.c.h.b16 %v1223
    %v2437 = vunpack.c.l.b16 %v1224
    %v2438 = vunpack.c.h.b16 %v1224
    %v2439 = vunpack.c.l.b16 %v1225
    %v2440 = vunpack.c.h.b16 %v1225
    %v2441 = vunpack.c.l.b16 %v1226
    %v2442 = vunpack.c.h.b16 %v1226
    %v2443 = vunpack.c.l.b16 %v1227
    %v2444 = vunpack.c.h.b16 %v1227
    %v2445 = vunpack.c.l.b16 %v1228
    %v2446 = vunpack.c.h.b16 %v1228
    %v2447 = vunpack.c.l.b16 %v1229
    %v2448 = vunpack.c.h.b16 %v1229
    %v2449 = vunpack.c.l.b16 %v1230
    %v2450 = vunpack.c.h.b16 %v1230
    %v2451 = vunpack.c.l.b16 %v1231
    %v2452 = vunpack.c.h.b16 %v1231
    %v2453 = vunpack.c.l.b16 %v1232
    %v2454 = vunpack.c.h.b16 %v1232
    %v2455 = vunpack.c.l.b16 %v1233
    %v2456 = vunpack.c.h.b16 %v1233
    %v2457 = vunpack.c.l.b16 %v1234
    %v2458 = vunpack.c.h.b16 %v1234
    %v2459 = vunpack.c.l.b16 %v1235
    %v2460 = vunpack.c.h.b16 %v1235
    %v2461 = vunpack.c.l.b16 %v1236
    %v2462 = vunpack.c.h.b16 %v1236
    %v2463 = vunpack.c.l.b16 %v1237
    %v2464 = vunpack.c.h.b16 %v1237
    %v2465 = vunpack.c.l.b16 %v1238
    %v2466 = vunpack.c.h.b16 %v1238
    %v2467 = vunpack.c.l.b16 %v1239
    %v2468 = vunpack.c.h.b16 %v1239
    %v2469 = vunpack.c.l.b16 %v1240
    %v2470 = vunpack.c.h.b16 %v1240
    %v2471 = vunpack.c.l.b16 %v1241
    %v2472 = vunpack.c.h.b16 %v1241
    %v2473 = vunpack.c.l.b16 %v1242
    %v2474 = vunpack.c.h.b16 %v1242
    %v2475 = vunpack.c.l.b16 %v1243
    %v2476 = vunpack.c.h.b16 %v1243
    %v2477 = vunpack.c.l.b16 %v1244
    %v2478 = vunpack.c.h.b16 %v1244
    %v2479 = vunpack.c.l.b16 %v1245
    %v2480 = vunpack.c.h.b16 %v1245
    %v2481 = vunpack.c.l.b16 %v1246
    %v2482 = vunpack.c.h.b16 %v1246
    %v2483 = vunpack.c.l.b16 %v1247
    %v2484 = vunpack.c.h.b16 %v1247
    %v2485 = vunpack.c.l.b16 %v1248
    %v2486 = vunpack.c.h.b16 %v1248
    %v2487 = vunpack.c.l.b16 %v1249
    %v2488 = vunpack.c.h.b16 %v1249
    %v2489 = vunpack.c.l.b16 %v1250
    %v2490 = vunpack.c.h.b16 %v1250
    %v2491 = vunpack.c.l.b16 %v1251
    %v2492 = vunpack.c.h.b16 %v1251
    %v2493 = vunpack.c.l.b16 %v1252
    %v2494 = vunpack.c.h.b16 %v1252
    %v2495 = vunpack.c.l.b16 %v1253
    %v2496 = vunpack.c.h.b16 %v1253
    %v2497 = vunpack.c.l.b16 %v1254
    %v2498 = vunpack.c.h.b16 %v1254
    %v2499 = vunpack.c.l.b16 %v1255
    %v2500 = vunpack.c.h.b16 %v1255
    %v2501 = vunpack.c.l.b16 %v1256
    %v2502 = vunpack.c.h.b16 %v1256
    %v2503 = vunpack.c.l.b16 %v1257
    %v2504 = vunpack.c.h.b16 %v1257
    %v2505 = vunpack.c.l.b16 %v1258
    %v2506 = vunpack.c.h.b16 %v1258
    %v2507 = vunpack.c.l.b16 %v1259
    %v2508 = vunpack.c.h.b16 %v1259
    %v2509 = vunpack.c.l.b16 %v1260
    %v2510 = vunpack.c.h.b16 %v1260
    %v2511 = vunpack.c.l.b16 %v1261
    %v2512 = vunpack.c.h.b16 %v1261
    %v2513 = vunpack.c.l.b16 %v1262
    %v2514 = vunpack.c.h.b16 %v1262
    %v2515 = vunpack.c.l.b16 %v1263
    %v2516 = vunpack.c.h.b16 %v1263
    %v2517 = vunpack.c.l.b16 %v1264
    %v2518 = vunpack.c.h.b16 %v1264
    %v2519 = vunpack.c.l.b16 %v1265
    %v2520 = vunpack.c.h.b16 %v1265
    %v2521 = vunpack.c.l.b16 %v1266
    %v2522 = vunpack.c.h.b16 %v1266
    %v2523 = vunpack.c.l.b16 %v1267
    %v2524 = vunpack.c.h.b16 %v1267
    %v2525 = vunpack.c.l.b16 %v1268
    %v2526 = vunpack.c.h.b16 %v1268
    %v2527 = vunpack.c.l.b16 %v1269
    %v2528 = vunpack.c.h.b16 %v1269
    %v2529 = vunpack.c.l.b16 %v1270
    %v2530 = vunpack.c.h.b16 %v1270
    %v2531 = vunpack.c.l.b16 %v1271
    %v2532 = vunpack.c.h.b16 %v1271
    %v2533 = vunpack.c.l.b16 %v1272
    %v2534 = vunpack.c.h.b16 %v1272
    %v2535 = vunpack.c.l.b16 %v1273
    %v2536 = vunpack.c.h.b16 %v1273
    %v2537 = vunpack.c.l.b16 %v1274
    %v2538 = vunpack.c.h.b16 %v1274
    %v2539 = vunpack.c.l.b16 %v1275
    %v2540 = vunpack.c.h.b16 %v1275
    %v2541 = vunpack.c.l.b16 %v1276
    %v2542 = vunpack.c.h.b16 %v1276
    %v2543 = vunpack.c.l.b16 %v1277
    %v2544 = vunpack.c.h.b16 %v1277
    %v2545 = vunpack.c.l.b16 %v1278
    %v2546 = vunpack.c.h.b16 %v1278
    %v2547 = vunpack.c.l.b16 %v1279
    %v2548 = vunpack.c.h.b16 %v1279
    %v2549 = vunpack.c.l.b16 %v1280
    %v2550 = vunpack.c.h.b16 %v1280
    %v2551 = vunpack.c.l.b16 %v1281
    %v2552 = vunpack.c.h.b16 %v1281
    %v2553 = vunpack.c.l.b16 %v1282
    %v2554 = vunpack.c.h.b16 %v1282
    %v2555 = vunpack.c.l.b16 %v1283
    %v2556 = vunpack.c.h.b16 %v1283
    %v2557 = vunpack.c.l.b16 %v1284
    %v2558 = vunpack.c.h.b16 %v1284
    %v2559 = vunpack.c.l.b16 %v1285
    %v2560 = vunpack.c.h.b16 %v1285
    %v2561 = vunpack.c.l.b16 %v1286
    %v2562 = vunpack.c.h.b16 %v1286
    %v2563 = vunpack.c.l.b16 %v1287
    %v2564 = vunpack.c.h.b16 %v1287
    %v2565 = vunpack.c.l.b16 %v1288
    %v2566 = vunpack.c.h.b16 %v1288
    %v2567 = vunpack.c.l.b16 %v1289
    %v2568 = vunpack.c.h.b16 %v1289
    %v2569 = vunpack.c.l.b16 %v1290
    %v2570 = vunpack.c.h.b16 %v1290
    %v2571 = vunpack.c.l.b16 %v1291
    %v2572 = vunpack.c.h.b16 %v1291
    %v2573 = vunpack.c.l.b16 %v1292
    %v2574 = vunpack.c.h.b16 %v1292
    %v2575 = vunpack.c.l.b16 %v1293
    %v2576 = vunpack.c.h.b16 %v1293
    %v2577 = vunpack.c.l.b16 %v1294
    %v2578 = vunpack.c.h.b16 %v1294
    %v2579 = vunpack.c.l.b16 %v1295
    %v2580 = vunpack.c.h.b16 %v1295
    %v2581 = vunpack.c.l.b16 %v1296
    %v2582 = vunpack.c.h.b16 %v1296
    %v2583 = vunpack.c.l.b16 %v1297
    %v2584 = vunpack.c.h.b16 %v1297
    %v2585 = vunpack.c.l.b16 %v1298
    %v2586 = vunpack.c.h.b16 %v1298
    %v2587 = vunpack.c.l.b16 %v1299
    %v2588 = vunpack.c.h.b16 %v1299
    %v2589 = vunpack.c.l.b16 %v1300
    %v2590 = vunpack.c.h.b16 %v1300
    %v2591 = vunpack.c.l.b16 %v1301
    %v2592 = vunpack.c.h.b16 %v1301
    %v2593 = vunpack.c.l.b16 %v1302
    %v2594 = vunpack.c.h.b16 %v1302
    %v2595 = vunpack.c.l.b16 %v1303
    %v2596 = vunpack.c.h.b16 %v1303
    %v2597 = vunpack.c.l.b16 %v1304
    %v2598 = vunpack.c.h.b16 %v1304
    %v2599 = vunpack.c.l.b16 %v1305
    %v2600 = vunpack.c.h.b16 %v1305
    %v2601 = vunpack.c.l.b16 %v1306
    %v2602 = vunpack.c.h.b16 %v1306
    %v2603 = vunpack.c.l.b16 %v1307
    %v2604 = vunpack.c.h.b16 %v1307
    %v2605 = vunpack.c.l.b16 %v1308
    %v2606 = vunpack.c.h.b16 %v1308
    %v2607 = vunpack.c.l.b16 %v1309
    %v2608 = vunpack.c.h.b16 %v1309
    %v2609 = vunpack.c.l.b16 %v1310
    %v2610 = vunpack.c.h.b16 %v1310
    %v2611 = vunpack.c.l.b16 %v1311
    %v2612 = vunpack.c.h.b16 %v1311
    %v2613 = vunpack.c.l.b16 %v1312
    %v2614 = vunpack.c.h.b16 %v1312
    %v2615 = vunpack.c.l.b16 %v1313
    %v2616 = vunpack.c.h.b16 %v1313
    %v2617 = vunpack.c.l.b16 %v1314
    %v2618 = vunpack.c.h.b16 %v1314
    %v2619 = vunpack.c.l.b16 %v1315
    %v2620 = vunpack.c.h.b16 %v1315
    %v2621 = vunpack.c.l.b16 %v1316
    %v2622 = vunpack.c.h.b16 %v1316
    %v2623 = vunpack.c.l.b16 %v1317
    %v2624 = vunpack.c.h.b16 %v1317
    %v2625 = vunpack.c.l.b16 %v1318
    %v2626 = vunpack.c.h.b16 %v1318
    %v2627 = vunpack.c.l.b16 %v1319
    %v2628 = vunpack.c.h.b16 %v1319
    %v2629 = vunpack.c.l.b16 %v1320
    %v2630 = vunpack.c.h.b16 %v1320
    %v2631 = vunpack.c.l.b16 %v1321
    %v2632 = vunpack.c.h.b16 %v1321
    %v2633 = vunpack.c.l.b16 %v1322
    %v2634 = vunpack.c.h.b16 %v1322
    %v2635 = vunpack.c.l.b16 %v1323
    %v2636 = vunpack.c.h.b16 %v1323
    %v2637 = vunpack.c.l.b16 %v1324
    %v2638 = vunpack.c.h.b16 %v1324
    %v2639 = vunpack.c.l.b16 %v1325
    %v2640 = vunpack.c.h.b16 %v1325
    %v2641 = vunpack.c.l.b16 %v1326
    %v2642 = vunpack.c.h.b16 %v1326
    %v2643 = vunpack.c.l.b16 %v1327
    %v2644 = vunpack.c.h.b16 %v1327
    %v2645 = vunpack.c.l.b16 %v1328
    %v2646 = vunpack.c.h.b16 %v1328
    %v2647 = vunpack.c.l.b16 %v1329
    %v2648 = vunpack.c.h.b16 %v1329
    %v2649 = vunpack.c.l.b16 %v1330
    %v2650 = vunpack.c.h.b16 %v1330
    %v2651 = vunpack.c.l.b16 %v1331
    %v2652 = vunpack.c.h.b16 %v1331
    %v2653 = vunpack.c.l.b16 %v1332
    %v2654 = vunpack.c.h.b16 %v1332
    %v2655 = vunpack.c.l.b16 %v1333
    %v2656 = vunpack.c.h.b16 %v1333
    %v2657 = vunpack.c.l.b16 %v1334
    %v2658 = vunpack.c.h.b16 %v1334
    %v2659 = vunpack.c.l.b16 %v1335
    %v2660 = vunpack.c.h.b16 %v1335
    %v2661 = vunpack.c.l.b16 %v1336
    %v2662 = vunpack.c.h.b16 %v1336
    %v2663 = vunpack.c.l.b16 %v1337
    %v2664 = vunpack.c.h.b16 %v1337
    %v2665 = vunpack.c.l.b16 %v1338
    %v2666 = vunpack.c.h.b16 %v1338
    %v2667 = vunpack.c.l.b16 %v1339
    %v2668 = vunpack.c.h.b16 %v1339
    %v2669 = vunpack.c.l.b16 %v1340
    %v2670 = vunpack.c.h.b16 %v1340
    %v2671 = vunpack.c.l.b16 %v1341
    %v2672 = vunpack.c.h.b16 %v1341
    %v2673 = vunpack.c.l.b16 %v1342
    %v2674 = vunpack.c.h.b16 %v1342
    %v2675 = vunpack.c.l.b16 %v1343
    %v2676 = vunpack.c.h.b16 %v1343
    %v2677 = vunpack.c.l.b16 %v1344
    %v2678 = vunpack.c.h.b16 %v1344
    %v2679 = vunpack.c.l.b16 %v1345
    %v2680 = vunpack.c.h.b16 %v1345
    %v2681 = vunpack.c.l.b16 %v1346
    %v2682 = vunpack.c.h.b16 %v1346
    %v2683 = vunpack.c.l.b16 %v1347
    %v2684 = vunpack.c.h.b16 %v1347
    %v2685 = vunpack.c.l.b16 %v1348
    %v2686 = vunpack.c.h.b16 %v1348
    %v2687 = vunpack.c.l.b16 %v1349
    %v2688 = vunpack.c.h.b16 %v1349
    %v2689 = vunpack.c.l.b16 %v1350
    %v2690 = vunpack.c.h.b16 %v1350
    %v2691 = vunpack.c.l.b16 %v1351
    %v2692 = vunpack.c.h.b16 %v1351
    %v2693 = vunpack.c.l.b16 %v1352
    %v2694 = vunpack.c.h.b16 %v1352
    %v2695 = vunpack.c.l.b16 %v1353
    %v2696 = vunpack.c.h.b16 %v1353
    %v2697 = vunpack.c.l.b16 %v1354
    %v2698 = vunpack.c.h.b16 %v1354
    %v2699 = vunpack.c.l.b16 %v1355
    %v2700 = vunpack.c.h.b16 %v1355
    %v2701 = vunpack.c.l.b16 %v1356
    %v2702 = vunpack.c.h.b16 %v1356
    %v2703 = vunpack.c.l.b16 %v1357
    %v2704 = vunpack.c.h.b16 %v1357
    %v2705 = vunpack.c.l.b16 %v1358
    %v2706 = vunpack.c.h.b16 %v1358
    %v2707 = vunpack.c.l.b16 %v1359
    %v2708 = vunpack.c.h.b16 %v1359
    %v2709 = vunpack.c.l.b16 %v1360
    %v2710 = vunpack.c.h.b16 %v1360
    %v2711 = vunpack.c.l.b16 %v1361
    %v2712 = vunpack.c.h.b16 %v1361
    %v2713 = vunpack.c.l.b16 %v1362
    %v2714 = vunpack.c.h.b16 %v1362
    %v2715 = vunpack.c.l.b16 %v1363
    %v2716 = vunpack.c.h.b16 %v1363
    %v2717 = vunpack.c.l.b16 %v1364
    %v2718 = vunpack.c.h.b16 %v1364
    %v2719 = vunpack.c.l.b16 %v1365
    %v2720 = vunpack.c.h.b16 %v1365
    %v2721 = vunpack.c.l.b16 %v1366
    %v2722 = vunpack.c.h.b16 %v1366
    %v2723 = vunpack.c.l.b16 %v1367
    %v2724 = vunpack.c.h.b16 %v1367
    %v2725 = vunpack.c.l.b16 %v1368
    %v2726 = vunpack.c.h.b16 %v1368
    %v2727 = vunpack.c.l.b16 %v1369
    %v2728 = vunpack.c.h.b16 %v1369
    %v2729 = vunpack.c.l.b16 %v1370
    %v2730 = vunpack.c.h.b16 %v1370
    %v2731 = vunpack.c.l.b16 %v1371
    %v2732 = vunpack.c.h.b16 %v1371
    %v2733 = vunpack.c.l.b16 %v1372
    %v2734 = vunpack.c.h.b16 %v1372
    %v2735 = vunpack.c.l.b16 %v1373
    %v2736 = vunpack.c.h.b16 %v1373
    %v2737 = vunpack.c.l.b16 %v1374
    %v2738 = vunpack.c.h.b16 %v1374
    %v2739 = vunpack.c.l.b16 %v1375
    %v2740 = vunpack.c.h.b16 %v1375
    %v2741 = vunpack.c.l.b16 %v1376
    %v2742 = vunpack.c.h.b16 %v1376
    %v2743 = vunpack.c.l.b16 %v1377
    %v2744 = vunpack.c.h.b16 %v1377
    %v2745 = vunpack.c.l.b16 %v1378
    %v2746 = vunpack.c.h.b16 %v1378
    %v2747 = vunpack.c.l.b16 %v1379
    %v2748 = vunpack.c.h.b16 %v1379
    %v2749 = vunpack.c.l.b16 %v1380
    %v2750 = vunpack.c.h.b16 %v1380
    %v2751 = vunpack.c.l.b16 %v1381
    %v2752 = vunpack.c.h.b16 %v1381
    %v2753 = vunpack.c.l.b16 %v1382
    %v2754 = vunpack.c.h.b16 %v1382
    %v2755 = vunpack.c.l.b16 %v1383
    %v2756 = vunpack.c.h.b16 %v1383
    %v2757 = vunpack.c.l.b16 %v1384
    %v2758 = vunpack.c.h.b16 %v1384
    %v2759 = vunpack.c.l.b16 %v1385
    %v2760 = vunpack.c.h.b16 %v1385
    %v2761 = vunpack.c.l.b16 %v1386
    %v2762 = vunpack.c.h.b16 %v1386
    %v2763 = vunpack.c.l.b16 %v1387
    %v2764 = vunpack.c.h.b16 %v1387
    %v2765 = vunpack.c.l.b16 %v1388
    %v2766 = vunpack.c.h.b16 %v1388
    %v2767 = vunpack.c.l.b16 %v1389
    %v2768 = vunpack.c.h.b16 %v1389
    %v2769 = vunpack.c.l.b16 %v1390
    %v2770 = vunpack.c.h.b16 %v1390
    %v2771 = vunpack.c.l.b16 %v1391
    %v2772 = vunpack.c.h.b16 %v1391
    %v2773 = vunpack.c.l.b16 %v1392
    %v2774 = vunpack.c.h.b16 %v1392
    %v2775 = vunpack.c.l.b16 %v1393
    %v2776 = vunpack.c.h.b16 %v1393
    %v2777 = vunpack.c.l.b16 %v1394
    %v2778 = vunpack.c.h.b16 %v1394
    %v2779 = vunpack.c.l.b16 %v1395
    %v2780 = vunpack.c.h.b16 %v1395
    %v2781 = vunpack.c.l.b16 %v1396
    %v2782 = vunpack.c.h.b16 %v1396
    %v2783 = vunpack.c.l.b16 %v1397
    %v2784 = vunpack.c.h.b16 %v1397
    %v2785 = vunpack.c.l.b16 %v1398
    %v2786 = vunpack.c.h.b16 %v1398
    %v2787 = vunpack.c.l.b16 %v1399
    %v2788 = vunpack.c.h.b16 %v1399
    %v2789 = vunpack.c.l.b16 %v1400
    %v2790 = vunpack.c.h.b16 %v1400
    %v2791 = vunpack.c.l.b16 %v1401
    %v2792 = vunpack.c.h.b16 %v1401
    %v2793 = vunpack.c.l.b16 %v1402
    %v2794 = vunpack.c.h.b16 %v1402
    %v2795 = vunpack.c.l.b16 %v1403
    %v2796 = vunpack.c.h.b16 %v1403
    %v2797 = vunpack.c.l.b16 %v1404
    %v2798 = vunpack.c.h.b16 %v1404
    %v2799 = vunpack.c.l.b16 %v1405
    %v2800 = vunpack.c.h.b16 %v1405
    %v2801 = vunpack.c.l.b16 %v1406
    %v2802 = vunpack.c.h.b16 %v1406
    %v2803 = vunpack.c.l.b16 %v1407
    %v2804 = vunpack.c.h.b16 %v1407
    %v2805 = vunpack.c.l.b16 %v1408
    %v2806 = vunpack.c.h.b16 %v1408
    %v2807 = vunpack.c.l.b16 %v1409
    %v2808 = vunpack.c.h.b16 %v1409
    %v2809 = vunpack.c.l.b16 %v1410
    %v2810 = vunpack.c.h.b16 %v1410
    %v2811 = vunpack.c.l.b16 %v1411
    %v2812 = vunpack.c.h.b16 %v1411
    %v2813 = vunpack.c.l.b16 %v1412
    %v2814 = vunpack.c.h.b16 %v1412
    %v2815 = vunpack.c.l.b16 %v1413
    %v2816 = vunpack.c.h.b16 %v1413
    %v2817 = vunpack.c.l.b16 %v1414
    %v2818 = vunpack.c.h.b16 %v1414
    %v2819 = vunpack.c.l.b16 %v1415
    %v2820 = vunpack.c.h.b16 %v1415
    %v2821 = vunpack.c.l.b16 %v1416
    %v2822 = vunpack.c.h.b16 %v1416
    %v2823 = vunpack.c.l.b16 %v1417
    %v2824 = vunpack.c.h.b16 %v1417
    %v2825 = vunpack.c.l.b16 %v1418
    %v2826 = vunpack.c.h.b16 %v1418
    %v2827 = vunpack.c.l.b16 %v1419
    %v2828 = vunpack.c.h.b16 %v1419
    %v2829 = vunpack.c.l.b16 %v1420
    %v2830 = vunpack.c.h.b16 %v1420
    %v2831 = vunpack.c.l.b16 %v1421
    %v2832 = vunpack.c.h.b16 %v1421
    %v2833 = vunpack.c.l.b16 %v1422
    %v2834 = vunpack.c.h.b16 %v1422
    %v2835 = vunpack.c.l.b16 %v1423
    %v2836 = vunpack.c.h.b16 %v1423
    %v2837 = vunpack.c.l.b16 %v1424
    %v2838 = vunpack.c.h.b16 %v1424
    %v2839 = vunpack.c.l.b16 %v1425
    %v2840 = vunpack.c.h.b16 %v1425
    %v2841 = vunpack.c.l.b16 %v1426
    %v2842 = vunpack.c.h.b16 %v1426
    %v2843 = vunpack.c.l.b16 %v1427
    %v2844 = vunpack.c.h.b16 %v1427
    %v2845 = vunpack.c.l.b16 %v1428
    %v2846 = vunpack.c.h.b16 %v1428
    %v2847 = vunpack.c.l.b16 %v1429
    %v2848 = vunpack.c.h.b16 %v1429
    %v2849 = vunpack.c.l.b16 %v1430
    %v2850 = vunpack.c.h.b16 %v1430
    %v2851 = vunpack.c.l.b16 %v1431
    %v2852 = vunpack.c.h.b16 %v1431
    %v2853 = vunpack.c.l.b16 %v1432
    %v2854 = vunpack.c.h.b16 %v1432
    %v2855 = vunpack.c.l.b16 %v1433
    %v2856 = vunpack.c.h.b16 %v1433
    %v2857 = vunpack.c.l.b16 %v1434
    %v2858 = vunpack.c.h.b16 %v1434
    %v2859 = vunpack.c.l.b16 %v1435
    %v2860 = vunpack.c.h.b16 %v1435
    %v2861 = vunpack.c.l.b16 %v1436
    %v2862 = vunpack.c.h.b16 %v1436
    %v2863 = vunpack.c.l.b16 %v1437
    %v2864 = vunpack.c.h.b16 %v1437
    %v2865 = vunpack.c.l.b16 %v1438
    %v2866 = vunpack.c.h.b16 %v1438
    %v2867 = vunpack.c.l.b16 %v1439
    %v2868 = vunpack.c.h.b16 %v1439
    %v2869 = vunpack.c.l.b16 %v1440
    %v2870 = vunpack.c.h.b16 %v1440
    %v2871 = vunpack.c.l.b16 %v1441
    %v2872 = vunpack.c.h.b16 %v1441
    %v2873 = vunpack.c.l.b16 %v1442
    %v2874 = vunpack.c.h.b16 %v1442
    %v2875 = vunpack.c.l.b16 %v1443
    %v2876 = vunpack.c.h.b16 %v1443
    %v2877 = vunpack.c.l.b16 %v1444
    %v2878 = vunpack.c.h.b16 %v1444
    %v2879 = vunpack.c.l.b16 %v1445
    %v2880 = vunpack.c.h.b16 %v1445
    %v2881 = vunpack.c.l.b16 %v1446
    %v2882 = vunpack.c.h.b16 %v1446
    %v2883 = vunpack.c.l.b16 %v1447
    %v2884 = vunpack.c.h.b16 %v1447
    %v2885 = vunpack.c.l.b16 %v1448
    %v2886 = vunpack.c.h.b16 %v1448
    %v2887 = vunpack.c.l.b16 %v1449
    %v2888 = vunpack.c.h.b16 %v1449
    %v2889 = vunpack.c.l.b16 %v1450
    %v2890 = vunpack.c.h.b16 %v1450
    %v2891 = vunpack.c.l.b16 %v1451
    %v2892 = vunpack.c.h.b16 %v1451
    %v2893 = vunpack.c.l.b16 %v1452
    %v2894 = vunpack.c.h.b16 %v1452
    %v2895 = vunpack.c.l.b16 %v1453
    %v2896 = vunpack.c.h.b16 %v1453
    %v2897 = vunpack.c.l.b16 %v1454
    %v2898 = vunpack.c.h.b16 %v1454
    %v2899 = vunpack.c.l.b16 %v1455
    %v2900 = vunpack.c.h.b16 %v1455
    %v2901 = vunpack.c.l.b16 %v1456
    %v2902 = vunpack.c.h.b16 %v1456
    %v2903 = vunpack.c.l.b16 %v1457
    %v2904 = vunpack.c.h.b16 %v1457
    %v2905 = vunpack.c.l.b16 %v1458
    %v2906 = vunpack.c.h.b16 %v1458
    %v2907 = vunpack.c.l.b16 %v1459
    %v2908 = vunpack.c.h.b16 %v1459
    %v2909 = vunpack.c.l.b16 %v1460
    %v2910 = vunpack.c.h.b16 %v1460
    %v2911 = vunpack.c.l.b16 %v1461
    %v2912 = vunpack.c.h.b16 %v1461
    %v2913 = vunpack.c.l.b16 %v1462
    %v2914 = vunpack.c.h.b16 %v1462
    %v2915 = vunpack.c.l.b16 %v1463
    %v2916 = vunpack.c.h.b16 %v1463
    %v2917 = vunpack.c.l.b16 %v1464
    %v2918 = vunpack.c.h.b16 %v1464
    %v2919 = vunpack.c.l.b16 %v1465
    %v2920 = vunpack.c.h.b16 %v1465
    %v2921 = vunpack.c.l.b16 %v1466
    %v2922 = vunpack.c.h.b16 %v1466
    %v2923 = vunpack.c.l.b16 %v1467
    %v2924 = vunpack.c.h.b16 %v1467
    %v2925 = vunpack.c.l.b16 %v1468
    %v2926 = vunpack.c.h.b16 %v1468
    %v2927 = vunpack.c.l.b16 %v1469
    %v2928 = vunpack.c.h.b16 %v1469
    %v2929 = vunpack.c.l.b16 %v1470
    %v2930 = vunpack.c.h.b16 %v1470
    %v2931 = vunpack.c.l.b16 %v1471
    %v2932 = vunpack.c.h.b16 %v1471
    %v2933 = vunpack.c.l.b16 %v1472
    %v2934 = vunpack.c.h.b16 %v1472
    %v2935 = vunpack.c.l.b16 %v1473
    %v2936 = vunpack.c.h.b16 %v1473
    %v2937 = vunpack.c.l.b16 %v1474
    %v2938 = vunpack.c.h.b16 %v1474
    %v2939 = vunpack.c.l.b16 %v1475
    %v2940 = vunpack.c.h.b16 %v1475
    %v2941 = vunpack.c.l.b16 %v1476
    %v2942 = vunpack.c.h.b16 %v1476
    %v2943 = vunpack.c.l.b16 %v1477
    %v2944 = vunpack.c.h.b16 %v1477
    %v2945 = vunpack.c.l.b16 %v1478
    %v2946 = vunpack.c.h.b16 %v1478
    %v2947 = vunpack.c.l.b16 %v1479
    %v2948 = vunpack.c.h.b16 %v1479
    %v2949 = vunpack.c.l.b16 %v1480
    %v2950 = vunpack.c.h.b16 %v1480
    %v2951 = vunpack.c.l.b16 %v1481
    %v2952 = vunpack.c.h.b16 %v1481
    %v2953 = vunpack.c.l.b16 %v1482
    %v2954 = vunpack.c.h.b16 %v1482
    %v2955 = vunpack.c.l.b16 %v1483
    %v2956 = vunpack.c.h.b16 %v1483
    %v2957 = vunpack.c.l.b16 %v1484
    %v2958 = vunpack.c.h.b16 %v1484
    %v2959 = vunpack.c.l.b16 %v1485
    %v2960 = vunpack.c.h.b16 %v1485
    %v2961 = vunpack.c.l.b16 %v1486
    %v2962 = vunpack.c.h.b16 %v1486
    %v2963 = vunpack.c.l.b16 %v1487
    %v2964 = vunpack.c.h.b16 %v1487
    %v2965 = vunpack.c.l.b16 %v1488
    %v2966 = vunpack.c.h.b16 %v1488
    %v2967 = vunpack.c.l.b16 %v1489
    %v2968 = vunpack.c.h.b16 %v1489
    %v2969 = vunpack.c.l.b16 %v1490
    %v2970 = vunpack.c.h.b16 %v1490
    %v2971 = vunpack.c.l.b16 %v1491
    %v2972 = vunpack.c.h.b16 %v1491
    %v2973 = vunpack.c.l.b16 %v1492
    %v2974 = vunpack.c.h.b16 %v1492
    %v2975 = vunpack.c.l.b16 %v1493
    %v2976 = vunpack.c.h.b16 %v1493
    %v2977 = vunpack.c.l.b16 %v1494
    %v2978 = vunpack.c.h.b16 %v1494
    %v2979 = vunpack.c.l.b16 %v1495
    %v2980 = vunpack.c.h.b16 %v1495
    %v2981 = vunpack.c.l.b16 %v1496
    %v2982 = vunpack.c.h.b16 %v1496
    %v2983 = vunpack.c.l.b16 %v1497
    %v2984 = vunpack.c.h.b16 %v1497
    %v2985 = vunpack.c.l.b16 %v1498
    %v2986 = vunpack.c.h.b16 %v1498
    %v2987 = vunpack.c.l.b16 %v1499
    %v2988 = vunpack.c.h.b16 %v1499
    %v2989 = vunpack.c.l.b16 %v1500
    %v2990 = vunpack.c.h.b16 %v1500
    %v2991 = vunpack.c.l.b16 %v1501
    %v2992 = vunpack.c.h.b16 %v1501
    %v2993 = vunpack.c.l.b16 %v1502
    %v2994 = vunpack.c.h.b16 %v1502
    %v2995 = vunpack.c.l.b16 %v1503
    %v2996 = vunpack.c.h.b16 %v1503
    %v2997 = vunpack.c.l.b16 %v1504
    %v2998 = vunpack.c.h.b16 %v1504
    %v2999 = vunpack.c.l.b16 %v1505
    %v3000 = vunpack.c.h.b16 %v1505
    %v3001 = vunpack.c.l.b16 %v1506
    %v3002 = vunpack.c.h.b16 %v1506
    %v3003 = vunpack.c.l.b16 %v1507
    %v3004 = vunpack.c.h.b16 %v1507
    %v3005 = vunpack.c.l.b16 %v1508
    %v3006 = vunpack.c.h.b16 %v1508
    %v3007 = vunpack.c.l.b16 %v1509
    %v3008 = vunpack.c.h.b16 %v1509
    %v3009 = vunpack.c.l.b16 %v1510
    %v3010 = vunpack.c.h.b16 %v1510
    %v3011 = vunpack.c.l.b16 %v1511
    %v3012 = vunpack.c.h.b16 %v1511
    %v3013 = vunpack.c.l.b16 %v1512
    %v3014 = vunpack.c.h.b16 %v1512
    %v3015 = vunpack.c.l.b16 %v1513
    %v3016 = vunpack.c.h.b16 %v1513
    %v3017 = vunpack.c.l.b16 %v1514
    %v3018 = vunpack.c.h.b16 %v1514
    %v3019 = vunpack.c.l.b16 %v1515
    %v3020 = vunpack.c.h.b16 %v1515
    %v3021 = vunpack.c.l.b16 %v1516
    %v3022 = vunpack.c.h.b16 %v1516
    %v3023 = vunpack.c.l.b16 %v1517
    %v3024 = vunpack.c.h.b16 %v1517
    %v3025 = vunpack.c.l.b16 %v1518
    %v3026 = vunpack.c.h.b16 %v1518
    %v3027 = vunpack.c.l.b16 %v1519
    %v3028 = vunpack.c.h.b16 %v1519
    %v3029 = vunpack.c.l.b16 %v1520
    %v3030 = vunpack.c.h.b16 %v1520
    %v3031 = vunpack.c.l.b16 %v1521
    %v3032 = vunpack.c.h.b16 %v1521
    %v3033 = vunpack.c.l.b16 %v1522
    %v3034 = vunpack.c.h.b16 %v1522
    %v3035 = vunpack.c.l.b16 %v1523
    %v3036 = vunpack.c.h.b16 %v1523
    %v3037 = vunpack.c.l.b16 %v1524
    %v3038 = vunpack.c.h.b16 %v1524
    %v3039 = vunpack.c.l.b16 %v1525
    %v3040 = vunpack.c.h.b16 %v1525
    %v3041 = vunpack.c.l.b16 %v1526
    %v3042 = vunpack.c.h.b16 %v1526
    %v3043 = vunpack.c.l.b16 %v1527
    %v3044 = vunpack.c.h.b16 %v1527
    %v3045 = vunpack.c.l.b16 %v1528
    %v3046 = vunpack.c.h.b16 %v1528
    %v3047 = vunpack.c.l.b16 %v1529
    %v3048 = vunpack.c.h.b16 %v1529
    %v3049 = vunpack.c.l.b16 %v1530
    %v3050 = vunpack.c.h.b16 %v1530
    %v3051 = vunpack.c.l.b16 %v1531
    %v3052 = vunpack.c.h.b16 %v1531
    %v3053 = vunpack.c.l.b16 %v1532
    %v3054 = vunpack.c.h.b16 %v1532
    %v3055 = vunpack.c.l.b16 %v1533
    %v3056 = vunpack.c.h.b16 %v1533
    %v3057 = vunpack.c.l.b16 %v1534
    %v3058 = vunpack.c.h.b16 %v1534
    %v3059 = vunpack.c.l.b16 %v1535
    %v3060 = vunpack.c.h.b16 %v1535
    %v3061 = vunpack.c.l.b16 %v1536
    %v3062 = vunpack.c.h.b16 %v1536
    %v3063 = vunpack.c.l.b16 %v1537
    %v3064 = vunpack.c.h.b16 %v1537
    %v3065 = vunpack.c.l.b16 %v1538
    %v3066 = vunpack.c.h.b16 %v1538
    %v3067 = vunpack.c.l.b16 %v1539
    %v3068 = vunpack.c.h.b16 %v1539
    %v3069 = vunpack.c.l.b16 %v1540
    %v3070 = vunpack.c.h.b16 %v1540
    %v3071 = vunpack.c.l.b16 %v1541
    %v3072 = vunpack.c.h.b16 %v1541
    %v3073 = vunpack.c.l.b16 %v1542
    %v3074 = vunpack.c.h.b16 %v1542
    %v3075 = vunpack.c.l.b16 %v1543
    %v3076 = vunpack.c.h.b16 %v1543
    %v3077 = vunpack.c.l.b16 %v1544
    %v3078 = vunpack.c.h.b16 %v1544
    %v3079 = vunpack.c.l.b16 %v1545
    %v3080 = vunpack.c.h.b16 %v1545
    %v3081 = vunpack.c.l.b16 %v1546
    %v3082 = vunpack.c.h.b16 %v1546
    %v3083 = vunpack.c.l.b16 %v1547
    %v3084 = vunpack.c.h.b16 %v1547
    %v3085 = vunpack.c.l.b16 %v1548
    %v3086 = vunpack.c.h.b16 %v1548
    %v3087 = vunpack.c.l.b16 %v1549
    %v3088 = vunpack.c.h.b16 %v1549
    %v3089 = vunpack.c.l.b16 %v1550
    %v3090 = vunpack.c.h.b16 %v1550
    %v3091 = vunpack.c.l.b16 %v1551
    %v3092 = vunpack.c.h.b16 %v1551
    %v3093 = vunpack.c.l.b16 %v1552
    %v3094 = vunpack.c.h.b16 %v1552
    %v3095 = vunpack.c.l.b16 %v1553
    %v3096 = vunpack.c.h.b16 %v1553
    %v3097 = vunpack.c.l.b16 %v1554
    %v3098 = vunpack.c.h.b16 %v1554
    %v3099 = vunpack.c.l.b16 %v1555
    %v3100 = vunpack.c.h.b16 %v1555
    %v3101 = vunpack.c.l.b16 %v1556
    %v3102 = vunpack.c.h.b16 %v1556
    %v3103 = vunpack.c.l.b16 %v1557
    %v3104 = vunpack.c.h.b16 %v1557
    %v3105 = vunpack.c.l.b16 %v1558
    %v3106 = vunpack.c.h.b16 %v1558
    %v3107 = vunpack.c.l.b16 %v1559
    %v3108 = vunpack.c.h.b16 %v1559
    %v3109 = vunpack.c.l.b16 %v1560
    %v3110 = vunpack.c.h.b16 %v1560
    %v3111 = vunpack.c.l.b16 %v1561
    %v3112 = vunpack.c.h.b16 %v1561
    %v3113 = vunpack.c.l.b16 %v1562
    %v3114 = vunpack.c.h.b16 %v1562
    %v3115 = vunpack.c.l.b16 %v1563
    %v3116 = vunpack.c.h.b16 %v1563
    %v3117 = vunpack.c.l.b16 %v1564
    %v3118 = vunpack.c.h.b16 %v1564
    %v3119 = vunpack.c.l.b16 %v1565
    %v3120 = vunpack.c.h.b16 %v1565
    %v3121 = vunpack.c.l.b16 %v1566
    %v3122 = vunpack.c.h.b16 %v1566
    %v3123 = vunpack.c.l.b16 %v1567
    %v3124 = vunpack.c.h.b16 %v1567
    %v3125 = vunpack.c.l.b16 %v1568
    %v3126 = vunpack.c.h.b16 %v1568
    %v3127 = vunpack.c.l.b16 %v1569
    %v3128 = vunpack.c.h.b16 %v1569
    %v3129 = vunpack.c.l.b16 %v1570
    %v3130 = vunpack.c.h.b16 %v1570
    %v3131 = vunpack.c.l.b16 %v1571
    %v3132 = vunpack.c.h.b16 %v1571
    %v3133 = vunpack.c.l.b16 %v1572
    %v3134 = vunpack.c.h.b16 %v1572
    %v3135 = vunpack.c.l.b16 %v1573
    %v3136 = vunpack.c.h.b16 %v1573
    %v3137 = vunpack.c.l.b16 %v1574
    %v3138 = vunpack.c.h.b16 %v1574
    %v3139 = vunpack.c.l.b16 %v1575
    %v3140 = vunpack.c.h.b16 %v1575
    %v3141 = vunpack.c.l.b16 %v1576
    %v3142 = vunpack.c.h.b16 %v1576
    %v3143 = vunpack.c.l.b16 %v1577
    %v3144 = vunpack.c.h.b16 %v1577
    %v3145 = vunpack.c.l.b16 %v1578
    %v3146 = vunpack.c.h.b16 %v1578
    %v3147 = vunpack.c.l.b16 %v1579
    %v3148 = vunpack.c.h.b16 %v1579
    %v3149 = vunpack.c.l.b16 %v1580
    %v3150 = vunpack.c.h.b16 %v1580
    %v3151 = vunpack.c.l.b16 %v1581
    %v3152 = vunpack.c.h.b16 %v1581
    %v3153 = vunpack.c.l.b16 %v1582
    %v3154 = vunpack.c.h.b16 %v1582
    %v3155 = vunpack.c.l.b16 %v1583
    %v3156 = vunpack.c.h.b16 %v1583
    %v3157 = vunpack.c.l.b16 %v1584
    %v3158 = vunpack.c.h.b16 %v1584
    %v3159 = vunpack.c.l.b16 %v1585
    %v3160 = vunpack.c.h.b16 %v1585
    %v3161 = vunpack.c.l.b16 %v1586
    %v3162 = vunpack.c.h.b16 %v1586
    %v3163 = vunpack.c.l.b16 %v1587
    %v3164 = vunpack.c.h.b16 %v1587
    %v3165 = vunpack.c.l.b16 %v1588
    %v3166 = vunpack.c.h.b16 %v1588
    %v3167 = vunpack.c.l.b16 %v1589
    %v3168 = vunpack.c.h.b16 %v1589
    %v3169 = vunpack.c.l.b16 %v1590
    %v3170 = vunpack.c.h.b16 %v1590
    %v3171 = vunpack.c.l.b16 %v1591
    %v3172 = vunpack.c.h.b16 %v1591
    %v3173 = vunpack.c.l.b16 %v1592
    %v3174 = vunpack.c.h.b16 %v1592
    %v3175 = vunpack.c.l.b16 %v1593
    %v3176 = vunpack.c.h.b16 %v1593
    %v3177 = vunpack.c.l.b16 %v1594
    %v3178 = vunpack.c.h.b16 %v1594
    %v3179 = vunpack.c.l.b16 %v1595
    %v3180 = vunpack.c.h.b16 %v1595
    %v3181 = vunpack.c.l.b16 %v1596
    %v3182 = vunpack.c.h.b16 %v1596
    %v3183 = vunpack.c.l.b16 %v1597
    %v3184 = vunpack.c.h.b16 %v1597
    %v3185 = vunpack.c.l.b16 %v1598
    %v3186 = vunpack.c.h.b16 %v1598
    %v3187 = vunpack.c.l.b16 %v1599
    %v3188 = vunpack.c.h.b16 %v1599
    %v3189 = vunpack.c.l.b16 %v1600
    %v3190 = vunpack.c.h.b16 %v1600
    %v3191 = vunpack.c.l.b16 %v1601
    %v3192 = vunpack.c.h.b16 %v1601
    %v3193 = vunpack.c.l.b16 %v1602
    %v3194 = vunpack.c.h.b16 %v1602
    %v3195 = vunpack.c.l.b16 %v1603
    %v3196 = vunpack.c.h.b16 %v1603
    %v3197 = vunpack.c.l.b16 %v1604
    %v3198 = vunpack.c.h.b16 %v1604
    %v3199 = vunpack.c.l.b16 %v1605
    %v3200 = vunpack.c.h.b16 %v1605
    %v3201 = vunpack.c.l.b16 %v1606
    %v3202 = vunpack.c.h.b16 %v1606
    %v3203 = vunpack.c.l.b16 %v1607
    %v3204 = vunpack.c.h.b16 %v1607
    %v3205 = vunpack.c.l.b16 %v1608
    %v3206 = vunpack.c.h.b16 %v1608
    %v3207 = vunpack.c.l.b16 %v1609
    %v3208 = vunpack.c.h.b16 %v1609
    %v3209 = vunpack.c.l.b16 %v1610
    %v3210 = vunpack.c.h.b16 %v1610
    %v3211 = vunpack.c.l.b16 %v1611
    %v3212 = vunpack.c.h.b16 %v1611
    %v3213 = vunpack.c.l.b16 %v1612
    %v3214 = vunpack.c.h.b16 %v1612
    %v3215 = vunpack.c.l.b16 %v1613
    %v3216 = vunpack.c.h.b16 %v1613
    %v3217 = vunpack.c.l.b16 %v1614
    %v3218 = vunpack.c.h.b16 %v1614
    %v3219 = vunpack.c.l.b16 %v1615
    %v3220 = vunpack.c.h.b16 %v1615
    %v3221 = vunpack.c.l.b16 %v1616
    %v3222 = vunpack.c.h.b16 %v1616
    %v3223 = vunpack.c.l.b16 %v1617
    %v3224 = vunpack.c.h.b16 %v1617
    %v3225 = vunpack.c.l.b16 %v1618
    %v3226 = vunpack.c.h.b16 %v1618
    %v3227 = vunpack.c.l.b16 %v1619
    %v3228 = vunpack.c.h.b16 %v1619
    %v3229 = vunpack.c.l.b16 %v1620
    %v3230 = vunpack.c.h.b16 %v1620
    %v3231 = vunpack.c.l.b16 %v1621
    %v3232 = vunpack.c.h.b16 %v1621
    %v3233 = vunpack.c.l.b16 %v1622
    %v3234 = vunpack.c.h.b16 %v1622
    %v3235 = vunpack.c.l.b16 %v1623
    %v3236 = vunpack.c.h.b16 %v1623
    %v3237 = vunpack.c.l.b16 %v1624
    %v3238 = vunpack.c.h.b16 %v1624
    %v3239 = vunpack.c.l.b16 %v1625
    %v3240 = vunpack.c.h.b16 %v1625
    %v3241 = vunpack.c.l.b16 %v1626
    %v3242 = vunpack.c.h.b16 %v1626
    %v3243 = vunpack.c.l.b16 %v1627
    %v3244 = vunpack.c.h.b16 %v1627
    %v3245 = vunpack.c.l.b16 %v1628
    %v3246 = vunpack.c.h.b16 %v1628
    %v3247 = vunpack.c.l.b16 %v1629
    %v3248 = vunpack.c.h.b16 %v1629
    %v3249 = vunpack.c.l.b16 %v1630
    %v3250 = vunpack.c.h.b16 %v1630
    %v3251 = vpack.c.b16 %v2243, %v2227
    %v3252 = vpack.c.b16 %v2244, %v2228
    %v3253 = vpack.c.b16 %v2245, %v2229
    %v3254 = vpack.c.b16 %v2246, %v2230
    %v3255 = vpack.c.b16 %v2247, %v2231
    %v3256 = vpack.c.b16 %v2248, %v2232
    %v3257 = vpack.c.b16 %v2249, %v2233
    %v3258 = vpack.c.b16 %v2250, %v2234
    %v3259 = vpack.c.b16 %v2251, %v2235
    %v3260 = vpack.c.b16 %v2252, %v2236
    %v3261 = vpack.c.b16 %v2253, %v2237
    %v3262 = vpack.c.b16 %v2254, %v2238
    %v3263 = vpack.c.b16 %v2255, %v2239
    %v3264 = vpack.c.b16 %v2256, %v2240
    %v3265 = vpack.c.b16 %v2257, %v2241
    %v3266 = vpack.c.b16 %v2258, %v2242
    %v3267 = vpack.c.b16 %v2275, %v2259
    %v3268 = vpack.c.b16 %v2276, %v2260
    %v3269 = vpack.c.b16 %v2277, %v2261
    %v3270 = vpack.c.b16 %v2278, %v2262
    %v3271 = vpack.c.b16 %v2279, %v2263
    %v3272 = vpack.c.b16 %v2280, %v2264
    %v3273 = vpack.c.b16 %v2281, %v2265
    %v3274 = vpack.c.b16 %v2282, %v2266
    %v3275 = vpack.c.b16 %v2283, %v2267
    %v3276 = vpack.c.b16 %v2284, %v2268
    %v3277 = vpack.c.b16 %v2285, %v2269
    %v3278 = vpack.c.b16 %v2286, %v2270
    %v3279 = vpack.c.b16 %v2287, %v2271
    %v3280 = vpack.c.b16 %v2288, %v2272
    %v3281 = vpack.c.b16 %v2289, %v2273
    %v3282 = vpack.c.b16 %v2290, %v2274
    %v3283 = vpack.c.b16 %v2307, %v2291
    %v3284 = vpack.c.b16 %v2308, %v2292
    %v3285 = vpack.c.b16 %v2309, %v2293
    %v3286 = vpack.c.b16 %v2310, %v2294
    %v3287 = vpack.c.b16 %v2311, %v2295
    %v3288 = vpack.c.b16 %v2312, %v2296
    %v3289 = vpack.c.b16 %v2313, %v2297
    %v3290 = vpack.c.b16 %v2314, %v2298
    %v3291 = vpack.c.b16 %v2315, %v2299
    %v3292 = vpack.c.b16 %v2316, %v2300
    %v3293 = vpack.c.b16 %v2317, %v2301
    %v3294 = vpack.c.b16 %v2318, %v2302
    %v3295 = vpack.c.b16 %v2319, %v2303
    %v3296 = vpack.c.b16 %v2320, %v2304
    %v3297 = vpack.c.b16 %v2321, %v2305
    %v3298 = vpack.c.b16 %v2322, %v2306
    %v3299 = vpack.c.b16 %v2339, %v2323
    %v3300 = vpack.c.b16 %v2340, %v2324
    %v3301 = vpack.c.b16 %v2341, %v2325
    %v3302 = vpack.c.b16 %v2342, %v2326
    %v3303 = vpack.c.b16 %v2343, %v2327
    %v3304 = vpack.c.b16 %v2344, %v2328
    %v3305 = vpack.c.b16 %v2345, %v2329
    %v3306 = vpack.c.b16 %v2346, %v2330
    %v3307 = vpack.c.b16 %v2347, %v2331
    %v3308 = vpack.c.b16 %v2348, %v2332
    %v3309 = vpack.c.b16 %v2349, %v2333
    %v3310 = vpack.c.b16 %v2350, %v2334
    %v3311 = vpack.c.b16 %v2351, %v2335
    %v3312 = vpack.c.b16 %v2352, %v2336
    %v3313 = vpack.c.b16 %v2353, %v2337
    %v3314 = vpack.c.b16 %v2354, %v2338
    %v3315 = vpack.c.b16 %v2371, %v2355
    %v3316 = vpack.c.b16 %v2372, %v2356
    %v3317 = vpack.c.b16 %v2373, %v2357
    %v3318 = vpack.c.b16 %v2374, %v2358
    %v3319 = vpack.c.b16 %v2375, %v2359
    %v3320 = vpack.c.b16 %v2376, %v2360
    %v3321 = vpack.c.b16 %v2377, %v2361
    %v3322 = vpack.c.b16 %v2378, %v2362
    %v3323 = vpack.c.b16 %v2379, %v2363
    %v3324 = vpack.c.b16 %v2380, %v2364
    %v3325 = vpack.c.b16 %v2381, %v2365
    %v3326 = vpack.c.b16 %v2382, %v2366
    %v3327 = vpack.c.b16 %v2383, %v2367
    %v3328 = vpack.c.b16 %v2384, %v2368
    %v3329 = vpack.c.b16 %v2385, %v2369
    %v3330 = vpack.c.b16 %v2386, %v2370
    %v3331 = vpack.c.b16 %v2403, %v2387
    %v3332 = vpack.c.b16 %v2404, %v2388
    %v3333 = vpack.c.b16 %v2405, %v2389
    %v3334 = vpack.c.b16 %v2406, %v2390
    %v3335 = vpack.c.b16 %v2407, %v2391
    %v3336 = vpack.c.b16 %v2408, %v2392
    %v3337 = vpack.c.b16 %v2409, %v2393
    %v3338 = vpack.c.b16 %v2410, %v2394
    %v3339 = vpack.c.b16 %v2411, %v2395
    %v3340 = vpack.c.b16 %v2412, %v2396
    %v3341 = vpack.c.b16 %v2413, %v2397
    %v3342 = vpack.c.b16 %v2414, %v2398
    %v3343 = vpack.c.b16 %v2415, %v2399
    %v3344 = vpack.c.b16 %v2416, %v2400
    %v3345 = vpack.c.b16 %v2417, %v2401
    %v3346 = vpack.c.b16 %v2418, %v2402
    %v3347 = vpack.c.b16 %v2435, %v2419
    %v3348 = vpack.c.b16 %v2436, %v2420
    %v3349 = vpack.c.b16 %v2437, %v2421
    %v3350 = vpack.c.b16 %v2438, %v2422
    %v3351 = vpack.c.b16 %v2439, %v2423
    %v3352 = vpack.c.b16 %v2440, %v2424
    %v3353 = vpack.c.b16 %v2441, %v2425
    %v3354 = vpack.c.b16 %v2442, %v2426
    %v3355 = vpack.c.b16 %v2443, %v2427
    %v3356 = vpack.c.b16 %v2444, %v2428
    %v3357 = vpack.c.b16 %v2445, %v2429
    %v3358 = vpack.c.b16 %v2446, %v2430
    %v3359 = vpack.c.b16 %v2447, %v2431
    %v3360 = vpack.c.b16 %v2448, %v2432
    %v3361 = vpack.c.b16 %v2449, %v2433
    %v3362 = vpack.c.b16 %v2450, %v2434
    %v3363 = vpack.c.b16 %v2467, %v2451
    %v3364 = vpack.c.b16 %v2468, %v2452
    %v3365 = vpack.c.b16 %v2469, %v2453
    %v3366 = vpack.c.b16 %v2470, %v2454
    %v3367 = vpack.c.b16 %v2471, %v2455
    %v3368 = vpack.c.b16 %v2472, %v2456
    %v3369 = vpack.c.b16 %v2473, %v2457
    %v3370 = vpack.c.b16 %v2474, %v2458
    %v3371 = vpack.c.b16 %v2475, %v2459
    %v3372 = vpack.c.b16 %v2476, %v2460
    %v3373 = vpack.c.b16 %v2477, %v2461
    %v3374 = vpack.c.b16 %v2478, %v2462
    %v3375 = vpack.c.b16 %v2479, %v2463
    %v3376 = vpack.c.b16 %v2480, %v2464
    %v3377 = vpack.c.b16 %v2481, %v2465
    %v3378 = vpack.c.b16 %v2482, %v2466
    %v3379 = vpack.c.b16 %v2499, %v2483
    %v3380 = vpack.c.b16 %v2500, %v2484
    %v3381 = vpack.c.b16 %v2501, %v2485
    %v3382 = vpack.c.b16 %v2502, %v2486
    %v3383 = vpack.c.b16 %v2503, %v2487
    %v3384 = vpack.c.b16 %v2504, %v2488
    %v3385 = vpack.c.b16 %v2505, %v2489
    %v3386 = vpack.c.b16 %v2506, %v2490
    %v3387 = vpack.c.b16 %v2507, %v2491
    %v3388 = vpack.c.b16 %v2508, %v2492
    %v3389 = vpack.c.b16 %v2509, %v2493
    %v3390 = vpack.c.b16 %v2510, %v2494
    %v3391 = vpack.c.b16 %v2511, %v2495
    %v3392 = vpack.c.b16 %v2512, %v2496
    %v3393 = vpack.c.b16 %v2513, %v2497
    %v3394 = vpack.c.b16 %v2514, %v2498
    %v3395 = vpack.c.b16 %v2531, %v2515
    %v3396 = vpack.c.b16 %v2532, %v2516
    %v3397 = vpack.c.b16 %v2533, %v2517
    %v3398 = vpack.c.b16 %v2534, %v2518
    %v3399 = vpack.c.b16 %v2535, %v2519
    %v3400 = vpack.c.b16 %v2536, %v2520
    %v3401 = vpack.c.b16 %v2537, %v2521
    %v3402 = vpack.c.b16 %v2538, %v2522
    %v3403 = vpack.c.b16 %v2539, %v2523
    %v3404 = vpack.c.b16 %v2540, %v2524
    %v3405 = vpack.c.b16 %v2541, %v2525
    %v3406 = vpack.c.b16 %v2542, %v2526
    %v3407 = vpack.c.b16 %v2543, %v2527
    %v3408 = vpack.c.b16 %v2544, %v2528
    %v3409 = vpack.c.b16 %v2545, %v2529
    %v3410 = vpack.c.b16 %v2546, %v2530
    %v3411 = vpack.c.b16 %v2563, %v2547
    %v3412 = vpack.c.b16 %v2564, %v2548
    %v3413 = vpack.c.b16 %v2565, %v2549
    %v3414 = vpack.c.b16 %v2566, %v2550
    %v3415 = vpack.c.b16 %v2567, %v2551
    %v3416 = vpack.c.b16 %v2568, %v2552
    %v3417 = vpack.c.b16 %v2569, %v2553
    %v3418 = vpack.c.b16 %v2570, %v2554
    %v3419 = vpack.c.b16 %v2571, %v2555
    %v3420 = vpack.c.b16 %v2572, %v2556
    %v3421 = vpack.c.b16 %v2573, %v2557
    %v3422 = vpack.c.b16 %v2574, %v2558
    %v3423 = vpack.c.b16 %v2575, %v2559
    %v3424 = vpack.c.b16 %v2576, %v2560
    %v3425 = vpack.c.b16 %v2577, %v2561
    %v3426 = vpack.c.b16 %v2578, %v2562
    %v3427 = vpack.c.b16 %v2595, %v2579
    %v3428 = vpack.c.b16 %v2596, %v2580
    %v3429 = vpack.c.b16 %v2597, %v2581
    %v3430 = vpack.c.b16 %v2598, %v2582
    %v3431 = vpack.c.b16 %v2599, %v2583
    %v3432 = vpack.c.b16 %v2600, %v2584
    %v3433 = vpack.c.b16 %v2601, %v2585
    %v3434 = vpack.c.b16 %v2602, %v2586
    %v3435 = vpack.c.b16 %v2603, %v2587
    %v3436 = vpack.c.b16 %v2604, %v2588
    %v3437 = vpack.c.b16 %v2605, %v2589
    %v3438 = vpack.c.b16 %v2606, %v2590
    %v3439 = vpack.c.b16 %v2607, %v2591
    %v3440 = vpack.c.b16 %v2608, %v2592
    %v3441 = vpack.c.b16 %v2609, %v2593
    %v3442 = vpack.c.b16 %v2610, %v2594
    %v3443 = vpack.c.b16 %v2627, %v2611
    %v3444 = vpack.c.b16 %v2628, %v2612
    %v3445 = vpack.c.b16 %v2629, %v2613
    %v3446 = vpack.c.b16 %v2630, %v2614
    %v3447 = vpack.c.b16 %v2631, %v2615
    %v3448 = vpack.c.b16 %v2632, %v2616
    %v3449 = vpack.c.b16 %v2633, %v2617
    %v3450 = vpack.c.b16 %v2634, %v2618
    %v3451 = vpack.c.b16 %v2635, %v2619
    %v3452 = vpack.c.b16 %v2636, %v2620
    %v3453 = vpack.c.b16 %v2637, %v2621
    %v3454 = vpack.c.b16 %v2638, %v2622
    %v3455 = vpack.c.b16 %v2639, %v2623
    %v3456 = vpack.c.b16 %v2640, %v2624
    %v3457 = vpack.c.b16 %v2641, %v2625
    %v3458 = vpack.c.b16 %v2642, %v2626
    %v3459 = vpack.c.b16 %v2659, %v2643
    %v3460 = vpack.c.b16 %v2660, %v2644
    %v3461 = vpack.c.b16 %v2661, %v2645
    %v3462 = vpack.c.b16 %v2662, %v2646
    %v3463 = vpack.c.b16 %v2663, %v2647
    %v3464 = vpack.c.b16 %v2664, %v2648
    %v3465 = vpack.c.b16 %v2665, %v2649
    %v3466 = vpack.c.b16 %v2666, %v2650
    %v3467 = vpack.c.b16 %v2667, %v2651
    %v3468 = vpack.c.b16 %v2668, %v2652
    %v3469 = vpack.c.b16 %v2669, %v2653
    %v3470 = vpack.c.b16 %v2670, %v2654
    %v3471 = vpack.c.b16 %v2671, %v2655
    %v3472 = vpack.c.b16 %v2672, %v2656
    %v3473 = vpack.c.b16 %v2673, %v2657
    %v3474 = vpack.c.b16 %v2674, %v2658
    %v3475 = vpack.c.b16 %v2691, %v2675
    %v3476 = vpack.c.b16 %v2692, %v2676
    %v3477 = vpack.c.b16 %v2693, %v2677
    %v3478 = vpack.c.b16 %v2694, %v2678
    %v3479 = vpack.c.b16 %v2695, %v2679
    %v3480 = vpack.c.b16 %v2696, %v2680
    %v3481 = vpack.c.b16 %v2697, %v2681
    %v3482 = vpack.c.b16 %v2698, %v2682
    %v3483 = vpack.c.b16 %v2699, %v2683
    %v3484 = vpack.c.b16 %v2700, %v2684
    %v3485 = vpack.c.b16 %v2701, %v2685
    %v3486 = vpack.c.b16 %v2702, %v2686
    %v3487 = vpack.c.b16 %v2703, %v2687
    %v3488 = vpack.c.b16 %v2704, %v2688
    %v3489 = vpack.c.b16 %v2705, %v2689
    %v3490 = vpack.c.b16 %v2706, %v2690
    %v3491 = vpack.c.b16 %v2723, %v2707
    %v3492 = vpack.c.b16 %v2724, %v2708
    %v3493 = vpack.c.b16 %v2725, %v2709
    %v3494 = vpack.c.b16 %v2726, %v2710
    %v3495 = vpack.c.b16 %v2727, %v2711
    %v3496 = vpack.c.b16 %v2728, %v2712
    %v3497 = vpack.c.b16 %v2729, %v2713
    %v3498 = vpack.c.b16 %v2730, %v2714
    %v3499 = vpack.c.b16 %v2731, %v2715
    %v3500 = vpack.c.b16 %v2732, %v2716
    %v3501 = vpack.c.b16 %v2733, %v2717
    %v3502 = vpack.c.b16 %v2734, %v2718
    %v3503 = vpack.c.b16 %v2735, %v2719
    %v3504 = vpack.c.b16 %v2736, %v2720
    %v3505 = vpack.c.b16 %v2737, %v2721
    %v3506 = vpack.c.b16 %v2738, %v2722
    %v3507 = vpack.c.b16 %v2755, %v2739
    %v3508 = vpack.c.b16 %v2756, %v2740
    %v3509 = vpack.c.b16 %v2757, %v2741
    %v3510 = vpack.c.b16 %v2758, %v2742
    %v3511 = vpack.c.b16 %v2759, %v2743
    %v3512 = vpack.c.b16 %v2760, %v2744
    %v3513 = vpack.c.b16 %v2761, %v2745
    %v3514 = vpack.c.b16 %v2762, %v2746
    %v3515 = vpack.c.b16 %v2763, %v2747
    %v3516 = vpack.c.b16 %v2764, %v2748
    %v3517 = vpack.c.b16 %v2765, %v2749
    %v3518 = vpack.c.b16 %v2766, %v2750
    %v3519 = vpack.c.b16 %v2767, %v2751
    %v3520 = vpack.c.b16 %v2768, %v2752
    %v3521 = vpack.c.b16 %v2769, %v2753
    %v3522 = vpack.c.b16 %v2770, %v2754
    %v3523 = vpack.c.b16 %v2787, %v2771
    %v3524 = vpack.c.b16 %v2788, %v2772
    %v3525 = vpack.c.b16 %v2789, %v2773
    %v3526 = vpack.c.b16 %v2790, %v2774
    %v3527 = vpack.c.b16 %v2791, %v2775
    %v3528 = vpack.c.b16 %v2792, %v2776
    %v3529 = vpack.c.b16 %v2793, %v2777
    %v3530 = vpack.c.b16 %v2794, %v2778
    %v3531 = vpack.c.b16 %v2795, %v2779
    %v3532 = vpack.c.b16 %v2796, %v2780
    %v3533 = vpack.c.b16 %v2797, %v2781
    %v3534 = vpack.c.b16 %v2798, %v2782
    %v3535 = vpack.c.b16 %v2799, %v2783
    %v3536 = vpack.c.b16 %v2800, %v2784
    %v3537 = vpack.c.b16 %v2801, %v2785
    %v3538 = vpack.c.b16 %v2802, %v2786
    %v3539 = vpack.c.b16 %v2819, %v2803
    %v3540 = vpack.c.b16 %v2820, %v2804
    %v3541 = vpack.c.b16 %v2821, %v2805
    %v3542 = vpack.c.b16 %v2822, %v2806
    %v3543 = vpack.c.b16 %v2823, %v2807
    %v3544 = vpack.c.b16 %v2824, %v2808
    %v3545 = vpack.c.b16 %v2825, %v2809
    %v3546 = vpack.c.b16 %v2826, %v2810
    %v3547 = vpack.c.b16 %v2827, %v2811
    %v3548 = vpack.c.b16 %v2828, %v2812
    %v3549 = vpack.c.b16 %v2829, %v2813
    %v3550 = vpack.c.b16 %v2830, %v2814
    %v3551 = vpack.c.b16 %v2831, %v2815
    %v3552 = vpack.c.b16 %v2832, %v2816
    %v3553 = vpack.c.b16 %v2833, %v2817
    %v3554 = vpack.c.b16 %v2834, %v2818
    %v3555 = vpack.c.b16 %v2851, %v2835
    %v3556 = vpack.c.b16 %v2852, %v2836
    %v3557 = vpack.c.b16 %v2853, %v2837
    %v3558 = vpack.c.b16 %v2854, %v2838
    %v3559 = vpack.c.b16 %v2855, %v2839
    %v3560 = vpack.c.b16 %v2856, %v2840
    %v3561 = vpack.c.b16 %v2857, %v2841
    %v3562 = vpack.c.b16 %v2858, %v2842
    %v3563 = vpack.c.b16 %v2859, %v2843
    %v3564 = vpack.c.b16 %v2860, %v2844
    %v3565 = vpack.c.b16 %v2861, %v2845
    %v3566 = vpack.c.b16 %v2862, %v2846
    %v3567 = vpack.c.b16 %v2863, %v2847
    %v3568 = vpack.c.b16 %v2864, %v2848
    %v3569 = vpack.c.b16 %v2865, %v2849
    %v3570 = vpack.c.b16 %v2866, %v2850
    %v3571 = vpack.c.b16 %v2883, %v2867
    %v3572 = vpack.c.b16 %v2884, %v2868
    %v3573 = vpack.c.b16 %v2885, %v2869
    %v3574 = vpack.c.b16 %v2886, %v2870
    %v3575 = vpack.c.b16 %v2887, %v2871
    %v3576 = vpack.c.b16 %v2888, %v2872
    %v3577 = vpack.c.b16 %v2889, %v2873
    %v3578 = vpack.c.b16 %v2890, %v2874
    %v3579 = vpack.c.b16 %v2891, %v2875
    %v3580 = vpack.c.b16 %v2892, %v2876
    %v3581 = vpack.c.b16 %v2893, %v2877
    %v3582 = vpack.c.b16 %v2894, %v2878
    %v3583 = vpack.c.b16 %v2895, %v2879
    %v3584 = vpack.c.b16 %v2896, %v2880
    %v3585 = vpack.c.b16 %v2897, %v2881
    %v3586 = vpack.c.b16 %v2898, %v2882
    %v3587 = vpack.c.b16 %v2915, %v2899
    %v3588 = vpack.c.b16 %v2916, %v2900
    %v3589 = vpack.c.b16 %v2917, %v2901
    %v3590 = vpack.c.b16 %v2918, %v2902
    %v3591 = vpack.c.b16 %v2919, %v2903
    %v3592 = vpack.c.b16 %v2920, %v2904
    %v3593 = vpack.c.b16 %v2921, %v2905
    %v3594 = vpack.c.b16 %v2922, %v2906
    %v3595 = vpack.c.b16 %v2923, %v2907
    %v3596 = vpack.c.b16 %v2924, %v2908
    %v3597 = vpack.c.b16 %v2925, %v2909
    %v3598 = vpack.c.b16 %v2926, %v2910
    %v3599 = vpack.c.b16 %v2927, %v2911
    %v3600 = vpack.c.b16 %v2928, %v2912
    %v3601 = vpack.c.b16 %v2929, %v2913
    %v3602 = vpack.c.b16 %v2930, %v2914
    %v3603 = vpack.c.b16 %v2947, %v2931
    %v3604 = vpack.c.b16 %v2948, %v2932
    %v3605 = vpack.c.b16 %v2949, %v2933
    %v3606 = vpack.c.b16 %v2950, %v2934
    %v3607 = vpack.c.b16 %v2951, %v2935
    %v3608 = vpack.c.b16 %v2952, %v2936
    %v3609 = vpack.c.b16 %v2953, %v2937
    %v3610 = vpack.c.b16 %v2954, %v2938
    %v3611 = vpack.c.b16 %v2955, %v2939
    %v3612 = vpack.c.b16 %v2956, %v2940
    %v3613 = vpack.c.b16 %v2957, %v2941
    %v3614 = vpack.c.b16 %v2958, %v2942
    %v3615 = vpack.c.b16 %v2959, %v2943
    %v3616 = vpack.c.b16 %v2960, %v2944
    %v3617 = vpack.c.b16 %v2961, %v2945
    %v3618 = vpack.c.b16 %v2962, %v2946
    %v3619 = vpack.c.b16 %v2979, %v2963
    %v3620 = vpack.c.b16 %v2980, %v2964
    %v3621 = vpack.c.b16 %v2981, %v2965
    %v3622 = vpack.c.b16 %v2982, %v2966
    %v3623 = vpack.c.b16 %v2983, %v2967
    %v3624 = vpack.c.b16 %v2984, %v2968
    %v3625 = vpack.c.b16 %v2985, %v2969
    %v3626 = vpack.c.b16 %v2986, %v2970
    %v3627 = vpack.c.b16 %v2987, %v2971
    %v3628 = vpack.c.b16 %v2988, %v2972
    %v3629 = vpack.c.b16 %v2989, %v2973
    %v3630 = vpack.c.b16 %v2990, %v2974
    %v3631 = vpack.c.b16 %v2991, %v2975
    %v3632 = vpack.c.b16 %v2992, %v2976
    %v3633 = vpack.c.b16 %v2993, %v2977
    %v3634 = vpack.c.b16 %v2994, %v2978
    %v3635 = vpack.c.b16 %v3011, %v2995
    %v3636 = vpack.c.b16 %v3012, %v2996
    %v3637 = vpack.c.b16 %v3013, %v2997
    %v3638 = vpack.c.b16 %v3014, %v2998
    %v3639 = vpack.c.b16 %v3015, %v2999
    %v3640 = vpack.c.b16 %v3016, %v3000
    %v3641 = vpack.c.b16 %v3017, %v3001
    %v3642 = vpack.c.b16 %v3018, %v3002
    %v3643 = vpack.c.b16 %v3019, %v3003
    %v3644 = vpack.c.b16 %v3020, %v3004
    %v3645 = vpack.c.b16 %v3021, %v3005
    %v3646 = vpack.c.b16 %v3022, %v3006
    %v3647 = vpack.c.b16 %v3023, %v3007
    %v3648 = vpack.c.b16 %v3024, %v3008
    %v3649 = vpack.c.b16 %v3025, %v3009
    %v3650 = vpack.c.b16 %v3026, %v3010
    %v3651 = vpack.c.b16 %v3043, %v3027
    %v3652 = vpack.c.b16 %v3044, %v3028
    %v3653 = vpack.c.b16 %v3045, %v3029
    %v3654 = vpack.c.b16 %v3046, %v3030
    %v3655 = vpack.c.b16 %v3047, %v3031
    %v3656 = vpack.c.b16 %v3048, %v3032
    %v3657 = vpack.c.b16 %v3049, %v3033
    %v3658 = vpack.c.b16 %v3050, %v3034
    %v3659 = vpack.c.b16 %v3051, %v3035
    %v3660 = vpack.c.b16 %v3052, %v3036
    %v3661 = vpack.c.b16 %v3053, %v3037
    %v3662 = vpack.c.b16 %v3054, %v3038
    %v3663 = vpack.c.b16 %v3055, %v3039
    %v3664 = vpack.c.b16 %v3056, %v3040
    %v3665 = vpack.c.b16 %v3057, %v3041
    %v3666 = vpack.c.b16 %v3058, %v3042
    %v3667 = vpack.c.b16 %v3075, %v3059
    %v3668 = vpack.c.b16 %v3076, %v3060
    %v3669 = vpack.c.b16 %v3077, %v3061
    %v3670 = vpack.c.b16 %v3078, %v3062
    %v3671 = vpack.c.b16 %v3079, %v3063
    %v3672 = vpack.c.b16 %v3080, %v3064
    %v3673 = vpack.c.b16 %v3081, %v3065
    %v3674 = vpack.c.b16 %v3082, %v3066
    %v3675 = vpack.c.b16 %v3083, %v3067
    %v3676 = vpack.c.b16 %v3084, %v3068
    %v3677 = vpack.c.b16 %v3085, %v3069
    %v3678 = vpack.c.b16 %v3086, %v3070
    %v3679 = vpack.c.b16 %v3087, %v3071
    %v3680 = vpack.c.b16 %v3088, %v3072
    %v3681 = vpack.c.b16 %v3089, %v3073
    %v3682 = vpack.c.b16 %v3090, %v3074
    %v3683 = vpack.c.b16 %v3107, %v3091
    %v3684 = vpack.c.b16 %v3108, %v3092
    %v3685 = vpack.c.b16 %v3109, %v3093
    %v3686 = vpack.c.b16 %v3110, %v3094
    %v3687 = vpack.c.b16 %v3111, %v3095
    %v3688 = vpack.c.b16 %v3112, %v3096
    %v3689 = vpack.c.b16 %v3113, %v3097
    %v3690 = vpack.c.b16 %v3114, %v3098
    %v3691 = vpack.c.b16 %v3115, %v3099
    %v3692 = vpack.c.b16 %v3116, %v3100
    %v3693 = vpack.c.b16 %v3117, %v3101
    %v3694 = vpack.c.b16 %v3118, %v3102
    %v3695 = vpack.c.b16 %v3119, %v3103
    %v3696 = vpack.c.b16 %v3120, %v3104
    %v3697 = vpack.c.b16 %v3121, %v3105
    %v3698 = vpack.c.b16 %v3122, %v3106
    %v3699 = vpack.c.b16 %v3139, %v3123
    %v3700 = vpack.c.b16 %v3140, %v3124
    %v3701 = vpack.c.b16 %v3141, %v3125
    %v3702 = vpack.c.b16 %v3142, %v3126
    %v3703 = vpack.c.b16 %v3143, %v3127
    %v3704 = vpack.c.b16 %v3144, %v3128
    %v3705 = vpack.c.b16 %v3145, %v3129
    %v3706 = vpack.c.b16 %v3146, %v3130
    %v3707 = vpack.c.b16 %v3147, %v3131
    %v3708 = vpack.c.b16 %v3148, %v3132
    %v3709 = vpack.c.b16 %v3149, %v3133
    %v3710 = vpack.c.b16 %v3150, %v3134
    %v3711 = vpack.c.b16 %v3151, %v3135
    %v3712 = vpack.c.b16 %v3152, %v3136
    %v3713 = vpack.c.b16 %v3153, %v3137
    %v3714 = vpack.c.b16 %v3154, %v3138
    %v3715 = vpack.c.b16 %v3171, %v3155
    %v3716 = vpack.c.b16 %v3172, %v3156
    %v3717 = vpack.c.b16 %v3173, %v3157
    %v3718 = vpack.c.b16 %v3174, %v3158
    %v3719 = vpack.c.b16 %v3175, %v3159
    %v3720 = vpack.c.b16 %v3176, %v3160
    %v3721 = vpack.c.b16 %v3177, %v3161
    %v3722 = vpack.c.b16 %v3178, %v3162
    %v3723 = vpack.c.b16 %v3179, %v3163
    %v3724 = vpack.c.b16 %v3180, %v3164
    %v3725 = vpack.c.b16 %v3181, %v3165
    %v3726 = vpack.c.b16 %v3182, %v3166
    %v3727 = vpack.c.b16 %v3183, %v3167
    %v3728 = vpack.c.b16 %v3184, %v3168
    %v3729 = vpack.c.b16 %v3185, %v3169
    %v3730 = vpack.c.b16 %v3186, %v3170
    %v3731 = vpack.c.b16 %v3203, %v3187
    %v3732 = vpack.c.b16 %v3204, %v3188
    %v3733 = vpack.c.b16 %v3205, %v3189
    %v3734 = vpack.c.b16 %v3206, %v3190
    %v3735 = vpack.c.b16 %v3207, %v3191
    %v3736 = vpack.c.b16 %v3208, %v3192
    %v3737 = vpack.c.b16 %v3209, %v3193
    %v3738 = vpack.c.b16 %v3210, %v3194
    %v3739 = vpack.c.b16 %v3211, %v3195
    %v3740 = vpack.c.b16 %v3212, %v3196
    %v3741 = vpack.c.b16 %v3213, %v3197
    %v3742 = vpack.c.b16 %v3214, %v3198
    %v3743 = vpack.c.b16 %v3215, %v3199
    %v3744 = vpack.c.b16 %v3216, %v3200
    %v3745 = vpack.c.b16 %v3217, %v3201
    %v3746 = vpack.c.b16 %v3218, %v3202
    %v3747 = vpack.c.b16 %v3235, %v3219
    %v3748 = vpack.c.b16 %v3236, %v3220
    %v3749 = vpack.c.b16 %v3237, %v3221
    %v3750 = vpack.c.b16 %v3238, %v3222
    %v3751 = vpack.c.b16 %v3239, %v3223
    %v3752 = vpack.c.b16 %v3240, %v3224
    %v3753 = vpack.c.b16 %v3241, %v3225
    %v3754 = vpack.c.b16 %v3242, %v3226
    %v3755 = vpack.c.b16 %v3243, %v3227
    %v3756 = vpack.c.b16 %v3244, %v3228
    %v3757 = vpack.c.b16 %v3245, %v3229
    %v3758 = vpack.c.b16 %v3246, %v3230
    %v3759 = vpack.c.b16 %v3247, %v3231
    %v3760 = vpack.c.b16 %v3248, %v3232
    %v3761 = vpack.c.b16 %v3249, %v3233
    %v3762 = vpack.c.b16 %v3250, %v3234
    %4275 = vmatprep.subr.bf16.mxu0 %v3364
    %4276 = vmatpush1.bf16.msra.mxu0 %v3363
    %4277 = vmatprep.subr.bf16.mxu0 %v3348
    %4278 = vmatpush1.bf16.msra.mxu0 %v3347
    %4279 = vmatprep.subr.bf16.mxu0 %v3332
    %4280 = vmatpush1.bf16.msra.mxu0 %v3331
    %4281 = vmatprep.subr.bf16.mxu0 %v3316
    %4282 = vmatpush1.bf16.msra.mxu0 %v3315
    %4283 = vmatprep.subr.bf16.mxu0 %v3300
    %4284 = vmatpush1.bf16.msra.mxu0 %v3299
    %4285 = vmatprep.subr.bf16.mxu0 %v3284
    %4286 = vmatpush1.bf16.msra.mxu0 %v3283
    %4287 = vmatprep.subr.bf16.mxu0 %v3268
    %4288 = vmatpush1.bf16.msra.mxu0 %v3267
    %4289 = vmatprep.subr.bf16.mxu0 %v3252
    %4290 = vmatpush1.bf16.msra.mxu0 %v3251
    %4291 = vmatprep.subr.bf16.mxu0 %v3492
    %4292 = vmatpush2.bf16.msra.mxu0 %v3491
    %4293 = vmatprep.subr.bf16.mxu0 %v3476
    %4294 = vmatpush2.bf16.msra.mxu0 %v3475
    %4295 = vmatprep.subr.bf16.mxu0 %v3460
    %4296 = vmatpush2.bf16.msra.mxu0 %v3459
    %4297 = vmatprep.subr.bf16.mxu0 %v3444
    %4298 = vmatpush2.bf16.msra.mxu0 %v3443
    %4299 = vmatprep.subr.bf16.mxu0 %v3428
    %4300 = vmatpush2.bf16.msra.mxu0 %v3427
    %4301 = vmatprep.subr.bf16.mxu0 %v3412
    %4302 = vmatpush2.bf16.msra.mxu0 %v3411
    %4303 = vmatprep.subr.bf16.mxu0 %v3396
    %4304 = vmatpush2.bf16.msra.mxu0 %v3395
    %4305 = vmatprep.subr.bf16.mxu0 %v3380
    %4306 = vmatpush2.bf16.msra.mxu0 %v3379
    %4307 = vmatprep.mubr.bf16.mxu0 %v1116
    %4308 = vmatmul.mubr.bf16.gmra.mxu0 %v1115
    %v4309 = vpop.f32.mrf.mxu0
    %v4310 = vadd.f32 %v1638, %v4309
    %v4311 = vpop.f32.mrf.mxu0
    %v4312 = vadd.f32 %v1642, %v4311
    %v4313 = vpop.f32.mrf.mxu0
    %v4314 = vpop.f32.mrf.mxu0
    %4315 = vdwg.mxu0
    %4316 = vmatprep.subr.bf16.mxu0 %v3620
    %4317 = vmatpush1.bf16.msra.mxu0 %v3619
    %4318 = vmatprep.subr.bf16.mxu0 %v3604
    %4319 = vmatpush1.bf16.msra.mxu0 %v3603
    %4320 = vmatprep.subr.bf16.mxu0 %v3588
    %4321 = vmatpush1.bf16.msra.mxu0 %v3587
    %4322 = vmatprep.subr.bf16.mxu0 %v3572
    %4323 = vmatpush1.bf16.msra.mxu0 %v3571
    %4324 = vmatprep.subr.bf16.mxu0 %v3556
    %4325 = vmatpush1.bf16.msra.mxu0 %v3555
    %4326 = vmatprep.subr.bf16.mxu0 %v3540
    %4327 = vmatpush1.bf16.msra.mxu0 %v3539
    %4328 = vmatprep.subr.bf16.mxu0 %v3524
    %4329 = vmatpush1.bf16.msra.mxu0 %v3523
    %4330 = vmatprep.subr.bf16.mxu0 %v3508
    %4331 = vmatpush1.bf16.msra.mxu0 %v3507
    %4332 = vmatprep.subr.bf16.mxu0 %v3748
    %4333 = vmatpush2.bf16.msra.mxu0 %v3747
    %4334 = vmatprep.subr.bf16.mxu0 %v3732
    %4335 = vmatpush2.bf16.msra.mxu0 %v3731
    %4336 = vmatprep.subr.bf16.mxu0 %v3716
    %4337 = vmatpush2.bf16.msra.mxu0 %v3715
    %4338 = vmatprep.subr.bf16.mxu0 %v3700
    %4339 = vmatpush2.bf16.msra.mxu0 %v3699
    %4340 = vmatprep.subr.bf16.mxu0 %v3684
    %4341 = vmatpush2.bf16.msra.mxu0 %v3683
    %4342 = vmatprep.subr.bf16.mxu0 %v3668
    %4343 = vmatpush2.bf16.msra.mxu0 %v3667
    %4344 = vmatprep.subr.bf16.mxu0 %v3652
    %4345 = vmatpush2.bf16.msra.mxu0 %v3651
    %4346 = vmatprep.subr.bf16.mxu0 %v3636
    %4347 = vmatpush2.bf16.msra.mxu0 %v3635
    %4348 = vmatprep.mubr.bf16.mxu0 %v1118
    %4349 = vmatmul.mubr.bf16.gmra.mxu0 %v1117
    %v4350 = vpop.f32.mrf.mxu0
    %v4351 = vadd.f32 %v4310, %v4350
    %v4352 = vpop.f32.mrf.mxu0
    %v4353 = vadd.f32 %v4312, %v4352
    %v4354 = vpop.f32.mrf.mxu0
    %v4355 = vpop.f32.mrf.mxu0
    %4356 = vdwg.mxu0
    %4357 = vmatprep.subr.bf16.mxu0 %v3366
    %4358 = vmatpush1.bf16.msra.mxu0 %v3365
    %4359 = vmatprep.subr.bf16.mxu0 %v3350
    %4360 = vmatpush1.bf16.msra.mxu0 %v3349
    %4361 = vmatprep.subr.bf16.mxu0 %v3334
    %4362 = vmatpush1.bf16.msra.mxu0 %v3333
    %4363 = vmatprep.subr.bf16.mxu0 %v3318
    %4364 = vmatpush1.bf16.msra.mxu0 %v3317
    %4365 = vmatprep.subr.bf16.mxu0 %v3302
    %4366 = vmatpush1.bf16.msra.mxu0 %v3301
    %4367 = vmatprep.subr.bf16.mxu0 %v3286
    %4368 = vmatpush1.bf16.msra.mxu0 %v3285
    %4369 = vmatprep.subr.bf16.mxu0 %v3270
    %4370 = vmatpush1.bf16.msra.mxu0 %v3269
    %4371 = vmatprep.subr.bf16.mxu0 %v3254
    %4372 = vmatpush1.bf16.msra.mxu0 %v3253
    %4373 = vmatprep.subr.bf16.mxu0 %v3494
    %4374 = vmatpush2.bf16.msra.mxu0 %v3493
    %4375 = vmatprep.subr.bf16.mxu0 %v3478
    %4376 = vmatpush2.bf16.msra.mxu0 %v3477
    %4377 = vmatprep.subr.bf16.mxu0 %v3462
    %4378 = vmatpush2.bf16.msra.mxu0 %v3461
    %4379 = vmatprep.subr.bf16.mxu0 %v3446
    %4380 = vmatpush2.bf16.msra.mxu0 %v3445
    %4381 = vmatprep.subr.bf16.mxu0 %v3430
    %4382 = vmatpush2.bf16.msra.mxu0 %v3429
    %4383 = vmatprep.subr.bf16.mxu0 %v3414
    %4384 = vmatpush2.bf16.msra.mxu0 %v3413
    %4385 = vmatprep.subr.bf16.mxu0 %v3398
    %4386 = vmatpush2.bf16.msra.mxu0 %v3397
    %4387 = vmatprep.subr.bf16.mxu0 %v3382
    %4388 = vmatpush2.bf16.msra.mxu0 %v3381
    %4389 = vmatprep.mubr.bf16.mxu0 %v1116
    %4390 = vmatmul.mubr.bf16.gmra.mxu0 %v1115
    %v4391 = vpop.f32.mrf.mxu0
    %v4392 = vadd.f32 %v1646, %v4391
    %v4393 = vpop.f32.mrf.mxu0
    %v4394 = vadd.f32 %v1650, %v4393
    %v4395 = vpop.f32.mrf.mxu0
    %v4396 = vpop.f32.mrf.mxu0
    %4397 = vdwg.mxu0
    %4398 = vmatprep.subr.bf16.mxu0 %v3622
    %4399 = vmatpush1.bf16.msra.mxu0 %v3621
    %4400 = vmatprep.subr.bf16.mxu0 %v3606
    %4401 = vmatpush1.bf16.msra.mxu0 %v3605
    %4402 = vmatprep.subr.bf16.mxu0 %v3590
    %4403 = vmatpush1.bf16.msra.mxu0 %v3589
    %4404 = vmatprep.subr.bf16.mxu0 %v3574
    %4405 = vmatpush1.bf16.msra.mxu0 %v3573
    %4406 = vmatprep.subr.bf16.mxu0 %v3558
    %4407 = vmatpush1.bf16.msra.mxu0 %v3557
    %4408 = vmatprep.subr.bf16.mxu0 %v3542
    %4409 = vmatpush1.bf16.msra.mxu0 %v3541
    %4410 = vmatprep.subr.bf16.mxu0 %v3526
    %4411 = vmatpush1.bf16.msra.mxu0 %v3525
    %4412 = vmatprep.subr.bf16.mxu0 %v3510
    %4413 = vmatpush1.bf16.msra.mxu0 %v3509
    %4414 = vmatprep.subr.bf16.mxu0 %v3750
    %4415 = vmatpush2.bf16.msra.mxu0 %v3749
    %4416 = vmatprep.subr.bf16.mxu0 %v3734
    %4417 = vmatpush2.bf16.msra.mxu0 %v3733
    %4418 = vmatprep.subr.bf16.mxu0 %v3718
    %4419 = vmatpush2.bf16.msra.mxu0 %v3717
    %4420 = vmatprep.subr.bf16.mxu0 %v3702
    %4421 = vmatpush2.bf16.msra.mxu0 %v3701
    %4422 = vmatprep.subr.bf16.mxu0 %v3686
    %4423 = vmatpush2.bf16.msra.mxu0 %v3685
    %4424 = vmatprep.subr.bf16.mxu0 %v3670
    %4425 = vmatpush2.bf16.msra.mxu0 %v3669
    %4426 = vmatprep.subr.bf16.mxu0 %v3654
    %4427 = vmatpush2.bf16.msra.mxu0 %v3653
    %4428 = vmatprep.subr.bf16.mxu0 %v3638
    %4429 = vmatpush2.bf16.msra.mxu0 %v3637
    %4430 = vmatprep.mubr.bf16.mxu0 %v1118
    %4431 = vmatmul.mubr.bf16.gmra.mxu0 %v1117
    %v4432 = vpop.f32.mrf.mxu0
    %v4433 = vadd.f32 %v4392, %v4432
    %v4434 = vpop.f32.mrf.mxu0
    %v4435 = vadd.f32 %v4394, %v4434
    %v4436 = vpop.f32.mrf.mxu0
    %v4437 = vpop.f32.mrf.mxu0
    %4438 = vdwg.mxu0
    %4439 = vmatprep.subr.bf16.mxu0 %v3368
    %4440 = vmatpush1.bf16.msra.mxu0 %v3367
    %4441 = vmatprep.subr.bf16.mxu0 %v3352
    %4442 = vmatpush1.bf16.msra.mxu0 %v3351
    %4443 = vmatprep.subr.bf16.mxu0 %v3336
    %4444 = vmatpush1.bf16.msra.mxu0 %v3335
    %4445 = vmatprep.subr.bf16.mxu0 %v3320
    %4446 = vmatpush1.bf16.msra.mxu0 %v3319
    %4447 = vmatprep.subr.bf16.mxu0 %v3304
    %4448 = vmatpush1.bf16.msra.mxu0 %v3303
    %4449 = vmatprep.subr.bf16.mxu0 %v3288
    %4450 = vmatpush1.bf16.msra.mxu0 %v3287
    %4451 = vmatprep.subr.bf16.mxu0 %v3272
    %4452 = vmatpush1.bf16.msra.mxu0 %v3271
    %4453 = vmatprep.subr.bf16.mxu0 %v3256
    %4454 = vmatpush1.bf16.msra.mxu0 %v3255
    %4455 = vmatprep.subr.bf16.mxu0 %v3496
    %4456 = vmatpush2.bf16.msra.mxu0 %v3495
    %4457 = vmatprep.subr.bf16.mxu0 %v3480
    %4458 = vmatpush2.bf16.msra.mxu0 %v3479
    %4459 = vmatprep.subr.bf16.mxu0 %v3464
    %4460 = vmatpush2.bf16.msra.mxu0 %v3463
    %4461 = vmatprep.subr.bf16.mxu0 %v3448
    %4462 = vmatpush2.bf16.msra.mxu0 %v3447
    %4463 = vmatprep.subr.bf16.mxu0 %v3432
    %4464 = vmatpush2.bf16.msra.mxu0 %v3431
    %4465 = vmatprep.subr.bf16.mxu0 %v3416
    %4466 = vmatpush2.bf16.msra.mxu0 %v3415
    %4467 = vmatprep.subr.bf16.mxu0 %v3400
    %4468 = vmatpush2.bf16.msra.mxu0 %v3399
    %4469 = vmatprep.subr.bf16.mxu0 %v3384
    %4470 = vmatpush2.bf16.msra.mxu0 %v3383
    %4471 = vmatprep.mubr.bf16.mxu0 %v1116
    %4472 = vmatmul.mubr.bf16.gmra.mxu0 %v1115
    %v4473 = vpop.f32.mrf.mxu0
    %v4474 = vadd.f32 %v1654, %v4473
    %v4475 = vpop.f32.mrf.mxu0
    %v4476 = vadd.f32 %v1658, %v4475
    %v4477 = vpop.f32.mrf.mxu0
    %v4478 = vpop.f32.mrf.mxu0
    %4479 = vdwg.mxu0
    %4480 = vmatprep.subr.bf16.mxu0 %v3624
    %4481 = vmatpush1.bf16.msra.mxu0 %v3623
    %4482 = vmatprep.subr.bf16.mxu0 %v3608
    %4483 = vmatpush1.bf16.msra.mxu0 %v3607
    %4484 = vmatprep.subr.bf16.mxu0 %v3592
    %4485 = vmatpush1.bf16.msra.mxu0 %v3591
    %4486 = vmatprep.subr.bf16.mxu0 %v3576
    %4487 = vmatpush1.bf16.msra.mxu0 %v3575
    %4488 = vmatprep.subr.bf16.mxu0 %v3560
    %4489 = vmatpush1.bf16.msra.mxu0 %v3559
    %4490 = vmatprep.subr.bf16.mxu0 %v3544
    %4491 = vmatpush1.bf16.msra.mxu0 %v3543
    %4492 = vmatprep.subr.bf16.mxu0 %v3528
    %4493 = vmatpush1.bf16.msra.mxu0 %v3527
    %4494 = vmatprep.subr.bf16.mxu0 %v3512
    %4495 = vmatpush1.bf16.msra.mxu0 %v3511
    %4496 = vmatprep.subr.bf16.mxu0 %v3752
    %4497 = vmatpush2.bf16.msra.mxu0 %v3751
    %4498 = vmatprep.subr.bf16.mxu0 %v3736
    %4499 = vmatpush2.bf16.msra.mxu0 %v3735
    %4500 = vmatprep.subr.bf16.mxu0 %v3720
    %4501 = vmatpush2.bf16.msra.mxu0 %v3719
    %4502 = vmatprep.subr.bf16.mxu0 %v3704
    %4503 = vmatpush2.bf16.msra.mxu0 %v3703
    %4504 = vmatprep.subr.bf16.mxu0 %v3688
    %4505 = vmatpush2.bf16.msra.mxu0 %v3687
    %4506 = vmatprep.subr.bf16.mxu0 %v3672
    %4507 = vmatpush2.bf16.msra.mxu0 %v3671
    %4508 = vmatprep.subr.bf16.mxu0 %v3656
    %4509 = vmatpush2.bf16.msra.mxu0 %v3655
    %4510 = vmatprep.subr.bf16.mxu0 %v3640
    %4511 = vmatpush2.bf16.msra.mxu0 %v3639
    %4512 = vmatprep.mubr.bf16.mxu0 %v1118
    %4513 = vmatmul.mubr.bf16.gmra.mxu0 %v1117
    %v4514 = vpop.f32.mrf.mxu0
    %v4515 = vadd.f32 %v4474, %v4514
    %v4516 = vpop.f32.mrf.mxu0
    %v4517 = vadd.f32 %v4476, %v4516
    %v4518 = vpop.f32.mrf.mxu0
    %v4519 = vpop.f32.mrf.mxu0
    %4520 = vdwg.mxu0
    %4521 = vmatprep.subr.bf16.mxu0 %v3370
    %4522 = vmatpush1.bf16.msra.mxu0 %v3369
    %4523 = vmatprep.subr.bf16.mxu0 %v3354
    %4524 = vmatpush1.bf16.msra.mxu0 %v3353
    %4525 = vmatprep.subr.bf16.mxu0 %v3338
    %4526 = vmatpush1.bf16.msra.mxu0 %v3337
    %4527 = vmatprep.subr.bf16.mxu0 %v3322
    %4528 = vmatpush1.bf16.msra.mxu0 %v3321
    %4529 = vmatprep.subr.bf16.mxu0 %v3306
    %4530 = vmatpush1.bf16.msra.mxu0 %v3305
    %4531 = vmatprep.subr.bf16.mxu0 %v3290
    %4532 = vmatpush1.bf16.msra.mxu0 %v3289
    %4533 = vmatprep.subr.bf16.mxu0 %v3274
    %4534 = vmatpush1.bf16.msra.mxu0 %v3273
    %4535 = vmatprep.subr.bf16.mxu0 %v3258
    %4536 = vmatpush1.bf16.msra.mxu0 %v3257
    %4537 = vmatprep.subr.bf16.mxu0 %v3498
    %4538 = vmatpush2.bf16.msra.mxu0 %v3497
    %4539 = vmatprep.subr.bf16.mxu0 %v3482
    %4540 = vmatpush2.bf16.msra.mxu0 %v3481
    %4541 = vmatprep.subr.bf16.mxu0 %v3466
    %4542 = vmatpush2.bf16.msra.mxu0 %v3465
    %4543 = vmatprep.subr.bf16.mxu0 %v3450
    %4544 = vmatpush2.bf16.msra.mxu0 %v3449
    %4545 = vmatprep.subr.bf16.mxu0 %v3434
    %4546 = vmatpush2.bf16.msra.mxu0 %v3433
    %4547 = vmatprep.subr.bf16.mxu0 %v3418
    %4548 = vmatpush2.bf16.msra.mxu0 %v3417
    %4549 = vmatprep.subr.bf16.mxu0 %v3402
    %4550 = vmatpush2.bf16.msra.mxu0 %v3401
    %4551 = vmatprep.subr.bf16.mxu0 %v3386
    %4552 = vmatpush2.bf16.msra.mxu0 %v3385
    %4553 = vmatprep.mubr.bf16.mxu0 %v1116
    %4554 = vmatmul.mubr.bf16.gmra.mxu0 %v1115
    %v4555 = vpop.f32.mrf.mxu0
    %v4556 = vadd.f32 %v1662, %v4555
    %v4557 = vpop.f32.mrf.mxu0
    %v4558 = vadd.f32 %v1666, %v4557
    %v4559 = vpop.f32.mrf.mxu0
    %v4560 = vpop.f32.mrf.mxu0
    %4561 = vdwg.mxu0
    %4562 = vmatprep.subr.bf16.mxu0 %v3626
    %4563 = vmatpush1.bf16.msra.mxu0 %v3625
    %4564 = vmatprep.subr.bf16.mxu0 %v3610
    %4565 = vmatpush1.bf16.msra.mxu0 %v3609
    %4566 = vmatprep.subr.bf16.mxu0 %v3594
    %4567 = vmatpush1.bf16.msra.mxu0 %v3593
    %4568 = vmatprep.subr.bf16.mxu0 %v3578
    %4569 = vmatpush1.bf16.msra.mxu0 %v3577
    %4570 = vmatprep.subr.bf16.mxu0 %v3562
    %4571 = vmatpush1.bf16.msra.mxu0 %v3561
    %4572 = vmatprep.subr.bf16.mxu0 %v3546
    %4573 = vmatpush1.bf16.msra.mxu0 %v3545
    %4574 = vmatprep.subr.bf16.mxu0 %v3530
    %4575 = vmatpush1.bf16.msra.mxu0 %v3529
    %4576 = vmatprep.subr.bf16.mxu0 %v3514
    %4577 = vmatpush1.bf16.msra.mxu0 %v3513
    %4578 = vmatprep.subr.bf16.mxu0 %v3754
    %4579 = vmatpush2.bf16.msra.mxu0 %v3753
    %4580 = vmatprep.subr.bf16.mxu0 %v3738
    %4581 = vmatpush2.bf16.msra.mxu0 %v3737
    %4582 = vmatprep.subr.bf16.mxu0 %v3722
    %4583 = vmatpush2.bf16.msra.mxu0 %v3721
    %4584 = vmatprep.subr.bf16.mxu0 %v3706
    %4585 = vmatpush2.bf16.msra.mxu0 %v3705
    %4586 = vmatprep.subr.bf16.mxu0 %v3690
    %4587 = vmatpush2.bf16.msra.mxu0 %v3689
    %4588 = vmatprep.subr.bf16.mxu0 %v3674
    %4589 = vmatpush2.bf16.msra.mxu0 %v3673
    %4590 = vmatprep.subr.bf16.mxu0 %v3658
    %4591 = vmatpush2.bf16.msra.mxu0 %v3657
    %4592 = vmatprep.subr.bf16.mxu0 %v3642
    %4593 = vmatpush2.bf16.msra.mxu0 %v3641
    %4594 = vmatprep.mubr.bf16.mxu0 %v1118
    %4595 = vmatmul.mubr.bf16.gmra.mxu0 %v1117
    %v4596 = vpop.f32.mrf.mxu0
    %v4597 = vadd.f32 %v4556, %v4596
    %v4598 = vpop.f32.mrf.mxu0
    %v4599 = vadd.f32 %v4558, %v4598
    %v4600 = vpop.f32.mrf.mxu0
    %v4601 = vpop.f32.mrf.mxu0
    %4602 = vdwg.mxu0
    %4603 = vmatprep.subr.bf16.mxu0 %v3372
    %4604 = vmatpush1.bf16.msra.mxu0 %v3371
    %4605 = vmatprep.subr.bf16.mxu0 %v3356
    %4606 = vmatpush1.bf16.msra.mxu0 %v3355
    %4607 = vmatprep.subr.bf16.mxu0 %v3340
    %4608 = vmatpush1.bf16.msra.mxu0 %v3339
    %4609 = vmatprep.subr.bf16.mxu0 %v3324
    %4610 = vmatpush1.bf16.msra.mxu0 %v3323
    %4611 = vmatprep.subr.bf16.mxu0 %v3308
    %4612 = vmatpush1.bf16.msra.mxu0 %v3307
    %4613 = vmatprep.subr.bf16.mxu0 %v3292
    %4614 = vmatpush1.bf16.msra.mxu0 %v3291
    %4615 = vmatprep.subr.bf16.mxu0 %v3276
    %4616 = vmatpush1.bf16.msra.mxu0 %v3275
    %4617 = vmatprep.subr.bf16.mxu0 %v3260
    %4618 = vmatpush1.bf16.msra.mxu0 %v3259
    %4619 = vmatprep.subr.bf16.mxu0 %v3500
    %4620 = vmatpush2.bf16.msra.mxu0 %v3499
    %4621 = vmatprep.subr.bf16.mxu0 %v3484
    %4622 = vmatpush2.bf16.msra.mxu0 %v3483
    %4623 = vmatprep.subr.bf16.mxu0 %v3468
    %4624 = vmatpush2.bf16.msra.mxu0 %v3467
    %4625 = vmatprep.subr.bf16.mxu0 %v3452
    %4626 = vmatpush2.bf16.msra.mxu0 %v3451
    %4627 = vmatprep.subr.bf16.mxu0 %v3436
    %4628 = vmatpush2.bf16.msra.mxu0 %v3435
    %4629 = vmatprep.subr.bf16.mxu0 %v3420
    %4630 = vmatpush2.bf16.msra.mxu0 %v3419
    %4631 = vmatprep.subr.bf16.mxu0 %v3404
    %4632 = vmatpush2.bf16.msra.mxu0 %v3403
    %4633 = vmatprep.subr.bf16.mxu0 %v3388
    %4634 = vmatpush2.bf16.msra.mxu0 %v3387
    %4635 = vmatprep.mubr.bf16.mxu0 %v1116
    %4636 = vmatmul.mubr.bf16.gmra.mxu0 %v1115
    %v4637 = vpop.f32.mrf.mxu0
    %v4638 = vadd.f32 %v1670, %v4637
    %v4639 = vpop.f32.mrf.mxu0
    %v4640 = vadd.f32 %v1674, %v4639
    %v4641 = vpop.f32.mrf.mxu0
    %v4642 = vpop.f32.mrf.mxu0
    %4643 = vdwg.mxu0
    %4644 = vmatprep.subr.bf16.mxu0 %v3628
    %4645 = vmatpush1.bf16.msra.mxu0 %v3627
    %4646 = vmatprep.subr.bf16.mxu0 %v3612
    %4647 = vmatpush1.bf16.msra.mxu0 %v3611
    %4648 = vmatprep.subr.bf16.mxu0 %v3596
    %4649 = vmatpush1.bf16.msra.mxu0 %v3595
    %4650 = vmatprep.subr.bf16.mxu0 %v3580
    %4651 = vmatpush1.bf16.msra.mxu0 %v3579
    %4652 = vmatprep.subr.bf16.mxu0 %v3564
    %4653 = vmatpush1.bf16.msra.mxu0 %v3563
    %4654 = vmatprep.subr.bf16.mxu0 %v3548
    %4655 = vmatpush1.bf16.msra.mxu0 %v3547
    %4656 = vmatprep.subr.bf16.mxu0 %v3532
    %4657 = vmatpush1.bf16.msra.mxu0 %v3531
    %4658 = vmatprep.subr.bf16.mxu0 %v3516
    %4659 = vmatpush1.bf16.msra.mxu0 %v3515
    %4660 = vmatprep.subr.bf16.mxu0 %v3756
    %4661 = vmatpush2.bf16.msra.mxu0 %v3755
    %4662 = vmatprep.subr.bf16.mxu0 %v3740
    %4663 = vmatpush2.bf16.msra.mxu0 %v3739
    %4664 = vmatprep.subr.bf16.mxu0 %v3724
    %4665 = vmatpush2.bf16.msra.mxu0 %v3723
    %4666 = vmatprep.subr.bf16.mxu0 %v3708
    %4667 = vmatpush2.bf16.msra.mxu0 %v3707
    %4668 = vmatprep.subr.bf16.mxu0 %v3692
    %4669 = vmatpush2.bf16.msra.mxu0 %v3691
    %4670 = vmatprep.subr.bf16.mxu0 %v3676
    %4671 = vmatpush2.bf16.msra.mxu0 %v3675
    %4672 = vmatprep.subr.bf16.mxu0 %v3660
    %4673 = vmatpush2.bf16.msra.mxu0 %v3659
    %4674 = vmatprep.subr.bf16.mxu0 %v3644
    %4675 = vmatpush2.bf16.msra.mxu0 %v3643
    %4676 = vmatprep.mubr.bf16.mxu0 %v1118
    %4677 = vmatmul.mubr.bf16.gmra.mxu0 %v1117
    %v4678 = vpop.f32.mrf.mxu0
    %v4679 = vadd.f32 %v4638, %v4678
    %v4680 = vpop.f32.mrf.mxu0
    %v4681 = vadd.f32 %v4640, %v4680
    %v4682 = vpop.f32.mrf.mxu0
    %v4683 = vpop.f32.mrf.mxu0
    %4684 = vdwg.mxu0
    %4685 = vmatprep.subr.bf16.mxu0 %v3374
    %4686 = vmatpush1.bf16.msra.mxu0 %v3373
    %4687 = vmatprep.subr.bf16.mxu0 %v3358
    %4688 = vmatpush1.bf16.msra.mxu0 %v3357
    %4689 = vmatprep.subr.bf16.mxu0 %v3342
    %4690 = vmatpush1.bf16.msra.mxu0 %v3341
    %4691 = vmatprep.subr.bf16.mxu0 %v3326
    %4692 = vmatpush1.bf16.msra.mxu0 %v3325
    %4693 = vmatprep.subr.bf16.mxu0 %v3310
    %4694 = vmatpush1.bf16.msra.mxu0 %v3309
    %4695 = vmatprep.subr.bf16.mxu0 %v3294
    %4696 = vmatpush1.bf16.msra.mxu0 %v3293
    %4697 = vmatprep.subr.bf16.mxu0 %v3278
    %4698 = vmatpush1.bf16.msra.mxu0 %v3277
    %4699 = vmatprep.subr.bf16.mxu0 %v3262
    %4700 = vmatpush1.bf16.msra.mxu0 %v3261
    %4701 = vmatprep.subr.bf16.mxu0 %v3502
    %4702 = vmatpush2.bf16.msra.mxu0 %v3501
    %4703 = vmatprep.subr.bf16.mxu0 %v3486
    %4704 = vmatpush2.bf16.msra.mxu0 %v3485
    %4705 = vmatprep.subr.bf16.mxu0 %v3470
    %4706 = vmatpush2.bf16.msra.mxu0 %v3469
    %4707 = vmatprep.subr.bf16.mxu0 %v3454
    %4708 = vmatpush2.bf16.msra.mxu0 %v3453
    %4709 = vmatprep.subr.bf16.mxu0 %v3438
    %4710 = vmatpush2.bf16.msra.mxu0 %v3437
    %4711 = vmatprep.subr.bf16.mxu0 %v3422
    %4712 = vmatpush2.bf16.msra.mxu0 %v3421
    %4713 = vmatprep.subr.bf16.mxu0 %v3406
    %4714 = vmatpush2.bf16.msra.mxu0 %v3405
    %4715 = vmatprep.subr.bf16.mxu0 %v3390
    %4716 = vmatpush2.bf16.msra.mxu0 %v3389
    %4717 = vmatprep.mubr.bf16.mxu0 %v1116
    %4718 = vmatmul.mubr.bf16.gmra.mxu0 %v1115
    %v4719 = vpop.f32.mrf.mxu0
    %v4720 = vadd.f32 %v1678, %v4719
    %v4721 = vpop.f32.mrf.mxu0
    %v4722 = vadd.f32 %v1682, %v4721
    %v4723 = vpop.f32.mrf.mxu0
    %v4724 = vpop.f32.mrf.mxu0
    %4725 = vdwg.mxu0
    %4726 = vmatprep.subr.bf16.mxu0 %v3630
    %4727 = vmatpush1.bf16.msra.mxu0 %v3629
    %4728 = vmatprep.subr.bf16.mxu0 %v3614
    %4729 = vmatpush1.bf16.msra.mxu0 %v3613
    %4730 = vmatprep.subr.bf16.mxu0 %v3598
    %4731 = vmatpush1.bf16.msra.mxu0 %v3597
    %4732 = vmatprep.subr.bf16.mxu0 %v3582
    %4733 = vmatpush1.bf16.msra.mxu0 %v3581
    %4734 = vmatprep.subr.bf16.mxu0 %v3566
    %4735 = vmatpush1.bf16.msra.mxu0 %v3565
    %4736 = vmatprep.subr.bf16.mxu0 %v3550
    %4737 = vmatpush1.bf16.msra.mxu0 %v3549
    %4738 = vmatprep.subr.bf16.mxu0 %v3534
    %4739 = vmatpush1.bf16.msra.mxu0 %v3533
    %4740 = vmatprep.subr.bf16.mxu0 %v3518
    %4741 = vmatpush1.bf16.msra.mxu0 %v3517
    %4742 = vmatprep.subr.bf16.mxu0 %v3758
    %4743 = vmatpush2.bf16.msra.mxu0 %v3757
    %4744 = vmatprep.subr.bf16.mxu0 %v3742
    %4745 = vmatpush2.bf16.msra.mxu0 %v3741
    %4746 = vmatprep.subr.bf16.mxu0 %v3726
    %4747 = vmatpush2.bf16.msra.mxu0 %v3725
    %4748 = vmatprep.subr.bf16.mxu0 %v3710
    %4749 = vmatpush2.bf16.msra.mxu0 %v3709
    %4750 = vmatprep.subr.bf16.mxu0 %v3694
    %4751 = vmatpush2.bf16.msra.mxu0 %v3693
    %4752 = vmatprep.subr.bf16.mxu0 %v3678
    %4753 = vmatpush2.bf16.msra.mxu0 %v3677
    %4754 = vmatprep.subr.bf16.mxu0 %v3662
    %4755 = vmatpush2.bf16.msra.mxu0 %v3661
    %4756 = vmatprep.subr.bf16.mxu0 %v3646
    %4757 = vmatpush2.bf16.msra.mxu0 %v3645
    %4758 = vmatprep.mubr.bf16.mxu0 %v1118
    %4759 = vmatmul.mubr.bf16.gmra.mxu0 %v1117
    %v4760 = vpop.f32.mrf.mxu0
    %v4761 = vadd.f32 %v4720, %v4760
    %v4762 = vpop.f32.mrf.mxu0
    %v4763 = vadd.f32 %v4722, %v4762
    %v4764 = vpop.f32.mrf.mxu0
    %v4765 = vpop.f32.mrf.mxu0
    %4766 = vdwg.mxu0
    %4767 = vmatprep.subr.bf16.mxu0 %v3376
    %4768 = vmatpush1.bf16.msra.mxu0 %v3375
    %4769 = vmatprep.subr.bf16.mxu0 %v3360
    %4770 = vmatpush1.bf16.msra.mxu0 %v3359
    %4771 = vmatprep.subr.bf16.mxu0 %v3344
    %4772 = vmatpush1.bf16.msra.mxu0 %v3343
    %4773 = vmatprep.subr.bf16.mxu0 %v3328
    %4774 = vmatpush1.bf16.msra.mxu0 %v3327
    %4775 = vmatprep.subr.bf16.mxu0 %v3312
    %4776 = vmatpush1.bf16.msra.mxu0 %v3311
    %4777 = vmatprep.subr.bf16.mxu0 %v3296
    %4778 = vmatpush1.bf16.msra.mxu0 %v3295
    %4779 = vmatprep.subr.bf16.mxu0 %v3280
    %4780 = vmatpush1.bf16.msra.mxu0 %v3279
    %4781 = vmatprep.subr.bf16.mxu0 %v3264
    %4782 = vmatpush1.bf16.msra.mxu0 %v3263
    %4783 = vmatprep.subr.bf16.mxu0 %v3504
    %4784 = vmatpush2.bf16.msra.mxu0 %v3503
    %4785 = vmatprep.subr.bf16.mxu0 %v3488
    %4786 = vmatpush2.bf16.msra.mxu0 %v3487
    %4787 = vmatprep.subr.bf16.mxu0 %v3472
    %4788 = vmatpush2.bf16.msra.mxu0 %v3471
    %4789 = vmatprep.subr.bf16.mxu0 %v3456
    %4790 = vmatpush2.bf16.msra.mxu0 %v3455
    %4791 = vmatprep.subr.bf16.mxu0 %v3440
    %4792 = vmatpush2.bf16.msra.mxu0 %v3439
    %4793 = vmatprep.subr.bf16.mxu0 %v3424
    %4794 = vmatpush2.bf16.msra.mxu0 %v3423
    %4795 = vmatprep.subr.bf16.mxu0 %v3408
    %4796 = vmatpush2.bf16.msra.mxu0 %v3407
    %4797 = vmatprep.subr.bf16.mxu0 %v3392
    %4798 = vmatpush2.bf16.msra.mxu0 %v3391
    %4799 = vmatprep.mubr.bf16.mxu0 %v1116
    %4800 = vmatmul.mubr.bf16.gmra.mxu0 %v1115
    %v4801 = vpop.f32.mrf.mxu0
    %v4802 = vadd.f32 %v1686, %v4801
    %v4803 = vpop.f32.mrf.mxu0
    %v4804 = vadd.f32 %v1690, %v4803
    %v4805 = vpop.f32.mrf.mxu0
    %v4806 = vpop.f32.mrf.mxu0
    %4807 = vdwg.mxu0
    %4808 = vmatprep.subr.bf16.mxu0 %v3632
    %4809 = vmatpush1.bf16.msra.mxu0 %v3631
    %4810 = vmatprep.subr.bf16.mxu0 %v3616
    %4811 = vmatpush1.bf16.msra.mxu0 %v3615
    %4812 = vmatprep.subr.bf16.mxu0 %v3600
    %4813 = vmatpush1.bf16.msra.mxu0 %v3599
    %4814 = vmatprep.subr.bf16.mxu0 %v3584
    %4815 = vmatpush1.bf16.msra.mxu0 %v3583
    %4816 = vmatprep.subr.bf16.mxu0 %v3568
    %4817 = vmatpush1.bf16.msra.mxu0 %v3567
    %4818 = vmatprep.subr.bf16.mxu0 %v3552
    %4819 = vmatpush1.bf16.msra.mxu0 %v3551
    %4820 = vmatprep.subr.bf16.mxu0 %v3536
    %4821 = vmatpush1.bf16.msra.mxu0 %v3535
    %4822 = vmatprep.subr.bf16.mxu0 %v3520
    %4823 = vmatpush1.bf16.msra.mxu0 %v3519
    %4824 = vmatprep.subr.bf16.mxu0 %v3760
    %4825 = vmatpush2.bf16.msra.mxu0 %v3759
    %4826 = vmatprep.subr.bf16.mxu0 %v3744
    %4827 = vmatpush2.bf16.msra.mxu0 %v3743
    %4828 = vmatprep.subr.bf16.mxu0 %v3728
    %4829 = vmatpush2.bf16.msra.mxu0 %v3727
    %4830 = vmatprep.subr.bf16.mxu0 %v3712
    %4831 = vmatpush2.bf16.msra.mxu0 %v3711
    %4832 = vmatprep.subr.bf16.mxu0 %v3696
    %4833 = vmatpush2.bf16.msra.mxu0 %v3695
    %4834 = vmatprep.subr.bf16.mxu0 %v3680
    %4835 = vmatpush2.bf16.msra.mxu0 %v3679
    %4836 = vmatprep.subr.bf16.mxu0 %v3664
    %4837 = vmatpush2.bf16.msra.mxu0 %v3663
    %4838 = vmatprep.subr.bf16.mxu0 %v3648
    %4839 = vmatpush2.bf16.msra.mxu0 %v3647
    %4840 = vmatprep.mubr.bf16.mxu0 %v1118
    %4841 = vmatmul.mubr.bf16.gmra.mxu0 %v1117
    %v4842 = vpop.f32.mrf.mxu0
    %v4843 = vadd.f32 %v4802, %v4842
    %v4844 = vpop.f32.mrf.mxu0
    %v4845 = vadd.f32 %v4804, %v4844
    %v4846 = vpop.f32.mrf.mxu0
    %v4847 = vpop.f32.mrf.mxu0
    %4848 = vdwg.mxu0
    %4849 = vmatprep.subr.bf16.mxu0 %v3378
    %4850 = vmatpush1.bf16.msra.mxu0 %v3377
    %4851 = vmatprep.subr.bf16.mxu0 %v3362
    %4852 = vmatpush1.bf16.msra.mxu0 %v3361
    %4853 = vmatprep.subr.bf16.mxu0 %v3346
    %4854 = vmatpush1.bf16.msra.mxu0 %v3345
    %4855 = vmatprep.subr.bf16.mxu0 %v3330
    %4856 = vmatpush1.bf16.msra.mxu0 %v3329
    %4857 = vmatprep.subr.bf16.mxu0 %v3314
    %4858 = vmatpush1.bf16.msra.mxu0 %v3313
    %4859 = vmatprep.subr.bf16.mxu0 %v3298
    %4860 = vmatpush1.bf16.msra.mxu0 %v3297
    %4861 = vmatprep.subr.bf16.mxu0 %v3282
    %4862 = vmatpush1.bf16.msra.mxu0 %v3281
    %4863 = vmatprep.subr.bf16.mxu0 %v3266
    %4864 = vmatpush1.bf16.msra.mxu0 %v3265
    %4865 = vmatprep.subr.bf16.mxu0 %v3506
    %4866 = vmatpush2.bf16.msra.mxu0 %v3505
    %4867 = vmatprep.subr.bf16.mxu0 %v3490
    %4868 = vmatpush2.bf16.msra.mxu0 %v3489
    %4869 = vmatprep.subr.bf16.mxu0 %v3474
    %4870 = vmatpush2.bf16.msra.mxu0 %v3473
    %4871 = vmatprep.subr.bf16.mxu0 %v3458
    %4872 = vmatpush2.bf16.msra.mxu0 %v3457
    %4873 = vmatprep.subr.bf16.mxu0 %v3442
    %4874 = vmatpush2.bf16.msra.mxu0 %v3441
    %4875 = vmatprep.subr.bf16.mxu0 %v3426
    %4876 = vmatpush2.bf16.msra.mxu0 %v3425
    %4877 = vmatprep.subr.bf16.mxu0 %v3410
    %4878 = vmatpush2.bf16.msra.mxu0 %v3409
    %4879 = vmatprep.subr.bf16.mxu0 %v3394
    %4880 = vmatpush2.bf16.msra.mxu0 %v3393
    %4881 = vmatprep.mubr.bf16.mxu0 %v1116
    %4882 = vmatmul.mubr.bf16.gmra.mxu0 %v1115
    %v4883 = vpop.f32.mrf.mxu0
    %v4884 = vadd.f32 %v1694, %v4883
    %v4885 = vpop.f32.mrf.mxu0
    %v4886 = vadd.f32 %v1698, %v4885
    %v4887 = vpop.f32.mrf.mxu0
    %v4888 = vpop.f32.mrf.mxu0
    %4889 = vdwg.mxu0
    %4890 = vmatprep.subr.bf16.mxu0 %v3634
    %4891 = vmatpush1.bf16.msra.mxu0 %v3633
    %4892 = vmatprep.subr.bf16.mxu0 %v3618
    %4893 = vmatpush1.bf16.msra.mxu0 %v3617
    %4894 = vmatprep.subr.bf16.mxu0 %v3602
    %4895 = vmatpush1.bf16.msra.mxu0 %v3601
    %4896 = vmatprep.subr.bf16.mxu0 %v3586
    %4897 = vmatpush1.bf16.msra.mxu0 %v3585
    %4898 = vmatprep.subr.bf16.mxu0 %v3570
    %4899 = vmatpush1.bf16.msra.mxu0 %v3569
    %4900 = vmatprep.subr.bf16.mxu0 %v3554
    %4901 = vmatpush1.bf16.msra.mxu0 %v3553
    %4902 = vmatprep.subr.bf16.mxu0 %v3538
    %4903 = vmatpush1.bf16.msra.mxu0 %v3537
    %4904 = vmatprep.subr.bf16.mxu0 %v3522
    %4905 = vmatpush1.bf16.msra.mxu0 %v3521
    %4906 = vmatprep.subr.bf16.mxu0 %v3762
    %4907 = vmatpush2.bf16.msra.mxu0 %v3761
    %4908 = vmatprep.subr.bf16.mxu0 %v3746
    %4909 = vmatpush2.bf16.msra.mxu0 %v3745
    %4910 = vmatprep.subr.bf16.mxu0 %v3730
    %4911 = vmatpush2.bf16.msra.mxu0 %v3729
    %4912 = vmatprep.subr.bf16.mxu0 %v3714
    %4913 = vmatpush2.bf16.msra.mxu0 %v3713
    %4914 = vmatprep.subr.bf16.mxu0 %v3698
    %4915 = vmatpush2.bf16.msra.mxu0 %v3697
    %4916 = vmatprep.subr.bf16.mxu0 %v3682
    %4917 = vmatpush2.bf16.msra.mxu0 %v3681
    %4918 = vmatprep.subr.bf16.mxu0 %v3666
    %4919 = vmatpush2.bf16.msra.mxu0 %v3665
    %4920 = vmatprep.subr.bf16.mxu0 %v3650
    %4921 = vmatpush2.bf16.msra.mxu0 %v3649
    %4922 = vmatprep.mubr.bf16.mxu0 %v1118
    %4923 = vmatmul.mubr.bf16.gmra.mxu0 %v1117
    %v4924 = vpop.f32.mrf.mxu0
    %v4925 = vadd.f32 %v4884, %v4924
    %v4926 = vpop.f32.mrf.mxu0
    %v4927 = vadd.f32 %v4886, %v4926
    %v4928 = vpop.f32.mrf.mxu0
    %v4929 = vpop.f32.mrf.mxu0
    %4930 = vdwg.mxu0
    %v4931 = vmul.f32 %v4351, 0.5
    %v4932 = vmul.f32 %v4353, 0.5
    %v4933 = vmul.f32 %v4433, 0.5
    %v4934 = vmul.f32 %v4435, 0.5
    %v4935 = vmul.f32 %v4515, 0.5
    %v4936 = vmul.f32 %v4517, 0.5
    %v4937 = vmul.f32 %v4597, 0.5
    %v4938 = vmul.f32 %v4599, 0.5
    %v4939 = vmul.f32 %v4679, 0.5
    %v4940 = vmul.f32 %v4681, 0.5
    %v4941 = vmul.f32 %v4761, 0.5
    %v4942 = vmul.f32 %v4763, 0.5
    %v4943 = vmul.f32 %v4843, 0.5
    %v4944 = vmul.f32 %v4845, 0.5
    %v4945 = vmul.f32 %v4925, 0.5
    %v4946 = vmul.f32 %v4927, 0.5
    %v4947 = vmul.f32 %v4351, 0.70710677
    %v4948 = vmul.f32 %v4353, 0.70710677
    %v4949 = vmul.f32 %v4433, 0.70710677
    %v4950 = vmul.f32 %v4435, 0.70710677
    %v4951 = vmul.f32 %v4515, 0.70710677
    %v4952 = vmul.f32 %v4517, 0.70710677
    %v4953 = vmul.f32 %v4597, 0.70710677
    %v4954 = vmul.f32 %v4599, 0.70710677
    %v4955 = vmul.f32 %v4679, 0.70710677
    %v4956 = vmul.f32 %v4681, 0.70710677
    %v4957 = vmul.f32 %v4761, 0.70710677
    %v4958 = vmul.f32 %v4763, 0.70710677
    %v4959 = vmul.f32 %v4843, 0.70710677
    %v4960 = vmul.f32 %v4845, 0.70710677
    %v4961 = vmul.f32 %v4925, 0.70710677
    %v4962 = vmul.f32 %v4927, 0.70710677
    %v4963 = verf.f32.pop %v4947
    %v4964 = verf.f32.pop %v4948
    %v4965 = verf.f32.pop %v4949
    %v4966 = verf.f32.pop %v4950
    %v4967 = verf.f32.pop %v4951
    %v4968 = verf.f32.pop %v4952
    %v4969 = verf.f32.pop %v4953
    %v4970 = verf.f32.pop %v4954
    %v4971 = verf.f32.pop %v4955
    %v4972 = verf.f32.pop %v4956
    %v4973 = verf.f32.pop %v4957
    %v4974 = verf.f32.pop %v4958
    %v4975 = verf.f32.pop %v4959
    %v4976 = verf.f32.pop %v4960
    %v4977 = verf.f32.pop %v4961
    %v4978 = verf.f32.pop %v4962
    %v4979 = vadd.f32 %v4963, 1.0
    %v4980 = vadd.f32 %v4964, 1.0
    %v4981 = vadd.f32 %v4965, 1.0
    %v4982 = vadd.f32 %v4966, 1.0
    %v4983 = vadd.f32 %v4967, 1.0
    %v4984 = vadd.f32 %v4968, 1.0
    %v4985 = vadd.f32 %v4969, 1.0
    %v4986 = vadd.f32 %v4970, 1.0
    %v4987 = vadd.f32 %v4971, 1.0
    %v4988 = vadd.f32 %v4972, 1.0
    %v4989 = vadd.f32 %v4973, 1.0
    %v4990 = vadd.f32 %v4974, 1.0
    %v4991 = vadd.f32 %v4975, 1.0
    %v4992 = vadd.f32 %v4976, 1.0
    %v4993 = vadd.f32 %v4977, 1.0
    %v4994 = vadd.f32 %v4978, 1.0
    %v4995 = vmul.f32 %v4931, %v4979
    %v4996 = vmul.f32 %v4932, %v4980
    %v4997 = vmul.f32 %v4933, %v4981
    %v4998 = vmul.f32 %v4934, %v4982
    %v4999 = vmul.f32 %v4935, %v4983
    %v5000 = vmul.f32 %v4936, %v4984
    %v5001 = vmul.f32 %v4937, %v4985
    %v5002 = vmul.f32 %v4938, %v4986
    %v5003 = vmul.f32 %v4939, %v4987
    %v5004 = vmul.f32 %v4940, %v4988
    %v5005 = vmul.f32 %v4941, %v4989
    %v5006 = vmul.f32 %v4942, %v4990
    %v5007 = vmul.f32 %v4943, %v4991
    %v5008 = vmul.f32 %v4944, %v4992
    %v5009 = vmul.f32 %v4945, %v4993
    %v5010 = vmul.f32 %v4946, %v4994
    %v5011 = vpack.c.bf16 %v4995, %v4995
    %v5012 = vpack.c.bf16 %v4996, %v4996
    %v5013 = vpack.c.bf16 %v4997, %v4997
    %v5014 = vpack.c.bf16 %v4998, %v4998
    %v5015 = vpack.c.bf16 %v4999, %v4999
    %v5016 = vpack.c.bf16 %v5000, %v5000
    %v5017 = vpack.c.bf16 %v5001, %v5001
    %v5018 = vpack.c.bf16 %v5002, %v5002
    %v5019 = vpack.c.bf16 %v5003, %v5003
    %v5020 = vpack.c.bf16 %v5004, %v5004
    %v5021 = vpack.c.bf16 %v5005, %v5005
    %v5022 = vpack.c.bf16 %v5006, %v5006
    %v5023 = vpack.c.bf16 %v5007, %v5007
    %v5024 = vpack.c.bf16 %v5008, %v5008
    %v5025 = vpack.c.bf16 %v5009, %v5009
    %v5026 = vpack.c.bf16 %v5010, %v5010
    %v5027 = vld [vmem:[#allocation11] sm:$0xff]
    %v5028 = vld [vmem:[#allocation11 + $0x8] sm:$0xff]
    %v5029 = vld [vmem:[#allocation11 + $0x10] sm:$0xff]
    %v5030 = vld [vmem:[#allocation11 + $0x18] sm:$0xff]
    %v5031 = vld [vmem:[#allocation11 + $0x20] sm:$0xff]
    %v5032 = vld [vmem:[#allocation11 + $0x28] sm:$0xff]
    %v5033 = vld [vmem:[#allocation11 + $0x30] sm:$0xff]
    %v5034 = vld [vmem:[#allocation11 + $0x38] sm:$0xff]
    %v5035 = vld [vmem:[#allocation11 + $0x40] sm:$0xff]
    %v5036 = vld [vmem:[#allocation11 + $0x48] sm:$0xff]
    %v5037 = vld [vmem:[#allocation11 + $0x50] sm:$0xff]
    %v5038 = vld [vmem:[#allocation11 + $0x58] sm:$0xff]
    %v5039 = vld [vmem:[#allocation11 + $0x60] sm:$0xff]
    %v5040 = vld [vmem:[#allocation11 + $0x68] sm:$0xff]
    %v5041 = vld [vmem:[#allocation11 + $0x70] sm:$0xff]
    %v5042 = vld [vmem:[#allocation11 + $0x78] sm:$0xff]
    %v5043 = vld [vmem:[#allocation11 + $0x80] sm:$0xff]
    %v5044 = vld [vmem:[#allocation11 + $0x88] sm:$0xff]
    %v5045 = vld [vmem:[#allocation11 + $0x90] sm:$0xff]
    %v5046 = vld [vmem:[#allocation11 + $0x98] sm:$0xff]
    %v5047 = vld [vmem:[#allocation11 + $0xa0] sm:$0xff]
    %v5048 = vld [vmem:[#allocation11 + $0xa8] sm:$0xff]
    %v5049 = vld [vmem:[#allocation11 + $0xb0] sm:$0xff]
    %v5050 = vld [vmem:[#allocation11 + $0xb8] sm:$0xff]
    %v5051 = vld [vmem:[#allocation11 + $0xc0] sm:$0xff]
    %v5052 = vld [vmem:[#allocation11 + $0xc8] sm:$0xff]
    %v5053 = vld [vmem:[#allocation11 + $0xd0] sm:$0xff]
    %v5054 = vld [vmem:[#allocation11 + $0xd8] sm:$0xff]
    %v5055 = vld [vmem:[#allocation11 + $0xe0] sm:$0xff]
    %v5056 = vld [vmem:[#allocation11 + $0xe8] sm:$0xff]
    %v5057 = vld [vmem:[#allocation11 + $0xf0] sm:$0xff]
    %v5058 = vld [vmem:[#allocation11 + $0xf8] sm:$0xff]
    %v5059 = vld [vmem:[#allocation11 + $0x100] sm:$0xff]
    %v5060 = vld [vmem:[#allocation11 + $0x108] sm:$0xff]
    %v5061 = vld [vmem:[#allocation11 + $0x110] sm:$0xff]
    %v5062 = vld [vmem:[#allocation11 + $0x118] sm:$0xff]
    %v5063 = vld [vmem:[#allocation11 + $0x120] sm:$0xff]
    %v5064 = vld [vmem:[#allocation11 + $0x128] sm:$0xff]
    %v5065 = vld [vmem:[#allocation11 + $0x130] sm:$0xff]
    %v5066 = vld [vmem:[#allocation11 + $0x138] sm:$0xff]
    %v5067 = vld [vmem:[#allocation11 + $0x140] sm:$0xff]
    %v5068 = vld [vmem:[#allocation11 + $0x148] sm:$0xff]
    %v5069 = vld [vmem:[#allocation11 + $0x150] sm:$0xff]
    %v5070 = vld [vmem:[#allocation11 + $0x158] sm:$0xff]
    %v5071 = vld [vmem:[#allocation11 + $0x160] sm:$0xff]
    %v5072 = vld [vmem:[#allocation11 + $0x168] sm:$0xff]
    %v5073 = vld [vmem:[#allocation11 + $0x170] sm:$0xff]
    %v5074 = vld [vmem:[#allocation11 + $0x178] sm:$0xff]
    %v5075 = vld [vmem:[#allocation11 + $0x180] sm:$0xff]
    %v5076 = vld [vmem:[#allocation11 + $0x188] sm:$0xff]
    %v5077 = vld [vmem:[#allocation11 + $0x190] sm:$0xff]
    %v5078 = vld [vmem:[#allocation11 + $0x198] sm:$0xff]
    %v5079 = vld [vmem:[#allocation11 + $0x1a0] sm:$0xff]
    %v5080 = vld [vmem:[#allocation11 + $0x1a8] sm:$0xff]
    %v5081 = vld [vmem:[#allocation11 + $0x1b0] sm:$0xff]
    %v5082 = vld [vmem:[#allocation11 + $0x1b8] sm:$0xff]
    %v5083 = vld [vmem:[#allocation11 + $0x1c0] sm:$0xff]
    %v5084 = vld [vmem:[#allocation11 + $0x1c8] sm:$0xff]
    %v5085 = vld [vmem:[#allocation11 + $0x1d0] sm:$0xff]
    %v5086 = vld [vmem:[#allocation11 + $0x1d8] sm:$0xff]
    %v5087 = vld [vmem:[#allocation11 + $0x1e0] sm:$0xff]
    %v5088 = vld [vmem:[#allocation11 + $0x1e8] sm:$0xff]
    %v5089 = vld [vmem:[#allocation11 + $0x1f0] sm:$0xff]
    %v5090 = vld [vmem:[#allocation11 + $0x1f8] sm:$0xff]
    %v5091 = vld [vmem:[#allocation11 + $0x200] sm:$0xff]
    %v5092 = vld [vmem:[#allocation11 + $0x208] sm:$0xff]
    %v5093 = vld [vmem:[#allocation11 + $0x210] sm:$0xff]
    %v5094 = vld [vmem:[#allocation11 + $0x218] sm:$0xff]
    %v5095 = vld [vmem:[#allocation11 + $0x220] sm:$0xff]
    %v5096 = vld [vmem:[#allocation11 + $0x228] sm:$0xff]
    %v5097 = vld [vmem:[#allocation11 + $0x230] sm:$0xff]
    %v5098 = vld [vmem:[#allocation11 + $0x238] sm:$0xff]
    %v5099 = vld [vmem:[#allocation11 + $0x240] sm:$0xff]
    %v5100 = vld [vmem:[#allocation11 + $0x248] sm:$0xff]
    %v5101 = vld [vmem:[#allocation11 + $0x250] sm:$0xff]
    %v5102 = vld [vmem:[#allocation11 + $0x258] sm:$0xff]
    %v5103 = vld [vmem:[#allocation11 + $0x260] sm:$0xff]
    %v5104 = vld [vmem:[#allocation11 + $0x268] sm:$0xff]
    %v5105 = vld [vmem:[#allocation11 + $0x270] sm:$0xff]
    %v5106 = vld [vmem:[#allocation11 + $0x278] sm:$0xff]
    %v5107 = vld [vmem:[#allocation11 + $0x280] sm:$0xff]
    %v5108 = vld [vmem:[#allocation11 + $0x288] sm:$0xff]
    %v5109 = vld [vmem:[#allocation11 + $0x290] sm:$0xff]
    %v5110 = vld [vmem:[#allocation11 + $0x298] sm:$0xff]
    %v5111 = vld [vmem:[#allocation11 + $0x2a0] sm:$0xff]
    %v5112 = vld [vmem:[#allocation11 + $0x2a8] sm:$0xff]
    %v5113 = vld [vmem:[#allocation11 + $0x2b0] sm:$0xff]
    %v5114 = vld [vmem:[#allocation11 + $0x2b8] sm:$0xff]
    %v5115 = vld [vmem:[#allocation11 + $0x2c0] sm:$0xff]
    %v5116 = vld [vmem:[#allocation11 + $0x2c8] sm:$0xff]
    %v5117 = vld [vmem:[#allocation11 + $0x2d0] sm:$0xff]
    %v5118 = vld [vmem:[#allocation11 + $0x2d8] sm:$0xff]
    %v5119 = vld [vmem:[#allocation11 + $0x2e0] sm:$0xff]
    %v5120 = vld [vmem:[#allocation11 + $0x2e8] sm:$0xff]
    %v5121 = vld [vmem:[#allocation11 + $0x2f0] sm:$0xff]
    %v5122 = vld [vmem:[#allocation11 + $0x2f8] sm:$0xff]
    %v5123 = vld [vmem:[#allocation11 + $0x300] sm:$0xff]
    %v5124 = vld [vmem:[#allocation11 + $0x308] sm:$0xff]
    %v5125 = vld [vmem:[#allocation11 + $0x310] sm:$0xff]
    %v5126 = vld [vmem:[#allocation11 + $0x318] sm:$0xff]
    %v5127 = vld [vmem:[#allocation11 + $0x320] sm:$0xff]
    %v5128 = vld [vmem:[#allocation11 + $0x328] sm:$0xff]
    %v5129 = vld [vmem:[#allocation11 + $0x330] sm:$0xff]
    %v5130 = vld [vmem:[#allocation11 + $0x338] sm:$0xff]
    %v5131 = vld [vmem:[#allocation11 + $0x340] sm:$0xff]
    %v5132 = vld [vmem:[#allocation11 + $0x348] sm:$0xff]
    %v5133 = vld [vmem:[#allocation11 + $0x350] sm:$0xff]
    %v5134 = vld [vmem:[#allocation11 + $0x358] sm:$0xff]
    %v5135 = vld [vmem:[#allocation11 + $0x360] sm:$0xff]
    %v5136 = vld [vmem:[#allocation11 + $0x368] sm:$0xff]
    %v5137 = vld [vmem:[#allocation11 + $0x370] sm:$0xff]
    %v5138 = vld [vmem:[#allocation11 + $0x378] sm:$0xff]
    %v5139 = vld [vmem:[#allocation11 + $0x380] sm:$0xff]
    %v5140 = vld [vmem:[#allocation11 + $0x388] sm:$0xff]
    %v5141 = vld [vmem:[#allocation11 + $0x390] sm:$0xff]
    %v5142 = vld [vmem:[#allocation11 + $0x398] sm:$0xff]
    %v5143 = vld [vmem:[#allocation11 + $0x3a0] sm:$0xff]
    %v5144 = vld [vmem:[#allocation11 + $0x3a8] sm:$0xff]
    %v5145 = vld [vmem:[#allocation11 + $0x3b0] sm:$0xff]
    %v5146 = vld [vmem:[#allocation11 + $0x3b8] sm:$0xff]
    %v5147 = vld [vmem:[#allocation11 + $0x3c0] sm:$0xff]
    %v5148 = vld [vmem:[#allocation11 + $0x3c8] sm:$0xff]
    %v5149 = vld [vmem:[#allocation11 + $0x3d0] sm:$0xff]
    %v5150 = vld [vmem:[#allocation11 + $0x3d8] sm:$0xff]
    %v5151 = vld [vmem:[#allocation11 + $0x3e0] sm:$0xff]
    %v5152 = vld [vmem:[#allocation11 + $0x3e8] sm:$0xff]
    %v5153 = vld [vmem:[#allocation11 + $0x3f0] sm:$0xff]
    %v5154 = vld [vmem:[#allocation11 + $0x3f8] sm:$0xff]
    %v5155 = vld [vmem:[#allocation11 + $0x400] sm:$0xff]
    %v5156 = vld [vmem:[#allocation11 + $0x408] sm:$0xff]
    %v5157 = vld [vmem:[#allocation11 + $0x410] sm:$0xff]
    %v5158 = vld [vmem:[#allocation11 + $0x418] sm:$0xff]
    %v5159 = vld [vmem:[#allocation11 + $0x420] sm:$0xff]
    %v5160 = vld [vmem:[#allocation11 + $0x428] sm:$0xff]
    %v5161 = vld [vmem:[#allocation11 + $0x430] sm:$0xff]
    %v5162 = vld [vmem:[#allocation11 + $0x438] sm:$0xff]
    %v5163 = vld [vmem:[#allocation11 + $0x440] sm:$0xff]
    %v5164 = vld [vmem:[#allocation11 + $0x448] sm:$0xff]
    %v5165 = vld [vmem:[#allocation11 + $0x450] sm:$0xff]
    %v5166 = vld [vmem:[#allocation11 + $0x458] sm:$0xff]
    %v5167 = vld [vmem:[#allocation11 + $0x460] sm:$0xff]
    %v5168 = vld [vmem:[#allocation11 + $0x468] sm:$0xff]
    %v5169 = vld [vmem:[#allocation11 + $0x470] sm:$0xff]
    %v5170 = vld [vmem:[#allocation11 + $0x478] sm:$0xff]
    %v5171 = vld [vmem:[#allocation11 + $0x480] sm:$0xff]
    %v5172 = vld [vmem:[#allocation11 + $0x488] sm:$0xff]
    %v5173 = vld [vmem:[#allocation11 + $0x490] sm:$0xff]
    %v5174 = vld [vmem:[#allocation11 + $0x498] sm:$0xff]
    %v5175 = vld [vmem:[#allocation11 + $0x4a0] sm:$0xff]
    %v5176 = vld [vmem:[#allocation11 + $0x4a8] sm:$0xff]
    %v5177 = vld [vmem:[#allocation11 + $0x4b0] sm:$0xff]
    %v5178 = vld [vmem:[#allocation11 + $0x4b8] sm:$0xff]
    %v5179 = vld [vmem:[#allocation11 + $0x4c0] sm:$0xff]
    %v5180 = vld [vmem:[#allocation11 + $0x4c8] sm:$0xff]
    %v5181 = vld [vmem:[#allocation11 + $0x4d0] sm:$0xff]
    %v5182 = vld [vmem:[#allocation11 + $0x4d8] sm:$0xff]
    %v5183 = vld [vmem:[#allocation11 + $0x4e0] sm:$0xff]
    %v5184 = vld [vmem:[#allocation11 + $0x4e8] sm:$0xff]
    %v5185 = vld [vmem:[#allocation11 + $0x4f0] sm:$0xff]
    %v5186 = vld [vmem:[#allocation11 + $0x4f8] sm:$0xff]
    %v5187 = vld [vmem:[#allocation11 + $0x500] sm:$0xff]
    %v5188 = vld [vmem:[#allocation11 + $0x508] sm:$0xff]
    %v5189 = vld [vmem:[#allocation11 + $0x510] sm:$0xff]
    %v5190 = vld [vmem:[#allocation11 + $0x518] sm:$0xff]
    %v5191 = vld [vmem:[#allocation11 + $0x520] sm:$0xff]
    %v5192 = vld [vmem:[#allocation11 + $0x528] sm:$0xff]
    %v5193 = vld [vmem:[#allocation11 + $0x530] sm:$0xff]
    %v5194 = vld [vmem:[#allocation11 + $0x538] sm:$0xff]
    %v5195 = vld [vmem:[#allocation11 + $0x540] sm:$0xff]
    %v5196 = vld [vmem:[#allocation11 + $0x548] sm:$0xff]
    %v5197 = vld [vmem:[#allocation11 + $0x550] sm:$0xff]
    %v5198 = vld [vmem:[#allocation11 + $0x558] sm:$0xff]
    %v5199 = vld [vmem:[#allocation11 + $0x560] sm:$0xff]
    %v5200 = vld [vmem:[#allocation11 + $0x568] sm:$0xff]
    %v5201 = vld [vmem:[#allocation11 + $0x570] sm:$0xff]
    %v5202 = vld [vmem:[#allocation11 + $0x578] sm:$0xff]
    %v5203 = vld [vmem:[#allocation11 + $0x580] sm:$0xff]
    %v5204 = vld [vmem:[#allocation11 + $0x588] sm:$0xff]
    %v5205 = vld [vmem:[#allocation11 + $0x590] sm:$0xff]
    %v5206 = vld [vmem:[#allocation11 + $0x598] sm:$0xff]
    %v5207 = vld [vmem:[#allocation11 + $0x5a0] sm:$0xff]
    %v5208 = vld [vmem:[#allocation11 + $0x5a8] sm:$0xff]
    %v5209 = vld [vmem:[#allocation11 + $0x5b0] sm:$0xff]
    %v5210 = vld [vmem:[#allocation11 + $0x5b8] sm:$0xff]
    %v5211 = vld [vmem:[#allocation11 + $0x5c0] sm:$0xff]
    %v5212 = vld [vmem:[#allocation11 + $0x5c8] sm:$0xff]
    %v5213 = vld [vmem:[#allocation11 + $0x5d0] sm:$0xff]
    %v5214 = vld [vmem:[#allocation11 + $0x5d8] sm:$0xff]
    %v5215 = vld [vmem:[#allocation11 + $0x5e0] sm:$0xff]
    %v5216 = vld [vmem:[#allocation11 + $0x5e8] sm:$0xff]
    %v5217 = vld [vmem:[#allocation11 + $0x5f0] sm:$0xff]
    %v5218 = vld [vmem:[#allocation11 + $0x5f8] sm:$0xff]
    %v5219 = vld [vmem:[#allocation11 + $0x600] sm:$0xff]
    %v5220 = vld [vmem:[#allocation11 + $0x608] sm:$0xff]
    %v5221 = vld [vmem:[#allocation11 + $0x610] sm:$0xff]
    %v5222 = vld [vmem:[#allocation11 + $0x618] sm:$0xff]
    %v5223 = vld [vmem:[#allocation11 + $0x620] sm:$0xff]
    %v5224 = vld [vmem:[#allocation11 + $0x628] sm:$0xff]
    %v5225 = vld [vmem:[#allocation11 + $0x630] sm:$0xff]
    %v5226 = vld [vmem:[#allocation11 + $0x638] sm:$0xff]
    %v5227 = vld [vmem:[#allocation11 + $0x640] sm:$0xff]
    %v5228 = vld [vmem:[#allocation11 + $0x648] sm:$0xff]
    %v5229 = vld [vmem:[#allocation11 + $0x650] sm:$0xff]
    %v5230 = vld [vmem:[#allocation11 + $0x658] sm:$0xff]
    %v5231 = vld [vmem:[#allocation11 + $0x660] sm:$0xff]
    %v5232 = vld [vmem:[#allocation11 + $0x668] sm:$0xff]
    %v5233 = vld [vmem:[#allocation11 + $0x670] sm:$0xff]
    %v5234 = vld [vmem:[#allocation11 + $0x678] sm:$0xff]
    %v5235 = vld [vmem:[#allocation11 + $0x680] sm:$0xff]
    %v5236 = vld [vmem:[#allocation11 + $0x688] sm:$0xff]
    %v5237 = vld [vmem:[#allocation11 + $0x690] sm:$0xff]
    %v5238 = vld [vmem:[#allocation11 + $0x698] sm:$0xff]
    %v5239 = vld [vmem:[#allocation11 + $0x6a0] sm:$0xff]
    %v5240 = vld [vmem:[#allocation11 + $0x6a8] sm:$0xff]
    %v5241 = vld [vmem:[#allocation11 + $0x6b0] sm:$0xff]
    %v5242 = vld [vmem:[#allocation11 + $0x6b8] sm:$0xff]
    %v5243 = vld [vmem:[#allocation11 + $0x6c0] sm:$0xff]
    %v5244 = vld [vmem:[#allocation11 + $0x6c8] sm:$0xff]
    %v5245 = vld [vmem:[#allocation11 + $0x6d0] sm:$0xff]
    %v5246 = vld [vmem:[#allocation11 + $0x6d8] sm:$0xff]
    %v5247 = vld [vmem:[#allocation11 + $0x6e0] sm:$0xff]
    %v5248 = vld [vmem:[#allocation11 + $0x6e8] sm:$0xff]
    %v5249 = vld [vmem:[#allocation11 + $0x6f0] sm:$0xff]
    %v5250 = vld [vmem:[#allocation11 + $0x6f8] sm:$0xff]
    %v5251 = vld [vmem:[#allocation11 + $0x700] sm:$0xff]
    %v5252 = vld [vmem:[#allocation11 + $0x708] sm:$0xff]
    %v5253 = vld [vmem:[#allocation11 + $0x710] sm:$0xff]
    %v5254 = vld [vmem:[#allocation11 + $0x718] sm:$0xff]
    %v5255 = vld [vmem:[#allocation11 + $0x720] sm:$0xff]
    %v5256 = vld [vmem:[#allocation11 + $0x728] sm:$0xff]
    %v5257 = vld [vmem:[#allocation11 + $0x730] sm:$0xff]
    %v5258 = vld [vmem:[#allocation11 + $0x738] sm:$0xff]
    %v5259 = vld [vmem:[#allocation11 + $0x740] sm:$0xff]
    %v5260 = vld [vmem:[#allocation11 + $0x748] sm:$0xff]
    %v5261 = vld [vmem:[#allocation11 + $0x750] sm:$0xff]
    %v5262 = vld [vmem:[#allocation11 + $0x758] sm:$0xff]
    %v5263 = vld [vmem:[#allocation11 + $0x760] sm:$0xff]
    %v5264 = vld [vmem:[#allocation11 + $0x768] sm:$0xff]
    %v5265 = vld [vmem:[#allocation11 + $0x770] sm:$0xff]
    %v5266 = vld [vmem:[#allocation11 + $0x778] sm:$0xff]
    %v5267 = vld [vmem:[#allocation11 + $0x780] sm:$0xff]
    %v5268 = vld [vmem:[#allocation11 + $0x788] sm:$0xff]
    %v5269 = vld [vmem:[#allocation11 + $0x790] sm:$0xff]
    %v5270 = vld [vmem:[#allocation11 + $0x798] sm:$0xff]
    %v5271 = vld [vmem:[#allocation11 + $0x7a0] sm:$0xff]
    %v5272 = vld [vmem:[#allocation11 + $0x7a8] sm:$0xff]
    %v5273 = vld [vmem:[#allocation11 + $0x7b0] sm:$0xff]
    %v5274 = vld [vmem:[#allocation11 + $0x7b8] sm:$0xff]
    %v5275 = vld [vmem:[#allocation11 + $0x7c0] sm:$0xff]
    %v5276 = vld [vmem:[#allocation11 + $0x7c8] sm:$0xff]
    %v5277 = vld [vmem:[#allocation11 + $0x7d0] sm:$0xff]
    %v5278 = vld [vmem:[#allocation11 + $0x7d8] sm:$0xff]
    %v5279 = vld [vmem:[#allocation11 + $0x7e0] sm:$0xff]
    %v5280 = vld [vmem:[#allocation11 + $0x7e8] sm:$0xff]
    %v5281 = vld [vmem:[#allocation11 + $0x7f0] sm:$0xff]
    %v5282 = vld [vmem:[#allocation11 + $0x7f8] sm:$0xff]
    %v5283 = vld [vmem:[#allocation11 + $0x800] sm:$0xff]
    %v5284 = vld [vmem:[#allocation11 + $0x808] sm:$0xff]
    %v5285 = vld [vmem:[#allocation11 + $0x810] sm:$0xff]
    %v5286 = vld [vmem:[#allocation11 + $0x818] sm:$0xff]
    %v5287 = vld [vmem:[#allocation11 + $0x820] sm:$0xff]
    %v5288 = vld [vmem:[#allocation11 + $0x828] sm:$0xff]
    %v5289 = vld [vmem:[#allocation11 + $0x830] sm:$0xff]
    %v5290 = vld [vmem:[#allocation11 + $0x838] sm:$0xff]
    %v5291 = vld [vmem:[#allocation11 + $0x840] sm:$0xff]
    %v5292 = vld [vmem:[#allocation11 + $0x848] sm:$0xff]
    %v5293 = vld [vmem:[#allocation11 + $0x850] sm:$0xff]
    %v5294 = vld [vmem:[#allocation11 + $0x858] sm:$0xff]
    %v5295 = vld [vmem:[#allocation11 + $0x860] sm:$0xff]
    %v5296 = vld [vmem:[#allocation11 + $0x868] sm:$0xff]
    %v5297 = vld [vmem:[#allocation11 + $0x870] sm:$0xff]
    %v5298 = vld [vmem:[#allocation11 + $0x878] sm:$0xff]
    %v5299 = vld [vmem:[#allocation11 + $0x880] sm:$0xff]
    %v5300 = vld [vmem:[#allocation11 + $0x888] sm:$0xff]
    %v5301 = vld [vmem:[#allocation11 + $0x890] sm:$0xff]
    %v5302 = vld [vmem:[#allocation11 + $0x898] sm:$0xff]
    %v5303 = vld [vmem:[#allocation11 + $0x8a0] sm:$0xff]
    %v5304 = vld [vmem:[#allocation11 + $0x8a8] sm:$0xff]
    %v5305 = vld [vmem:[#allocation11 + $0x8b0] sm:$0xff]
    %v5306 = vld [vmem:[#allocation11 + $0x8b8] sm:$0xff]
    %v5307 = vld [vmem:[#allocation11 + $0x8c0] sm:$0xff]
    %v5308 = vld [vmem:[#allocation11 + $0x8c8] sm:$0xff]
    %v5309 = vld [vmem:[#allocation11 + $0x8d0] sm:$0xff]
    %v5310 = vld [vmem:[#allocation11 + $0x8d8] sm:$0xff]
    %v5311 = vld [vmem:[#allocation11 + $0x8e0] sm:$0xff]
    %v5312 = vld [vmem:[#allocation11 + $0x8e8] sm:$0xff]
    %v5313 = vld [vmem:[#allocation11 + $0x8f0] sm:$0xff]
    %v5314 = vld [vmem:[#allocation11 + $0x8f8] sm:$0xff]
    %v5315 = vld [vmem:[#allocation11 + $0x900] sm:$0xff]
    %v5316 = vld [vmem:[#allocation11 + $0x908] sm:$0xff]
    %v5317 = vld [vmem:[#allocation11 + $0x910] sm:$0xff]
    %v5318 = vld [vmem:[#allocation11 + $0x918] sm:$0xff]
    %v5319 = vld [vmem:[#allocation11 + $0x920] sm:$0xff]
    %v5320 = vld [vmem:[#allocation11 + $0x928] sm:$0xff]
    %v5321 = vld [vmem:[#allocation11 + $0x930] sm:$0xff]
    %v5322 = vld [vmem:[#allocation11 + $0x938] sm:$0xff]
    %v5323 = vld [vmem:[#allocation11 + $0x940] sm:$0xff]
    %v5324 = vld [vmem:[#allocation11 + $0x948] sm:$0xff]
    %v5325 = vld [vmem:[#allocation11 + $0x950] sm:$0xff]
    %v5326 = vld [vmem:[#allocation11 + $0x958] sm:$0xff]
    %v5327 = vld [vmem:[#allocation11 + $0x960] sm:$0xff]
    %v5328 = vld [vmem:[#allocation11 + $0x968] sm:$0xff]
    %v5329 = vld [vmem:[#allocation11 + $0x970] sm:$0xff]
    %v5330 = vld [vmem:[#allocation11 + $0x978] sm:$0xff]
    %v5331 = vld [vmem:[#allocation11 + $0x980] sm:$0xff]
    %v5332 = vld [vmem:[#allocation11 + $0x988] sm:$0xff]
    %v5333 = vld [vmem:[#allocation11 + $0x990] sm:$0xff]
    %v5334 = vld [vmem:[#allocation11 + $0x998] sm:$0xff]
    %v5335 = vld [vmem:[#allocation11 + $0x9a0] sm:$0xff]
    %v5336 = vld [vmem:[#allocation11 + $0x9a8] sm:$0xff]
    %v5337 = vld [vmem:[#allocation11 + $0x9b0] sm:$0xff]
    %v5338 = vld [vmem:[#allocation11 + $0x9b8] sm:$0xff]
    %v5339 = vld [vmem:[#allocation11 + $0x9c0] sm:$0xff]
    %v5340 = vld [vmem:[#allocation11 + $0x9c8] sm:$0xff]
    %v5341 = vld [vmem:[#allocation11 + $0x9d0] sm:$0xff]
    %v5342 = vld [vmem:[#allocation11 + $0x9d8] sm:$0xff]
    %v5343 = vld [vmem:[#allocation11 + $0x9e0] sm:$0xff]
    %v5344 = vld [vmem:[#allocation11 + $0x9e8] sm:$0xff]
    %v5345 = vld [vmem:[#allocation11 + $0x9f0] sm:$0xff]
    %v5346 = vld [vmem:[#allocation11 + $0x9f8] sm:$0xff]
    %v5347 = vld [vmem:[#allocation11 + $0xa00] sm:$0xff]
    %v5348 = vld [vmem:[#allocation11 + $0xa08] sm:$0xff]
    %v5349 = vld [vmem:[#allocation11 + $0xa10] sm:$0xff]
    %v5350 = vld [vmem:[#allocation11 + $0xa18] sm:$0xff]
    %v5351 = vld [vmem:[#allocation11 + $0xa20] sm:$0xff]
    %v5352 = vld [vmem:[#allocation11 + $0xa28] sm:$0xff]
    %v5353 = vld [vmem:[#allocation11 + $0xa30] sm:$0xff]
    %v5354 = vld [vmem:[#allocation11 + $0xa38] sm:$0xff]
    %v5355 = vld [vmem:[#allocation11 + $0xa40] sm:$0xff]
    %v5356 = vld [vmem:[#allocation11 + $0xa48] sm:$0xff]
    %v5357 = vld [vmem:[#allocation11 + $0xa50] sm:$0xff]
    %v5358 = vld [vmem:[#allocation11 + $0xa58] sm:$0xff]
    %v5359 = vld [vmem:[#allocation11 + $0xa60] sm:$0xff]
    %v5360 = vld [vmem:[#allocation11 + $0xa68] sm:$0xff]
    %v5361 = vld [vmem:[#allocation11 + $0xa70] sm:$0xff]
    %v5362 = vld [vmem:[#allocation11 + $0xa78] sm:$0xff]
    %v5363 = vld [vmem:[#allocation11 + $0xa80] sm:$0xff]
    %v5364 = vld [vmem:[#allocation11 + $0xa88] sm:$0xff]
    %v5365 = vld [vmem:[#allocation11 + $0xa90] sm:$0xff]
    %v5366 = vld [vmem:[#allocation11 + $0xa98] sm:$0xff]
    %v5367 = vld [vmem:[#allocation11 + $0xaa0] sm:$0xff]
    %v5368 = vld [vmem:[#allocation11 + $0xaa8] sm:$0xff]
    %v5369 = vld [vmem:[#allocation11 + $0xab0] sm:$0xff]
    %v5370 = vld [vmem:[#allocation11 + $0xab8] sm:$0xff]
    %v5371 = vld [vmem:[#allocation11 + $0xac0] sm:$0xff]
    %v5372 = vld [vmem:[#allocation11 + $0xac8] sm:$0xff]
    %v5373 = vld [vmem:[#allocation11 + $0xad0] sm:$0xff]
    %v5374 = vld [vmem:[#allocation11 + $0xad8] sm:$0xff]
    %v5375 = vld [vmem:[#allocation11 + $0xae0] sm:$0xff]
    %v5376 = vld [vmem:[#allocation11 + $0xae8] sm:$0xff]
    %v5377 = vld [vmem:[#allocation11 + $0xaf0] sm:$0xff]
    %v5378 = vld [vmem:[#allocation11 + $0xaf8] sm:$0xff]
    %v5379 = vld [vmem:[#allocation11 + $0xb00] sm:$0xff]
    %v5380 = vld [vmem:[#allocation11 + $0xb08] sm:$0xff]
    %v5381 = vld [vmem:[#allocation11 + $0xb10] sm:$0xff]
    %v5382 = vld [vmem:[#allocation11 + $0xb18] sm:$0xff]
    %v5383 = vld [vmem:[#allocation11 + $0xb20] sm:$0xff]
    %v5384 = vld [vmem:[#allocation11 + $0xb28] sm:$0xff]
    %v5385 = vld [vmem:[#allocation11 + $0xb30] sm:$0xff]
    %v5386 = vld [vmem:[#allocation11 + $0xb38] sm:$0xff]
    %v5387 = vld [vmem:[#allocation11 + $0xb40] sm:$0xff]
    %v5388 = vld [vmem:[#allocation11 + $0xb48] sm:$0xff]
    %v5389 = vld [vmem:[#allocation11 + $0xb50] sm:$0xff]
    %v5390 = vld [vmem:[#allocation11 + $0xb58] sm:$0xff]
    %v5391 = vld [vmem:[#allocation11 + $0xb60] sm:$0xff]
    %v5392 = vld [vmem:[#allocation11 + $0xb68] sm:$0xff]
    %v5393 = vld [vmem:[#allocation11 + $0xb70] sm:$0xff]
    %v5394 = vld [vmem:[#allocation11 + $0xb78] sm:$0xff]
    %v5395 = vld [vmem:[#allocation11 + $0xb80] sm:$0xff]
    %v5396 = vld [vmem:[#allocation11 + $0xb88] sm:$0xff]
    %v5397 = vld [vmem:[#allocation11 + $0xb90] sm:$0xff]
    %v5398 = vld [vmem:[#allocation11 + $0xb98] sm:$0xff]
    %v5399 = vld [vmem:[#allocation11 + $0xba0] sm:$0xff]
    %v5400 = vld [vmem:[#allocation11 + $0xba8] sm:$0xff]
    %v5401 = vld [vmem:[#allocation11 + $0xbb0] sm:$0xff]
    %v5402 = vld [vmem:[#allocation11 + $0xbb8] sm:$0xff]
    %v5403 = vld [vmem:[#allocation11 + $0xbc0] sm:$0xff]
    %v5404 = vld [vmem:[#allocation11 + $0xbc8] sm:$0xff]
    %v5405 = vld [vmem:[#allocation11 + $0xbd0] sm:$0xff]
    %v5406 = vld [vmem:[#allocation11 + $0xbd8] sm:$0xff]
    %v5407 = vld [vmem:[#allocation11 + $0xbe0] sm:$0xff]
    %v5408 = vld [vmem:[#allocation11 + $0xbe8] sm:$0xff]
    %v5409 = vld [vmem:[#allocation11 + $0xbf0] sm:$0xff]
    %v5410 = vld [vmem:[#allocation11 + $0xbf8] sm:$0xff]
    %v5411 = vld [vmem:[#allocation11 + $0xc00] sm:$0xff]
    %v5412 = vld [vmem:[#allocation11 + $0xc08] sm:$0xff]
    %v5413 = vld [vmem:[#allocation11 + $0xc10] sm:$0xff]
    %v5414 = vld [vmem:[#allocation11 + $0xc18] sm:$0xff]
    %v5415 = vld [vmem:[#allocation11 + $0xc20] sm:$0xff]
    %v5416 = vld [vmem:[#allocation11 + $0xc28] sm:$0xff]
    %v5417 = vld [vmem:[#allocation11 + $0xc30] sm:$0xff]
    %v5418 = vld [vmem:[#allocation11 + $0xc38] sm:$0xff]
    %v5419 = vld [vmem:[#allocation11 + $0xc40] sm:$0xff]
    %v5420 = vld [vmem:[#allocation11 + $0xc48] sm:$0xff]
    %v5421 = vld [vmem:[#allocation11 + $0xc50] sm:$0xff]
    %v5422 = vld [vmem:[#allocation11 + $0xc58] sm:$0xff]
    %v5423 = vld [vmem:[#allocation11 + $0xc60] sm:$0xff]
    %v5424 = vld [vmem:[#allocation11 + $0xc68] sm:$0xff]
    %v5425 = vld [vmem:[#allocation11 + $0xc70] sm:$0xff]
    %v5426 = vld [vmem:[#allocation11 + $0xc78] sm:$0xff]
    %v5427 = vld [vmem:[#allocation11 + $0xc80] sm:$0xff]
    %v5428 = vld [vmem:[#allocation11 + $0xc88] sm:$0xff]
    %v5429 = vld [vmem:[#allocation11 + $0xc90] sm:$0xff]
    %v5430 = vld [vmem:[#allocation11 + $0xc98] sm:$0xff]
    %v5431 = vld [vmem:[#allocation11 + $0xca0] sm:$0xff]
    %v5432 = vld [vmem:[#allocation11 + $0xca8] sm:$0xff]
    %v5433 = vld [vmem:[#allocation11 + $0xcb0] sm:$0xff]
    %v5434 = vld [vmem:[#allocation11 + $0xcb8] sm:$0xff]
    %v5435 = vld [vmem:[#allocation11 + $0xcc0] sm:$0xff]
    %v5436 = vld [vmem:[#allocation11 + $0xcc8] sm:$0xff]
    %v5437 = vld [vmem:[#allocation11 + $0xcd0] sm:$0xff]
    %v5438 = vld [vmem:[#allocation11 + $0xcd8] sm:$0xff]
    %v5439 = vld [vmem:[#allocation11 + $0xce0] sm:$0xff]
    %v5440 = vld [vmem:[#allocation11 + $0xce8] sm:$0xff]
    %v5441 = vld [vmem:[#allocation11 + $0xcf0] sm:$0xff]
    %v5442 = vld [vmem:[#allocation11 + $0xcf8] sm:$0xff]
    %v5443 = vld [vmem:[#allocation11 + $0xd00] sm:$0xff]
    %v5444 = vld [vmem:[#allocation11 + $0xd08] sm:$0xff]
    %v5445 = vld [vmem:[#allocation11 + $0xd10] sm:$0xff]
    %v5446 = vld [vmem:[#allocation11 + $0xd18] sm:$0xff]
    %v5447 = vld [vmem:[#allocation11 + $0xd20] sm:$0xff]
    %v5448 = vld [vmem:[#allocation11 + $0xd28] sm:$0xff]
    %v5449 = vld [vmem:[#allocation11 + $0xd30] sm:$0xff]
    %v5450 = vld [vmem:[#allocation11 + $0xd38] sm:$0xff]
    %v5451 = vld [vmem:[#allocation11 + $0xd40] sm:$0xff]
    %v5452 = vld [vmem:[#allocation11 + $0xd48] sm:$0xff]
    %v5453 = vld [vmem:[#allocation11 + $0xd50] sm:$0xff]
    %v5454 = vld [vmem:[#allocation11 + $0xd58] sm:$0xff]
    %v5455 = vld [vmem:[#allocation11 + $0xd60] sm:$0xff]
    %v5456 = vld [vmem:[#allocation11 + $0xd68] sm:$0xff]
    %v5457 = vld [vmem:[#allocation11 + $0xd70] sm:$0xff]
    %v5458 = vld [vmem:[#allocation11 + $0xd78] sm:$0xff]
    %v5459 = vld [vmem:[#allocation11 + $0xd80] sm:$0xff]
    %v5460 = vld [vmem:[#allocation11 + $0xd88] sm:$0xff]
    %v5461 = vld [vmem:[#allocation11 + $0xd90] sm:$0xff]
    %v5462 = vld [vmem:[#allocation11 + $0xd98] sm:$0xff]
    %v5463 = vld [vmem:[#allocation11 + $0xda0] sm:$0xff]
    %v5464 = vld [vmem:[#allocation11 + $0xda8] sm:$0xff]
    %v5465 = vld [vmem:[#allocation11 + $0xdb0] sm:$0xff]
    %v5466 = vld [vmem:[#allocation11 + $0xdb8] sm:$0xff]
    %v5467 = vld [vmem:[#allocation11 + $0xdc0] sm:$0xff]
    %v5468 = vld [vmem:[#allocation11 + $0xdc8] sm:$0xff]
    %v5469 = vld [vmem:[#allocation11 + $0xdd0] sm:$0xff]
    %v5470 = vld [vmem:[#allocation11 + $0xdd8] sm:$0xff]
    %v5471 = vld [vmem:[#allocation11 + $0xde0] sm:$0xff]
    %v5472 = vld [vmem:[#allocation11 + $0xde8] sm:$0xff]
    %v5473 = vld [vmem:[#allocation11 + $0xdf0] sm:$0xff]
    %v5474 = vld [vmem:[#allocation11 + $0xdf8] sm:$0xff]
    %v5475 = vld [vmem:[#allocation11 + $0xe00] sm:$0xff]
    %v5476 = vld [vmem:[#allocation11 + $0xe08] sm:$0xff]
    %v5477 = vld [vmem:[#allocation11 + $0xe10] sm:$0xff]
    %v5478 = vld [vmem:[#allocation11 + $0xe18] sm:$0xff]
    %v5479 = vld [vmem:[#allocation11 + $0xe20] sm:$0xff]
    %v5480 = vld [vmem:[#allocation11 + $0xe28] sm:$0xff]
    %v5481 = vld [vmem:[#allocation11 + $0xe30] sm:$0xff]
    %v5482 = vld [vmem:[#allocation11 + $0xe38] sm:$0xff]
    %v5483 = vld [vmem:[#allocation11 + $0xe40] sm:$0xff]
    %v5484 = vld [vmem:[#allocation11 + $0xe48] sm:$0xff]
    %v5485 = vld [vmem:[#allocation11 + $0xe50] sm:$0xff]
    %v5486 = vld [vmem:[#allocation11 + $0xe58] sm:$0xff]
    %v5487 = vld [vmem:[#allocation11 + $0xe60] sm:$0xff]
    %v5488 = vld [vmem:[#allocation11 + $0xe68] sm:$0xff]
    %v5489 = vld [vmem:[#allocation11 + $0xe70] sm:$0xff]
    %v5490 = vld [vmem:[#allocation11 + $0xe78] sm:$0xff]
    %v5491 = vld [vmem:[#allocation11 + $0xe80] sm:$0xff]
    %v5492 = vld [vmem:[#allocation11 + $0xe88] sm:$0xff]
    %v5493 = vld [vmem:[#allocation11 + $0xe90] sm:$0xff]
    %v5494 = vld [vmem:[#allocation11 + $0xe98] sm:$0xff]
    %v5495 = vld [vmem:[#allocation11 + $0xea0] sm:$0xff]
    %v5496 = vld [vmem:[#allocation11 + $0xea8] sm:$0xff]
    %v5497 = vld [vmem:[#allocation11 + $0xeb0] sm:$0xff]
    %v5498 = vld [vmem:[#allocation11 + $0xeb8] sm:$0xff]
    %v5499 = vld [vmem:[#allocation11 + $0xec0] sm:$0xff]
    %v5500 = vld [vmem:[#allocation11 + $0xec8] sm:$0xff]
    %v5501 = vld [vmem:[#allocation11 + $0xed0] sm:$0xff]
    %v5502 = vld [vmem:[#allocation11 + $0xed8] sm:$0xff]
    %v5503 = vld [vmem:[#allocation11 + $0xee0] sm:$0xff]
    %v5504 = vld [vmem:[#allocation11 + $0xee8] sm:$0xff]
    %v5505 = vld [vmem:[#allocation11 + $0xef0] sm:$0xff]
    %v5506 = vld [vmem:[#allocation11 + $0xef8] sm:$0xff]
    %v5507 = vld [vmem:[#allocation11 + $0xf00] sm:$0xff]
    %v5508 = vld [vmem:[#allocation11 + $0xf08] sm:$0xff]
    %v5509 = vld [vmem:[#allocation11 + $0xf10] sm:$0xff]
    %v5510 = vld [vmem:[#allocation11 + $0xf18] sm:$0xff]
    %v5511 = vld [vmem:[#allocation11 + $0xf20] sm:$0xff]
    %v5512 = vld [vmem:[#allocation11 + $0xf28] sm:$0xff]
    %v5513 = vld [vmem:[#allocation11 + $0xf30] sm:$0xff]
    %v5514 = vld [vmem:[#allocation11 + $0xf38] sm:$0xff]
    %v5515 = vld [vmem:[#allocation11 + $0xf40] sm:$0xff]
    %v5516 = vld [vmem:[#allocation11 + $0xf48] sm:$0xff]
    %v5517 = vld [vmem:[#allocation11 + $0xf50] sm:$0xff]
    %v5518 = vld [vmem:[#allocation11 + $0xf58] sm:$0xff]
    %v5519 = vld [vmem:[#allocation11 + $0xf60] sm:$0xff]
    %v5520 = vld [vmem:[#allocation11 + $0xf68] sm:$0xff]
    %v5521 = vld [vmem:[#allocation11 + $0xf70] sm:$0xff]
    %v5522 = vld [vmem:[#allocation11 + $0xf78] sm:$0xff]
    %v5523 = vld [vmem:[#allocation11 + $0xf80] sm:$0xff]
    %v5524 = vld [vmem:[#allocation11 + $0xf88] sm:$0xff]
    %v5525 = vld [vmem:[#allocation11 + $0xf90] sm:$0xff]
    %v5526 = vld [vmem:[#allocation11 + $0xf98] sm:$0xff]
    %v5527 = vld [vmem:[#allocation11 + $0xfa0] sm:$0xff]
    %v5528 = vld [vmem:[#allocation11 + $0xfa8] sm:$0xff]
    %v5529 = vld [vmem:[#allocation11 + $0xfb0] sm:$0xff]
    %v5530 = vld [vmem:[#allocation11 + $0xfb8] sm:$0xff]
    %v5531 = vld [vmem:[#allocation11 + $0xfc0] sm:$0xff]
    %v5532 = vld [vmem:[#allocation11 + $0xfc8] sm:$0xff]
    %v5533 = vld [vmem:[#allocation11 + $0xfd0] sm:$0xff]
    %v5534 = vld [vmem:[#allocation11 + $0xfd8] sm:$0xff]
    %v5535 = vld [vmem:[#allocation11 + $0xfe0] sm:$0xff]
    %v5536 = vld [vmem:[#allocation11 + $0xfe8] sm:$0xff]
    %v5537 = vld [vmem:[#allocation11 + $0xff0] sm:$0xff]
    %v5538 = vld [vmem:[#allocation11 + $0xff8] sm:$0xff]
    %v5539 = vld [vmem:[#allocation13] sm:$0xf]
    %v5541 = vlaneseq
    %v5542 = vshrl.u32 %v5541, 7
    %v5543 = vsub.s32 0, %v5542
    %v5544 = vrot.slane %v5539, %v5543
    %v5545 = vlaneseq
    %v5546 = vshrl.u32 %v5545, 7
    %v5547 = vsub.s32 1, %v5546
    %v5548 = vrot.slane %v5539, %v5547
    %v5549 = vlaneseq
    %v5550 = vshrl.u32 %v5549, 7
    %v5551 = vsub.s32 2, %v5550
    %v5552 = vrot.slane %v5539, %v5551
    %v5553 = vlaneseq
    %v5554 = vshrl.u32 %v5553, 7
    %v5555 = vsub.s32 3, %v5554
    %v5556 = vrot.slane %v5539, %v5555
    %v6073 = vunpack.c.l.b16 %v5027
    %v6074 = vunpack.c.h.b16 %v5027
    %v6075 = vunpack.c.l.b16 %v5028
    %v6076 = vunpack.c.h.b16 %v5028
    %v6077 = vunpack.c.l.b16 %v5029
    %v6078 = vunpack.c.h.b16 %v5029
    %v6079 = vunpack.c.l.b16 %v5030
    %v6080 = vunpack.c.h.b16 %v5030
    %v6081 = vunpack.c.l.b16 %v5031
    %v6082 = vunpack.c.h.b16 %v5031
    %v6083 = vunpack.c.l.b16 %v5032
    %v6084 = vunpack.c.h.b16 %v5032
    %v6085 = vunpack.c.l.b16 %v5033
    %v6086 = vunpack.c.h.b16 %v5033
    %v6087 = vunpack.c.l.b16 %v5034
    %v6088 = vunpack.c.h.b16 %v5034
    %v6089 = vunpack.c.l.b16 %v5035
    %v6090 = vunpack.c.h.b16 %v5035
    %v6091 = vunpack.c.l.b16 %v5036
    %v6092 = vunpack.c.h.b16 %v5036
    %v6093 = vunpack.c.l.b16 %v5037
    %v6094 = vunpack.c.h.b16 %v5037
    %v6095 = vunpack.c.l.b16 %v5038
    %v6096 = vunpack.c.h.b16 %v5038
    %v6097 = vunpack.c.l.b16 %v5039
    %v6098 = vunpack.c.h.b16 %v5039
    %v6099 = vunpack.c.l.b16 %v5040
    %v6100 = vunpack.c.h.b16 %v5040
    %v6101 = vunpack.c.l.b16 %v5041
    %v6102 = vunpack.c.h.b16 %v5041
    %v6103 = vunpack.c.l.b16 %v5042
    %v6104 = vunpack.c.h.b16 %v5042
    %v6105 = vunpack.c.l.b16 %v5043
    %v6106 = vunpack.c.h.b16 %v5043
    %v6107 = vunpack.c.l.b16 %v5044
    %v6108 = vunpack.c.h.b16 %v5044
    %v6109 = vunpack.c.l.b16 %v5045
    %v6110 = vunpack.c.h.b16 %v5045
    %v6111 = vunpack.c.l.b16 %v5046
    %v6112 = vunpack.c.h.b16 %v5046
    %v6113 = vunpack.c.l.b16 %v5047
    %v6114 = vunpack.c.h.b16 %v5047
    %v6115 = vunpack.c.l.b16 %v5048
    %v6116 = vunpack.c.h.b16 %v5048
    %v6117 = vunpack.c.l.b16 %v5049
    %v6118 = vunpack.c.h.b16 %v5049
    %v6119 = vunpack.c.l.b16 %v5050
    %v6120 = vunpack.c.h.b16 %v5050
    %v6121 = vunpack.c.l.b16 %v5051
    %v6122 = vunpack.c.h.b16 %v5051
    %v6123 = vunpack.c.l.b16 %v5052
    %v6124 = vunpack.c.h.b16 %v5052
    %v6125 = vunpack.c.l.b16 %v5053
    %v6126 = vunpack.c.h.b16 %v5053
    %v6127 = vunpack.c.l.b16 %v5054
    %v6128 = vunpack.c.h.b16 %v5054
    %v6129 = vunpack.c.l.b16 %v5055
    %v6130 = vunpack.c.h.b16 %v5055
    %v6131 = vunpack.c.l.b16 %v5056
    %v6132 = vunpack.c.h.b16 %v5056
    %v6133 = vunpack.c.l.b16 %v5057
    %v6134 = vunpack.c.h.b16 %v5057
    %v6135 = vunpack.c.l.b16 %v5058
    %v6136 = vunpack.c.h.b16 %v5058
    %v6137 = vunpack.c.l.b16 %v5059
    %v6138 = vunpack.c.h.b16 %v5059
    %v6139 = vunpack.c.l.b16 %v5060
    %v6140 = vunpack.c.h.b16 %v5060
    %v6141 = vunpack.c.l.b16 %v5061
    %v6142 = vunpack.c.h.b16 %v5061
    %v6143 = vunpack.c.l.b16 %v5062
    %v6144 = vunpack.c.h.b16 %v5062
    %v6145 = vunpack.c.l.b16 %v5063
    %v6146 = vunpack.c.h.b16 %v5063
    %v6147 = vunpack.c.l.b16 %v5064
    %v6148 = vunpack.c.h.b16 %v5064
    %v6149 = vunpack.c.l.b16 %v5065
    %v6150 = vunpack.c.h.b16 %v5065
    %v6151 = vunpack.c.l.b16 %v5066
    %v6152 = vunpack.c.h.b16 %v5066
    %v6153 = vunpack.c.l.b16 %v5067
    %v6154 = vunpack.c.h.b16 %v5067
    %v6155 = vunpack.c.l.b16 %v5068
    %v6156 = vunpack.c.h.b16 %v5068
    %v6157 = vunpack.c.l.b16 %v5069
    %v6158 = vunpack.c.h.b16 %v5069
    %v6159 = vunpack.c.l.b16 %v5070
    %v6160 = vunpack.c.h.b16 %v5070
    %v6161 = vunpack.c.l.b16 %v5071
    %v6162 = vunpack.c.h.b16 %v5071
    %v6163 = vunpack.c.l.b16 %v5072
    %v6164 = vunpack.c.h.b16 %v5072
    %v6165 = vunpack.c.l.b16 %v5073
    %v6166 = vunpack.c.h.b16 %v5073
    %v6167 = vunpack.c.l.b16 %v5074
    %v6168 = vunpack.c.h.b16 %v5074
    %v6169 = vunpack.c.l.b16 %v5075
    %v6170 = vunpack.c.h.b16 %v5075
    %v6171 = vunpack.c.l.b16 %v5076
    %v6172 = vunpack.c.h.b16 %v5076
    %v6173 = vunpack.c.l.b16 %v5077
    %v6174 = vunpack.c.h.b16 %v5077
    %v6175 = vunpack.c.l.b16 %v5078
    %v6176 = vunpack.c.h.b16 %v5078
    %v6177 = vunpack.c.l.b16 %v5079
    %v6178 = vunpack.c.h.b16 %v5079
    %v6179 = vunpack.c.l.b16 %v5080
    %v6180 = vunpack.c.h.b16 %v5080
    %v6181 = vunpack.c.l.b16 %v5081
    %v6182 = vunpack.c.h.b16 %v5081
    %v6183 = vunpack.c.l.b16 %v5082
    %v6184 = vunpack.c.h.b16 %v5082
    %v6185 = vunpack.c.l.b16 %v5083
    %v6186 = vunpack.c.h.b16 %v5083
    %v6187 = vunpack.c.l.b16 %v5084
    %v6188 = vunpack.c.h.b16 %v5084
    %v6189 = vunpack.c.l.b16 %v5085
    %v6190 = vunpack.c.h.b16 %v5085
    %v6191 = vunpack.c.l.b16 %v5086
    %v6192 = vunpack.c.h.b16 %v5086
    %v6193 = vunpack.c.l.b16 %v5087
    %v6194 = vunpack.c.h.b16 %v5087
    %v6195 = vunpack.c.l.b16 %v5088
    %v6196 = vunpack.c.h.b16 %v5088
    %v6197 = vunpack.c.l.b16 %v5089
    %v6198 = vunpack.c.h.b16 %v5089
    %v6199 = vunpack.c.l.b16 %v5090
    %v6200 = vunpack.c.h.b16 %v5090
    %v6201 = vunpack.c.l.b16 %v5091
    %v6202 = vunpack.c.h.b16 %v5091
    %v6203 = vunpack.c.l.b16 %v5092
    %v6204 = vunpack.c.h.b16 %v5092
    %v6205 = vunpack.c.l.b16 %v5093
    %v6206 = vunpack.c.h.b16 %v5093
    %v6207 = vunpack.c.l.b16 %v5094
    %v6208 = vunpack.c.h.b16 %v5094
    %v6209 = vunpack.c.l.b16 %v5095
    %v6210 = vunpack.c.h.b16 %v5095
    %v6211 = vunpack.c.l.b16 %v5096
    %v6212 = vunpack.c.h.b16 %v5096
    %v6213 = vunpack.c.l.b16 %v5097
    %v6214 = vunpack.c.h.b16 %v5097
    %v6215 = vunpack.c.l.b16 %v5098
    %v6216 = vunpack.c.h.b16 %v5098
    %v6217 = vunpack.c.l.b16 %v5099
    %v6218 = vunpack.c.h.b16 %v5099
    %v6219 = vunpack.c.l.b16 %v5100
    %v6220 = vunpack.c.h.b16 %v5100
    %v6221 = vunpack.c.l.b16 %v5101
    %v6222 = vunpack.c.h.b16 %v5101
    %v6223 = vunpack.c.l.b16 %v5102
    %v6224 = vunpack.c.h.b16 %v5102
    %v6225 = vunpack.c.l.b16 %v5103
    %v6226 = vunpack.c.h.b16 %v5103
    %v6227 = vunpack.c.l.b16 %v5104
    %v6228 = vunpack.c.h.b16 %v5104
    %v6229 = vunpack.c.l.b16 %v5105
    %v6230 = vunpack.c.h.b16 %v5105
    %v6231 = vunpack.c.l.b16 %v5106
    %v6232 = vunpack.c.h.b16 %v5106
    %v6233 = vunpack.c.l.b16 %v5107
    %v6234 = vunpack.c.h.b16 %v5107
    %v6235 = vunpack.c.l.b16 %v5108
    %v6236 = vunpack.c.h.b16 %v5108
    %v6237 = vunpack.c.l.b16 %v5109
    %v6238 = vunpack.c.h.b16 %v5109
    %v6239 = vunpack.c.l.b16 %v5110
    %v6240 = vunpack.c.h.b16 %v5110
    %v6241 = vunpack.c.l.b16 %v5111
    %v6242 = vunpack.c.h.b16 %v5111
    %v6243 = vunpack.c.l.b16 %v5112
    %v6244 = vunpack.c.h.b16 %v5112
    %v6245 = vunpack.c.l.b16 %v5113
    %v6246 = vunpack.c.h.b16 %v5113
    %v6247 = vunpack.c.l.b16 %v5114
    %v6248 = vunpack.c.h.b16 %v5114
    %v6249 = vunpack.c.l.b16 %v5115
    %v6250 = vunpack.c.h.b16 %v5115
    %v6251 = vunpack.c.l.b16 %v5116
    %v6252 = vunpack.c.h.b16 %v5116
    %v6253 = vunpack.c.l.b16 %v5117
    %v6254 = vunpack.c.h.b16 %v5117
    %v6255 = vunpack.c.l.b16 %v5118
    %v6256 = vunpack.c.h.b16 %v5118
    %v6257 = vunpack.c.l.b16 %v5119
    %v6258 = vunpack.c.h.b16 %v5119
    %v6259 = vunpack.c.l.b16 %v5120
    %v6260 = vunpack.c.h.b16 %v5120
    %v6261 = vunpack.c.l.b16 %v5121
    %v6262 = vunpack.c.h.b16 %v5121
    %v6263 = vunpack.c.l.b16 %v5122
    %v6264 = vunpack.c.h.b16 %v5122
    %v6265 = vunpack.c.l.b16 %v5123
    %v6266 = vunpack.c.h.b16 %v5123
    %v6267 = vunpack.c.l.b16 %v5124
    %v6268 = vunpack.c.h.b16 %v5124
    %v6269 = vunpack.c.l.b16 %v5125
    %v6270 = vunpack.c.h.b16 %v5125
    %v6271 = vunpack.c.l.b16 %v5126
    %v6272 = vunpack.c.h.b16 %v5126
    %v6273 = vunpack.c.l.b16 %v5127
    %v6274 = vunpack.c.h.b16 %v5127
    %v6275 = vunpack.c.l.b16 %v5128
    %v6276 = vunpack.c.h.b16 %v5128
    %v6277 = vunpack.c.l.b16 %v5129
    %v6278 = vunpack.c.h.b16 %v5129
    %v6279 = vunpack.c.l.b16 %v5130
    %v6280 = vunpack.c.h.b16 %v5130
    %v6281 = vunpack.c.l.b16 %v5131
    %v6282 = vunpack.c.h.b16 %v5131
    %v6283 = vunpack.c.l.b16 %v5132
    %v6284 = vunpack.c.h.b16 %v5132
    %v6285 = vunpack.c.l.b16 %v5133
    %v6286 = vunpack.c.h.b16 %v5133
    %v6287 = vunpack.c.l.b16 %v5134
    %v6288 = vunpack.c.h.b16 %v5134
    %v6289 = vunpack.c.l.b16 %v5135
    %v6290 = vunpack.c.h.b16 %v5135
    %v6291 = vunpack.c.l.b16 %v5136
    %v6292 = vunpack.c.h.b16 %v5136
    %v6293 = vunpack.c.l.b16 %v5137
    %v6294 = vunpack.c.h.b16 %v5137
    %v6295 = vunpack.c.l.b16 %v5138
    %v6296 = vunpack.c.h.b16 %v5138
    %v6297 = vunpack.c.l.b16 %v5139
    %v6298 = vunpack.c.h.b16 %v5139
    %v6299 = vunpack.c.l.b16 %v5140
    %v6300 = vunpack.c.h.b16 %v5140
    %v6301 = vunpack.c.l.b16 %v5141
    %v6302 = vunpack.c.h.b16 %v5141
    %v6303 = vunpack.c.l.b16 %v5142
    %v6304 = vunpack.c.h.b16 %v5142
    %v6305 = vunpack.c.l.b16 %v5143
    %v6306 = vunpack.c.h.b16 %v5143
    %v6307 = vunpack.c.l.b16 %v5144
    %v6308 = vunpack.c.h.b16 %v5144
    %v6309 = vunpack.c.l.b16 %v5145
    %v6310 = vunpack.c.h.b16 %v5145
    %v6311 = vunpack.c.l.b16 %v5146
    %v6312 = vunpack.c.h.b16 %v5146
    %v6313 = vunpack.c.l.b16 %v5147
    %v6314 = vunpack.c.h.b16 %v5147
    %v6315 = vunpack.c.l.b16 %v5148
    %v6316 = vunpack.c.h.b16 %v5148
    %v6317 = vunpack.c.l.b16 %v5149
    %v6318 = vunpack.c.h.b16 %v5149
    %v6319 = vunpack.c.l.b16 %v5150
    %v6320 = vunpack.c.h.b16 %v5150
    %v6321 = vunpack.c.l.b16 %v5151
    %v6322 = vunpack.c.h.b16 %v5151
    %v6323 = vunpack.c.l.b16 %v5152
    %v6324 = vunpack.c.h.b16 %v5152
    %v6325 = vunpack.c.l.b16 %v5153
    %v6326 = vunpack.c.h.b16 %v5153
    %v6327 = vunpack.c.l.b16 %v5154
    %v6328 = vunpack.c.h.b16 %v5154
    %v6329 = vunpack.c.l.b16 %v5155
    %v6330 = vunpack.c.h.b16 %v5155
    %v6331 = vunpack.c.l.b16 %v5156
    %v6332 = vunpack.c.h.b16 %v5156
    %v6333 = vunpack.c.l.b16 %v5157
    %v6334 = vunpack.c.h.b16 %v5157
    %v6335 = vunpack.c.l.b16 %v5158
    %v6336 = vunpack.c.h.b16 %v5158
    %v6337 = vunpack.c.l.b16 %v5159
    %v6338 = vunpack.c.h.b16 %v5159
    %v6339 = vunpack.c.l.b16 %v5160
    %v6340 = vunpack.c.h.b16 %v5160
    %v6341 = vunpack.c.l.b16 %v5161
    %v6342 = vunpack.c.h.b16 %v5161
    %v6343 = vunpack.c.l.b16 %v5162
    %v6344 = vunpack.c.h.b16 %v5162
    %v6345 = vunpack.c.l.b16 %v5163
    %v6346 = vunpack.c.h.b16 %v5163
    %v6347 = vunpack.c.l.b16 %v5164
    %v6348 = vunpack.c.h.b16 %v5164
    %v6349 = vunpack.c.l.b16 %v5165
    %v6350 = vunpack.c.h.b16 %v5165
    %v6351 = vunpack.c.l.b16 %v5166
    %v6352 = vunpack.c.h.b16 %v5166
    %v6353 = vunpack.c.l.b16 %v5167
    %v6354 = vunpack.c.h.b16 %v5167
    %v6355 = vunpack.c.l.b16 %v5168
    %v6356 = vunpack.c.h.b16 %v5168
    %v6357 = vunpack.c.l.b16 %v5169
    %v6358 = vunpack.c.h.b16 %v5169
    %v6359 = vunpack.c.l.b16 %v5170
    %v6360 = vunpack.c.h.b16 %v5170
    %v6361 = vunpack.c.l.b16 %v5171
    %v6362 = vunpack.c.h.b16 %v5171
    %v6363 = vunpack.c.l.b16 %v5172
    %v6364 = vunpack.c.h.b16 %v5172
    %v6365 = vunpack.c.l.b16 %v5173
    %v6366 = vunpack.c.h.b16 %v5173
    %v6367 = vunpack.c.l.b16 %v5174
    %v6368 = vunpack.c.h.b16 %v5174
    %v6369 = vunpack.c.l.b16 %v5175
    %v6370 = vunpack.c.h.b16 %v5175
    %v6371 = vunpack.c.l.b16 %v5176
    %v6372 = vunpack.c.h.b16 %v5176
    %v6373 = vunpack.c.l.b16 %v5177
    %v6374 = vunpack.c.h.b16 %v5177
    %v6375 = vunpack.c.l.b16 %v5178
    %v6376 = vunpack.c.h.b16 %v5178
    %v6377 = vunpack.c.l.b16 %v5179
    %v6378 = vunpack.c.h.b16 %v5179
    %v6379 = vunpack.c.l.b16 %v5180
    %v6380 = vunpack.c.h.b16 %v5180
    %v6381 = vunpack.c.l.b16 %v5181
    %v6382 = vunpack.c.h.b16 %v5181
    %v6383 = vunpack.c.l.b16 %v5182
    %v6384 = vunpack.c.h.b16 %v5182
    %v6385 = vunpack.c.l.b16 %v5183
    %v6386 = vunpack.c.h.b16 %v5183
    %v6387 = vunpack.c.l.b16 %v5184
    %v6388 = vunpack.c.h.b16 %v5184
    %v6389 = vunpack.c.l.b16 %v5185
    %v6390 = vunpack.c.h.b16 %v5185
    %v6391 = vunpack.c.l.b16 %v5186
    %v6392 = vunpack.c.h.b16 %v5186
    %v6393 = vunpack.c.l.b16 %v5187
    %v6394 = vunpack.c.h.b16 %v5187
    %v6395 = vunpack.c.l.b16 %v5188
    %v6396 = vunpack.c.h.b16 %v5188
    %v6397 = vunpack.c.l.b16 %v5189
    %v6398 = vunpack.c.h.b16 %v5189
    %v6399 = vunpack.c.l.b16 %v5190
    %v6400 = vunpack.c.h.b16 %v5190
    %v6401 = vunpack.c.l.b16 %v5191
    %v6402 = vunpack.c.h.b16 %v5191
    %v6403 = vunpack.c.l.b16 %v5192
    %v6404 = vunpack.c.h.b16 %v5192
    %v6405 = vunpack.c.l.b16 %v5193
    %v6406 = vunpack.c.h.b16 %v5193
    %v6407 = vunpack.c.l.b16 %v5194
    %v6408 = vunpack.c.h.b16 %v5194
    %v6409 = vunpack.c.l.b16 %v5195
    %v6410 = vunpack.c.h.b16 %v5195
    %v6411 = vunpack.c.l.b16 %v5196
    %v6412 = vunpack.c.h.b16 %v5196
    %v6413 = vunpack.c.l.b16 %v5197
    %v6414 = vunpack.c.h.b16 %v5197
    %v6415 = vunpack.c.l.b16 %v5198
    %v6416 = vunpack.c.h.b16 %v5198
    %v6417 = vunpack.c.l.b16 %v5199
    %v6418 = vunpack.c.h.b16 %v5199
    %v6419 = vunpack.c.l.b16 %v5200
    %v6420 = vunpack.c.h.b16 %v5200
    %v6421 = vunpack.c.l.b16 %v5201
    %v6422 = vunpack.c.h.b16 %v5201
    %v6423 = vunpack.c.l.b16 %v5202
    %v6424 = vunpack.c.h.b16 %v5202
    %v6425 = vunpack.c.l.b16 %v5203
    %v6426 = vunpack.c.h.b16 %v5203
    %v6427 = vunpack.c.l.b16 %v5204
    %v6428 = vunpack.c.h.b16 %v5204
    %v6429 = vunpack.c.l.b16 %v5205
    %v6430 = vunpack.c.h.b16 %v5205
    %v6431 = vunpack.c.l.b16 %v5206
    %v6432 = vunpack.c.h.b16 %v5206
    %v6433 = vunpack.c.l.b16 %v5207
    %v6434 = vunpack.c.h.b16 %v5207
    %v6435 = vunpack.c.l.b16 %v5208
    %v6436 = vunpack.c.h.b16 %v5208
    %v6437 = vunpack.c.l.b16 %v5209
    %v6438 = vunpack.c.h.b16 %v5209
    %v6439 = vunpack.c.l.b16 %v5210
    %v6440 = vunpack.c.h.b16 %v5210
    %v6441 = vunpack.c.l.b16 %v5211
    %v6442 = vunpack.c.h.b16 %v5211
    %v6443 = vunpack.c.l.b16 %v5212
    %v6444 = vunpack.c.h.b16 %v5212
    %v6445 = vunpack.c.l.b16 %v5213
    %v6446 = vunpack.c.h.b16 %v5213
    %v6447 = vunpack.c.l.b16 %v5214
    %v6448 = vunpack.c.h.b16 %v5214
    %v6449 = vunpack.c.l.b16 %v5215
    %v6450 = vunpack.c.h.b16 %v5215
    %v6451 = vunpack.c.l.b16 %v5216
    %v6452 = vunpack.c.h.b16 %v5216
    %v6453 = vunpack.c.l.b16 %v5217
    %v6454 = vunpack.c.h.b16 %v5217
    %v6455 = vunpack.c.l.b16 %v5218
    %v6456 = vunpack.c.h.b16 %v5218
    %v6457 = vunpack.c.l.b16 %v5219
    %v6458 = vunpack.c.h.b16 %v5219
    %v6459 = vunpack.c.l.b16 %v5220
    %v6460 = vunpack.c.h.b16 %v5220
    %v6461 = vunpack.c.l.b16 %v5221
    %v6462 = vunpack.c.h.b16 %v5221
    %v6463 = vunpack.c.l.b16 %v5222
    %v6464 = vunpack.c.h.b16 %v5222
    %v6465 = vunpack.c.l.b16 %v5223
    %v6466 = vunpack.c.h.b16 %v5223
    %v6467 = vunpack.c.l.b16 %v5224
    %v6468 = vunpack.c.h.b16 %v5224
    %v6469 = vunpack.c.l.b16 %v5225
    %v6470 = vunpack.c.h.b16 %v5225
    %v6471 = vunpack.c.l.b16 %v5226
    %v6472 = vunpack.c.h.b16 %v5226
    %v6473 = vunpack.c.l.b16 %v5227
    %v6474 = vunpack.c.h.b16 %v5227
    %v6475 = vunpack.c.l.b16 %v5228
    %v6476 = vunpack.c.h.b16 %v5228
    %v6477 = vunpack.c.l.b16 %v5229
    %v6478 = vunpack.c.h.b16 %v5229
    %v6479 = vunpack.c.l.b16 %v5230
    %v6480 = vunpack.c.h.b16 %v5230
    %v6481 = vunpack.c.l.b16 %v5231
    %v6482 = vunpack.c.h.b16 %v5231
    %v6483 = vunpack.c.l.b16 %v5232
    %v6484 = vunpack.c.h.b16 %v5232
    %v6485 = vunpack.c.l.b16 %v5233
    %v6486 = vunpack.c.h.b16 %v5233
    %v6487 = vunpack.c.l.b16 %v5234
    %v6488 = vunpack.c.h.b16 %v5234
    %v6489 = vunpack.c.l.b16 %v5235
    %v6490 = vunpack.c.h.b16 %v5235
    %v6491 = vunpack.c.l.b16 %v5236
    %v6492 = vunpack.c.h.b16 %v5236
    %v6493 = vunpack.c.l.b16 %v5237
    %v6494 = vunpack.c.h.b16 %v5237
    %v6495 = vunpack.c.l.b16 %v5238
    %v6496 = vunpack.c.h.b16 %v5238
    %v6497 = vunpack.c.l.b16 %v5239
    %v6498 = vunpack.c.h.b16 %v5239
    %v6499 = vunpack.c.l.b16 %v5240
    %v6500 = vunpack.c.h.b16 %v5240
    %v6501 = vunpack.c.l.b16 %v5241
    %v6502 = vunpack.c.h.b16 %v5241
    %v6503 = vunpack.c.l.b16 %v5242
    %v6504 = vunpack.c.h.b16 %v5242
    %v6505 = vunpack.c.l.b16 %v5243
    %v6506 = vunpack.c.h.b16 %v5243
    %v6507 = vunpack.c.l.b16 %v5244
    %v6508 = vunpack.c.h.b16 %v5244
    %v6509 = vunpack.c.l.b16 %v5245
    %v6510 = vunpack.c.h.b16 %v5245
    %v6511 = vunpack.c.l.b16 %v5246
    %v6512 = vunpack.c.h.b16 %v5246
    %v6513 = vunpack.c.l.b16 %v5247
    %v6514 = vunpack.c.h.b16 %v5247
    %v6515 = vunpack.c.l.b16 %v5248
    %v6516 = vunpack.c.h.b16 %v5248
    %v6517 = vunpack.c.l.b16 %v5249
    %v6518 = vunpack.c.h.b16 %v5249
    %v6519 = vunpack.c.l.b16 %v5250
    %v6520 = vunpack.c.h.b16 %v5250
    %v6521 = vunpack.c.l.b16 %v5251
    %v6522 = vunpack.c.h.b16 %v5251
    %v6523 = vunpack.c.l.b16 %v5252
    %v6524 = vunpack.c.h.b16 %v5252
    %v6525 = vunpack.c.l.b16 %v5253
    %v6526 = vunpack.c.h.b16 %v5253
    %v6527 = vunpack.c.l.b16 %v5254
    %v6528 = vunpack.c.h.b16 %v5254
    %v6529 = vunpack.c.l.b16 %v5255
    %v6530 = vunpack.c.h.b16 %v5255
    %v6531 = vunpack.c.l.b16 %v5256
    %v6532 = vunpack.c.h.b16 %v5256
    %v6533 = vunpack.c.l.b16 %v5257
    %v6534 = vunpack.c.h.b16 %v5257
    %v6535 = vunpack.c.l.b16 %v5258
    %v6536 = vunpack.c.h.b16 %v5258
    %v6537 = vunpack.c.l.b16 %v5259
    %v6538 = vunpack.c.h.b16 %v5259
    %v6539 = vunpack.c.l.b16 %v5260
    %v6540 = vunpack.c.h.b16 %v5260
    %v6541 = vunpack.c.l.b16 %v5261
    %v6542 = vunpack.c.h.b16 %v5261
    %v6543 = vunpack.c.l.b16 %v5262
    %v6544 = vunpack.c.h.b16 %v5262
    %v6545 = vunpack.c.l.b16 %v5263
    %v6546 = vunpack.c.h.b16 %v5263
    %v6547 = vunpack.c.l.b16 %v5264
    %v6548 = vunpack.c.h.b16 %v5264
    %v6549 = vunpack.c.l.b16 %v5265
    %v6550 = vunpack.c.h.b16 %v5265
    %v6551 = vunpack.c.l.b16 %v5266
    %v6552 = vunpack.c.h.b16 %v5266
    %v6553 = vunpack.c.l.b16 %v5267
    %v6554 = vunpack.c.h.b16 %v5267
    %v6555 = vunpack.c.l.b16 %v5268
    %v6556 = vunpack.c.h.b16 %v5268
    %v6557 = vunpack.c.l.b16 %v5269
    %v6558 = vunpack.c.h.b16 %v5269
    %v6559 = vunpack.c.l.b16 %v5270
    %v6560 = vunpack.c.h.b16 %v5270
    %v6561 = vunpack.c.l.b16 %v5271
    %v6562 = vunpack.c.h.b16 %v5271
    %v6563 = vunpack.c.l.b16 %v5272
    %v6564 = vunpack.c.h.b16 %v5272
    %v6565 = vunpack.c.l.b16 %v5273
    %v6566 = vunpack.c.h.b16 %v5273
    %v6567 = vunpack.c.l.b16 %v5274
    %v6568 = vunpack.c.h.b16 %v5274
    %v6569 = vunpack.c.l.b16 %v5275
    %v6570 = vunpack.c.h.b16 %v5275
    %v6571 = vunpack.c.l.b16 %v5276
    %v6572 = vunpack.c.h.b16 %v5276
    %v6573 = vunpack.c.l.b16 %v5277
    %v6574 = vunpack.c.h.b16 %v5277
    %v6575 = vunpack.c.l.b16 %v5278
    %v6576 = vunpack.c.h.b16 %v5278
    %v6577 = vunpack.c.l.b16 %v5279
    %v6578 = vunpack.c.h.b16 %v5279
    %v6579 = vunpack.c.l.b16 %v5280
    %v6580 = vunpack.c.h.b16 %v5280
    %v6581 = vunpack.c.l.b16 %v5281
    %v6582 = vunpack.c.h.b16 %v5281
    %v6583 = vunpack.c.l.b16 %v5282
    %v6584 = vunpack.c.h.b16 %v5282
    %v6585 = vunpack.c.l.b16 %v5283
    %v6586 = vunpack.c.h.b16 %v5283
    %v6587 = vunpack.c.l.b16 %v5284
    %v6588 = vunpack.c.h.b16 %v5284
    %v6589 = vunpack.c.l.b16 %v5285
    %v6590 = vunpack.c.h.b16 %v5285
    %v6591 = vunpack.c.l.b16 %v5286
    %v6592 = vunpack.c.h.b16 %v5286
    %v6593 = vunpack.c.l.b16 %v5287
    %v6594 = vunpack.c.h.b16 %v5287
    %v6595 = vunpack.c.l.b16 %v5288
    %v6596 = vunpack.c.h.b16 %v5288
    %v6597 = vunpack.c.l.b16 %v5289
    %v6598 = vunpack.c.h.b16 %v5289
    %v6599 = vunpack.c.l.b16 %v5290
    %v6600 = vunpack.c.h.b16 %v5290
    %v6601 = vunpack.c.l.b16 %v5291
    %v6602 = vunpack.c.h.b16 %v5291
    %v6603 = vunpack.c.l.b16 %v5292
    %v6604 = vunpack.c.h.b16 %v5292
    %v6605 = vunpack.c.l.b16 %v5293
    %v6606 = vunpack.c.h.b16 %v5293
    %v6607 = vunpack.c.l.b16 %v5294
    %v6608 = vunpack.c.h.b16 %v5294
    %v6609 = vunpack.c.l.b16 %v5295
    %v6610 = vunpack.c.h.b16 %v5295
    %v6611 = vunpack.c.l.b16 %v5296
    %v6612 = vunpack.c.h.b16 %v5296
    %v6613 = vunpack.c.l.b16 %v5297
    %v6614 = vunpack.c.h.b16 %v5297
    %v6615 = vunpack.c.l.b16 %v5298
    %v6616 = vunpack.c.h.b16 %v5298
    %v6617 = vunpack.c.l.b16 %v5299
    %v6618 = vunpack.c.h.b16 %v5299
    %v6619 = vunpack.c.l.b16 %v5300
    %v6620 = vunpack.c.h.b16 %v5300
    %v6621 = vunpack.c.l.b16 %v5301
    %v6622 = vunpack.c.h.b16 %v5301
    %v6623 = vunpack.c.l.b16 %v5302
    %v6624 = vunpack.c.h.b16 %v5302
    %v6625 = vunpack.c.l.b16 %v5303
    %v6626 = vunpack.c.h.b16 %v5303
    %v6627 = vunpack.c.l.b16 %v5304
    %v6628 = vunpack.c.h.b16 %v5304
    %v6629 = vunpack.c.l.b16 %v5305
    %v6630 = vunpack.c.h.b16 %v5305
    %v6631 = vunpack.c.l.b16 %v5306
    %v6632 = vunpack.c.h.b16 %v5306
    %v6633 = vunpack.c.l.b16 %v5307
    %v6634 = vunpack.c.h.b16 %v5307
    %v6635 = vunpack.c.l.b16 %v5308
    %v6636 = vunpack.c.h.b16 %v5308
    %v6637 = vunpack.c.l.b16 %v5309
    %v6638 = vunpack.c.h.b16 %v5309
    %v6639 = vunpack.c.l.b16 %v5310
    %v6640 = vunpack.c.h.b16 %v5310
    %v6641 = vunpack.c.l.b16 %v5311
    %v6642 = vunpack.c.h.b16 %v5311
    %v6643 = vunpack.c.l.b16 %v5312
    %v6644 = vunpack.c.h.b16 %v5312
    %v6645 = vunpack.c.l.b16 %v5313
    %v6646 = vunpack.c.h.b16 %v5313
    %v6647 = vunpack.c.l.b16 %v5314
    %v6648 = vunpack.c.h.b16 %v5314
    %v6649 = vunpack.c.l.b16 %v5315
    %v6650 = vunpack.c.h.b16 %v5315
    %v6651 = vunpack.c.l.b16 %v5316
    %v6652 = vunpack.c.h.b16 %v5316
    %v6653 = vunpack.c.l.b16 %v5317
    %v6654 = vunpack.c.h.b16 %v5317
    %v6655 = vunpack.c.l.b16 %v5318
    %v6656 = vunpack.c.h.b16 %v5318
    %v6657 = vunpack.c.l.b16 %v5319
    %v6658 = vunpack.c.h.b16 %v5319
    %v6659 = vunpack.c.l.b16 %v5320
    %v6660 = vunpack.c.h.b16 %v5320
    %v6661 = vunpack.c.l.b16 %v5321
    %v6662 = vunpack.c.h.b16 %v5321
    %v6663 = vunpack.c.l.b16 %v5322
    %v6664 = vunpack.c.h.b16 %v5322
    %v6665 = vunpack.c.l.b16 %v5323
    %v6666 = vunpack.c.h.b16 %v5323
    %v6667 = vunpack.c.l.b16 %v5324
    %v6668 = vunpack.c.h.b16 %v5324
    %v6669 = vunpack.c.l.b16 %v5325
    %v6670 = vunpack.c.h.b16 %v5325
    %v6671 = vunpack.c.l.b16 %v5326
    %v6672 = vunpack.c.h.b16 %v5326
    %v6673 = vunpack.c.l.b16 %v5327
    %v6674 = vunpack.c.h.b16 %v5327
    %v6675 = vunpack.c.l.b16 %v5328
    %v6676 = vunpack.c.h.b16 %v5328
    %v6677 = vunpack.c.l.b16 %v5329
    %v6678 = vunpack.c.h.b16 %v5329
    %v6679 = vunpack.c.l.b16 %v5330
    %v6680 = vunpack.c.h.b16 %v5330
    %v6681 = vunpack.c.l.b16 %v5331
    %v6682 = vunpack.c.h.b16 %v5331
    %v6683 = vunpack.c.l.b16 %v5332
    %v6684 = vunpack.c.h.b16 %v5332
    %v6685 = vunpack.c.l.b16 %v5333
    %v6686 = vunpack.c.h.b16 %v5333
    %v6687 = vunpack.c.l.b16 %v5334
    %v6688 = vunpack.c.h.b16 %v5334
    %v6689 = vunpack.c.l.b16 %v5335
    %v6690 = vunpack.c.h.b16 %v5335
    %v6691 = vunpack.c.l.b16 %v5336
    %v6692 = vunpack.c.h.b16 %v5336
    %v6693 = vunpack.c.l.b16 %v5337
    %v6694 = vunpack.c.h.b16 %v5337
    %v6695 = vunpack.c.l.b16 %v5338
    %v6696 = vunpack.c.h.b16 %v5338
    %v6697 = vunpack.c.l.b16 %v5339
    %v6698 = vunpack.c.h.b16 %v5339
    %v6699 = vunpack.c.l.b16 %v5340
    %v6700 = vunpack.c.h.b16 %v5340
    %v6701 = vunpack.c.l.b16 %v5341
    %v6702 = vunpack.c.h.b16 %v5341
    %v6703 = vunpack.c.l.b16 %v5342
    %v6704 = vunpack.c.h.b16 %v5342
    %v6705 = vunpack.c.l.b16 %v5343
    %v6706 = vunpack.c.h.b16 %v5343
    %v6707 = vunpack.c.l.b16 %v5344
    %v6708 = vunpack.c.h.b16 %v5344
    %v6709 = vunpack.c.l.b16 %v5345
    %v6710 = vunpack.c.h.b16 %v5345
    %v6711 = vunpack.c.l.b16 %v5346
    %v6712 = vunpack.c.h.b16 %v5346
    %v6713 = vunpack.c.l.b16 %v5347
    %v6714 = vunpack.c.h.b16 %v5347
    %v6715 = vunpack.c.l.b16 %v5348
    %v6716 = vunpack.c.h.b16 %v5348
    %v6717 = vunpack.c.l.b16 %v5349
    %v6718 = vunpack.c.h.b16 %v5349
    %v6719 = vunpack.c.l.b16 %v5350
    %v6720 = vunpack.c.h.b16 %v5350
    %v6721 = vunpack.c.l.b16 %v5351
    %v6722 = vunpack.c.h.b16 %v5351
    %v6723 = vunpack.c.l.b16 %v5352
    %v6724 = vunpack.c.h.b16 %v5352
    %v6725 = vunpack.c.l.b16 %v5353
    %v6726 = vunpack.c.h.b16 %v5353
    %v6727 = vunpack.c.l.b16 %v5354
    %v6728 = vunpack.c.h.b16 %v5354
    %v6729 = vunpack.c.l.b16 %v5355
    %v6730 = vunpack.c.h.b16 %v5355
    %v6731 = vunpack.c.l.b16 %v5356
    %v6732 = vunpack.c.h.b16 %v5356
    %v6733 = vunpack.c.l.b16 %v5357
    %v6734 = vunpack.c.h.b16 %v5357
    %v6735 = vunpack.c.l.b16 %v5358
    %v6736 = vunpack.c.h.b16 %v5358
    %v6737 = vunpack.c.l.b16 %v5359
    %v6738 = vunpack.c.h.b16 %v5359
    %v6739 = vunpack.c.l.b16 %v5360
    %v6740 = vunpack.c.h.b16 %v5360
    %v6741 = vunpack.c.l.b16 %v5361
    %v6742 = vunpack.c.h.b16 %v5361
    %v6743 = vunpack.c.l.b16 %v5362
    %v6744 = vunpack.c.h.b16 %v5362
    %v6745 = vunpack.c.l.b16 %v5363
    %v6746 = vunpack.c.h.b16 %v5363
    %v6747 = vunpack.c.l.b16 %v5364
    %v6748 = vunpack.c.h.b16 %v5364
    %v6749 = vunpack.c.l.b16 %v5365
    %v6750 = vunpack.c.h.b16 %v5365
    %v6751 = vunpack.c.l.b16 %v5366
    %v6752 = vunpack.c.h.b16 %v5366
    %v6753 = vunpack.c.l.b16 %v5367
    %v6754 = vunpack.c.h.b16 %v5367
    %v6755 = vunpack.c.l.b16 %v5368
    %v6756 = vunpack.c.h.b16 %v5368
    %v6757 = vunpack.c.l.b16 %v5369
    %v6758 = vunpack.c.h.b16 %v5369
    %v6759 = vunpack.c.l.b16 %v5370
    %v6760 = vunpack.c.h.b16 %v5370
    %v6761 = vunpack.c.l.b16 %v5371
    %v6762 = vunpack.c.h.b16 %v5371
    %v6763 = vunpack.c.l.b16 %v5372
    %v6764 = vunpack.c.h.b16 %v5372
    %v6765 = vunpack.c.l.b16 %v5373
    %v6766 = vunpack.c.h.b16 %v5373
    %v6767 = vunpack.c.l.b16 %v5374
    %v6768 = vunpack.c.h.b16 %v5374
    %v6769 = vunpack.c.l.b16 %v5375
    %v6770 = vunpack.c.h.b16 %v5375
    %v6771 = vunpack.c.l.b16 %v5376
    %v6772 = vunpack.c.h.b16 %v5376
    %v6773 = vunpack.c.l.b16 %v5377
    %v6774 = vunpack.c.h.b16 %v5377
    %v6775 = vunpack.c.l.b16 %v5378
    %v6776 = vunpack.c.h.b16 %v5378
    %v6777 = vunpack.c.l.b16 %v5379
    %v6778 = vunpack.c.h.b16 %v5379
    %v6779 = vunpack.c.l.b16 %v5380
    %v6780 = vunpack.c.h.b16 %v5380
    %v6781 = vunpack.c.l.b16 %v5381
    %v6782 = vunpack.c.h.b16 %v5381
    %v6783 = vunpack.c.l.b16 %v5382
    %v6784 = vunpack.c.h.b16 %v5382
    %v6785 = vunpack.c.l.b16 %v5383
    %v6786 = vunpack.c.h.b16 %v5383
    %v6787 = vunpack.c.l.b16 %v5384
    %v6788 = vunpack.c.h.b16 %v5384
    %v6789 = vunpack.c.l.b16 %v5385
    %v6790 = vunpack.c.h.b16 %v5385
    %v6791 = vunpack.c.l.b16 %v5386
    %v6792 = vunpack.c.h.b16 %v5386
    %v6793 = vunpack.c.l.b16 %v5387
    %v6794 = vunpack.c.h.b16 %v5387
    %v6795 = vunpack.c.l.b16 %v5388
    %v6796 = vunpack.c.h.b16 %v5388
    %v6797 = vunpack.c.l.b16 %v5389
    %v6798 = vunpack.c.h.b16 %v5389
    %v6799 = vunpack.c.l.b16 %v5390
    %v6800 = vunpack.c.h.b16 %v5390
    %v6801 = vunpack.c.l.b16 %v5391
    %v6802 = vunpack.c.h.b16 %v5391
    %v6803 = vunpack.c.l.b16 %v5392
    %v6804 = vunpack.c.h.b16 %v5392
    %v6805 = vunpack.c.l.b16 %v5393
    %v6806 = vunpack.c.h.b16 %v5393
    %v6807 = vunpack.c.l.b16 %v5394
    %v6808 = vunpack.c.h.b16 %v5394
    %v6809 = vunpack.c.l.b16 %v5395
    %v6810 = vunpack.c.h.b16 %v5395
    %v6811 = vunpack.c.l.b16 %v5396
    %v6812 = vunpack.c.h.b16 %v5396
    %v6813 = vunpack.c.l.b16 %v5397
    %v6814 = vunpack.c.h.b16 %v5397
    %v6815 = vunpack.c.l.b16 %v5398
    %v6816 = vunpack.c.h.b16 %v5398
    %v6817 = vunpack.c.l.b16 %v5399
    %v6818 = vunpack.c.h.b16 %v5399
    %v6819 = vunpack.c.l.b16 %v5400
    %v6820 = vunpack.c.h.b16 %v5400
    %v6821 = vunpack.c.l.b16 %v5401
    %v6822 = vunpack.c.h.b16 %v5401
    %v6823 = vunpack.c.l.b16 %v5402
    %v6824 = vunpack.c.h.b16 %v5402
    %v6825 = vunpack.c.l.b16 %v5403
    %v6826 = vunpack.c.h.b16 %v5403
    %v6827 = vunpack.c.l.b16 %v5404
    %v6828 = vunpack.c.h.b16 %v5404
    %v6829 = vunpack.c.l.b16 %v5405
    %v6830 = vunpack.c.h.b16 %v5405
    %v6831 = vunpack.c.l.b16 %v5406
    %v6832 = vunpack.c.h.b16 %v5406
    %v6833 = vunpack.c.l.b16 %v5407
    %v6834 = vunpack.c.h.b16 %v5407
    %v6835 = vunpack.c.l.b16 %v5408
    %v6836 = vunpack.c.h.b16 %v5408
    %v6837 = vunpack.c.l.b16 %v5409
    %v6838 = vunpack.c.h.b16 %v5409
    %v6839 = vunpack.c.l.b16 %v5410
    %v6840 = vunpack.c.h.b16 %v5410
    %v6841 = vunpack.c.l.b16 %v5411
    %v6842 = vunpack.c.h.b16 %v5411
    %v6843 = vunpack.c.l.b16 %v5412
    %v6844 = vunpack.c.h.b16 %v5412
    %v6845 = vunpack.c.l.b16 %v5413
    %v6846 = vunpack.c.h.b16 %v5413
    %v6847 = vunpack.c.l.b16 %v5414
    %v6848 = vunpack.c.h.b16 %v5414
    %v6849 = vunpack.c.l.b16 %v5415
    %v6850 = vunpack.c.h.b16 %v5415
    %v6851 = vunpack.c.l.b16 %v5416
    %v6852 = vunpack.c.h.b16 %v5416
    %v6853 = vunpack.c.l.b16 %v5417
    %v6854 = vunpack.c.h.b16 %v5417
    %v6855 = vunpack.c.l.b16 %v5418
    %v6856 = vunpack.c.h.b16 %v5418
    %v6857 = vunpack.c.l.b16 %v5419
    %v6858 = vunpack.c.h.b16 %v5419
    %v6859 = vunpack.c.l.b16 %v5420
    %v6860 = vunpack.c.h.b16 %v5420
    %v6861 = vunpack.c.l.b16 %v5421
    %v6862 = vunpack.c.h.b16 %v5421
    %v6863 = vunpack.c.l.b16 %v5422
    %v6864 = vunpack.c.h.b16 %v5422
    %v6865 = vunpack.c.l.b16 %v5423
    %v6866 = vunpack.c.h.b16 %v5423
    %v6867 = vunpack.c.l.b16 %v5424
    %v6868 = vunpack.c.h.b16 %v5424
    %v6869 = vunpack.c.l.b16 %v5425
    %v6870 = vunpack.c.h.b16 %v5425
    %v6871 = vunpack.c.l.b16 %v5426
    %v6872 = vunpack.c.h.b16 %v5426
    %v6873 = vunpack.c.l.b16 %v5427
    %v6874 = vunpack.c.h.b16 %v5427
    %v6875 = vunpack.c.l.b16 %v5428
    %v6876 = vunpack.c.h.b16 %v5428
    %v6877 = vunpack.c.l.b16 %v5429
    %v6878 = vunpack.c.h.b16 %v5429
    %v6879 = vunpack.c.l.b16 %v5430
    %v6880 = vunpack.c.h.b16 %v5430
    %v6881 = vunpack.c.l.b16 %v5431
    %v6882 = vunpack.c.h.b16 %v5431
    %v6883 = vunpack.c.l.b16 %v5432
    %v6884 = vunpack.c.h.b16 %v5432
    %v6885 = vunpack.c.l.b16 %v5433
    %v6886 = vunpack.c.h.b16 %v5433
    %v6887 = vunpack.c.l.b16 %v5434
    %v6888 = vunpack.c.h.b16 %v5434
    %v6889 = vunpack.c.l.b16 %v5435
    %v6890 = vunpack.c.h.b16 %v5435
    %v6891 = vunpack.c.l.b16 %v5436
    %v6892 = vunpack.c.h.b16 %v5436
    %v6893 = vunpack.c.l.b16 %v5437
    %v6894 = vunpack.c.h.b16 %v5437
    %v6895 = vunpack.c.l.b16 %v5438
    %v6896 = vunpack.c.h.b16 %v5438
    %v6897 = vunpack.c.l.b16 %v5439
    %v6898 = vunpack.c.h.b16 %v5439
    %v6899 = vunpack.c.l.b16 %v5440
    %v6900 = vunpack.c.h.b16 %v5440
    %v6901 = vunpack.c.l.b16 %v5441
    %v6902 = vunpack.c.h.b16 %v5441
    %v6903 = vunpack.c.l.b16 %v5442
    %v6904 = vunpack.c.h.b16 %v5442
    %v6905 = vunpack.c.l.b16 %v5443
    %v6906 = vunpack.c.h.b16 %v5443
    %v6907 = vunpack.c.l.b16 %v5444
    %v6908 = vunpack.c.h.b16 %v5444
    %v6909 = vunpack.c.l.b16 %v5445
    %v6910 = vunpack.c.h.b16 %v5445
    %v6911 = vunpack.c.l.b16 %v5446
    %v6912 = vunpack.c.h.b16 %v5446
    %v6913 = vunpack.c.l.b16 %v5447
    %v6914 = vunpack.c.h.b16 %v5447
    %v6915 = vunpack.c.l.b16 %v5448
    %v6916 = vunpack.c.h.b16 %v5448
    %v6917 = vunpack.c.l.b16 %v5449
    %v6918 = vunpack.c.h.b16 %v5449
    %v6919 = vunpack.c.l.b16 %v5450
    %v6920 = vunpack.c.h.b16 %v5450
    %v6921 = vunpack.c.l.b16 %v5451
    %v6922 = vunpack.c.h.b16 %v5451
    %v6923 = vunpack.c.l.b16 %v5452
    %v6924 = vunpack.c.h.b16 %v5452
    %v6925 = vunpack.c.l.b16 %v5453
    %v6926 = vunpack.c.h.b16 %v5453
    %v6927 = vunpack.c.l.b16 %v5454
    %v6928 = vunpack.c.h.b16 %v5454
    %v6929 = vunpack.c.l.b16 %v5455
    %v6930 = vunpack.c.h.b16 %v5455
    %v6931 = vunpack.c.l.b16 %v5456
    %v6932 = vunpack.c.h.b16 %v5456
    %v6933 = vunpack.c.l.b16 %v5457
    %v6934 = vunpack.c.h.b16 %v5457
    %v6935 = vunpack.c.l.b16 %v5458
    %v6936 = vunpack.c.h.b16 %v5458
    %v6937 = vunpack.c.l.b16 %v5459
    %v6938 = vunpack.c.h.b16 %v5459
    %v6939 = vunpack.c.l.b16 %v5460
    %v6940 = vunpack.c.h.b16 %v5460
    %v6941 = vunpack.c.l.b16 %v5461
    %v6942 = vunpack.c.h.b16 %v5461
    %v6943 = vunpack.c.l.b16 %v5462
    %v6944 = vunpack.c.h.b16 %v5462
    %v6945 = vunpack.c.l.b16 %v5463
    %v6946 = vunpack.c.h.b16 %v5463
    %v6947 = vunpack.c.l.b16 %v5464
    %v6948 = vunpack.c.h.b16 %v5464
    %v6949 = vunpack.c.l.b16 %v5465
    %v6950 = vunpack.c.h.b16 %v5465
    %v6951 = vunpack.c.l.b16 %v5466
    %v6952 = vunpack.c.h.b16 %v5466
    %v6953 = vunpack.c.l.b16 %v5467
    %v6954 = vunpack.c.h.b16 %v5467
    %v6955 = vunpack.c.l.b16 %v5468
    %v6956 = vunpack.c.h.b16 %v5468
    %v6957 = vunpack.c.l.b16 %v5469
    %v6958 = vunpack.c.h.b16 %v5469
    %v6959 = vunpack.c.l.b16 %v5470
    %v6960 = vunpack.c.h.b16 %v5470
    %v6961 = vunpack.c.l.b16 %v5471
    %v6962 = vunpack.c.h.b16 %v5471
    %v6963 = vunpack.c.l.b16 %v5472
    %v6964 = vunpack.c.h.b16 %v5472
    %v6965 = vunpack.c.l.b16 %v5473
    %v6966 = vunpack.c.h.b16 %v5473
    %v6967 = vunpack.c.l.b16 %v5474
    %v6968 = vunpack.c.h.b16 %v5474
    %v6969 = vunpack.c.l.b16 %v5475
    %v6970 = vunpack.c.h.b16 %v5475
    %v6971 = vunpack.c.l.b16 %v5476
    %v6972 = vunpack.c.h.b16 %v5476
    %v6973 = vunpack.c.l.b16 %v5477
    %v6974 = vunpack.c.h.b16 %v5477
    %v6975 = vunpack.c.l.b16 %v5478
    %v6976 = vunpack.c.h.b16 %v5478
    %v6977 = vunpack.c.l.b16 %v5479
    %v6978 = vunpack.c.h.b16 %v5479
    %v6979 = vunpack.c.l.b16 %v5480
    %v6980 = vunpack.c.h.b16 %v5480
    %v6981 = vunpack.c.l.b16 %v5481
    %v6982 = vunpack.c.h.b16 %v5481
    %v6983 = vunpack.c.l.b16 %v5482
    %v6984 = vunpack.c.h.b16 %v5482
    %v6985 = vunpack.c.l.b16 %v5483
    %v6986 = vunpack.c.h.b16 %v5483
    %v6987 = vunpack.c.l.b16 %v5484
    %v6988 = vunpack.c.h.b16 %v5484
    %v6989 = vunpack.c.l.b16 %v5485
    %v6990 = vunpack.c.h.b16 %v5485
    %v6991 = vunpack.c.l.b16 %v5486
    %v6992 = vunpack.c.h.b16 %v5486
    %v6993 = vunpack.c.l.b16 %v5487
    %v6994 = vunpack.c.h.b16 %v5487
    %v6995 = vunpack.c.l.b16 %v5488
    %v6996 = vunpack.c.h.b16 %v5488
    %v6997 = vunpack.c.l.b16 %v5489
    %v6998 = vunpack.c.h.b16 %v5489
    %v6999 = vunpack.c.l.b16 %v5490
    %v7000 = vunpack.c.h.b16 %v5490
    %v7001 = vunpack.c.l.b16 %v5491
    %v7002 = vunpack.c.h.b16 %v5491
    %v7003 = vunpack.c.l.b16 %v5492
    %v7004 = vunpack.c.h.b16 %v5492
    %v7005 = vunpack.c.l.b16 %v5493
    %v7006 = vunpack.c.h.b16 %v5493
    %v7007 = vunpack.c.l.b16 %v5494
    %v7008 = vunpack.c.h.b16 %v5494
    %v7009 = vunpack.c.l.b16 %v5495
    %v7010 = vunpack.c.h.b16 %v5495
    %v7011 = vunpack.c.l.b16 %v5496
    %v7012 = vunpack.c.h.b16 %v5496
    %v7013 = vunpack.c.l.b16 %v5497
    %v7014 = vunpack.c.h.b16 %v5497
    %v7015 = vunpack.c.l.b16 %v5498
    %v7016 = vunpack.c.h.b16 %v5498
    %v7017 = vunpack.c.l.b16 %v5499
    %v7018 = vunpack.c.h.b16 %v5499
    %v7019 = vunpack.c.l.b16 %v5500
    %v7020 = vunpack.c.h.b16 %v5500
    %v7021 = vunpack.c.l.b16 %v5501
    %v7022 = vunpack.c.h.b16 %v5501
    %v7023 = vunpack.c.l.b16 %v5502
    %v7024 = vunpack.c.h.b16 %v5502
    %v7025 = vunpack.c.l.b16 %v5503
    %v7026 = vunpack.c.h.b16 %v5503
    %v7027 = vunpack.c.l.b16 %v5504
    %v7028 = vunpack.c.h.b16 %v5504
    %v7029 = vunpack.c.l.b16 %v5505
    %v7030 = vunpack.c.h.b16 %v5505
    %v7031 = vunpack.c.l.b16 %v5506
    %v7032 = vunpack.c.h.b16 %v5506
    %v7033 = vunpack.c.l.b16 %v5507
    %v7034 = vunpack.c.h.b16 %v5507
    %v7035 = vunpack.c.l.b16 %v5508
    %v7036 = vunpack.c.h.b16 %v5508
    %v7037 = vunpack.c.l.b16 %v5509
    %v7038 = vunpack.c.h.b16 %v5509
    %v7039 = vunpack.c.l.b16 %v5510
    %v7040 = vunpack.c.h.b16 %v5510
    %v7041 = vunpack.c.l.b16 %v5511
    %v7042 = vunpack.c.h.b16 %v5511
    %v7043 = vunpack.c.l.b16 %v5512
    %v7044 = vunpack.c.h.b16 %v5512
    %v7045 = vunpack.c.l.b16 %v5513
    %v7046 = vunpack.c.h.b16 %v5513
    %v7047 = vunpack.c.l.b16 %v5514
    %v7048 = vunpack.c.h.b16 %v5514
    %v7049 = vunpack.c.l.b16 %v5515
    %v7050 = vunpack.c.h.b16 %v5515
    %v7051 = vunpack.c.l.b16 %v5516
    %v7052 = vunpack.c.h.b16 %v5516
    %v7053 = vunpack.c.l.b16 %v5517
    %v7054 = vunpack.c.h.b16 %v5517
    %v7055 = vunpack.c.l.b16 %v5518
    %v7056 = vunpack.c.h.b16 %v5518
    %v7057 = vunpack.c.l.b16 %v5519
    %v7058 = vunpack.c.h.b16 %v5519
    %v7059 = vunpack.c.l.b16 %v5520
    %v7060 = vunpack.c.h.b16 %v5520
    %v7061 = vunpack.c.l.b16 %v5521
    %v7062 = vunpack.c.h.b16 %v5521
    %v7063 = vunpack.c.l.b16 %v5522
    %v7064 = vunpack.c.h.b16 %v5522
    %v7065 = vunpack.c.l.b16 %v5523
    %v7066 = vunpack.c.h.b16 %v5523
    %v7067 = vunpack.c.l.b16 %v5524
    %v7068 = vunpack.c.h.b16 %v5524
    %v7069 = vunpack.c.l.b16 %v5525
    %v7070 = vunpack.c.h.b16 %v5525
    %v7071 = vunpack.c.l.b16 %v5526
    %v7072 = vunpack.c.h.b16 %v5526
    %v7073 = vunpack.c.l.b16 %v5527
    %v7074 = vunpack.c.h.b16 %v5527
    %v7075 = vunpack.c.l.b16 %v5528
    %v7076 = vunpack.c.h.b16 %v5528
    %v7077 = vunpack.c.l.b16 %v5529
    %v7078 = vunpack.c.h.b16 %v5529
    %v7079 = vunpack.c.l.b16 %v5530
    %v7080 = vunpack.c.h.b16 %v5530
    %v7081 = vunpack.c.l.b16 %v5531
    %v7082 = vunpack.c.h.b16 %v5531
    %v7083 = vunpack.c.l.b16 %v5532
    %v7084 = vunpack.c.h.b16 %v5532
    %v7085 = vunpack.c.l.b16 %v5533
    %v7086 = vunpack.c.h.b16 %v5533
    %v7087 = vunpack.c.l.b16 %v5534
    %v7088 = vunpack.c.h.b16 %v5534
    %v7089 = vunpack.c.l.b16 %v5535
    %v7090 = vunpack.c.h.b16 %v5535
    %v7091 = vunpack.c.l.b16 %v5536
    %v7092 = vunpack.c.h.b16 %v5536
    %v7093 = vunpack.c.l.b16 %v5537
    %v7094 = vunpack.c.h.b16 %v5537
    %v7095 = vunpack.c.l.b16 %v5538
    %v7096 = vunpack.c.h.b16 %v5538
    %v7097 = vpack.c.b16 %v6077, %v6073
    %v7098 = vpack.c.b16 %v6078, %v6074
    %v7099 = vpack.c.b16 %v6079, %v6075
    %v7100 = vpack.c.b16 %v6080, %v6076
    %v7101 = vpack.c.b16 %v6085, %v6081
    %v7102 = vpack.c.b16 %v6086, %v6082
    %v7103 = vpack.c.b16 %v6087, %v6083
    %v7104 = vpack.c.b16 %v6088, %v6084
    %v7105 = vpack.c.b16 %v6093, %v6089
    %v7106 = vpack.c.b16 %v6094, %v6090
    %v7107 = vpack.c.b16 %v6095, %v6091
    %v7108 = vpack.c.b16 %v6096, %v6092
    %v7109 = vpack.c.b16 %v6101, %v6097
    %v7110 = vpack.c.b16 %v6102, %v6098
    %v7111 = vpack.c.b16 %v6103, %v6099
    %v7112 = vpack.c.b16 %v6104, %v6100
    %v7113 = vpack.c.b16 %v6109, %v6105
    %v7114 = vpack.c.b16 %v6110, %v6106
    %v7115 = vpack.c.b16 %v6111, %v6107
    %v7116 = vpack.c.b16 %v6112, %v6108
    %v7117 = vpack.c.b16 %v6117, %v6113
    %v7118 = vpack.c.b16 %v6118, %v6114
    %v7119 = vpack.c.b16 %v6119, %v6115
    %v7120 = vpack.c.b16 %v6120, %v6116
    %v7121 = vpack.c.b16 %v6125, %v6121
    %v7122 = vpack.c.b16 %v6126, %v6122
    %v7123 = vpack.c.b16 %v6127, %v6123
    %v7124 = vpack.c.b16 %v6128, %v6124
    %v7125 = vpack.c.b16 %v6133, %v6129
    %v7126 = vpack.c.b16 %v6134, %v6130
    %v7127 = vpack.c.b16 %v6135, %v6131
    %v7128 = vpack.c.b16 %v6136, %v6132
    %v7129 = vpack.c.b16 %v6141, %v6137
    %v7130 = vpack.c.b16 %v6142, %v6138
    %v7131 = vpack.c.b16 %v6143, %v6139
    %v7132 = vpack.c.b16 %v6144, %v6140
    %v7133 = vpack.c.b16 %v6149, %v6145
    %v7134 = vpack.c.b16 %v6150, %v6146
    %v7135 = vpack.c.b16 %v6151, %v6147
    %v7136 = vpack.c.b16 %v6152, %v6148
    %v7137 = vpack.c.b16 %v6157, %v6153
    %v7138 = vpack.c.b16 %v6158, %v6154
    %v7139 = vpack.c.b16 %v6159, %v6155
    %v7140 = vpack.c.b16 %v6160, %v6156
    %v7141 = vpack.c.b16 %v6165, %v6161
    %v7142 = vpack.c.b16 %v6166, %v6162
    %v7143 = vpack.c.b16 %v6167, %v6163
    %v7144 = vpack.c.b16 %v6168, %v6164
    %v7145 = vpack.c.b16 %v6173, %v6169
    %v7146 = vpack.c.b16 %v6174, %v6170
    %v7147 = vpack.c.b16 %v6175, %v6171
    %v7148 = vpack.c.b16 %v6176, %v6172
    %v7149 = vpack.c.b16 %v6181, %v6177
    %v7150 = vpack.c.b16 %v6182, %v6178
    %v7151 = vpack.c.b16 %v6183, %v6179
    %v7152 = vpack.c.b16 %v6184, %v6180
    %v7153 = vpack.c.b16 %v6189, %v6185
    %v7154 = vpack.c.b16 %v6190, %v6186
    %v7155 = vpack.c.b16 %v6191, %v6187
    %v7156 = vpack.c.b16 %v6192, %v6188
    %v7157 = vpack.c.b16 %v6197, %v6193
    %v7158 = vpack.c.b16 %v6198, %v6194
    %v7159 = vpack.c.b16 %v6199, %v6195
    %v7160 = vpack.c.b16 %v6200, %v6196
    %v7161 = vpack.c.b16 %v6205, %v6201
    %v7162 = vpack.c.b16 %v6206, %v6202
    %v7163 = vpack.c.b16 %v6207, %v6203
    %v7164 = vpack.c.b16 %v6208, %v6204
    %v7165 = vpack.c.b16 %v6213, %v6209
    %v7166 = vpack.c.b16 %v6214, %v6210
    %v7167 = vpack.c.b16 %v6215, %v6211
    %v7168 = vpack.c.b16 %v6216, %v6212
    %v7169 = vpack.c.b16 %v6221, %v6217
    %v7170 = vpack.c.b16 %v6222, %v6218
    %v7171 = vpack.c.b16 %v6223, %v6219
    %v7172 = vpack.c.b16 %v6224, %v6220
    %v7173 = vpack.c.b16 %v6229, %v6225
    %v7174 = vpack.c.b16 %v6230, %v6226
    %v7175 = vpack.c.b16 %v6231, %v6227
    %v7176 = vpack.c.b16 %v6232, %v6228
    %v7177 = vpack.c.b16 %v6237, %v6233
    %v7178 = vpack.c.b16 %v6238, %v6234
    %v7179 = vpack.c.b16 %v6239, %v6235
    %v7180 = vpack.c.b16 %v6240, %v6236
    %v7181 = vpack.c.b16 %v6245, %v6241
    %v7182 = vpack.c.b16 %v6246, %v6242
    %v7183 = vpack.c.b16 %v6247, %v6243
    %v7184 = vpack.c.b16 %v6248, %v6244
    %v7185 = vpack.c.b16 %v6253, %v6249
    %v7186 = vpack.c.b16 %v6254, %v6250
    %v7187 = vpack.c.b16 %v6255, %v6251
    %v7188 = vpack.c.b16 %v6256, %v6252
    %v7189 = vpack.c.b16 %v6261, %v6257
    %v7190 = vpack.c.b16 %v6262, %v6258
    %v7191 = vpack.c.b16 %v6263, %v6259
    %v7192 = vpack.c.b16 %v6264, %v6260
    %v7193 = vpack.c.b16 %v6269, %v6265
    %v7194 = vpack.c.b16 %v6270, %v6266
    %v7195 = vpack.c.b16 %v6271, %v6267
    %v7196 = vpack.c.b16 %v6272, %v6268
    %v7197 = vpack.c.b16 %v6277, %v6273
    %v7198 = vpack.c.b16 %v6278, %v6274
    %v7199 = vpack.c.b16 %v6279, %v6275
    %v7200 = vpack.c.b16 %v6280, %v6276
    %v7201 = vpack.c.b16 %v6285, %v6281
    %v7202 = vpack.c.b16 %v6286, %v6282
    %v7203 = vpack.c.b16 %v6287, %v6283
    %v7204 = vpack.c.b16 %v6288, %v6284
    %v7205 = vpack.c.b16 %v6293, %v6289
    %v7206 = vpack.c.b16 %v6294, %v6290
    %v7207 = vpack.c.b16 %v6295, %v6291
    %v7208 = vpack.c.b16 %v6296, %v6292
    %v7209 = vpack.c.b16 %v6301, %v6297
    %v7210 = vpack.c.b16 %v6302, %v6298
    %v7211 = vpack.c.b16 %v6303, %v6299
    %v7212 = vpack.c.b16 %v6304, %v6300
    %v7213 = vpack.c.b16 %v6309, %v6305
    %v7214 = vpack.c.b16 %v6310, %v6306
    %v7215 = vpack.c.b16 %v6311, %v6307
    %v7216 = vpack.c.b16 %v6312, %v6308
    %v7217 = vpack.c.b16 %v6317, %v6313
    %v7218 = vpack.c.b16 %v6318, %v6314
    %v7219 = vpack.c.b16 %v6319, %v6315
    %v7220 = vpack.c.b16 %v6320, %v6316
    %v7221 = vpack.c.b16 %v6325, %v6321
    %v7222 = vpack.c.b16 %v6326, %v6322
    %v7223 = vpack.c.b16 %v6327, %v6323
    %v7224 = vpack.c.b16 %v6328, %v6324
    %v7225 = vpack.c.b16 %v6333, %v6329
    %v7226 = vpack.c.b16 %v6334, %v6330
    %v7227 = vpack.c.b16 %v6335, %v6331
    %v7228 = vpack.c.b16 %v6336, %v6332
    %v7229 = vpack.c.b16 %v6341, %v6337
    %v7230 = vpack.c.b16 %v6342, %v6338
    %v7231 = vpack.c.b16 %v6343, %v6339
    %v7232 = vpack.c.b16 %v6344, %v6340
    %v7233 = vpack.c.b16 %v6349, %v6345
    %v7234 = vpack.c.b16 %v6350, %v6346
    %v7235 = vpack.c.b16 %v6351, %v6347
    %v7236 = vpack.c.b16 %v6352, %v6348
    %v7237 = vpack.c.b16 %v6357, %v6353
    %v7238 = vpack.c.b16 %v6358, %v6354
    %v7239 = vpack.c.b16 %v6359, %v6355
    %v7240 = vpack.c.b16 %v6360, %v6356
    %v7241 = vpack.c.b16 %v6365, %v6361
    %v7242 = vpack.c.b16 %v6366, %v6362
    %v7243 = vpack.c.b16 %v6367, %v6363
    %v7244 = vpack.c.b16 %v6368, %v6364
    %v7245 = vpack.c.b16 %v6373, %v6369
    %v7246 = vpack.c.b16 %v6374, %v6370
    %v7247 = vpack.c.b16 %v6375, %v6371
    %v7248 = vpack.c.b16 %v6376, %v6372
    %v7249 = vpack.c.b16 %v6381, %v6377
    %v7250 = vpack.c.b16 %v6382, %v6378
    %v7251 = vpack.c.b16 %v6383, %v6379
    %v7252 = vpack.c.b16 %v6384, %v6380
    %v7253 = vpack.c.b16 %v6389, %v6385
    %v7254 = vpack.c.b16 %v6390, %v6386
    %v7255 = vpack.c.b16 %v6391, %v6387
    %v7256 = vpack.c.b16 %v6392, %v6388
    %v7257 = vpack.c.b16 %v6397, %v6393
    %v7258 = vpack.c.b16 %v6398, %v6394
    %v7259 = vpack.c.b16 %v6399, %v6395
    %v7260 = vpack.c.b16 %v6400, %v6396
    %v7261 = vpack.c.b16 %v6405, %v6401
    %v7262 = vpack.c.b16 %v6406, %v6402
    %v7263 = vpack.c.b16 %v6407, %v6403
    %v7264 = vpack.c.b16 %v6408, %v6404
    %v7265 = vpack.c.b16 %v6413, %v6409
    %v7266 = vpack.c.b16 %v6414, %v6410
    %v7267 = vpack.c.b16 %v6415, %v6411
    %v7268 = vpack.c.b16 %v6416, %v6412
    %v7269 = vpack.c.b16 %v6421, %v6417
    %v7270 = vpack.c.b16 %v6422, %v6418
    %v7271 = vpack.c.b16 %v6423, %v6419
    %v7272 = vpack.c.b16 %v6424, %v6420
    %v7273 = vpack.c.b16 %v6429, %v6425
    %v7274 = vpack.c.b16 %v6430, %v6426
    %v7275 = vpack.c.b16 %v6431, %v6427
    %v7276 = vpack.c.b16 %v6432, %v6428
    %v7277 = vpack.c.b16 %v6437, %v6433
    %v7278 = vpack.c.b16 %v6438, %v6434
    %v7279 = vpack.c.b16 %v6439, %v6435
    %v7280 = vpack.c.b16 %v6440, %v6436
    %v7281 = vpack.c.b16 %v6445, %v6441
    %v7282 = vpack.c.b16 %v6446, %v6442
    %v7283 = vpack.c.b16 %v6447, %v6443
    %v7284 = vpack.c.b16 %v6448, %v6444
    %v7285 = vpack.c.b16 %v6453, %v6449
    %v7286 = vpack.c.b16 %v6454, %v6450
    %v7287 = vpack.c.b16 %v6455, %v6451
    %v7288 = vpack.c.b16 %v6456, %v6452
    %v7289 = vpack.c.b16 %v6461, %v6457
    %v7290 = vpack.c.b16 %v6462, %v6458
    %v7291 = vpack.c.b16 %v6463, %v6459
    %v7292 = vpack.c.b16 %v6464, %v6460
    %v7293 = vpack.c.b16 %v6469, %v6465
    %v7294 = vpack.c.b16 %v6470, %v6466
    %v7295 = vpack.c.b16 %v6471, %v6467
    %v7296 = vpack.c.b16 %v6472, %v6468
    %v7297 = vpack.c.b16 %v6477, %v6473
    %v7298 = vpack.c.b16 %v6478, %v6474
    %v7299 = vpack.c.b16 %v6479, %v6475
    %v7300 = vpack.c.b16 %v6480, %v6476
    %v7301 = vpack.c.b16 %v6485, %v6481
    %v7302 = vpack.c.b16 %v6486, %v6482
    %v7303 = vpack.c.b16 %v6487, %v6483
    %v7304 = vpack.c.b16 %v6488, %v6484
    %v7305 = vpack.c.b16 %v6493, %v6489
    %v7306 = vpack.c.b16 %v6494, %v6490
    %v7307 = vpack.c.b16 %v6495, %v6491
    %v7308 = vpack.c.b16 %v6496, %v6492
    %v7309 = vpack.c.b16 %v6501, %v6497
    %v7310 = vpack.c.b16 %v6502, %v6498
    %v7311 = vpack.c.b16 %v6503, %v6499
    %v7312 = vpack.c.b16 %v6504, %v6500
    %v7313 = vpack.c.b16 %v6509, %v6505
    %v7314 = vpack.c.b16 %v6510, %v6506
    %v7315 = vpack.c.b16 %v6511, %v6507
    %v7316 = vpack.c.b16 %v6512, %v6508
    %v7317 = vpack.c.b16 %v6517, %v6513
    %v7318 = vpack.c.b16 %v6518, %v6514
    %v7319 = vpack.c.b16 %v6519, %v6515
    %v7320 = vpack.c.b16 %v6520, %v6516
    %v7321 = vpack.c.b16 %v6525, %v6521
    %v7322 = vpack.c.b16 %v6526, %v6522
    %v7323 = vpack.c.b16 %v6527, %v6523
    %v7324 = vpack.c.b16 %v6528, %v6524
    %v7325 = vpack.c.b16 %v6533, %v6529
    %v7326 = vpack.c.b16 %v6534, %v6530
    %v7327 = vpack.c.b16 %v6535, %v6531
    %v7328 = vpack.c.b16 %v6536, %v6532
    %v7329 = vpack.c.b16 %v6541, %v6537
    %v7330 = vpack.c.b16 %v6542, %v6538
    %v7331 = vpack.c.b16 %v6543, %v6539
    %v7332 = vpack.c.b16 %v6544, %v6540
    %v7333 = vpack.c.b16 %v6549, %v6545
    %v7334 = vpack.c.b16 %v6550, %v6546
    %v7335 = vpack.c.b16 %v6551, %v6547
    %v7336 = vpack.c.b16 %v6552, %v6548
    %v7337 = vpack.c.b16 %v6557, %v6553
    %v7338 = vpack.c.b16 %v6558, %v6554
    %v7339 = vpack.c.b16 %v6559, %v6555
    %v7340 = vpack.c.b16 %v6560, %v6556
    %v7341 = vpack.c.b16 %v6565, %v6561
    %v7342 = vpack.c.b16 %v6566, %v6562
    %v7343 = vpack.c.b16 %v6567, %v6563
    %v7344 = vpack.c.b16 %v6568, %v6564
    %v7345 = vpack.c.b16 %v6573, %v6569
    %v7346 = vpack.c.b16 %v6574, %v6570
    %v7347 = vpack.c.b16 %v6575, %v6571
    %v7348 = vpack.c.b16 %v6576, %v6572
    %v7349 = vpack.c.b16 %v6581, %v6577
    %v7350 = vpack.c.b16 %v6582, %v6578
    %v7351 = vpack.c.b16 %v6583, %v6579
    %v7352 = vpack.c.b16 %v6584, %v6580
    %v7353 = vpack.c.b16 %v6589, %v6585
    %v7354 = vpack.c.b16 %v6590, %v6586
    %v7355 = vpack.c.b16 %v6591, %v6587
    %v7356 = vpack.c.b16 %v6592, %v6588
    %v7357 = vpack.c.b16 %v6597, %v6593
    %v7358 = vpack.c.b16 %v6598, %v6594
    %v7359 = vpack.c.b16 %v6599, %v6595
    %v7360 = vpack.c.b16 %v6600, %v6596
    %v7361 = vpack.c.b16 %v6605, %v6601
    %v7362 = vpack.c.b16 %v6606, %v6602
    %v7363 = vpack.c.b16 %v6607, %v6603
    %v7364 = vpack.c.b16 %v6608, %v6604
    %v7365 = vpack.c.b16 %v6613, %v6609
    %v7366 = vpack.c.b16 %v6614, %v6610
    %v7367 = vpack.c.b16 %v6615, %v6611
    %v7368 = vpack.c.b16 %v6616, %v6612
    %v7369 = vpack.c.b16 %v6621, %v6617
    %v7370 = vpack.c.b16 %v6622, %v6618
    %v7371 = vpack.c.b16 %v6623, %v6619
    %v7372 = vpack.c.b16 %v6624, %v6620
    %v7373 = vpack.c.b16 %v6629, %v6625
    %v7374 = vpack.c.b16 %v6630, %v6626
    %v7375 = vpack.c.b16 %v6631, %v6627
    %v7376 = vpack.c.b16 %v6632, %v6628
    %v7377 = vpack.c.b16 %v6637, %v6633
    %v7378 = vpack.c.b16 %v6638, %v6634
    %v7379 = vpack.c.b16 %v6639, %v6635
    %v7380 = vpack.c.b16 %v6640, %v6636
    %v7381 = vpack.c.b16 %v6645, %v6641
    %v7382 = vpack.c.b16 %v6646, %v6642
    %v7383 = vpack.c.b16 %v6647, %v6643
    %v7384 = vpack.c.b16 %v6648, %v6644
    %v7385 = vpack.c.b16 %v6653, %v6649
    %v7386 = vpack.c.b16 %v6654, %v6650
    %v7387 = vpack.c.b16 %v6655, %v6651
    %v7388 = vpack.c.b16 %v6656, %v6652
    %v7389 = vpack.c.b16 %v6661, %v6657
    %v7390 = vpack.c.b16 %v6662, %v6658
    %v7391 = vpack.c.b16 %v6663, %v6659
    %v7392 = vpack.c.b16 %v6664, %v6660
    %v7393 = vpack.c.b16 %v6669, %v6665
    %v7394 = vpack.c.b16 %v6670, %v6666
    %v7395 = vpack.c.b16 %v6671, %v6667
    %v7396 = vpack.c.b16 %v6672, %v6668
    %v7397 = vpack.c.b16 %v6677, %v6673
    %v7398 = vpack.c.b16 %v6678, %v6674
    %v7399 = vpack.c.b16 %v6679, %v6675
    %v7400 = vpack.c.b16 %v6680, %v6676
    %v7401 = vpack.c.b16 %v6685, %v6681
    %v7402 = vpack.c.b16 %v6686, %v6682
    %v7403 = vpack.c.b16 %v6687, %v6683
    %v7404 = vpack.c.b16 %v6688, %v6684
    %v7405 = vpack.c.b16 %v6693, %v6689
    %v7406 = vpack.c.b16 %v6694, %v6690
    %v7407 = vpack.c.b16 %v6695, %v6691
    %v7408 = vpack.c.b16 %v6696, %v6692
    %v7409 = vpack.c.b16 %v6701, %v6697
    %v7410 = vpack.c.b16 %v6702, %v6698
    %v7411 = vpack.c.b16 %v6703, %v6699
    %v7412 = vpack.c.b16 %v6704, %v6700
    %v7413 = vpack.c.b16 %v6709, %v6705
    %v7414 = vpack.c.b16 %v6710, %v6706
    %v7415 = vpack.c.b16 %v6711, %v6707
    %v7416 = vpack.c.b16 %v6712, %v6708
    %v7417 = vpack.c.b16 %v6717, %v6713
    %v7418 = vpack.c.b16 %v6718, %v6714
    %v7419 = vpack.c.b16 %v6719, %v6715
    %v7420 = vpack.c.b16 %v6720, %v6716
    %v7421 = vpack.c.b16 %v6725, %v6721
    %v7422 = vpack.c.b16 %v6726, %v6722
    %v7423 = vpack.c.b16 %v6727, %v6723
    %v7424 = vpack.c.b16 %v6728, %v6724
    %v7425 = vpack.c.b16 %v6733, %v6729
    %v7426 = vpack.c.b16 %v6734, %v6730
    %v7427 = vpack.c.b16 %v6735, %v6731
    %v7428 = vpack.c.b16 %v6736, %v6732
    %v7429 = vpack.c.b16 %v6741, %v6737
    %v7430 = vpack.c.b16 %v6742, %v6738
    %v7431 = vpack.c.b16 %v6743, %v6739
    %v7432 = vpack.c.b16 %v6744, %v6740
    %v7433 = vpack.c.b16 %v6749, %v6745
    %v7434 = vpack.c.b16 %v6750, %v6746
    %v7435 = vpack.c.b16 %v6751, %v6747
    %v7436 = vpack.c.b16 %v6752, %v6748
    %v7437 = vpack.c.b16 %v6757, %v6753
    %v7438 = vpack.c.b16 %v6758, %v6754
    %v7439 = vpack.c.b16 %v6759, %v6755
    %v7440 = vpack.c.b16 %v6760, %v6756
    %v7441 = vpack.c.b16 %v6765, %v6761
    %v7442 = vpack.c.b16 %v6766, %v6762
    %v7443 = vpack.c.b16 %v6767, %v6763
    %v7444 = vpack.c.b16 %v6768, %v6764
    %v7445 = vpack.c.b16 %v6773, %v6769
    %v7446 = vpack.c.b16 %v6774, %v6770
    %v7447 = vpack.c.b16 %v6775, %v6771
    %v7448 = vpack.c.b16 %v6776, %v6772
    %v7449 = vpack.c.b16 %v6781, %v6777
    %v7450 = vpack.c.b16 %v6782, %v6778
    %v7451 = vpack.c.b16 %v6783, %v6779
    %v7452 = vpack.c.b16 %v6784, %v6780
    %v7453 = vpack.c.b16 %v6789, %v6785
    %v7454 = vpack.c.b16 %v6790, %v6786
    %v7455 = vpack.c.b16 %v6791, %v6787
    %v7456 = vpack.c.b16 %v6792, %v6788
    %v7457 = vpack.c.b16 %v6797, %v6793
    %v7458 = vpack.c.b16 %v6798, %v6794
    %v7459 = vpack.c.b16 %v6799, %v6795
    %v7460 = vpack.c.b16 %v6800, %v6796
    %v7461 = vpack.c.b16 %v6805, %v6801
    %v7462 = vpack.c.b16 %v6806, %v6802
    %v7463 = vpack.c.b16 %v6807, %v6803
    %v7464 = vpack.c.b16 %v6808, %v6804
    %v7465 = vpack.c.b16 %v6813, %v6809
    %v7466 = vpack.c.b16 %v6814, %v6810
    %v7467 = vpack.c.b16 %v6815, %v6811
    %v7468 = vpack.c.b16 %v6816, %v6812
    %v7469 = vpack.c.b16 %v6821, %v6817
    %v7470 = vpack.c.b16 %v6822, %v6818
    %v7471 = vpack.c.b16 %v6823, %v6819
    %v7472 = vpack.c.b16 %v6824, %v6820
    %v7473 = vpack.c.b16 %v6829, %v6825
    %v7474 = vpack.c.b16 %v6830, %v6826
    %v7475 = vpack.c.b16 %v6831, %v6827
    %v7476 = vpack.c.b16 %v6832, %v6828
    %v7477 = vpack.c.b16 %v6837, %v6833
    %v7478 = vpack.c.b16 %v6838, %v6834
    %v7479 = vpack.c.b16 %v6839, %v6835
    %v7480 = vpack.c.b16 %v6840, %v6836
    %v7481 = vpack.c.b16 %v6845, %v6841
    %v7482 = vpack.c.b16 %v6846, %v6842
    %v7483 = vpack.c.b16 %v6847, %v6843
    %v7484 = vpack.c.b16 %v6848, %v6844
    %v7485 = vpack.c.b16 %v6853, %v6849
    %v7486 = vpack.c.b16 %v6854, %v6850
    %v7487 = vpack.c.b16 %v6855, %v6851
    %v7488 = vpack.c.b16 %v6856, %v6852
    %v7489 = vpack.c.b16 %v6861, %v6857
    %v7490 = vpack.c.b16 %v6862, %v6858
    %v7491 = vpack.c.b16 %v6863, %v6859
    %v7492 = vpack.c.b16 %v6864, %v6860
    %v7493 = vpack.c.b16 %v6869, %v6865
    %v7494 = vpack.c.b16 %v6870, %v6866
    %v7495 = vpack.c.b16 %v6871, %v6867
    %v7496 = vpack.c.b16 %v6872, %v6868
    %v7497 = vpack.c.b16 %v6877, %v6873
    %v7498 = vpack.c.b16 %v6878, %v6874
    %v7499 = vpack.c.b16 %v6879, %v6875
    %v7500 = vpack.c.b16 %v6880, %v6876
    %v7501 = vpack.c.b16 %v6885, %v6881
    %v7502 = vpack.c.b16 %v6886, %v6882
    %v7503 = vpack.c.b16 %v6887, %v6883
    %v7504 = vpack.c.b16 %v6888, %v6884
    %v7505 = vpack.c.b16 %v6893, %v6889
    %v7506 = vpack.c.b16 %v6894, %v6890
    %v7507 = vpack.c.b16 %v6895, %v6891
    %v7508 = vpack.c.b16 %v6896, %v6892
    %v7509 = vpack.c.b16 %v6901, %v6897
    %v7510 = vpack.c.b16 %v6902, %v6898
    %v7511 = vpack.c.b16 %v6903, %v6899
    %v7512 = vpack.c.b16 %v6904, %v6900
    %v7513 = vpack.c.b16 %v6909, %v6905
    %v7514 = vpack.c.b16 %v6910, %v6906
    %v7515 = vpack.c.b16 %v6911, %v6907
    %v7516 = vpack.c.b16 %v6912, %v6908
    %v7517 = vpack.c.b16 %v6917, %v6913
    %v7518 = vpack.c.b16 %v6918, %v6914
    %v7519 = vpack.c.b16 %v6919, %v6915
    %v7520 = vpack.c.b16 %v6920, %v6916
    %v7521 = vpack.c.b16 %v6925, %v6921
    %v7522 = vpack.c.b16 %v6926, %v6922
    %v7523 = vpack.c.b16 %v6927, %v6923
    %v7524 = vpack.c.b16 %v6928, %v6924
    %v7525 = vpack.c.b16 %v6933, %v6929
    %v7526 = vpack.c.b16 %v6934, %v6930
    %v7527 = vpack.c.b16 %v6935, %v6931
    %v7528 = vpack.c.b16 %v6936, %v6932
    %v7529 = vpack.c.b16 %v6941, %v6937
    %v7530 = vpack.c.b16 %v6942, %v6938
    %v7531 = vpack.c.b16 %v6943, %v6939
    %v7532 = vpack.c.b16 %v6944, %v6940
    %v7533 = vpack.c.b16 %v6949, %v6945
    %v7534 = vpack.c.b16 %v6950, %v6946
    %v7535 = vpack.c.b16 %v6951, %v6947
    %v7536 = vpack.c.b16 %v6952, %v6948
    %v7537 = vpack.c.b16 %v6957, %v6953
    %v7538 = vpack.c.b16 %v6958, %v6954
    %v7539 = vpack.c.b16 %v6959, %v6955
    %v7540 = vpack.c.b16 %v6960, %v6956
    %v7541 = vpack.c.b16 %v6965, %v6961
    %v7542 = vpack.c.b16 %v6966, %v6962
    %v7543 = vpack.c.b16 %v6967, %v6963
    %v7544 = vpack.c.b16 %v6968, %v6964
    %v7545 = vpack.c.b16 %v6973, %v6969
    %v7546 = vpack.c.b16 %v6974, %v6970
    %v7547 = vpack.c.b16 %v6975, %v6971
    %v7548 = vpack.c.b16 %v6976, %v6972
    %v7549 = vpack.c.b16 %v6981, %v6977
    %v7550 = vpack.c.b16 %v6982, %v6978
    %v7551 = vpack.c.b16 %v6983, %v6979
    %v7552 = vpack.c.b16 %v6984, %v6980
    %v7553 = vpack.c.b16 %v6989, %v6985
    %v7554 = vpack.c.b16 %v6990, %v6986
    %v7555 = vpack.c.b16 %v6991, %v6987
    %v7556 = vpack.c.b16 %v6992, %v6988
    %v7557 = vpack.c.b16 %v6997, %v6993
    %v7558 = vpack.c.b16 %v6998, %v6994
    %v7559 = vpack.c.b16 %v6999, %v6995
    %v7560 = vpack.c.b16 %v7000, %v6996
    %v7561 = vpack.c.b16 %v7005, %v7001
    %v7562 = vpack.c.b16 %v7006, %v7002
    %v7563 = vpack.c.b16 %v7007, %v7003
    %v7564 = vpack.c.b16 %v7008, %v7004
    %v7565 = vpack.c.b16 %v7013, %v7009
    %v7566 = vpack.c.b16 %v7014, %v7010
    %v7567 = vpack.c.b16 %v7015, %v7011
    %v7568 = vpack.c.b16 %v7016, %v7012
    %v7569 = vpack.c.b16 %v7021, %v7017
    %v7570 = vpack.c.b16 %v7022, %v7018
    %v7571 = vpack.c.b16 %v7023, %v7019
    %v7572 = vpack.c.b16 %v7024, %v7020
    %v7573 = vpack.c.b16 %v7029, %v7025
    %v7574 = vpack.c.b16 %v7030, %v7026
    %v7575 = vpack.c.b16 %v7031, %v7027
    %v7576 = vpack.c.b16 %v7032, %v7028
    %v7577 = vpack.c.b16 %v7037, %v7033
    %v7578 = vpack.c.b16 %v7038, %v7034
    %v7579 = vpack.c.b16 %v7039, %v7035
    %v7580 = vpack.c.b16 %v7040, %v7036
    %v7581 = vpack.c.b16 %v7045, %v7041
    %v7582 = vpack.c.b16 %v7046, %v7042
    %v7583 = vpack.c.b16 %v7047, %v7043
    %v7584 = vpack.c.b16 %v7048, %v7044
    %v7585 = vpack.c.b16 %v7053, %v7049
    %v7586 = vpack.c.b16 %v7054, %v7050
    %v7587 = vpack.c.b16 %v7055, %v7051
    %v7588 = vpack.c.b16 %v7056, %v7052
    %v7589 = vpack.c.b16 %v7061, %v7057
    %v7590 = vpack.c.b16 %v7062, %v7058
    %v7591 = vpack.c.b16 %v7063, %v7059
    %v7592 = vpack.c.b16 %v7064, %v7060
    %v7593 = vpack.c.b16 %v7069, %v7065
    %v7594 = vpack.c.b16 %v7070, %v7066
    %v7595 = vpack.c.b16 %v7071, %v7067
    %v7596 = vpack.c.b16 %v7072, %v7068
    %v7597 = vpack.c.b16 %v7077, %v7073
    %v7598 = vpack.c.b16 %v7078, %v7074
    %v7599 = vpack.c.b16 %v7079, %v7075
    %v7600 = vpack.c.b16 %v7080, %v7076
    %v7601 = vpack.c.b16 %v7085, %v7081
    %v7602 = vpack.c.b16 %v7086, %v7082
    %v7603 = vpack.c.b16 %v7087, %v7083
    %v7604 = vpack.c.b16 %v7088, %v7084
    %v7605 = vpack.c.b16 %v7093, %v7089
    %v7606 = vpack.c.b16 %v7094, %v7090
    %v7607 = vpack.c.b16 %v7095, %v7091
    %v7608 = vpack.c.b16 %v7096, %v7092
    %8121 = vmatprep.subr.bf16.mxu0 %v7126
    %8122 = vmatpush1.bf16.msra.mxu0 %v7125
    %8123 = vmatprep.subr.bf16.mxu0 %v7122
    %8124 = vmatpush1.bf16.msra.mxu0 %v7121
    %8125 = vmatprep.subr.bf16.mxu0 %v7118
    %8126 = vmatpush1.bf16.msra.mxu0 %v7117
    %8127 = vmatprep.subr.bf16.mxu0 %v7114
    %8128 = vmatpush1.bf16.msra.mxu0 %v7113
    %8129 = vmatprep.subr.bf16.mxu0 %v7110
    %8130 = vmatpush1.bf16.msra.mxu0 %v7109
    %8131 = vmatprep.subr.bf16.mxu0 %v7106
    %8132 = vmatpush1.bf16.msra.mxu0 %v7105
    %8133 = vmatprep.subr.bf16.mxu0 %v7102
    %8134 = vmatpush1.bf16.msra.mxu0 %v7101
    %8135 = vmatprep.subr.bf16.mxu0 %v7098
    %8136 = vmatpush1.bf16.msra.mxu0 %v7097
    %8137 = vmatprep.subr.bf16.mxu0 %v7158
    %8138 = vmatpush2.bf16.msra.mxu0 %v7157
    %8139 = vmatprep.subr.bf16.mxu0 %v7154
    %8140 = vmatpush2.bf16.msra.mxu0 %v7153
    %8141 = vmatprep.subr.bf16.mxu0 %v7150
    %8142 = vmatpush2.bf16.msra.mxu0 %v7149
    %8143 = vmatprep.subr.bf16.mxu0 %v7146
    %8144 = vmatpush2.bf16.msra.mxu0 %v7145
    %8145 = vmatprep.subr.bf16.mxu0 %v7142
    %8146 = vmatpush2.bf16.msra.mxu0 %v7141
    %8147 = vmatprep.subr.bf16.mxu0 %v7138
    %8148 = vmatpush2.bf16.msra.mxu0 %v7137
    %8149 = vmatprep.subr.bf16.mxu0 %v7134
    %8150 = vmatpush2.bf16.msra.mxu0 %v7133
    %8151 = vmatprep.subr.bf16.mxu0 %v7130
    %8152 = vmatpush2.bf16.msra.mxu0 %v7129
    %8153 = vmatprep.mubr.bf16.mxu0 %v5012
    %8154 = vmatmul.mubr.bf16.gmra.mxu0 %v5011
    %v8155 = vpop.f32.mrf.mxu0
    %v8156 = vadd.f32 %v5544, %v8155
    %v8157 = vpop.f32.mrf.mxu0
    %v8158 = vadd.f32 %v5548, %v8157
    %v8159 = vpop.f32.mrf.mxu0
    %v8160 = vpop.f32.mrf.mxu0
    %8161 = vdwg.mxu0
    %8162 = vmatprep.subr.bf16.mxu0 %v7190
    %8163 = vmatpush1.bf16.msra.mxu0 %v7189
    %8164 = vmatprep.subr.bf16.mxu0 %v7186
    %8165 = vmatpush1.bf16.msra.mxu0 %v7185
    %8166 = vmatprep.subr.bf16.mxu0 %v7182
    %8167 = vmatpush1.bf16.msra.mxu0 %v7181
    %8168 = vmatprep.subr.bf16.mxu0 %v7178
    %8169 = vmatpush1.bf16.msra.mxu0 %v7177
    %8170 = vmatprep.subr.bf16.mxu0 %v7174
    %8171 = vmatpush1.bf16.msra.mxu0 %v7173
    %8172 = vmatprep.subr.bf16.mxu0 %v7170
    %8173 = vmatpush1.bf16.msra.mxu0 %v7169
    %8174 = vmatprep.subr.bf16.mxu0 %v7166
    %8175 = vmatpush1.bf16.msra.mxu0 %v7165
    %8176 = vmatprep.subr.bf16.mxu0 %v7162
    %8177 = vmatpush1.bf16.msra.mxu0 %v7161
    %8178 = vmatprep.subr.bf16.mxu0 %v7222
    %8179 = vmatpush2.bf16.msra.mxu0 %v7221
    %8180 = vmatprep.subr.bf16.mxu0 %v7218
    %8181 = vmatpush2.bf16.msra.mxu0 %v7217
    %8182 = vmatprep.subr.bf16.mxu0 %v7214
    %8183 = vmatpush2.bf16.msra.mxu0 %v7213
    %8184 = vmatprep.subr.bf16.mxu0 %v7210
    %8185 = vmatpush2.bf16.msra.mxu0 %v7209
    %8186 = vmatprep.subr.bf16.mxu0 %v7206
    %8187 = vmatpush2.bf16.msra.mxu0 %v7205
    %8188 = vmatprep.subr.bf16.mxu0 %v7202
    %8189 = vmatpush2.bf16.msra.mxu0 %v7201
    %8190 = vmatprep.subr.bf16.mxu0 %v7198
    %8191 = vmatpush2.bf16.msra.mxu0 %v7197
    %8192 = vmatprep.subr.bf16.mxu0 %v7194
    %8193 = vmatpush2.bf16.msra.mxu0 %v7193
    %8194 = vmatprep.mubr.bf16.mxu0 %v5014
    %8195 = vmatmul.mubr.bf16.gmra.mxu0 %v5013
    %v8196 = vpop.f32.mrf.mxu0
    %v8197 = vadd.f32 %v8156, %v8196
    %v8198 = vpop.f32.mrf.mxu0
    %v8199 = vadd.f32 %v8158, %v8198
    %v8200 = vpop.f32.mrf.mxu0
    %v8201 = vpop.f32.mrf.mxu0
    %8202 = vdwg.mxu0
    %8203 = vmatprep.subr.bf16.mxu0 %v7254
    %8204 = vmatpush1.bf16.msra.mxu0 %v7253
    %8205 = vmatprep.subr.bf16.mxu0 %v7250
    %8206 = vmatpush1.bf16.msra.mxu0 %v7249
    %8207 = vmatprep.subr.bf16.mxu0 %v7246
    %8208 = vmatpush1.bf16.msra.mxu0 %v7245
    %8209 = vmatprep.subr.bf16.mxu0 %v7242
    %8210 = vmatpush1.bf16.msra.mxu0 %v7241
    %8211 = vmatprep.subr.bf16.mxu0 %v7238
    %8212 = vmatpush1.bf16.msra.mxu0 %v7237
    %8213 = vmatprep.subr.bf16.mxu0 %v7234
    %8214 = vmatpush1.bf16.msra.mxu0 %v7233
    %8215 = vmatprep.subr.bf16.mxu0 %v7230
    %8216 = vmatpush1.bf16.msra.mxu0 %v7229
    %8217 = vmatprep.subr.bf16.mxu0 %v7226
    %8218 = vmatpush1.bf16.msra.mxu0 %v7225
    %8219 = vmatprep.subr.bf16.mxu0 %v7286
    %8220 = vmatpush2.bf16.msra.mxu0 %v7285
    %8221 = vmatprep.subr.bf16.mxu0 %v7282
    %8222 = vmatpush2.bf16.msra.mxu0 %v7281
    %8223 = vmatprep.subr.bf16.mxu0 %v7278
    %8224 = vmatpush2.bf16.msra.mxu0 %v7277
    %8225 = vmatprep.subr.bf16.mxu0 %v7274
    %8226 = vmatpush2.bf16.msra.mxu0 %v7273
    %8227 = vmatprep.subr.bf16.mxu0 %v7270
    %8228 = vmatpush2.bf16.msra.mxu0 %v7269
    %8229 = vmatprep.subr.bf16.mxu0 %v7266
    %8230 = vmatpush2.bf16.msra.mxu0 %v7265
    %8231 = vmatprep.subr.bf16.mxu0 %v7262
    %8232 = vmatpush2.bf16.msra.mxu0 %v7261
    %8233 = vmatprep.subr.bf16.mxu0 %v7258
    %8234 = vmatpush2.bf16.msra.mxu0 %v7257
    %8235 = vmatprep.mubr.bf16.mxu0 %v5016
    %8236 = vmatmul.mubr.bf16.gmra.mxu0 %v5015
    %v8237 = vpop.f32.mrf.mxu0
    %v8238 = vadd.f32 %v8197, %v8237
    %v8239 = vpop.f32.mrf.mxu0
    %v8240 = vadd.f32 %v8199, %v8239
    %v8241 = vpop.f32.mrf.mxu0
    %v8242 = vpop.f32.mrf.mxu0
    %8243 = vdwg.mxu0
    %8244 = vmatprep.subr.bf16.mxu0 %v7318
    %8245 = vmatpush1.bf16.msra.mxu0 %v7317
    %8246 = vmatprep.subr.bf16.mxu0 %v7314
    %8247 = vmatpush1.bf16.msra.mxu0 %v7313
    %8248 = vmatprep.subr.bf16.mxu0 %v7310
    %8249 = vmatpush1.bf16.msra.mxu0 %v7309
    %8250 = vmatprep.subr.bf16.mxu0 %v7306
    %8251 = vmatpush1.bf16.msra.mxu0 %v7305
    %8252 = vmatprep.subr.bf16.mxu0 %v7302
    %8253 = vmatpush1.bf16.msra.mxu0 %v7301
    %8254 = vmatprep.subr.bf16.mxu0 %v7298
    %8255 = vmatpush1.bf16.msra.mxu0 %v7297
    %8256 = vmatprep.subr.bf16.mxu0 %v7294
    %8257 = vmatpush1.bf16.msra.mxu0 %v7293
    %8258 = vmatprep.subr.bf16.mxu0 %v7290
    %8259 = vmatpush1.bf16.msra.mxu0 %v7289
    %8260 = vmatprep.subr.bf16.mxu0 %v7350
    %8261 = vmatpush2.bf16.msra.mxu0 %v7349
    %8262 = vmatprep.subr.bf16.mxu0 %v7346
    %8263 = vmatpush2.bf16.msra.mxu0 %v7345
    %8264 = vmatprep.subr.bf16.mxu0 %v7342
    %8265 = vmatpush2.bf16.msra.mxu0 %v7341
    %8266 = vmatprep.subr.bf16.mxu0 %v7338
    %8267 = vmatpush2.bf16.msra.mxu0 %v7337
    %8268 = vmatprep.subr.bf16.mxu0 %v7334
    %8269 = vmatpush2.bf16.msra.mxu0 %v7333
    %8270 = vmatprep.subr.bf16.mxu0 %v7330
    %8271 = vmatpush2.bf16.msra.mxu0 %v7329
    %8272 = vmatprep.subr.bf16.mxu0 %v7326
    %8273 = vmatpush2.bf16.msra.mxu0 %v7325
    %8274 = vmatprep.subr.bf16.mxu0 %v7322
    %8275 = vmatpush2.bf16.msra.mxu0 %v7321
    %8276 = vmatprep.mubr.bf16.mxu0 %v5018
    %8277 = vmatmul.mubr.bf16.gmra.mxu0 %v5017
    %v8278 = vpop.f32.mrf.mxu0
    %v8279 = vadd.f32 %v8238, %v8278
    %v8280 = vpop.f32.mrf.mxu0
    %v8281 = vadd.f32 %v8240, %v8280
    %v8282 = vpop.f32.mrf.mxu0
    %v8283 = vpop.f32.mrf.mxu0
    %8284 = vdwg.mxu0
    %8285 = vmatprep.subr.bf16.mxu0 %v7382
    %8286 = vmatpush1.bf16.msra.mxu0 %v7381
    %8287 = vmatprep.subr.bf16.mxu0 %v7378
    %8288 = vmatpush1.bf16.msra.mxu0 %v7377
    %8289 = vmatprep.subr.bf16.mxu0 %v7374
    %8290 = vmatpush1.bf16.msra.mxu0 %v7373
    %8291 = vmatprep.subr.bf16.mxu0 %v7370
    %8292 = vmatpush1.bf16.msra.mxu0 %v7369
    %8293 = vmatprep.subr.bf16.mxu0 %v7366
    %8294 = vmatpush1.bf16.msra.mxu0 %v7365
    %8295 = vmatprep.subr.bf16.mxu0 %v7362
    %8296 = vmatpush1.bf16.msra.mxu0 %v7361
    %8297 = vmatprep.subr.bf16.mxu0 %v7358
    %8298 = vmatpush1.bf16.msra.mxu0 %v7357
    %8299 = vmatprep.subr.bf16.mxu0 %v7354
    %8300 = vmatpush1.bf16.msra.mxu0 %v7353
    %8301 = vmatprep.subr.bf16.mxu0 %v7414
    %8302 = vmatpush2.bf16.msra.mxu0 %v7413
    %8303 = vmatprep.subr.bf16.mxu0 %v7410
    %8304 = vmatpush2.bf16.msra.mxu0 %v7409
    %8305 = vmatprep.subr.bf16.mxu0 %v7406
    %8306 = vmatpush2.bf16.msra.mxu0 %v7405
    %8307 = vmatprep.subr.bf16.mxu0 %v7402
    %8308 = vmatpush2.bf16.msra.mxu0 %v7401
    %8309 = vmatprep.subr.bf16.mxu0 %v7398
    %8310 = vmatpush2.bf16.msra.mxu0 %v7397
    %8311 = vmatprep.subr.bf16.mxu0 %v7394
    %8312 = vmatpush2.bf16.msra.mxu0 %v7393
    %8313 = vmatprep.subr.bf16.mxu0 %v7390
    %8314 = vmatpush2.bf16.msra.mxu0 %v7389
    %8315 = vmatprep.subr.bf16.mxu0 %v7386
    %8316 = vmatpush2.bf16.msra.mxu0 %v7385
    %8317 = vmatprep.mubr.bf16.mxu0 %v5020
    %8318 = vmatmul.mubr.bf16.gmra.mxu0 %v5019
    %v8319 = vpop.f32.mrf.mxu0
    %v8320 = vadd.f32 %v8279, %v8319
    %v8321 = vpop.f32.mrf.mxu0
    %v8322 = vadd.f32 %v8281, %v8321
    %v8323 = vpop.f32.mrf.mxu0
    %v8324 = vpop.f32.mrf.mxu0
    %8325 = vdwg.mxu0
    %8326 = vmatprep.subr.bf16.mxu0 %v7446
    %8327 = vmatpush1.bf16.msra.mxu0 %v7445
    %8328 = vmatprep.subr.bf16.mxu0 %v7442
    %8329 = vmatpush1.bf16.msra.mxu0 %v7441
    %8330 = vmatprep.subr.bf16.mxu0 %v7438
    %8331 = vmatpush1.bf16.msra.mxu0 %v7437
    %8332 = vmatprep.subr.bf16.mxu0 %v7434
    %8333 = vmatpush1.bf16.msra.mxu0 %v7433
    %8334 = vmatprep.subr.bf16.mxu0 %v7430
    %8335 = vmatpush1.bf16.msra.mxu0 %v7429
    %8336 = vmatprep.subr.bf16.mxu0 %v7426
    %8337 = vmatpush1.bf16.msra.mxu0 %v7425
    %8338 = vmatprep.subr.bf16.mxu0 %v7422
    %8339 = vmatpush1.bf16.msra.mxu0 %v7421
    %8340 = vmatprep.subr.bf16.mxu0 %v7418
    %8341 = vmatpush1.bf16.msra.mxu0 %v7417
    %8342 = vmatprep.subr.bf16.mxu0 %v7478
    %8343 = vmatpush2.bf16.msra.mxu0 %v7477
    %8344 = vmatprep.subr.bf16.mxu0 %v7474
    %8345 = vmatpush2.bf16.msra.mxu0 %v7473
    %8346 = vmatprep.subr.bf16.mxu0 %v7470
    %8347 = vmatpush2.bf16.msra.mxu0 %v7469
    %8348 = vmatprep.subr.bf16.mxu0 %v7466
    %8349 = vmatpush2.bf16.msra.mxu0 %v7465
    %8350 = vmatprep.subr.bf16.mxu0 %v7462
    %8351 = vmatpush2.bf16.msra.mxu0 %v7461
    %8352 = vmatprep.subr.bf16.mxu0 %v7458
    %8353 = vmatpush2.bf16.msra.mxu0 %v7457
    %8354 = vmatprep.subr.bf16.mxu0 %v7454
    %8355 = vmatpush2.bf16.msra.mxu0 %v7453
    %8356 = vmatprep.subr.bf16.mxu0 %v7450
    %8357 = vmatpush2.bf16.msra.mxu0 %v7449
    %8358 = vmatprep.mubr.bf16.mxu0 %v5022
    %8359 = vmatmul.mubr.bf16.gmra.mxu0 %v5021
    %v8360 = vpop.f32.mrf.mxu0
    %v8361 = vadd.f32 %v8320, %v8360
    %v8362 = vpop.f32.mrf.mxu0
    %v8363 = vadd.f32 %v8322, %v8362
    %v8364 = vpop.f32.mrf.mxu0
    %v8365 = vpop.f32.mrf.mxu0
    %8366 = vdwg.mxu0
    %8367 = vmatprep.subr.bf16.mxu0 %v7510
    %8368 = vmatpush1.bf16.msra.mxu0 %v7509
    %8369 = vmatprep.subr.bf16.mxu0 %v7506
    %8370 = vmatpush1.bf16.msra.mxu0 %v7505
    %8371 = vmatprep.subr.bf16.mxu0 %v7502
    %8372 = vmatpush1.bf16.msra.mxu0 %v7501
    %8373 = vmatprep.subr.bf16.mxu0 %v7498
    %8374 = vmatpush1.bf16.msra.mxu0 %v7497
    %8375 = vmatprep.subr.bf16.mxu0 %v7494
    %8376 = vmatpush1.bf16.msra.mxu0 %v7493
    %8377 = vmatprep.subr.bf16.mxu0 %v7490
    %8378 = vmatpush1.bf16.msra.mxu0 %v7489
    %8379 = vmatprep.subr.bf16.mxu0 %v7486
    %8380 = vmatpush1.bf16.msra.mxu0 %v7485
    %8381 = vmatprep.subr.bf16.mxu0 %v7482
    %8382 = vmatpush1.bf16.msra.mxu0 %v7481
    %8383 = vmatprep.subr.bf16.mxu0 %v7542
    %8384 = vmatpush2.bf16.msra.mxu0 %v7541
    %8385 = vmatprep.subr.bf16.mxu0 %v7538
    %8386 = vmatpush2.bf16.msra.mxu0 %v7537
    %8387 = vmatprep.subr.bf16.mxu0 %v7534
    %8388 = vmatpush2.bf16.msra.mxu0 %v7533
    %8389 = vmatprep.subr.bf16.mxu0 %v7530
    %8390 = vmatpush2.bf16.msra.mxu0 %v7529
    %8391 = vmatprep.subr.bf16.mxu0 %v7526
    %8392 = vmatpush2.bf16.msra.mxu0 %v7525
    %8393 = vmatprep.subr.bf16.mxu0 %v7522
    %8394 = vmatpush2.bf16.msra.mxu0 %v7521
    %8395 = vmatprep.subr.bf16.mxu0 %v7518
    %8396 = vmatpush2.bf16.msra.mxu0 %v7517
    %8397 = vmatprep.subr.bf16.mxu0 %v7514
    %8398 = vmatpush2.bf16.msra.mxu0 %v7513
    %8399 = vmatprep.mubr.bf16.mxu0 %v5024
    %8400 = vmatmul.mubr.bf16.gmra.mxu0 %v5023
    %v8401 = vpop.f32.mrf.mxu0
    %v8402 = vadd.f32 %v8361, %v8401
    %v8403 = vpop.f32.mrf.mxu0
    %v8404 = vadd.f32 %v8363, %v8403
    %v8405 = vpop.f32.mrf.mxu0
    %v8406 = vpop.f32.mrf.mxu0
    %8407 = vdwg.mxu0
    %8408 = vmatprep.subr.bf16.mxu0 %v7574
    %8409 = vmatpush1.bf16.msra.mxu0 %v7573
    %8410 = vmatprep.subr.bf16.mxu0 %v7570
    %8411 = vmatpush1.bf16.msra.mxu0 %v7569
    %8412 = vmatprep.subr.bf16.mxu0 %v7566
    %8413 = vmatpush1.bf16.msra.mxu0 %v7565
    %8414 = vmatprep.subr.bf16.mxu0 %v7562
    %8415 = vmatpush1.bf16.msra.mxu0 %v7561
    %8416 = vmatprep.subr.bf16.mxu0 %v7558
    %8417 = vmatpush1.bf16.msra.mxu0 %v7557
    %8418 = vmatprep.subr.bf16.mxu0 %v7554
    %8419 = vmatpush1.bf16.msra.mxu0 %v7553
    %8420 = vmatprep.subr.bf16.mxu0 %v7550
    %8421 = vmatpush1.bf16.msra.mxu0 %v7549
    %8422 = vmatprep.subr.bf16.mxu0 %v7546
    %8423 = vmatpush1.bf16.msra.mxu0 %v7545
    %8424 = vmatprep.subr.bf16.mxu0 %v7606
    %8425 = vmatpush2.bf16.msra.mxu0 %v7605
    %8426 = vmatprep.subr.bf16.mxu0 %v7602
    %8427 = vmatpush2.bf16.msra.mxu0 %v7601
    %8428 = vmatprep.subr.bf16.mxu0 %v7598
    %8429 = vmatpush2.bf16.msra.mxu0 %v7597
    %8430 = vmatprep.subr.bf16.mxu0 %v7594
    %8431 = vmatpush2.bf16.msra.mxu0 %v7593
    %8432 = vmatprep.subr.bf16.mxu0 %v7590
    %8433 = vmatpush2.bf16.msra.mxu0 %v7589
    %8434 = vmatprep.subr.bf16.mxu0 %v7586
    %8435 = vmatpush2.bf16.msra.mxu0 %v7585
    %8436 = vmatprep.subr.bf16.mxu0 %v7582
    %8437 = vmatpush2.bf16.msra.mxu0 %v7581
    %8438 = vmatprep.subr.bf16.mxu0 %v7578
    %8439 = vmatpush2.bf16.msra.mxu0 %v7577
    %8440 = vmatprep.mubr.bf16.mxu0 %v5026
    %8441 = vmatmul.mubr.bf16.gmra.mxu0 %v5025
    %v8442 = vpop.f32.mrf.mxu0
    %v8443 = vadd.f32 %v8402, %v8442
    %v8444 = vpop.f32.mrf.mxu0
    %v8445 = vadd.f32 %v8404, %v8444
    %v8446 = vpop.f32.mrf.mxu0
    %v8447 = vpop.f32.mrf.mxu0
    %8448 = vdwg.mxu0
    %8449 = vmatprep.subr.bf16.mxu0 %v7128
    %8450 = vmatpush1.bf16.msra.mxu0 %v7127
    %8451 = vmatprep.subr.bf16.mxu0 %v7124
    %8452 = vmatpush1.bf16.msra.mxu0 %v7123
    %8453 = vmatprep.subr.bf16.mxu0 %v7120
    %8454 = vmatpush1.bf16.msra.mxu0 %v7119
    %8455 = vmatprep.subr.bf16.mxu0 %v7116
    %8456 = vmatpush1.bf16.msra.mxu0 %v7115
    %8457 = vmatprep.subr.bf16.mxu0 %v7112
    %8458 = vmatpush1.bf16.msra.mxu0 %v7111
    %8459 = vmatprep.subr.bf16.mxu0 %v7108
    %8460 = vmatpush1.bf16.msra.mxu0 %v7107
    %8461 = vmatprep.subr.bf16.mxu0 %v7104
    %8462 = vmatpush1.bf16.msra.mxu0 %v7103
    %8463 = vmatprep.subr.bf16.mxu0 %v7100
    %8464 = vmatpush1.bf16.msra.mxu0 %v7099
    %8465 = vmatprep.subr.bf16.mxu0 %v7160
    %8466 = vmatpush2.bf16.msra.mxu0 %v7159
    %8467 = vmatprep.subr.bf16.mxu0 %v7156
    %8468 = vmatpush2.bf16.msra.mxu0 %v7155
    %8469 = vmatprep.subr.bf16.mxu0 %v7152
    %8470 = vmatpush2.bf16.msra.mxu0 %v7151
    %8471 = vmatprep.subr.bf16.mxu0 %v7148
    %8472 = vmatpush2.bf16.msra.mxu0 %v7147
    %8473 = vmatprep.subr.bf16.mxu0 %v7144
    %8474 = vmatpush2.bf16.msra.mxu0 %v7143
    %8475 = vmatprep.subr.bf16.mxu0 %v7140
    %8476 = vmatpush2.bf16.msra.mxu0 %v7139
    %8477 = vmatprep.subr.bf16.mxu0 %v7136
    %8478 = vmatpush2.bf16.msra.mxu0 %v7135
    %8479 = vmatprep.subr.bf16.mxu0 %v7132
    %8480 = vmatpush2.bf16.msra.mxu0 %v7131
    %8481 = vmatprep.mubr.bf16.mxu0 %v5012
    %8482 = vmatmul.mubr.bf16.gmra.mxu0 %v5011
    %v8483 = vpop.f32.mrf.mxu0
    %v8484 = vadd.f32 %v5552, %v8483
    %v8485 = vpop.f32.mrf.mxu0
    %v8486 = vadd.f32 %v5556, %v8485
    %v8487 = vpop.f32.mrf.mxu0
    %v8488 = vpop.f32.mrf.mxu0
    %8489 = vdwg.mxu0
    %8490 = vmatprep.subr.bf16.mxu0 %v7192
    %8491 = vmatpush1.bf16.msra.mxu0 %v7191
    %8492 = vmatprep.subr.bf16.mxu0 %v7188
    %8493 = vmatpush1.bf16.msra.mxu0 %v7187
    %8494 = vmatprep.subr.bf16.mxu0 %v7184
    %8495 = vmatpush1.bf16.msra.mxu0 %v7183
    %8496 = vmatprep.subr.bf16.mxu0 %v7180
    %8497 = vmatpush1.bf16.msra.mxu0 %v7179
    %8498 = vmatprep.subr.bf16.mxu0 %v7176
    %8499 = vmatpush1.bf16.msra.mxu0 %v7175
    %8500 = vmatprep.subr.bf16.mxu0 %v7172
    %8501 = vmatpush1.bf16.msra.mxu0 %v7171
    %8502 = vmatprep.subr.bf16.mxu0 %v7168
    %8503 = vmatpush1.bf16.msra.mxu0 %v7167
    %8504 = vmatprep.subr.bf16.mxu0 %v7164
    %8505 = vmatpush1.bf16.msra.mxu0 %v7163
    %8506 = vmatprep.subr.bf16.mxu0 %v7224
    %8507 = vmatpush2.bf16.msra.mxu0 %v7223
    %8508 = vmatprep.subr.bf16.mxu0 %v7220
    %8509 = vmatpush2.bf16.msra.mxu0 %v7219
    %8510 = vmatprep.subr.bf16.mxu0 %v7216
    %8511 = vmatpush2.bf16.msra.mxu0 %v7215
    %8512 = vmatprep.subr.bf16.mxu0 %v7212
    %8513 = vmatpush2.bf16.msra.mxu0 %v7211
    %8514 = vmatprep.subr.bf16.mxu0 %v7208
    %8515 = vmatpush2.bf16.msra.mxu0 %v7207
    %8516 = vmatprep.subr.bf16.mxu0 %v7204
    %8517 = vmatpush2.bf16.msra.mxu0 %v7203
    %8518 = vmatprep.subr.bf16.mxu0 %v7200
    %8519 = vmatpush2.bf16.msra.mxu0 %v7199
    %8520 = vmatprep.subr.bf16.mxu0 %v7196
    %8521 = vmatpush2.bf16.msra.mxu0 %v7195
    %8522 = vmatprep.mubr.bf16.mxu0 %v5014
    %8523 = vmatmul.mubr.bf16.gmra.mxu0 %v5013
    %v8524 = vpop.f32.mrf.mxu0
    %v8525 = vadd.f32 %v8484, %v8524
    %v8526 = vpop.f32.mrf.mxu0
    %v8527 = vadd.f32 %v8486, %v8526
    %v8528 = vpop.f32.mrf.mxu0
    %v8529 = vpop.f32.mrf.mxu0
    %8530 = vdwg.mxu0
    %8531 = vmatprep.subr.bf16.mxu0 %v7256
    %8532 = vmatpush1.bf16.msra.mxu0 %v7255
    %8533 = vmatprep.subr.bf16.mxu0 %v7252
    %8534 = vmatpush1.bf16.msra.mxu0 %v7251
    %8535 = vmatprep.subr.bf16.mxu0 %v7248
    %8536 = vmatpush1.bf16.msra.mxu0 %v7247
    %8537 = vmatprep.subr.bf16.mxu0 %v7244
    %8538 = vmatpush1.bf16.msra.mxu0 %v7243
    %8539 = vmatprep.subr.bf16.mxu0 %v7240
    %8540 = vmatpush1.bf16.msra.mxu0 %v7239
    %8541 = vmatprep.subr.bf16.mxu0 %v7236
    %8542 = vmatpush1.bf16.msra.mxu0 %v7235
    %8543 = vmatprep.subr.bf16.mxu0 %v7232
    %8544 = vmatpush1.bf16.msra.mxu0 %v7231
    %8545 = vmatprep.subr.bf16.mxu0 %v7228
    %8546 = vmatpush1.bf16.msra.mxu0 %v7227
    %8547 = vmatprep.subr.bf16.mxu0 %v7288
    %8548 = vmatpush2.bf16.msra.mxu0 %v7287
    %8549 = vmatprep.subr.bf16.mxu0 %v7284
    %8550 = vmatpush2.bf16.msra.mxu0 %v7283
    %8551 = vmatprep.subr.bf16.mxu0 %v7280
    %8552 = vmatpush2.bf16.msra.mxu0 %v7279
    %8553 = vmatprep.subr.bf16.mxu0 %v7276
    %8554 = vmatpush2.bf16.msra.mxu0 %v7275
    %8555 = vmatprep.subr.bf16.mxu0 %v7272
    %8556 = vmatpush2.bf16.msra.mxu0 %v7271
    %8557 = vmatprep.subr.bf16.mxu0 %v7268
    %8558 = vmatpush2.bf16.msra.mxu0 %v7267
    %8559 = vmatprep.subr.bf16.mxu0 %v7264
    %8560 = vmatpush2.bf16.msra.mxu0 %v7263
    %8561 = vmatprep.subr.bf16.mxu0 %v7260
    %8562 = vmatpush2.bf16.msra.mxu0 %v7259
    %8563 = vmatprep.mubr.bf16.mxu0 %v5016
    %8564 = vmatmul.mubr.bf16.gmra.mxu0 %v5015
    %v8565 = vpop.f32.mrf.mxu0
    %v8566 = vadd.f32 %v8525, %v8565
    %v8567 = vpop.f32.mrf.mxu0
    %v8568 = vadd.f32 %v8527, %v8567
    %v8569 = vpop.f32.mrf.mxu0
    %v8570 = vpop.f32.mrf.mxu0
    %8571 = vdwg.mxu0
    %8572 = vmatprep.subr.bf16.mxu0 %v7320
    %8573 = vmatpush1.bf16.msra.mxu0 %v7319
    %8574 = vmatprep.subr.bf16.mxu0 %v7316
    %8575 = vmatpush1.bf16.msra.mxu0 %v7315
    %8576 = vmatprep.subr.bf16.mxu0 %v7312
    %8577 = vmatpush1.bf16.msra.mxu0 %v7311
    %8578 = vmatprep.subr.bf16.mxu0 %v7308
    %8579 = vmatpush1.bf16.msra.mxu0 %v7307
    %8580 = vmatprep.subr.bf16.mxu0 %v7304
    %8581 = vmatpush1.bf16.msra.mxu0 %v7303
    %8582 = vmatprep.subr.bf16.mxu0 %v7300
    %8583 = vmatpush1.bf16.msra.mxu0 %v7299
    %8584 = vmatprep.subr.bf16.mxu0 %v7296
    %8585 = vmatpush1.bf16.msra.mxu0 %v7295
    %8586 = vmatprep.subr.bf16.mxu0 %v7292
    %8587 = vmatpush1.bf16.msra.mxu0 %v7291
    %8588 = vmatprep.subr.bf16.mxu0 %v7352
    %8589 = vmatpush2.bf16.msra.mxu0 %v7351
    %8590 = vmatprep.subr.bf16.mxu0 %v7348
    %8591 = vmatpush2.bf16.msra.mxu0 %v7347
    %8592 = vmatprep.subr.bf16.mxu0 %v7344
    %8593 = vmatpush2.bf16.msra.mxu0 %v7343
    %8594 = vmatprep.subr.bf16.mxu0 %v7340
    %8595 = vmatpush2.bf16.msra.mxu0 %v7339
    %8596 = vmatprep.subr.bf16.mxu0 %v7336
    %8597 = vmatpush2.bf16.msra.mxu0 %v7335
    %8598 = vmatprep.subr.bf16.mxu0 %v7332
    %8599 = vmatpush2.bf16.msra.mxu0 %v7331
    %8600 = vmatprep.subr.bf16.mxu0 %v7328
    %8601 = vmatpush2.bf16.msra.mxu0 %v7327
    %8602 = vmatprep.subr.bf16.mxu0 %v7324
    %8603 = vmatpush2.bf16.msra.mxu0 %v7323
    %8604 = vmatprep.mubr.bf16.mxu0 %v5018
    %8605 = vmatmul.mubr.bf16.gmra.mxu0 %v5017
    %v8606 = vpop.f32.mrf.mxu0
    %v8607 = vadd.f32 %v8566, %v8606
    %v8608 = vpop.f32.mrf.mxu0
    %v8609 = vadd.f32 %v8568, %v8608
    %v8610 = vpop.f32.mrf.mxu0
    %v8611 = vpop.f32.mrf.mxu0
    %8612 = vdwg.mxu0
    %8613 = vmatprep.subr.bf16.mxu0 %v7384
    %8614 = vmatpush1.bf16.msra.mxu0 %v7383
    %8615 = vmatprep.subr.bf16.mxu0 %v7380
    %8616 = vmatpush1.bf16.msra.mxu0 %v7379
    %8617 = vmatprep.subr.bf16.mxu0 %v7376
    %8618 = vmatpush1.bf16.msra.mxu0 %v7375
    %8619 = vmatprep.subr.bf16.mxu0 %v7372
    %8620 = vmatpush1.bf16.msra.mxu0 %v7371
    %8621 = vmatprep.subr.bf16.mxu0 %v7368
    %8622 = vmatpush1.bf16.msra.mxu0 %v7367
    %8623 = vmatprep.subr.bf16.mxu0 %v7364
    %8624 = vmatpush1.bf16.msra.mxu0 %v7363
    %8625 = vmatprep.subr.bf16.mxu0 %v7360
    %8626 = vmatpush1.bf16.msra.mxu0 %v7359
    %8627 = vmatprep.subr.bf16.mxu0 %v7356
    %8628 = vmatpush1.bf16.msra.mxu0 %v7355
    %8629 = vmatprep.subr.bf16.mxu0 %v7416
    %8630 = vmatpush2.bf16.msra.mxu0 %v7415
    %8631 = vmatprep.subr.bf16.mxu0 %v7412
    %8632 = vmatpush2.bf16.msra.mxu0 %v7411
    %8633 = vmatprep.subr.bf16.mxu0 %v7408
    %8634 = vmatpush2.bf16.msra.mxu0 %v7407
    %8635 = vmatprep.subr.bf16.mxu0 %v7404
    %8636 = vmatpush2.bf16.msra.mxu0 %v7403
    %8637 = vmatprep.subr.bf16.mxu0 %v7400
    %8638 = vmatpush2.bf16.msra.mxu0 %v7399
    %8639 = vmatprep.subr.bf16.mxu0 %v7396
    %8640 = vmatpush2.bf16.msra.mxu0 %v7395
    %8641 = vmatprep.subr.bf16.mxu0 %v7392
    %8642 = vmatpush2.bf16.msra.mxu0 %v7391
    %8643 = vmatprep.subr.bf16.mxu0 %v7388
    %8644 = vmatpush2.bf16.msra.mxu0 %v7387
    %8645 = vmatprep.mubr.bf16.mxu0 %v5020
    %8646 = vmatmul.mubr.bf16.gmra.mxu0 %v5019
    %v8647 = vpop.f32.mrf.mxu0
    %v8648 = vadd.f32 %v8607, %v8647
    %v8649 = vpop.f32.mrf.mxu0
    %v8650 = vadd.f32 %v8609, %v8649
    %v8651 = vpop.f32.mrf.mxu0
    %v8652 = vpop.f32.mrf.mxu0
    %8653 = vdwg.mxu0
    %8654 = vmatprep.subr.bf16.mxu0 %v7448
    %8655 = vmatpush1.bf16.msra.mxu0 %v7447
    %8656 = vmatprep.subr.bf16.mxu0 %v7444
    %8657 = vmatpush1.bf16.msra.mxu0 %v7443
    %8658 = vmatprep.subr.bf16.mxu0 %v7440
    %8659 = vmatpush1.bf16.msra.mxu0 %v7439
    %8660 = vmatprep.subr.bf16.mxu0 %v7436
    %8661 = vmatpush1.bf16.msra.mxu0 %v7435
    %8662 = vmatprep.subr.bf16.mxu0 %v7432
    %8663 = vmatpush1.bf16.msra.mxu0 %v7431
    %8664 = vmatprep.subr.bf16.mxu0 %v7428
    %8665 = vmatpush1.bf16.msra.mxu0 %v7427
    %8666 = vmatprep.subr.bf16.mxu0 %v7424
    %8667 = vmatpush1.bf16.msra.mxu0 %v7423
    %8668 = vmatprep.subr.bf16.mxu0 %v7420
    %8669 = vmatpush1.bf16.msra.mxu0 %v7419
    %8670 = vmatprep.subr.bf16.mxu0 %v7480
    %8671 = vmatpush2.bf16.msra.mxu0 %v7479
    %8672 = vmatprep.subr.bf16.mxu0 %v7476
    %8673 = vmatpush2.bf16.msra.mxu0 %v7475
    %8674 = vmatprep.subr.bf16.mxu0 %v7472
    %8675 = vmatpush2.bf16.msra.mxu0 %v7471
    %8676 = vmatprep.subr.bf16.mxu0 %v7468
    %8677 = vmatpush2.bf16.msra.mxu0 %v7467
    %8678 = vmatprep.subr.bf16.mxu0 %v7464
    %8679 = vmatpush2.bf16.msra.mxu0 %v7463
    %8680 = vmatprep.subr.bf16.mxu0 %v7460
    %8681 = vmatpush2.bf16.msra.mxu0 %v7459
    %8682 = vmatprep.subr.bf16.mxu0 %v7456
    %8683 = vmatpush2.bf16.msra.mxu0 %v7455
    %8684 = vmatprep.subr.bf16.mxu0 %v7452
    %8685 = vmatpush2.bf16.msra.mxu0 %v7451
    %8686 = vmatprep.mubr.bf16.mxu0 %v5022
    %8687 = vmatmul.mubr.bf16.gmra.mxu0 %v5021
    %v8688 = vpop.f32.mrf.mxu0
    %v8689 = vadd.f32 %v8648, %v8688
    %v8690 = vpop.f32.mrf.mxu0
    %v8691 = vadd.f32 %v8650, %v8690
    %v8692 = vpop.f32.mrf.mxu0
    %v8693 = vpop.f32.mrf.mxu0
    %8694 = vdwg.mxu0
    %8695 = vmatprep.subr.bf16.mxu0 %v7512
    %8696 = vmatpush1.bf16.msra.mxu0 %v7511
    %8697 = vmatprep.subr.bf16.mxu0 %v7508
    %8698 = vmatpush1.bf16.msra.mxu0 %v7507
    %8699 = vmatprep.subr.bf16.mxu0 %v7504
    %8700 = vmatpush1.bf16.msra.mxu0 %v7503
    %8701 = vmatprep.subr.bf16.mxu0 %v7500
    %8702 = vmatpush1.bf16.msra.mxu0 %v7499
    %8703 = vmatprep.subr.bf16.mxu0 %v7496
    %8704 = vmatpush1.bf16.msra.mxu0 %v7495
    %8705 = vmatprep.subr.bf16.mxu0 %v7492
    %8706 = vmatpush1.bf16.msra.mxu0 %v7491
    %8707 = vmatprep.subr.bf16.mxu0 %v7488
    %8708 = vmatpush1.bf16.msra.mxu0 %v7487
    %8709 = vmatprep.subr.bf16.mxu0 %v7484
    %8710 = vmatpush1.bf16.msra.mxu0 %v7483
    %8711 = vmatprep.subr.bf16.mxu0 %v7544
    %8712 = vmatpush2.bf16.msra.mxu0 %v7543
    %8713 = vmatprep.subr.bf16.mxu0 %v7540
    %8714 = vmatpush2.bf16.msra.mxu0 %v7539
    %8715 = vmatprep.subr.bf16.mxu0 %v7536
    %8716 = vmatpush2.bf16.msra.mxu0 %v7535
    %8717 = vmatprep.subr.bf16.mxu0 %v7532
    %8718 = vmatpush2.bf16.msra.mxu0 %v7531
    %8719 = vmatprep.subr.bf16.mxu0 %v7528
    %8720 = vmatpush2.bf16.msra.mxu0 %v7527
    %8721 = vmatprep.subr.bf16.mxu0 %v7524
    %8722 = vmatpush2.bf16.msra.mxu0 %v7523
    %8723 = vmatprep.subr.bf16.mxu0 %v7520
    %8724 = vmatpush2.bf16.msra.mxu0 %v7519
    %8725 = vmatprep.subr.bf16.mxu0 %v7516
    %8726 = vmatpush2.bf16.msra.mxu0 %v7515
    %8727 = vmatprep.mubr.bf16.mxu0 %v5024
    %8728 = vmatmul.mubr.bf16.gmra.mxu0 %v5023
    %v8729 = vpop.f32.mrf.mxu0
    %v8730 = vadd.f32 %v8689, %v8729
    %v8731 = vpop.f32.mrf.mxu0
    %v8732 = vadd.f32 %v8691, %v8731
    %v8733 = vpop.f32.mrf.mxu0
    %v8734 = vpop.f32.mrf.mxu0
    %8735 = vdwg.mxu0
    %8736 = vmatprep.subr.bf16.mxu0 %v7576
    %8737 = vmatpush1.bf16.msra.mxu0 %v7575
    %8738 = vmatprep.subr.bf16.mxu0 %v7572
    %8739 = vmatpush1.bf16.msra.mxu0 %v7571
    %8740 = vmatprep.subr.bf16.mxu0 %v7568
    %8741 = vmatpush1.bf16.msra.mxu0 %v7567
    %8742 = vmatprep.subr.bf16.mxu0 %v7564
    %8743 = vmatpush1.bf16.msra.mxu0 %v7563
    %8744 = vmatprep.subr.bf16.mxu0 %v7560
    %8745 = vmatpush1.bf16.msra.mxu0 %v7559
    %8746 = vmatprep.subr.bf16.mxu0 %v7556
    %8747 = vmatpush1.bf16.msra.mxu0 %v7555
    %8748 = vmatprep.subr.bf16.mxu0 %v7552
    %8749 = vmatpush1.bf16.msra.mxu0 %v7551
    %8750 = vmatprep.subr.bf16.mxu0 %v7548
    %8751 = vmatpush1.bf16.msra.mxu0 %v7547
    %8752 = vmatprep.subr.bf16.mxu0 %v7608
    %8753 = vmatpush2.bf16.msra.mxu0 %v7607
    %8754 = vmatprep.subr.bf16.mxu0 %v7604
    %8755 = vmatpush2.bf16.msra.mxu0 %v7603
    %8756 = vmatprep.subr.bf16.mxu0 %v7600
    %8757 = vmatpush2.bf16.msra.mxu0 %v7599
    %8758 = vmatprep.subr.bf16.mxu0 %v7596
    %8759 = vmatpush2.bf16.msra.mxu0 %v7595
    %8760 = vmatprep.subr.bf16.mxu0 %v7592
    %8761 = vmatpush2.bf16.msra.mxu0 %v7591
    %8762 = vmatprep.subr.bf16.mxu0 %v7588
    %8763 = vmatpush2.bf16.msra.mxu0 %v7587
    %8764 = vmatprep.subr.bf16.mxu0 %v7584
    %8765 = vmatpush2.bf16.msra.mxu0 %v7583
    %8766 = vmatprep.subr.bf16.mxu0 %v7580
    %8767 = vmatpush2.bf16.msra.mxu0 %v7579
    %8768 = vmatprep.mubr.bf16.mxu0 %v5026
    %8769 = vmatmul.mubr.bf16.gmra.mxu0 %v5025
    %v8770 = vpop.f32.mrf.mxu0
    %v8771 = vadd.f32 %v8730, %v8770
    %v8772 = vpop.f32.mrf.mxu0
    %v8773 = vadd.f32 %v8732, %v8772
    %v8774 = vpop.f32.mrf.mxu0
    %v8775 = vpop.f32.mrf.mxu0
    %8776 = vdwg.mxu0
    %v8777 = vadd.f32 %v1111, %v8443
    %v8778 = vadd.f32 %v1112, %v8445
    %v8779 = vadd.f32 %v1113, %v8771
    %v8780 = vadd.f32 %v1114, %v8773
    %v8781 = vld [vmem:[#allocation14] sm:$0xf]
    %v8783 = vlaneseq
    %v8784 = vshrl.u32 %v8783, 7
    %v8785 = vsub.s32 0, %v8784
    %v8786 = vrot.slane %v8781, %v8785
    %v8787 = vlaneseq
    %v8788 = vshrl.u32 %v8787, 7
    %v8789 = vsub.s32 1, %v8788
    %v8790 = vrot.slane %v8781, %v8789
    %v8791 = vlaneseq
    %v8792 = vshrl.u32 %v8791, 7
    %v8793 = vsub.s32 2, %v8792
    %v8794 = vrot.slane %v8781, %v8793
    %v8795 = vlaneseq
    %v8796 = vshrl.u32 %v8795, 7
    %v8797 = vsub.s32 3, %v8796
    %v8798 = vrot.slane %v8781, %v8797
    %v8803 = vmul.f32 %v8777, %v8786
    %v8804 = vmul.f32 %v8778, %v8790
    %v8805 = vmul.f32 %v8779, %v8794
    %v8806 = vmul.f32 %v8780, %v8798
    %v8807 = vadd.f32 %v8803, %v8804
    %v8808 = vadd.f32 %v8807, %v8805
    %v8809 = vadd.f32 %v8808, %v8806
    %8810 = vadd.xlane.f32.xlu0 %v8809
    %v8811 = vpop.xlane.xlu0 %8810
    %v8812 = vld [vmem:[#allocation2] sm:$0x1]
    %v8814 = vlaneseq
    %v8815 = vshrl.u32 %v8814, 7
    %v8816 = vsub.s32 0, %v8815
    %v8817 = vrot.slane %v8812, %v8816
    %v8819 = vadd.f32 %v8811, %v8817
    %vm8820 = vcmask 7168
    %8821 = vst.msk [vmem:[%s9] sm:$0xff] %vm8820, %v8819
    // Predicated region
    $region70: #{tpu_custom_call.1} parent=1 // pred_check
      _
    $region71: #{tpu_custom_call.1} parent=1 // pred_check_branch
      %8823 = sbr.rel (0) target = $region73
    $region72: #{tpu_custom_call.1} parent=1 // pred_region
      _
    $region73: #{tpu_custom_call.1} parent=1 // pred_fallthru
      _
    // Predicated region
    $region74: #{tpu_custom_call.1} parent=1 // pred_check
      _
    $region75: #{tpu_custom_call.1} parent=1 // pred_check_branch
      %8825 = sbr.rel (0) target = $region77
    $region76: #{tpu_custom_call.1} parent=1 // pred_region
      _
    $region77: #{tpu_custom_call.1} parent=1 // pred_fallthru
      _
    %8826 = vsyncpa [#allocation4], 1
    %8827 = vsyncpa [#allocation6], 1
    %8828 = vsyncpa [#allocation9], 1
    %8829 = vsyncpa [#allocation12], 1
    %8830 = vsyncpa [#allocation15], 1

</llo_original>
